<compile_context>
chip_gen: v7x
topology: tpu7x:2x2x1
jax: 0.10.0
libtpu: 0.0.40
codegen_flags: <defaults>
</compile_context>

<pallas_src>
import functools
import math

import jax
import jax.numpy as jnp
from jax import lax
from jax.experimental import pallas as pl
from jax.experimental.pallas import tpu as pltpu


_STORAGE_DTYPES = {"bfloat16": jnp.bfloat16, "float32": jnp.float32}


def _storage_name(dt):
    if dt in (jnp.bfloat16, "bfloat16"):
        return "bfloat16"
    if dt in (jnp.float32, "float32", float):
        return "float32"
    raise ValueError(f"unsupported storage dtype: {dt}")


def _round_up(x, m):
    return -(-x // m) * m


def _const_index_map(ndim):
    return lambda n: (0,) * ndim


# -----------------------------------------------------------------------------
# One-time device probes (cached).
# -----------------------------------------------------------------------------
_ROLL_MODE_CACHE = None
_BUF1_CACHE = None


def _probe_roll_mode():
    """Measure pltpu.roll's shift direction; fall back to jnp.roll if needed."""
    global _ROLL_MODE_CACHE
    if _ROLL_MODE_CACHE is not None:
        return _ROLL_MODE_CACHE

    def _probe_kernel(o_ref):
        x = lax.broadcasted_iota(jnp.int32, (256, 128), 0)
        o_ref[...] = pltpu.roll(x, 1, 0)

    try:
        out = pl.pallas_call(
            _probe_kernel,
            out_shape=jax.ShapeDtypeStruct((256, 128), jnp.int32))()
        out = jax.block_until_ready(out)
        v10, v00 = int(out[1, 0]), int(out[0, 0])
        if v10 == 0 and v00 == 255:
            _ROLL_MODE_CACHE = "hw"        # pltpu.roll matches jnp.roll
        elif v10 == 2 and v00 == 1:
            _ROLL_MODE_CACHE = "hw_neg"    # pltpu.roll shifts the other way
        else:
            _ROLL_MODE_CACHE = "jnp"       # unexpected -> safe fallback
    except Exception:
        _ROLL_MODE_CACHE = "jnp"           # rotate not lowerable -> fallback
    return _ROLL_MODE_CACHE


def _probe_single_buffer():
    """Does this jax build accept pl.Buffered(1) (single-buffered operands)?"""
    global _BUF1_CACHE
    if _BUF1_CACHE is not None:
        return _BUF1_CACHE

    def _k(x_ref, o_ref):
        o_ref[...] = x_ref[...] * 2.0

    try:
        spec = pl.BlockSpec((8, 128), lambda i: (0, 0),
                            pipeline_mode=pl.Buffered(1))
        out = pl.pallas_call(
            _k,
            out_shape=jax.ShapeDtypeStruct((8, 128), jnp.float32),
            grid=(2,),
            in_specs=[spec],
            out_specs=pl.BlockSpec((8, 128), lambda i: (0, 0)),
        )(jnp.ones((8, 128), jnp.float32))
        jax.block_until_ready(out)
        _BUF1_CACHE = True
    except Exception:
        _BUF1_CACHE = False
    return _BUF1_CACHE


def _shift_rows(x, delta, roll_mode):
    """Return y with y[r] = x[(r - delta) mod n] (content moves by +delta rows)."""
    n = x.shape[0]
    if roll_mode == "hw":
        return pltpu.roll(x, delta % n, 0)
    if roll_mode == "hw_neg":
        return pltpu.roll(x, (-delta) % n, 0)
    return jnp.roll(x, delta, axis=0)


# -----------------------------------------------------------------------------
# Fused conv-stack kernel.
# -----------------------------------------------------------------------------
def _make_fused_kernel(H, W, dims, acts, roll_mode, storage_dtype):
    n_conv = len(dims) - 1
    HW = H * W
    HP = (H + 2) * W          # H-padded, flattened spatial extent
    cin0 = dims[0]

    def kernel(*refs):
        x_ref = refs[0]                              # (1, cin0, HW)
        w_refs = refs[1:1 + 2 * n_conv:2]            # (3, 3*cin, cout) each
        b_refs = refs[2:2 + 2 * n_conv:2]            # (1, cout) f32 each
        o_ref = refs[1 + 2 * n_conv]                 # (1, cout_last, HW)
        col = refs[2 + 2 * n_conv]                   # (HP, 3*c_col) scratch

        # Column index of every padded row; kills the wrap-around of the +-1
        # W-shifts at the image border (and across the halo/interior seam).
        colidx = lax.broadcasted_iota(jnp.int32, (HP, 1), 0) % W
        not_first = colidx != 0
        not_last = colidx != (W - 1)

        def left_of(v):      # value at (row, w-1); zero where w == 0
            return jnp.where(not_first, _shift_rows(v, 1, roll_mode), 0.0)

        def right_of(v):     # value at (row, w+1); zero where w == W-1
            return jnp.where(not_last, _shift_rows(v, -1, roll_mode), 0.0)

        # Zero the H-halo rows of every centre block.  The left/right shifted
        # blocks are rebuilt over the FULL padded height each layer and their
        # halo rows come out zero via the border masks, so only the centre
        # blocks (whose interiors are written by the previous layer) need it.
        for c in sorted(set(dims[:-1])):
            zero = jnp.zeros((W, c), storage_dtype)
            col[0:W, c:2 * c] = zero
            col[(H + 1) * W:HP, c:2 * c] = zero

        # Load this batch element into layer 0's centre block (interior rows).
        xin = jnp.transpose(x_ref[0].astype(jnp.float32), (1, 0))  # (HW, cin0)
        col[W:(H + 1) * W, cin0:2 * cin0] = xin.astype(storage_dtype)

        for j in range(n_conv):
            cin, cout = dims[j], dims[j + 1]
            w_ref, b_ref = w_refs[j], b_refs[j]

            # Hoisted +-1 column shifts: 2 rolls + 2 selects per layer, done
            # in f32 (v5e-safe), written next to the centre block so every ky
            # tap below is one contiguous (HW, 3*cin) slice.
            cen = col[0:HP, cin:2 * cin].astype(jnp.float32)
            col[0:HP, 0:cin] = left_of(cen).astype(storage_dtype)
            col[0:HP, 2 * cin:3 * cin] = right_of(cen).astype(storage_dtype)

            # Merged-kx dots: 3 MXU dots with K = 3*cin (back-to-back so the
            # chain can accumulate in the MXU result buffer on v7x).
            acc = None
            for ky in range(3):
                lhs = col[ky * W:ky * W + HW, 0:3 * cin]
                part = jnp.dot(lhs, w_ref[ky],
                               preferred_element_type=jnp.float32)
                acc = part if acc is None else acc + part

            acc = acc + b_ref[...]
            a = acts[j]
            if a == "relu":
                acc = jnp.maximum(acc, 0.0)
            elif a == "tanh":
                acc = jnp.tanh(acc)

            if j == n_conv - 1:
                # Lane-dense store: (HW, cout) -> (cout, HW), spatial on lanes.
                o_ref[0] = jnp.transpose(acc, (1, 0)).astype(o_ref.dtype)
            else:
                col[W:(H + 1) * W, cout:2 * cout] = acc.astype(storage_dtype)

    return kernel


def _vmem_limit_bytes(H, W, dims, storage_bytes, single_buffer):
    """Coarse upper bound on the kernel's VMEM needs, clamped to the chip."""
    HP, HW = (H + 2) * W, H * W
    c_col = max(dims[:-1])
    cmax = max(dims)
    est = _round_up(HP, 8) * _round_up(3 * c_col, 128) * storage_bytes   # col
    est += 3 * _round_up(HP, 8) * _round_up(cmax, 128) * 4               # f32 shift temps
    est += 2 * _round_up(HW, 8) * _round_up(cmax, 128) * 4               # accumulators
    nbuf = 1 if single_buffer else 2
    wb = 0
    for j in range(len(dims) - 1):
        wb += 3 * _round_up(3 * dims[j], 8) * _round_up(dims[j + 1], 128) * storage_bytes
        wb += 8 * _round_up(dims[j + 1], 128) * 4
    est += nbuf * wb
    est += 4 * _round_up(cmax, 8) * _round_up(HW, 128) * 4               # i/o blocks
    try:
        cap = (pltpu.get_tpu_info().vmem_capacity_bytes * 7) // 8
    except Exception:
        cap = 56 * 1024 * 1024
    cap = max(cap, 32 * 1024 * 1024)
    return int(min(max(est + est // 4 + (4 << 20), 32 << 20), cap))


def _fused_convnet(x_flat, ws, bs, *, H, W, dims, acts, roll_mode,
                   storage_dtype, single_buffer):
    """x_flat: (N, dims[0], H*W) f32.  Returns (N, dims[-1], H*W) f32."""
    if W % 8 != 0:
        raise ValueError("W must be a multiple of 8 (sublane alignment)")
    N = x_flat.shape[0]
    n_conv = len(dims) - 1
    cout_last = dims[-1]
    HW = H * W
    c_col = max(dims[:-1])

    kernel = _make_fused_kernel(H, W, dims, acts, roll_mode, storage_dtype)

    # Grid-invariant operands (weights/biases): single-buffer them if the
    # build supports pl.Buffered(1); default double-buffering only wastes VMEM.
    wb_kwargs = {"pipeline_mode": pl.Buffered(1)} if single_buffer else {}

    in_specs = [pl.BlockSpec((1, dims[0], HW), lambda n: (n, 0, 0))]
    flat_inputs = [x_flat]
    for j in range(n_conv):
        w, b = ws[j], bs[j]
        in_specs.append(pl.BlockSpec(w.shape, _const_index_map(w.ndim), **wb_kwargs))
        in_specs.append(pl.BlockSpec(b.shape, _const_index_map(b.ndim), **wb_kwargs))
        flat_inputs.append(w)
        flat_inputs.append(b)

    out_specs = pl.BlockSpec((1, cout_last, HW), lambda n: (n, 0, 0))
    scratch = [pltpu.VMEM(((H + 2) * W, 3 * c_col), storage_dtype)]

    storage_bytes = 2 if storage_dtype == jnp.bfloat16 else 4
    vmem_limit = _vmem_limit_bytes(H, W, dims, storage_bytes, single_buffer)

    return pl.pallas_call(
        kernel,
        out_shape=jax.ShapeDtypeStruct((N, cout_last, HW), jnp.float32),
        grid_spec=pltpu.PrefetchScalarGridSpec(
            num_scalar_prefetch=0,
            grid=(N,),
            in_specs=in_specs,
            out_specs=out_specs,
            scratch_shapes=scratch),
        compiler_params=pltpu.CompilerParams(
            dimension_semantics=("parallel",),
            vmem_limit_bytes=vmem_limit),
    )(*flat_inputs)


@functools.partial(
    jax.jit,
    static_argnames=("dims", "acts", "backwards", "roll_mode", "storage",
                     "single_buffer"))
def _ode_forward(y_nchw, ws, bs, *, dims, acts, backwards, roll_mode, storage,
                 single_buffer):
    N, C, H, W = y_nchw.shape
    storage_dtype = _STORAGE_DTYPES[storage]
    if backwards:
        # grad = -net(y).  The final activation is tanh (odd) or identity, so
        # negating the last conv's weights/bias negates the output exactly.
        ws = ws[:-1] + (-ws[-1],)
        bs = bs[:-1] + (-bs[-1],)
    x_flat = y_nchw.astype(jnp.float32).reshape(N, C, H * W)   # free reshape
    out = _fused_convnet(x_flat, ws, bs, H=H, W=W, dims=dims, acts=acts,
                         roll_mode=roll_mode, storage_dtype=storage_dtype,
                         single_buffer=single_buffer)
    return out.reshape(N, dims[-1], H, W)                      # free reshape


class ODEFuncPallas:
    """Pallas-TPU implementation of ODEFunc.forward (gradient_net conv stack)."""

    def __init__(self, n_inputs=3, n_outputs=3, n_layers=4, n_units=256,
                 nonlinear="relu", final_act=True, storage_dtype=jnp.bfloat16,
                 key=None):
        if key is None:
            key = jax.random.PRNGKey(0)
        dims = [n_inputs] + [n_units] * (n_layers + 1) + [n_outputs]
        self.dims = tuple(dims)
        self.acts = tuple([nonlinear] * (len(dims) - 2)
                          + ["tanh" if final_act else "none"])
        self.storage = _storage_name(storage_dtype)
        sdt = _STORAGE_DTYPES[self.storage]

        ws, bs = [], []
        for i in range(len(dims) - 1):
            cin, cout = dims[i], dims[i + 1]
            key, kw, kb = jax.random.split(key, 3)
            bound = 1.0 / math.sqrt(cin * 9)   # PyTorch Conv2d default init
            ws.append(jax.random.uniform(kw, (3, 3, cin, cout), jnp.float32,
                                         minval=-bound, maxval=bound))
            bs.append(jax.random.uniform(kb, (cout,), jnp.float32,
                                         minval=-bound, maxval=bound))
        self.ws = tuple(ws)        # HWIO f32 reference copies
        self.bs = tuple(bs)

        # Kernel weights: kx taps merged -> (3, 3*cin, cout), storage dtype.
        self.ws_kernel = tuple(
            ws[j].reshape(3, 3 * dims[j], dims[j + 1]).astype(sdt)
            for j in range(len(dims) - 1))
        self.bs_kernel = tuple(b.reshape(1, -1).astype(jnp.float32) for b in bs)

        self.roll_mode = _probe_roll_mode()
        self.single_buffer = _probe_single_buffer()

    def forward(self, t_local, y_nchw, backwards=False):
        """y_nchw: (N, C, H, W) float32.  Returns dy/dt with the same shape."""
        del t_local  # gradient_net ignores t (same as the PyTorch module)
        return _ode_forward(y_nchw, self.ws_kernel, self.bs_kernel,
                            dims=self.dims, acts=self.acts,
                            backwards=bool(backwards),
                            roll_mode=self.roll_mode, storage=self.storage,
                            single_buffer=self.single_buffer)

    # Pure-JAX reference (validation only).
    def forward_ref(self, t_local, y_nchw, backwards=False):
        del t_local
        x = jnp.transpose(y_nchw, (0, 2, 3, 1)).astype(jnp.float32)
        for w, b, a in zip(self.ws, self.bs, self.acts):
            x = lax.conv_general_dilated(
                x, w, window_strides=(1, 1), padding="SAME",
                dimension_numbers=("NHWC", "HWIO", "NHWC"))
            x = x + b
            if a == "relu":
                x = jnp.maximum(x, 0.0)
            elif a == "tanh":
                x = jnp.tanh(x)
        out = jnp.transpose(x, (0, 3, 1, 2))
        return -out if backwards else out


if __name__ == "__main__":
    key = jax.random.PRNGKey(0)
    k_param, k_in = jax.random.split(key)

    # Small shapes: batch=2, n_inputs=n_outputs=3 channels, 16x16 spatial,
    # n_layers=2 hidden convs with n_units=8 channels.
    y = jax.random.normal(k_in, (2, 3, 16, 16), dtype=jnp.float32)  # NCHW
    t_local = jnp.float32(0.0)

    # f32-storage variant: tight check of indexing / layout / sign folding.
    ode_f32 = ODEFuncPallas(n_inputs=3, n_outputs=3, n_layers=2, n_units=8,
                            nonlinear="relu", final_act=True,
                            storage_dtype=jnp.float32, key=k_param)
    # bf16-storage variant (deployment default): same weights, looser check.
    ode_bf16 = ODEFuncPallas(n_inputs=3, n_outputs=3, n_layers=2, n_units=8,
                             nonlinear="relu", final_act=True,
                             storage_dtype=jnp.bfloat16, key=k_param)

    ref = jax.block_until_ready(ode_f32.forward_ref(t_local, y, backwards=False))
    ref_bwd = jax.block_until_ready(ode_f32.forward_ref(t_local, y, backwards=True))

    for ode, tol in ((ode_f32, 1e-2), (ode_bf16, 4e-2)):
        grad = jax.block_until_ready(ode.forward(t_local, y, backwards=False))
        grad_bwd = jax.block_until_ready(ode.forward(t_local, y, backwards=True))
        assert grad.shape == y.shape and grad.dtype == jnp.float32
        assert jnp.allclose(grad, ref, atol=tol, rtol=tol), \
            float(jnp.max(jnp.abs(grad - ref)))
        assert jnp.allclose(grad_bwd, ref_bwd, atol=tol, rtol=tol), \
            float(jnp.max(jnp.abs(grad_bwd - ref_bwd)))

    print("KERNEL_OK")
</pallas_src>

<mosaic_0001>
module attributes {stable_mosaic.version = 11 : i64} {
  func.func @_k(%arg0: i32, %arg1: memref<8x128xf32, #tpu.memory_space<vmem>>, %arg2: memref<8x128xf32, #tpu.memory_space<vmem>>) attributes {dimension_semantics = [#tpu.dimension_semantics<arbitrary>], iteration_bounds = array<i64: 2>, scalar_prefetch = 0 : i64, scratch_operands = 0 : i64, tpu.core_type = #tpu.core_type<tc>, window_params = [{pipeline_mode = #tpu.pipeline_mode<synchronous>, transform_indices = @transform_0, window_bounds = array<i64: 8, 128>}, {pipeline_mode = #tpu.pipeline_mode<synchronous>, transform_indices = @transform_1, window_bounds = array<i64: 8, 128>}]} {
    %c0 = arith.constant 0 : index
    %c0_0 = arith.constant 0 : index
    %0 = vector.load %arg1[%c0, %c0_0] : memref<8x128xf32, #tpu.memory_space<vmem>>, vector<8x128xf32>
    %cst = arith.constant 2.000000e+00 : f32
    %1 = vector.broadcast %cst : f32 to vector<8x128xf32>
    %2 = arith.mulf %0, %1 : vector<8x128xf32>
    %c0_1 = arith.constant 0 : index
    %c0_2 = arith.constant 0 : index
    %3 = vector.load %arg2[%c0_1, %c0_2] : memref<8x128xf32, #tpu.memory_space<vmem>>, vector<8x128xf32>
    tpu.vector_store %arg2[%c0_1, %c0_2], %2 {strides = array<i32>} : memref<8x128xf32, #tpu.memory_space<vmem>>, vector<8x128xf32>,
    return
  }
  func.func @transform_0(%arg0: i32) -> (i32, i32) {
    %c0_i32 = arith.constant 0 : i32
    %c0_i32_0 = arith.constant 0 : i32
    %c0_i32_1 = arith.constant 0 : i32
    return %c0_i32, %c0_i32_0 : i32, i32
  }
  func.func @transform_1(%arg0: i32) -> (i32, i32) {
    %c0_i32 = arith.constant 0 : i32
    %c0_i32_0 = arith.constant 0 : i32
    %c0_i32_1 = arith.constant 0 : i32
    return %c0_i32, %c0_i32_0 : i32, i32
  }
}

module attributes {stable_mosaic.version = 11 : i64} {
  func.func @kernel(%arg0: i32, %arg1: memref<1x3x256xf32, #tpu.memory_space<vmem>>, %arg2: memref<3x9x8xf32, #tpu.memory_space<vmem>>, %arg3: memref<1x8xf32, #tpu.memory_space<vmem>>, %arg4: memref<3x24x8xf32, #tpu.memory_space<vmem>>, %arg5: memref<1x8xf32, #tpu.memory_space<vmem>>, %arg6: memref<3x24x8xf32, #tpu.memory_space<vmem>>, %arg7: memref<1x8xf32, #tpu.memory_space<vmem>>, %arg8: memref<3x24x3xf32, #tpu.memory_space<vmem>>, %arg9: memref<1x3xf32, #tpu.memory_space<vmem>>, %arg10: memref<1x3x256xf32, #tpu.memory_space<vmem>>, %arg11: memref<288x24xf32, #tpu.memory_space<vmem>>) attributes {dimension_semantics = [#tpu.dimension_semantics<parallel>], iteration_bounds = array<i64: 2>, scalar_prefetch = 0 : i64, scratch_operands = 1 : i64, tpu.core_type = #tpu.core_type<tc>, window_params = [{transform_indices = @transform_0, window_bounds = array<i64: 1, 3, 256>}, {pipeline_mode = #tpu.pipeline_mode<synchronous>, transform_indices = @transform_1, window_bounds = array<i64: 3, 9, 8>}, {pipeline_mode = #tpu.pipeline_mode<synchronous>, transform_indices = @transform_2, window_bounds = array<i64: 1, 8>}, {pipeline_mode = #tpu.pipeline_mode<synchronous>, transform_indices = @transform_3, window_bounds = array<i64: 3, 24, 8>}, {pipeline_mode = #tpu.pipeline_mode<synchronous>, transform_indices = @transform_4, window_bounds = array<i64: 1, 8>}, {pipeline_mode = #tpu.pipeline_mode<synchronous>, transform_indices = @transform_5, window_bounds = array<i64: 3, 24, 8>}, {pipeline_mode = #tpu.pipeline_mode<synchronous>, transform_indices = @transform_6, window_bounds = array<i64: 1, 8>}, {pipeline_mode = #tpu.pipeline_mode<synchronous>, transform_indices = @transform_7, window_bounds = array<i64: 3, 24, 3>}, {pipeline_mode = #tpu.pipeline_mode<synchronous>, transform_indices = @transform_8, window_bounds = array<i64: 1, 3>}, {transform_indices = @transform_9, window_bounds = array<i64: 1, 3, 256>}]} {
    %0 = tpu.iota {dimensions = array<i32: 0>} : vector<288x1xi32>
    %c16_i32 = arith.constant 16 : i32
    %c0_i32 = arith.constant 0 : i32
    %1 = arith.cmpi eq, %c16_i32, %c0_i32 : i32
    %c1_i32 = arith.constant 1 : i32
    %2 = arith.select %1, %c1_i32, %c16_i32 : i32
    %3 = vector.broadcast %2 : i32 to vector<288x1xi32>
    %4 = arith.remsi %0, %3 : vector<288x1xi32>
    %c0_i32_0 = arith.constant 0 : i32
    %5 = vector.broadcast %c0_i32_0 : i32 to vector<288x1xi32>
    %6 = arith.cmpi ne, %4, %5 : vector<288x1xi32>
    %c0_i32_1 = arith.constant 0 : i32
    %7 = vector.broadcast %c0_i32_1 : i32 to vector<288x1xi32>
    %8 = arith.cmpi slt, %4, %7 : vector<288x1xi32>
    %c0_i32_2 = arith.constant 0 : i32
    %9 = arith.cmpi slt, %2, %c0_i32_2 : i32
    %10 = vector.broadcast %9 : i1 to vector<288x1xi1>
    %11 = vector.broadcast %10 : vector<288x1xi1> to vector<288x1xi1>
    %12 = arith.xori %8, %11 : vector<288x1xi1>
    %13 = arith.andi %12, %6 : vector<288x1xi1>
    %14 = vector.broadcast %2 : i32 to vector<288x1xi32>
    %15 = arith.addi %4, %14 : vector<288x1xi32>
    %16 = arith.select %13, %15, %4 : vector<288x1xi1>, vector<288x1xi32>
    %c0_i32_3 = arith.constant 0 : i32
    %17 = vector.broadcast %c0_i32_3 : i32 to vector<288x1xi32>
    %18 = arith.cmpi ne, %16, %17 : vector<288x1xi32>
    %c15_i32 = arith.constant 15 : i32
    %19 = vector.broadcast %c15_i32 : i32 to vector<288x1xi32>
    %20 = arith.cmpi ne, %16, %19 : vector<288x1xi32>
    %cst = arith.constant 0.000000e+00 : f32
    %21 = vector.broadcast %cst : f32 to vector<16x3xf32>
    %c0 = arith.constant 0 : index
    %c3 = arith.constant 3 : index
    %22 = vector.load %arg11[%c0, %c3] : memref<288x24xf32, #tpu.memory_space<vmem>>, vector<16x3xf32>
    tpu.vector_store %arg11[%c0, %c3], %21 {strides = array<i32>} : memref<288x24xf32, #tpu.memory_space<vmem>>, vector<16x3xf32>,
    %c272 = arith.constant 272 : index
    %c3_4 = arith.constant 3 : index
    %23 = vector.load %arg11[%c272, %c3_4] : memref<288x24xf32, #tpu.memory_space<vmem>>, vector<16x3xf32>
    tpu.vector_store %arg11[%c272, %c3_4], %21 {strides = array<i32>} : memref<288x24xf32, #tpu.memory_space<vmem>>, vector<16x3xf32>,
    %cst_5 = arith.constant 0.000000e+00 : f32
    %24 = vector.broadcast %cst_5 : f32 to vector<16x8xf32>
    %c0_6 = arith.constant 0 : index
    %c8 = arith.constant 8 : index
    %25 = vector.load %arg11[%c0_6, %c8] : memref<288x24xf32, #tpu.memory_space<vmem>>, vector<16x8xf32>
    tpu.vector_store %arg11[%c0_6, %c8], %24 {strides = array<i32>} : memref<288x24xf32, #tpu.memory_space<vmem>>, vector<16x8xf32>,
    %c272_7 = arith.constant 272 : index
    %c8_8 = arith.constant 8 : index
    %26 = vector.load %arg11[%c272_7, %c8_8] : memref<288x24xf32, #tpu.memory_space<vmem>>, vector<16x8xf32>
    tpu.vector_store %arg11[%c272_7, %c8_8], %24 {strides = array<i32>} : memref<288x24xf32, #tpu.memory_space<vmem>>, vector<16x8xf32>,
    %c0_9 = arith.constant 0 : index
    %c0_10 = arith.constant 0 : index
    %c0_11 = arith.constant 0 : index
    %27 = vector.load %arg1[%c0_9, %c0_10, %c0_11] : memref<1x3x256xf32, #tpu.memory_space<vmem>>, vector<1x3x256xf32>
    %28 = vector.shape_cast %27 : vector<1x3x256xf32> to vector<3x256xf32>
    %29 = tpu.transpose %28, [1, 0] : vector<3x256xf32> -> vector<256x3xf32>
    %c16 = arith.constant 16 : index
    %c3_12 = arith.constant 3 : index
    %30 = vector.load %arg11[%c16, %c3_12] : memref<288x24xf32, #tpu.memory_space<vmem>>, vector<256x3xf32>
    tpu.vector_store %arg11[%c16, %c3_12], %29 {strides = array<i32>} : memref<288x24xf32, #tpu.memory_space<vmem>>, vector<256x3xf32>,
    %c0_13 = arith.constant 0 : index
    %c3_14 = arith.constant 3 : index
    %31 = vector.load %arg11[%c0_13, %c3_14] : memref<288x24xf32, #tpu.memory_space<vmem>>, vector<288x3xf32>
    %32 = vector.extract_strided_slice %31 {offsets = [287, 0], sizes = [1, 3], strides = [1, 1]} : vector<288x3xf32> to vector<1x3xf32>
    %33 = vector.extract_strided_slice %31 {offsets = [0, 0], sizes = [287, 3], strides = [1, 1]} : vector<288x3xf32> to vector<287x3xf32>
    %34 = tpu.concatenate %32, %33 in 0 : vector<1x3xf32>, vector<287x3xf32> -> vector<288x3xf32>
    %cst_15 = arith.constant 0.000000e+00 : f32
    %35 = vector.shape_cast %18 : vector<288x1xi1> to vector<288x1xi1>
    %36 = vector.broadcast %35 : vector<288x1xi1> to vector<288x3xi1>
    %37 = vector.broadcast %cst_15 : f32 to vector<288x3xf32>
    %38 = arith.select %36, %34, %37 : vector<288x3xi1>, vector<288x3xf32>
    %c0_16 = arith.constant 0 : index
    %c0_17 = arith.constant 0 : index
    %39 = vector.load %arg11[%c0_16, %c0_17] : memref<288x24xf32, #tpu.memory_space<vmem>>, vector<288x3xf32>
    tpu.vector_store %arg11[%c0_16, %c0_17], %38 {strides = array<i32>} : memref<288x24xf32, #tpu.memory_space<vmem>>, vector<288x3xf32>,
    %40 = vector.extract_strided_slice %31 {offsets = [1, 0], sizes = [287, 3], strides = [1, 1]} : vector<288x3xf32> to vector<287x3xf32>
    %41 = vector.extract_strided_slice %31 {offsets = [0, 0], sizes = [1, 3], strides = [1, 1]} : vector<288x3xf32> to vector<1x3xf32>
    %42 = tpu.concatenate %40, %41 in 0 : vector<287x3xf32>, vector<1x3xf32> -> vector<288x3xf32>
    %cst_18 = arith.constant 0.000000e+00 : f32
    %43 = vector.shape_cast %20 : vector<288x1xi1> to vector<288x1xi1>
    %44 = vector.broadcast %43 : vector<288x1xi1> to vector<288x3xi1>
    %45 = vector.broadcast %cst_18 : f32 to vector<288x3xf32>
    %46 = arith.select %44, %42, %45 : vector<288x3xi1>, vector<288x3xf32>
    %c0_19 = arith.constant 0 : index
    %c6 = arith.constant 6 : index
    %47 = vector.load %arg11[%c0_19, %c6] : memref<288x24xf32, #tpu.memory_space<vmem>>, vector<288x3xf32>
    tpu.vector_store %arg11[%c0_19, %c6], %46 {strides = array<i32>} : memref<288x24xf32, #tpu.memory_space<vmem>>, vector<288x3xf32>,
    %c0_20 = arith.constant 0 : index
    %c0_21 = arith.constant 0 : index
    %48 = vector.load %arg11[%c0_20, %c0_21] : memref<288x24xf32, #tpu.memory_space<vmem>>, vector<256x9xf32>
    %c0_22 = arith.constant 0 : index
    %c0_23 = arith.constant 0 : index
    %c0_24 = arith.constant 0 : index
    %49 = vector.load %arg2[%c0_22, %c0_23, %c0_24] : memref<3x9x8xf32, #tpu.memory_space<vmem>>, vector<1x9x8xf32>
    %50 = vector.shape_cast %49 : vector<1x9x8xf32> to vector<9x8xf32>
    %cst_25 = arith.constant dense<0.000000e+00> : vector<256x8xf32>
    %51 = tpu.matmul %48, %50, %cst_25 {dimension_numbers = #tpu.dot_dimension_numbers<[1], [0], [0], [1], [0, 0, 1, 1], [], []>} : vector<256x9xf32>, vector<9x8xf32>, vector<256x8xf32> -> vector<256x8xf32>
    %c16_26 = arith.constant 16 : index
    %c0_27 = arith.constant 0 : index
    %52 = vector.load %arg11[%c16_26, %c0_27] : memref<288x24xf32, #tpu.memory_space<vmem>>, vector<256x9xf32>
    %c1 = arith.constant 1 : index
    %c0_28 = arith.constant 0 : index
    %c0_29 = arith.constant 0 : index
    %53 = vector.load %arg2[%c1, %c0_28, %c0_29] : memref<3x9x8xf32, #tpu.memory_space<vmem>>, vector<1x9x8xf32>
    %54 = vector.shape_cast %53 : vector<1x9x8xf32> to vector<9x8xf32>
    %cst_30 = arith.constant dense<0.000000e+00> : vector<256x8xf32>
    %55 = tpu.matmul %52, %54, %cst_30 {dimension_numbers = #tpu.dot_dimension_numbers<[1], [0], [0], [1], [0, 0, 1, 1], [], []>} : vector<256x9xf32>, vector<9x8xf32>, vector<256x8xf32> -> vector<256x8xf32>
    %56 = arith.addf %51, %55 : vector<256x8xf32>
    %c32 = arith.constant 32 : index
    %c0_31 = arith.constant 0 : index
    %57 = vector.load %arg11[%c32, %c0_31] : memref<288x24xf32, #tpu.memory_space<vmem>>, vector<256x9xf32>
    %c2 = arith.constant 2 : index
    %c0_32 = arith.constant 0 : index
    %c0_33 = arith.constant 0 : index
    %58 = vector.load %arg2[%c2, %c0_32, %c0_33] : memref<3x9x8xf32, #tpu.memory_space<vmem>>, vector<1x9x8xf32>
    %59 = vector.shape_cast %58 : vector<1x9x8xf32> to vector<9x8xf32>
    %cst_34 = arith.constant dense<0.000000e+00> : vector<256x8xf32>
    %60 = tpu.matmul %57, %59, %cst_34 {dimension_numbers = #tpu.dot_dimension_numbers<[1], [0], [0], [1], [0, 0, 1, 1], [], []>} : vector<256x9xf32>, vector<9x8xf32>, vector<256x8xf32> -> vector<256x8xf32>
    %61 = arith.addf %56, %60 : vector<256x8xf32>
    %c0_35 = arith.constant 0 : index
    %c0_36 = arith.constant 0 : index
    %62 = vector.load %arg3[%c0_35, %c0_36] : memref<1x8xf32, #tpu.memory_space<vmem>>, vector<1x8xf32>
    %63 = vector.broadcast %62 : vector<1x8xf32> to vector<256x8xf32>
    %64 = arith.addf %61, %63 : vector<256x8xf32>
    %cst_37 = arith.constant 0.000000e+00 : f32
    %65 = vector.broadcast %cst_37 : f32 to vector<256x8xf32>
    %66 = arith.maximumf %64, %65 : vector<256x8xf32>
    %c16_38 = arith.constant 16 : index
    %c8_39 = arith.constant 8 : index
    %67 = vector.load %arg11[%c16_38, %c8_39] : memref<288x24xf32, #tpu.memory_space<vmem>>, vector<256x8xf32>
    tpu.vector_store %arg11[%c16_38, %c8_39], %66 {strides = array<i32>} : memref<288x24xf32, #tpu.memory_space<vmem>>, vector<256x8xf32>,
    %c0_40 = arith.constant 0 : index
    %c8_41 = arith.constant 8 : index
    %68 = vector.load %arg11[%c0_40, %c8_41] : memref<288x24xf32, #tpu.memory_space<vmem>>, vector<288x8xf32>
    %69 = vector.extract_strided_slice %68 {offsets = [287, 0], sizes = [1, 8], strides = [1, 1]} : vector<288x8xf32> to vector<1x8xf32>
    %70 = vector.extract_strided_slice %68 {offsets = [0, 0], sizes = [287, 8], strides = [1, 1]} : vector<288x8xf32> to vector<287x8xf32>
    %71 = tpu.concatenate %69, %70 in 0 : vector<1x8xf32>, vector<287x8xf32> -> vector<288x8xf32>
    %cst_42 = arith.constant 0.000000e+00 : f32
    %72 = vector.shape_cast %18 : vector<288x1xi1> to vector<288x1xi1>
    %73 = vector.broadcast %72 : vector<288x1xi1> to vector<288x8xi1>
    %74 = vector.broadcast %cst_42 : f32 to vector<288x8xf32>
    %75 = arith.select %73, %71, %74 : vector<288x8xi1>, vector<288x8xf32>
    %c0_43 = arith.constant 0 : index
    %c0_44 = arith.constant 0 : index
    %76 = vector.load %arg11[%c0_43, %c0_44] : memref<288x24xf32, #tpu.memory_space<vmem>>, vector<288x8xf32>
    tpu.vector_store %arg11[%c0_43, %c0_44], %75 {strides = array<i32>} : memref<288x24xf32, #tpu.memory_space<vmem>>, vector<288x8xf32>,
    %77 = vector.extract_strided_slice %68 {offsets = [1, 0], sizes = [287, 8], strides = [1, 1]} : vector<288x8xf32> to vector<287x8xf32>
    %78 = vector.extract_strided_slice %68 {offsets = [0, 0], sizes = [1, 8], strides = [1, 1]} : vector<288x8xf32> to vector<1x8xf32>
    %79 = tpu.concatenate %77, %78 in 0 : vector<287x8xf32>, vector<1x8xf32> -> vector<288x8xf32>
    %cst_45 = arith.constant 0.000000e+00 : f32
    %80 = vector.shape_cast %20 : vector<288x1xi1> to vector<288x1xi1>
    %81 = vector.broadcast %80 : vector<288x1xi1> to vector<288x8xi1>
    %82 = vector.broadcast %cst_45 : f32 to vector<288x8xf32>
    %83 = arith.select %81, %79, %82 : vector<288x8xi1>, vector<288x8xf32>
    %c0_46 = arith.constant 0 : index
    %c16_47 = arith.constant 16 : index
    %84 = vector.load %arg11[%c0_46, %c16_47] : memref<288x24xf32, #tpu.memory_space<vmem>>, vector<288x8xf32>
    tpu.vector_store %arg11[%c0_46, %c16_47], %83 {strides = array<i32>} : memref<288x24xf32, #tpu.memory_space<vmem>>, vector<288x8xf32>,
    %c0_48 = arith.constant 0 : index
    %c0_49 = arith.constant 0 : index
    %85 = vector.load %arg11[%c0_48, %c0_49] : memref<288x24xf32, #tpu.memory_space<vmem>>, vector<256x24xf32>
    %c0_50 = arith.constant 0 : index
    %c0_51 = arith.constant 0 : index
    %c0_52 = arith.constant 0 : index
    %86 = vector.load %arg4[%c0_50, %c0_51, %c0_52] : memref<3x24x8xf32, #tpu.memory_space<vmem>>, vector<1x24x8xf32>
    %87 = vector.shape_cast %86 : vector<1x24x8xf32> to vector<24x8xf32>
    %cst_53 = arith.constant dense<0.000000e+00> : vector<256x8xf32>
    %88 = tpu.matmul %85, %87, %cst_53 {dimension_numbers = #tpu.dot_dimension_numbers<[1], [0], [0], [1], [0, 0, 1, 1], [], []>} : vector<256x24xf32>, vector<24x8xf32>, vector<256x8xf32> -> vector<256x8xf32>
    %c16_54 = arith.constant 16 : index
    %c0_55 = arith.constant 0 : index
    %89 = vector.load %arg11[%c16_54, %c0_55] : memref<288x24xf32, #tpu.memory_space<vmem>>, vector<256x24xf32>
    %c1_56 = arith.constant 1 : index
    %c0_57 = arith.constant 0 : index
    %c0_58 = arith.constant 0 : index
    %90 = vector.load %arg4[%c1_56, %c0_57, %c0_58] : memref<3x24x8xf32, #tpu.memory_space<vmem>>, vector<1x24x8xf32>
    %91 = vector.shape_cast %90 : vector<1x24x8xf32> to vector<24x8xf32>
    %cst_59 = arith.constant dense<0.000000e+00> : vector<256x8xf32>
    %92 = tpu.matmul %89, %91, %cst_59 {dimension_numbers = #tpu.dot_dimension_numbers<[1], [0], [0], [1], [0, 0, 1, 1], [], []>} : vector<256x24xf32>, vector<24x8xf32>, vector<256x8xf32> -> vector<256x8xf32>
    %93 = arith.addf %88, %92 : vector<256x8xf32>
    %c32_60 = arith.constant 32 : index
    %c0_61 = arith.constant 0 : index
    %94 = vector.load %arg11[%c32_60, %c0_61] : memref<288x24xf32, #tpu.memory_space<vmem>>, vector<256x24xf32>
    %c2_62 = arith.constant 2 : index
    %c0_63 = arith.constant 0 : index
    %c0_64 = arith.constant 0 : index
    %95 = vector.load %arg4[%c2_62, %c0_63, %c0_64] : memref<3x24x8xf32, #tpu.memory_space<vmem>>, vector<1x24x8xf32>
    %96 = vector.shape_cast %95 : vector<1x24x8xf32> to vector<24x8xf32>
    %cst_65 = arith.constant dense<0.000000e+00> : vector<256x8xf32>
    %97 = tpu.matmul %94, %96, %cst_65 {dimension_numbers = #tpu.dot_dimension_numbers<[1], [0], [0], [1], [0, 0, 1, 1], [], []>} : vector<256x24xf32>, vector<24x8xf32>, vector<256x8xf32> -> vector<256x8xf32>
    %98 = arith.addf %93, %97 : vector<256x8xf32>
    %c0_66 = arith.constant 0 : index
    %c0_67 = arith.constant 0 : index
    %99 = vector.load %arg5[%c0_66, %c0_67] : memref<1x8xf32, #tpu.memory_space<vmem>>, vector<1x8xf32>
    %100 = vector.broadcast %99 : vector<1x8xf32> to vector<256x8xf32>
    %101 = arith.addf %98, %100 : vector<256x8xf32>
    %cst_68 = arith.constant 0.000000e+00 : f32
    %102 = vector.broadcast %cst_68 : f32 to vector<256x8xf32>
    %103 = arith.maximumf %101, %102 : vector<256x8xf32>
    %c16_69 = arith.constant 16 : index
    %c8_70 = arith.constant 8 : index
    %104 = vector.load %arg11[%c16_69, %c8_70] : memref<288x24xf32, #tpu.memory_space<vmem>>, vector<256x8xf32>
    tpu.vector_store %arg11[%c16_69, %c8_70], %103 {strides = array<i32>} : memref<288x24xf32, #tpu.memory_space<vmem>>, vector<256x8xf32>,
    %c0_71 = arith.constant 0 : index
    %c8_72 = arith.constant 8 : index
    %105 = vector.load %arg11[%c0_71, %c8_72] : memref<288x24xf32, #tpu.memory_space<vmem>>, vector<288x8xf32>
    %106 = vector.extract_strided_slice %105 {offsets = [287, 0], sizes = [1, 8], strides = [1, 1]} : vector<288x8xf32> to vector<1x8xf32>
    %107 = vector.extract_strided_slice %105 {offsets = [0, 0], sizes = [287, 8], strides = [1, 1]} : vector<288x8xf32> to vector<287x8xf32>
    %108 = tpu.concatenate %106, %107 in 0 : vector<1x8xf32>, vector<287x8xf32> -> vector<288x8xf32>
    %cst_73 = arith.constant 0.000000e+00 : f32
    %109 = vector.shape_cast %18 : vector<288x1xi1> to vector<288x1xi1>
    %110 = vector.broadcast %109 : vector<288x1xi1> to vector<288x8xi1>
    %111 = vector.broadcast %cst_73 : f32 to vector<288x8xf32>
    %112 = arith.select %110, %108, %111 : vector<288x8xi1>, vector<288x8xf32>
    %c0_74 = arith.constant 0 : index
    %c0_75 = arith.constant 0 : index
    %113 = vector.load %arg11[%c0_74, %c0_75] : memref<288x24xf32, #tpu.memory_space<vmem>>, vector<288x8xf32>
    tpu.vector_store %arg11[%c0_74, %c0_75], %112 {strides = array<i32>} : memref<288x24xf32, #tpu.memory_space<vmem>>, vector<288x8xf32>,
    %114 = vector.extract_strided_slice %105 {offsets = [1, 0], sizes = [287, 8], strides = [1, 1]} : vector<288x8xf32> to vector<287x8xf32>
    %115 = vector.extract_strided_slice %105 {offsets = [0, 0], sizes = [1, 8], strides = [1, 1]} : vector<288x8xf32> to vector<1x8xf32>
    %116 = tpu.concatenate %114, %115 in 0 : vector<287x8xf32>, vector<1x8xf32> -> vector<288x8xf32>
    %cst_76 = arith.constant 0.000000e+00 : f32
    %117 = vector.shape_cast %20 : vector<288x1xi1> to vector<288x1xi1>
    %118 = vector.broadcast %117 : vector<288x1xi1> to vector<288x8xi1>
    %119 = vector.broadcast %cst_76 : f32 to vector<288x8xf32>
    %120 = arith.select %118, %116, %119 : vector<288x8xi1>, vector<288x8xf32>
    %c0_77 = arith.constant 0 : index
    %c16_78 = arith.constant 16 : index
    %121 = vector.load %arg11[%c0_77, %c16_78] : memref<288x24xf32, #tpu.memory_space<vmem>>, vector<288x8xf32>
    tpu.vector_store %arg11[%c0_77, %c16_78], %120 {strides = array<i32>} : memref<288x24xf32, #tpu.memory_space<vmem>>, vector<288x8xf32>,
    %c0_79 = arith.constant 0 : index
    %c0_80 = arith.constant 0 : index
    %122 = vector.load %arg11[%c0_79, %c0_80] : memref<288x24xf32, #tpu.memory_space<vmem>>, vector<256x24xf32>
    %c0_81 = arith.constant 0 : index
    %c0_82 = arith.constant 0 : index
    %c0_83 = arith.constant 0 : index
    %123 = vector.load %arg6[%c0_81, %c0_82, %c0_83] : memref<3x24x8xf32, #tpu.memory_space<vmem>>, vector<1x24x8xf32>
    %124 = vector.shape_cast %123 : vector<1x24x8xf32> to vector<24x8xf32>
    %cst_84 = arith.constant dense<0.000000e+00> : vector<256x8xf32>
    %125 = tpu.matmul %122, %124, %cst_84 {dimension_numbers = #tpu.dot_dimension_numbers<[1], [0], [0], [1], [0, 0, 1, 1], [], []>} : vector<256x24xf32>, vector<24x8xf32>, vector<256x8xf32> -> vector<256x8xf32>
    %c16_85 = arith.constant 16 : index
    %c0_86 = arith.constant 0 : index
    %126 = vector.load %arg11[%c16_85, %c0_86] : memref<288x24xf32, #tpu.memory_space<vmem>>, vector<256x24xf32>
    %c1_87 = arith.constant 1 : index
    %c0_88 = arith.constant 0 : index
    %c0_89 = arith.constant 0 : index
    %127 = vector.load %arg6[%c1_87, %c0_88, %c0_89] : memref<3x24x8xf32, #tpu.memory_space<vmem>>, vector<1x24x8xf32>
    %128 = vector.shape_cast %127 : vector<1x24x8xf32> to vector<24x8xf32>
    %cst_90 = arith.constant dense<0.000000e+00> : vector<256x8xf32>
    %129 = tpu.matmul %126, %128, %cst_90 {dimension_numbers = #tpu.dot_dimension_numbers<[1], [0], [0], [1], [0, 0, 1, 1], [], []>} : vector<256x24xf32>, vector<24x8xf32>, vector<256x8xf32> -> vector<256x8xf32>
    %130 = arith.addf %125, %129 : vector<256x8xf32>
    %c32_91 = arith.constant 32 : index
    %c0_92 = arith.constant 0 : index
    %131 = vector.load %arg11[%c32_91, %c0_92] : memref<288x24xf32, #tpu.memory_space<vmem>>, vector<256x24xf32>
    %c2_93 = arith.constant 2 : index
    %c0_94 = arith.constant 0 : index
    %c0_95 = arith.constant 0 : index
    %132 = vector.load %arg6[%c2_93, %c0_94, %c0_95] : memref<3x24x8xf32, #tpu.memory_space<vmem>>, vector<1x24x8xf32>
    %133 = vector.shape_cast %132 : vector<1x24x8xf32> to vector<24x8xf32>
    %cst_96 = arith.constant dense<0.000000e+00> : vector<256x8xf32>
    %134 = tpu.matmul %131, %133, %cst_96 {dimension_numbers = #tpu.dot_dimension_numbers<[1], [0], [0], [1], [0, 0, 1, 1], [], []>} : vector<256x24xf32>, vector<24x8xf32>, vector<256x8xf32> -> vector<256x8xf32>
    %135 = arith.addf %130, %134 : vector<256x8xf32>
    %c0_97 = arith.constant 0 : index
    %c0_98 = arith.constant 0 : index
    %136 = vector.load %arg7[%c0_97, %c0_98] : memref<1x8xf32, #tpu.memory_space<vmem>>, vector<1x8xf32>
    %137 = vector.broadcast %136 : vector<1x8xf32> to vector<256x8xf32>
    %138 = arith.addf %135, %137 : vector<256x8xf32>
    %cst_99 = arith.constant 0.000000e+00 : f32
    %139 = vector.broadcast %cst_99 : f32 to vector<256x8xf32>
    %140 = arith.maximumf %138, %139 : vector<256x8xf32>
    %c16_100 = arith.constant 16 : index
    %c8_101 = arith.constant 8 : index
    %141 = vector.load %arg11[%c16_100, %c8_101] : memref<288x24xf32, #tpu.memory_space<vmem>>, vector<256x8xf32>
    tpu.vector_store %arg11[%c16_100, %c8_101], %140 {strides = array<i32>} : memref<288x24xf32, #tpu.memory_space<vmem>>, vector<256x8xf32>,
    %c0_102 = arith.constant 0 : index
    %c8_103 = arith.constant 8 : index
    %142 = vector.load %arg11[%c0_102, %c8_103] : memref<288x24xf32, #tpu.memory_space<vmem>>, vector<288x8xf32>
    %143 = vector.extract_strided_slice %142 {offsets = [287, 0], sizes = [1, 8], strides = [1, 1]} : vector<288x8xf32> to vector<1x8xf32>
    %144 = vector.extract_strided_slice %142 {offsets = [0, 0], sizes = [287, 8], strides = [1, 1]} : vector<288x8xf32> to vector<287x8xf32>
    %145 = tpu.concatenate %143, %144 in 0 : vector<1x8xf32>, vector<287x8xf32> -> vector<288x8xf32>
    %cst_104 = arith.constant 0.000000e+00 : f32
    %146 = vector.shape_cast %18 : vector<288x1xi1> to vector<288x1xi1>
    %147 = vector.broadcast %146 : vector<288x1xi1> to vector<288x8xi1>
    %148 = vector.broadcast %cst_104 : f32 to vector<288x8xf32>
    %149 = arith.select %147, %145, %148 : vector<288x8xi1>, vector<288x8xf32>
    %c0_105 = arith.constant 0 : index
    %c0_106 = arith.constant 0 : index
    %150 = vector.load %arg11[%c0_105, %c0_106] : memref<288x24xf32, #tpu.memory_space<vmem>>, vector<288x8xf32>
    tpu.vector_store %arg11[%c0_105, %c0_106], %149 {strides = array<i32>} : memref<288x24xf32, #tpu.memory_space<vmem>>, vector<288x8xf32>,
    %151 = vector.extract_strided_slice %142 {offsets = [1, 0], sizes = [287, 8], strides = [1, 1]} : vector<288x8xf32> to vector<287x8xf32>
    %152 = vector.extract_strided_slice %142 {offsets = [0, 0], sizes = [1, 8], strides = [1, 1]} : vector<288x8xf32> to vector<1x8xf32>
    %153 = tpu.concatenate %151, %152 in 0 : vector<287x8xf32>, vector<1x8xf32> -> vector<288x8xf32>
    %cst_107 = arith.constant 0.000000e+00 : f32
    %154 = vector.shape_cast %20 : vector<288x1xi1> to vector<288x1xi1>
    %155 = vector.broadcast %154 : vector<288x1xi1> to vector<288x8xi1>
    %156 = vector.broadcast %cst_107 : f32 to vector<288x8xf32>
    %157 = arith.select %155, %153, %156 : vector<288x8xi1>, vector<288x8xf32>
    %c0_108 = arith.constant 0 : index
    %c16_109 = arith.constant 16 : index
    %158 = vector.load %arg11[%c0_108, %c16_109] : memref<288x24xf32, #tpu.memory_space<vmem>>, vector<288x8xf32>
    tpu.vector_store %arg11[%c0_108, %c16_109], %157 {strides = array<i32>} : memref<288x24xf32, #tpu.memory_space<vmem>>, vector<288x8xf32>,
    %c0_110 = arith.constant 0 : index
    %c0_111 = arith.constant 0 : index
    %159 = vector.load %arg11[%c0_110, %c0_111] : memref<288x24xf32, #tpu.memory_space<vmem>>, vector<256x24xf32>
    %c0_112 = arith.constant 0 : index
    %c0_113 = arith.constant 0 : index
    %c0_114 = arith.constant 0 : index
    %160 = vector.load %arg8[%c0_112, %c0_113, %c0_114] : memref<3x24x3xf32, #tpu.memory_space<vmem>>, vector<1x24x3xf32>
    %161 = vector.shape_cast %160 : vector<1x24x3xf32> to vector<24x3xf32>
    %cst_115 = arith.constant dense<0.000000e+00> : vector<256x3xf32>
    %162 = tpu.matmul %159, %161, %cst_115 {dimension_numbers = #tpu.dot_dimension_numbers<[1], [0], [0], [1], [0, 0, 1, 1], [], []>} : vector<256x24xf32>, vector<24x3xf32>, vector<256x3xf32> -> vector<256x3xf32>
    %c16_116 = arith.constant 16 : index
    %c0_117 = arith.constant 0 : index
    %163 = vector.load %arg11[%c16_116, %c0_117] : memref<288x24xf32, #tpu.memory_space<vmem>>, vector<256x24xf32>
    %c1_118 = arith.constant 1 : index
    %c0_119 = arith.constant 0 : index
    %c0_120 = arith.constant 0 : index
    %164 = vector.load %arg8[%c1_118, %c0_119, %c0_120] : memref<3x24x3xf32, #tpu.memory_space<vmem>>, vector<1x24x3xf32>
    %165 = vector.shape_cast %164 : vector<1x24x3xf32> to vector<24x3xf32>
    %cst_121 = arith.constant dense<0.000000e+00> : vector<256x3xf32>
    %166 = tpu.matmul %163, %165, %cst_121 {dimension_numbers = #tpu.dot_dimension_numbers<[1], [0], [0], [1], [0, 0, 1, 1], [], []>} : vector<256x24xf32>, vector<24x3xf32>, vector<256x3xf32> -> vector<256x3xf32>
    %167 = arith.addf %162, %166 : vector<256x3xf32>
    %c32_122 = arith.constant 32 : index
    %c0_123 = arith.constant 0 : index
    %168 = vector.load %arg11[%c32_122, %c0_123] : memref<288x24xf32, #tpu.memory_space<vmem>>, vector<256x24xf32>
    %c2_124 = arith.constant 2 : index
    %c0_125 = arith.constant 0 : index
    %c0_126 = arith.constant 0 : index
    %169 = vector.load %arg8[%c2_124, %c0_125, %c0_126] : memref<3x24x3xf32, #tpu.memory_space<vmem>>, vector<1x24x3xf32>
    %170 = vector.shape_cast %169 : vector<1x24x3xf32> to vector<24x3xf32>
    %cst_127 = arith.constant dense<0.000000e+00> : vector<256x3xf32>
    %171 = tpu.matmul %168, %170, %cst_127 {dimension_numbers = #tpu.dot_dimension_numbers<[1], [0], [0], [1], [0, 0, 1, 1], [], []>} : vector<256x24xf32>, vector<24x3xf32>, vector<256x3xf32> -> vector<256x3xf32>
    %172 = arith.addf %167, %171 : vector<256x3xf32>
    %c0_128 = arith.constant 0 : index
    %c0_129 = arith.constant 0 : index
    %173 = vector.load %arg9[%c0_128, %c0_129] : memref<1x3xf32, #tpu.memory_space<vmem>>, vector<1x3xf32>
    %174 = vector.broadcast %173 : vector<1x3xf32> to vector<256x3xf32>
    %175 = arith.addf %172, %174 : vector<256x3xf32>
    %176 = math.tanh %175 : vector<256x3xf32>
    %177 = tpu.transpose %176, [1, 0] : vector<256x3xf32> -> vector<3x256xf32>
    %c0_130 = arith.constant 0 : index
    %c0_131 = arith.constant 0 : index
    %c0_132 = arith.constant 0 : index
    %178 = vector.load %arg10[%c0_130, %c0_131, %c0_132] : memref<1x3x256xf32, #tpu.memory_space<vmem>>, vector<1x3x256xf32>
    %179 = vector.shape_cast %178 : vector<1x3x256xf32> to vector<3x256xf32>
    %180 = vector.shape_cast %177 : vector<3x256xf32> to vector<1x3x256xf32>
    tpu.vector_store %arg10[%c0_130, %c0_131, %c0_132], %180 {strides = array<i32>} : memref<1x3x256xf32, #tpu.memory_space<vmem>>, vector<1x3x256xf32>,
    return
  }
  func.func @transform_0(%arg0: i32) -> (i32, i32, i32) {
    %c0_i32 = arith.constant 0 : i32
    %c0_i32_0 = arith.constant 0 : i32
    %c0_i32_1 = arith.constant 0 : i32
    return %arg0, %c0_i32, %c0_i32_0 : i32, i32, i32
  }
  func.func @transform_1(%arg0: i32) -> (i32, i32, i32) {
    %c0_i32 = arith.constant 0 : i32
    %c0_i32_0 = arith.constant 0 : i32
    %c0_i32_1 = arith.constant 0 : i32
    %c0_i32_2 = arith.constant 0 : i32
    return %c0_i32, %c0_i32_0, %c0_i32_1 : i32, i32, i32
  }
  func.func @transform_2(%arg0: i32) -> (i32, i32) {
    %c0_i32 = arith.constant 0 : i32
    %c0_i32_0 = arith.constant 0 : i32
    %c0_i32_1 = arith.constant 0 : i32
    return %c0_i32, %c0_i32_0 : i32, i32
  }
  func.func @transform_3(%arg0: i32) -> (i32, i32, i32) {
    %c0_i32 = arith.constant 0 : i32
    %c0_i32_0 = arith.constant 0 : i32
    %c0_i32_1 = arith.constant 0 : i32
    %c0_i32_2 = arith.constant 0 : i32
    return %c0_i32, %c0_i32_0, %c0_i32_1 : i32, i32, i32
  }
  func.func @transform_4(%arg0: i32) -> (i32, i32) {
    %c0_i32 = arith.constant 0 : i32
    %c0_i32_0 = arith.constant 0 : i32
    %c0_i32_1 = arith.constant 0 : i32
    return %c0_i32, %c0_i32_0 : i32, i32
  }
  func.func @transform_5(%arg0: i32) -> (i32, i32, i32) {
    %c0_i32 = arith.constant 0 : i32
    %c0_i32_0 = arith.constant 0 : i32
    %c0_i32_1 = arith.constant 0 : i32
    %c0_i32_2 = arith.constant 0 : i32
    return %c0_i32, %c0_i32_0, %c0_i32_1 : i32, i32, i32
  }
  func.func @transform_6(%arg0: i32) -> (i32, i32) {
    %c0_i32 = arith.constant 0 : i32
    %c0_i32_0 = arith.constant 0 : i32
    %c0_i32_1 = arith.constant 0 : i32
    return %c0_i32, %c0_i32_0 : i32, i32
  }
  func.func @transform_7(%arg0: i32) -> (i32, i32, i32) {
    %c0_i32 = arith.constant 0 : i32
    %c0_i32_0 = arith.constant 0 : i32
    %c0_i32_1 = arith.constant 0 : i32
    %c0_i32_2 = arith.constant 0 : i32
    return %c0_i32, %c0_i32_0, %c0_i32_1 : i32, i32, i32
  }
  func.func @transform_8(%arg0: i32) -> (i32, i32) {
    %c0_i32 = arith.constant 0 : i32
    %c0_i32_0 = arith.constant 0 : i32
    %c0_i32_1 = arith.constant 0 : i32
    return %c0_i32, %c0_i32_0 : i32, i32
  }
  func.func @transform_9(%arg0: i32) -> (i32, i32, i32) {
    %c0_i32 = arith.constant 0 : i32
    %c0_i32_0 = arith.constant 0 : i32
    %c0_i32_1 = arith.constant 0 : i32
    return %arg0, %c0_i32, %c0_i32_0 : i32, i32, i32
  }
}

</mosaic_0001>

<llo_original>
// kernel: tpu_custom_call.1
$region0: #{tpu_custom_call.1}
  #allocation0 [shape = 'u32[]', space=smem, size = 0x4, offset = 0x4, fixed_abs, tag = 'smem constant byte address 0x4 - core index']
  #allocation1 [shape = 'u32[144,128]{1,0:T(1,128)}', space=vmem, size = 0x12000, scoped, tag = 'internal scratch']
  %s0 = inlined_call_operand.hbm [shape: f32[8,128], index: 0, kind: input, shape index: {}]
  %s1 = inlined_call_operand.hbm [shape: f32[8,128], index: 1, kind: output, shape index: {}]
  %s2 = sld [smem:[#allocation0]]
  $region41: #{tpu_custom_call.1} parent=0
    _
  %s4 = ssub.s32 1, %s2
  %s5 = scalar_select 0, %s4, %s2
  $region1: #{tpu_custom_call.1} parent=0
    #allocation2 [shape = 'u8[4096]{0}', space=vmem, size = 0x1000, scoped, tag = 'input window, operand 0, single buffered']
    #allocation3 [shape = 's32[2]{0}', space=sflag, size = 0x8, scoped, tag = 'scoped memory for tpu_custom_call.1']
    #allocation4 [shape = 's32[2]{0}', space=sflag, size = 0x8, scoped, tag = 'scoped memory for tpu_custom_call.1']
    #allocation5 [shape = 'u8[4096]{0}', space=vmem, size = 0x1000, scoped, tag = 'output window, operand 0, single buffered']
    %6 = vsyncpa [#allocation3], 0
    %7 = vsyncpa [#allocation4], 0
    loop: start=0, step=1, limit=4
    $region2: #{tpu_custom_call.1} parent=1 // loop_pre_header
      _
    $region3: #{tpu_custom_call.1} parent=1 // loop_header
      %s9 = sphi 0, %s13
      %p10 = scmp.ge.s32.totalorder %s9, 4
      %s17 = sphi 0, %s17
      %s19 = sphi 0, %s17
      %s20 = sphi 0, %s19
      %s34 = sphi 0, %s20
      %s38 = sphi 0, %s38
      %s40 = sphi 0, %s38
      %s41 = sphi 0, %s40
      %s55 = sphi 0, %s41
    $region4: #{tpu_custom_call.1} parent=1 // loop_header_branch
      %12 = sbr.rel (%p10) target = $region8
    $region5: #{tpu_custom_call.1} parent=1 // loop_body
      %s14 = ssub.s32 %s9, 1
      %s15 = ssub.s32 %s9, 2
      %s16 = sadd.s32 %s9, 1
      %s18 = sadd.s32 %s17, 1
      %p21 = scmp.eq.s32.totalorder %s9, 1
      %p22 = scmp.ne.s32.totalorder %s17, %s19
      %p23 = scmp.eq.s32.totalorder %s9, 0
      %p24 = por %p22, %p23
      %p25 = scmp.ne.s32.totalorder %s17, %s19
      %p26 = scmp.eq.s32.totalorder %s14, 1
      %p27 = por %p25, %p26
      %p28 = scmp.ne.s32.totalorder %s19, %s20
      %p29 = scmp.eq.s32.totalorder %s14, 0
      %p30 = por %p28, %p29
      %p31 = scmp.ne.s32.totalorder %s19, %s20
      %p32 = scmp.eq.s32.totalorder %s15, 1
      %p33 = por %p31, %p32
      %p35 = scmp.ne.s32.totalorder %s20, %s34
      %p36 = scmp.eq.s32.totalorder %s15, 0
      %p37 = por %p35, %p36
      %s39 = sadd.s32 %s38, 1
      %p42 = scmp.eq.s32.totalorder %s9, 1
      %p43 = scmp.ne.s32.totalorder %s38, %s40
      %p44 = scmp.eq.s32.totalorder %s9, 0
      %p45 = por %p43, %p44
      %p46 = scmp.ne.s32.totalorder %s38, %s40
      %p47 = scmp.eq.s32.totalorder %s14, 1
      %p48 = por %p46, %p47
      %p49 = scmp.ne.s32.totalorder %s40, %s41
      %p50 = scmp.eq.s32.totalorder %s14, 0
      %p51 = por %p49, %p50
      %p52 = scmp.ne.s32.totalorder %s40, %s41
      %p53 = scmp.eq.s32.totalorder %s15, 1
      %p54 = por %p52, %p53
      %p56 = scmp.ne.s32.totalorder %s41, %s55
      %p57 = scmp.eq.s32.totalorder %s15, 0
      %p58 = por %p56, %p57
      %p59 = scmp.le.s32.totalorder 1, %s9
      %p60 = scmp.lt.s32.totalorder %s9, 3
      %p61 = pnand %p59, %p60
      %p62 = pneg %p61
      // Predicated region
      $region9: #{tpu_custom_call.1} parent=5 // pred_check
        _
      $region10: #{tpu_custom_call.1} parent=5 // pred_check_branch
        %64 = sbr.rel (%p61) target = $region12
      $region11: #{tpu_custom_call.1} parent=5 // pred_region
        %s65 = ssub.s32 %s9, 1
        // Predicated region
        $region13: #{tpu_custom_call.1} parent=11 // pred_check
          %p66 = pneg %p30
        $region14: #{tpu_custom_call.1} parent=11 // pred_check_branch
          %68 = sbr.rel (%p66) target = $region16
        $region15: #{tpu_custom_call.1} parent=11 // pred_region
          %s70 = ssub.s32 128, 128
          %71 = vsyncadd [#allocation3], %s70
          %s73 = sshll.u32 [#allocation2], 4
          %s74 = int_to_ptr.vmem [resolvable:$true] %s73
          %76 = dma.hbm_to_vmem [thread:$0]  %s0, 128, %s74, [#allocation3]
        $region16: #{tpu_custom_call.1} parent=11 // pred_fallthru
          _
      $region12: #{tpu_custom_call.1} parent=5 // pred_fallthru
        _
      %p77 = scmp.lt.s32.totalorder %s9, 2
      // Predicated region
      $region17: #{tpu_custom_call.1} parent=5 // pred_check
        %p78 = pneg %p77
      $region18: #{tpu_custom_call.1} parent=5 // pred_check_branch
        %80 = sbr.rel (%p78) target = $region20
      $region19: #{tpu_custom_call.1} parent=5 // pred_region
        _
      $region20: #{tpu_custom_call.1} parent=5 // pred_fallthru
        _
      %p81 = scmp.le.s32.totalorder 1, %s9
      %p82 = scmp.lt.s32.totalorder %s9, 3
      %p83 = pnand %p81, %p82
      %p84 = pneg %p83
      // Predicated region
      $region21: #{tpu_custom_call.1} parent=5 // pred_check
        _
      $region22: #{tpu_custom_call.1} parent=5 // pred_check_branch
        %86 = sbr.rel (%p83) target = $region24
      $region23: #{tpu_custom_call.1} parent=5 // pred_region
        %s87 = ssub.s32 %s9, 1
        // Predicated region
        $region25: #{tpu_custom_call.1} parent=23 // pred_check
          %p88 = pneg %p30
        $region26: #{tpu_custom_call.1} parent=23 // pred_check_branch
          %90 = sbr.rel (%p88) target = $region28
        $region27: #{tpu_custom_call.1} parent=23 // pred_region
          %91 = dma.done [#allocation3], 128
        $region28: #{tpu_custom_call.1} parent=23 // pred_fallthru
          _
        %p92 = pneg %p30
        %p93 = pneg %p27
        %p94 = pneg %p51
        %p95 = pneg %p48
        %v96 = vld [vmem:[#allocation2] sm:$0xff]
        %v97 = vmul.f32 %v96, 2.0
        %98 = vst [vmem:[#allocation5] sm:$0xff] %v97
        // Predicated region
        $region29: #{tpu_custom_call.1} parent=23 // pred_check
          %p99 = pneg %p48
        $region30: #{tpu_custom_call.1} parent=23 // pred_check_branch
          %101 = sbr.rel (%p99) target = $region32
        $region31: #{tpu_custom_call.1} parent=23 // pred_region
          %s103 = ssub.s32 128, 128
          %104 = vsyncadd [#allocation4], %s103
          %s106 = sshll.u32 [#allocation5], 4
          %s107 = int_to_ptr.vmem [resolvable:$true] %s106
          %109 = dma.vmem_to_hbm [thread:$0]  %s107, 128, %s1, [#allocation4]
        $region32: #{tpu_custom_call.1} parent=23 // pred_fallthru
          _
        // Predicated region
        $region33: #{tpu_custom_call.1} parent=23 // pred_check
          %p110 = pneg %p48
        $region34: #{tpu_custom_call.1} parent=23 // pred_check_branch
          %112 = sbr.rel (%p110) target = $region36
        $region35: #{tpu_custom_call.1} parent=23 // pred_region
          %113 = dma.done [#allocation4], 128
        $region36: #{tpu_custom_call.1} parent=23 // pred_fallthru
          _
      $region24: #{tpu_custom_call.1} parent=5 // pred_fallthru
        _
      %p114 = scmp.le.s32.totalorder 2, %s9
      // Predicated region
      $region37: #{tpu_custom_call.1} parent=5 // pred_check
        %p115 = pneg %p114
      $region38: #{tpu_custom_call.1} parent=5 // pred_check_branch
        %117 = sbr.rel (%p115) target = $region40
      $region39: #{tpu_custom_call.1} parent=5 // pred_region
        %s118 = ssub.s32 %s9, 2
      $region40: #{tpu_custom_call.1} parent=5 // pred_fallthru
        _
    $region6: #{tpu_custom_call.1} parent=1 // loop_footer
      %s13 = sadd.s32 1, %s9
    $region7: #{tpu_custom_call.1} parent=1 // loop_footer_branch
      %8 = sbr.rel target = $region3
    $region8: #{tpu_custom_call.1} parent=1 // loop_exit
      _
    %119 = vsyncpa [#allocation3], 1
    %s120 = scalar_lea.sflag [#allocation3], 1
    %121 = vsyncpa %s120, 1
    %122 = vsyncpa [#allocation4], 1
    %s123 = scalar_lea.sflag [#allocation4], 1
    %124 = vsyncpa %s123, 1

// kernel: _ode_forward.1
$region0: #{_ode_forward.1}
  #allocation0 [shape = 'u32[]', space=smem, size = 0x4, offset = 0x4, fixed_abs, tag = 'smem constant byte address 0x4 - core index']
  #allocation1 [shape = 'u32[144,128]{1,0:T(1,128)}', space=vmem, size = 0x12000, scoped, tag = 'internal scratch']
  #allocation2 [shape = 'f32[288,24]{1,0:T(8,128)}', space=vmem, size = 0x24000, scoped, tag = 'scratch operand']
  %s0 = inlined_call_operand.vmem [shape: f32[2,3,256], index: 0, kind: input, shape index: {}]
  %s1 = inlined_call_operand.vmem [shape: f32[3,9,8], index: 1, kind: input, shape index: {}]
  %s2 = inlined_call_operand.vmem [shape: f32[1,8], index: 2, kind: input, shape index: {}]
  %s3 = inlined_call_operand.vmem [shape: f32[3,24,8], index: 3, kind: input, shape index: {}]
  %s4 = inlined_call_operand.vmem [shape: f32[1,8], index: 4, kind: input, shape index: {}]
  %s5 = inlined_call_operand.vmem [shape: f32[3,24,8], index: 5, kind: input, shape index: {}]
  %s6 = inlined_call_operand.vmem [shape: f32[1,8], index: 6, kind: input, shape index: {}]
  %s7 = inlined_call_operand.vmem [shape: f32[3,24,3], index: 7, kind: input, shape index: {}]
  %s8 = inlined_call_operand.vmem [shape: f32[1,3], index: 8, kind: input, shape index: {}]
  %s9 = inlined_call_operand.vmem [shape: f32[2,3,256], index: 9, kind: output, shape index: {}]
  %s10 = sld [smem:[#allocation0]]
  $region69: #{_ode_forward.1} parent=0
    _
  %s12 = ssub.s32 1, %s10
  %s13 = scalar_select 0, %s12, %s10
  loop: start=0, step=1, limit=4
  $region2: #{_ode_forward.1} parent=0 // loop_pre_header
    _
  $region3: #{_ode_forward.1} parent=0 // loop_header
    %s15 = sphi 0, %s19
    %p16 = scmp.ge.s32.totalorder %s15, 4
    %s25 = sphi 0, %s27
    %s28 = sphi 0, %s25
    %s29 = sphi 0, %s28
    %s45 = sphi 0, %s29
    %s49 = sphi 0, %s49
    %s51 = sphi 0, %s49
    %s52 = sphi 0, %s51
    %s66 = sphi 0, %s52
    %s70 = sphi 0, %s70
    %s72 = sphi 0, %s70
    %s73 = sphi 0, %s72
    %s87 = sphi 0, %s73
    %s91 = sphi 0, %s91
    %s93 = sphi 0, %s91
    %s94 = sphi 0, %s93
    %s108 = sphi 0, %s94
    %s112 = sphi 0, %s112
    %s114 = sphi 0, %s112
    %s115 = sphi 0, %s114
    %s129 = sphi 0, %s115
    %s133 = sphi 0, %s133
    %s135 = sphi 0, %s133
    %s136 = sphi 0, %s135
    %s150 = sphi 0, %s136
    %s154 = sphi 0, %s154
    %s156 = sphi 0, %s154
    %s157 = sphi 0, %s156
    %s171 = sphi 0, %s157
    %s175 = sphi 0, %s175
    %s177 = sphi 0, %s175
    %s178 = sphi 0, %s177
    %s192 = sphi 0, %s178
    %s196 = sphi 0, %s196
    %s198 = sphi 0, %s196
    %s199 = sphi 0, %s198
    %s213 = sphi 0, %s199
    %s219 = sphi 0, %s221
    %s222 = sphi 0, %s219
    %s223 = sphi 0, %s222
    %s239 = sphi 0, %s223
  $region4: #{_ode_forward.1} parent=0 // loop_header_branch
    %18 = sbr.rel (%p16) target = $region8
  $region5: #{_ode_forward.1} parent=0 // loop_body
    %s20 = ssub.s32 %s15, 1
    %s21 = ssub.s32 %s15, 2
    %s22 = sadd.s32 %s15, 1
    %s23 = ssub.s32 %s15, %s22
    %p24 = scmp.eq.s32.totalorder %s23, 0
    %s26 = sadd.s32 %s25, 1
    %s27 = scalar_select %p24, %s25, %s26
    %p30 = pneg %p24
    %p31 = scmp.eq.s32.totalorder %s15, 1
    %p32 = por %p30, %p31
    %p33 = scmp.ne.s32.totalorder %s25, %s28
    %p34 = scmp.eq.s32.totalorder %s15, 0
    %p35 = por %p33, %p34
    %p36 = scmp.ne.s32.totalorder %s25, %s28
    %p37 = scmp.eq.s32.totalorder %s20, 1
    %p38 = por %p36, %p37
    %p39 = scmp.ne.s32.totalorder %s28, %s29
    %p40 = scmp.eq.s32.totalorder %s20, 0
    %p41 = por %p39, %p40
    %p42 = scmp.ne.s32.totalorder %s28, %s29
    %p43 = scmp.eq.s32.totalorder %s21, 1
    %p44 = por %p42, %p43
    %p46 = scmp.ne.s32.totalorder %s29, %s45
    %p47 = scmp.eq.s32.totalorder %s21, 0
    %p48 = por %p46, %p47
    %s50 = sadd.s32 %s49, 1
    %p53 = scmp.eq.s32.totalorder %s15, 1
    %p54 = scmp.ne.s32.totalorder %s49, %s51
    %p55 = scmp.eq.s32.totalorder %s15, 0
    %p56 = por %p54, %p55
    %p57 = scmp.ne.s32.totalorder %s49, %s51
    %p58 = scmp.eq.s32.totalorder %s20, 1
    %p59 = por %p57, %p58
    %p60 = scmp.ne.s32.totalorder %s51, %s52
    %p61 = scmp.eq.s32.totalorder %s20, 0
    %p62 = por %p60, %p61
    %p63 = scmp.ne.s32.totalorder %s51, %s52
    %p64 = scmp.eq.s32.totalorder %s21, 1
    %p65 = por %p63, %p64
    %p67 = scmp.ne.s32.totalorder %s52, %s66
    %p68 = scmp.eq.s32.totalorder %s21, 0
    %p69 = por %p67, %p68
    %s71 = sadd.s32 %s70, 1
    %p74 = scmp.eq.s32.totalorder %s15, 1
    %p75 = scmp.ne.s32.totalorder %s70, %s72
    %p76 = scmp.eq.s32.totalorder %s15, 0
    %p77 = por %p75, %p76
    %p78 = scmp.ne.s32.totalorder %s70, %s72
    %p79 = scmp.eq.s32.totalorder %s20, 1
    %p80 = por %p78, %p79
    %p81 = scmp.ne.s32.totalorder %s72, %s73
    %p82 = scmp.eq.s32.totalorder %s20, 0
    %p83 = por %p81, %p82
    %p84 = scmp.ne.s32.totalorder %s72, %s73
    %p85 = scmp.eq.s32.totalorder %s21, 1
    %p86 = por %p84, %p85
    %p88 = scmp.ne.s32.totalorder %s73, %s87
    %p89 = scmp.eq.s32.totalorder %s21, 0
    %p90 = por %p88, %p89
    %s92 = sadd.s32 %s91, 1
    %p95 = scmp.eq.s32.totalorder %s15, 1
    %p96 = scmp.ne.s32.totalorder %s91, %s93
    %p97 = scmp.eq.s32.totalorder %s15, 0
    %p98 = por %p96, %p97
    %p99 = scmp.ne.s32.totalorder %s91, %s93
    %p100 = scmp.eq.s32.totalorder %s20, 1
    %p101 = por %p99, %p100
    %p102 = scmp.ne.s32.totalorder %s93, %s94
    %p103 = scmp.eq.s32.totalorder %s20, 0
    %p104 = por %p102, %p103
    %p105 = scmp.ne.s32.totalorder %s93, %s94
    %p106 = scmp.eq.s32.totalorder %s21, 1
    %p107 = por %p105, %p106
    %p109 = scmp.ne.s32.totalorder %s94, %s108
    %p110 = scmp.eq.s32.totalorder %s21, 0
    %p111 = por %p109, %p110
    %s113 = sadd.s32 %s112, 1
    %p116 = scmp.eq.s32.totalorder %s15, 1
    %p117 = scmp.ne.s32.totalorder %s112, %s114
    %p118 = scmp.eq.s32.totalorder %s15, 0
    %p119 = por %p117, %p118
    %p120 = scmp.ne.s32.totalorder %s112, %s114
    %p121 = scmp.eq.s32.totalorder %s20, 1
    %p122 = por %p120, %p121
    %p123 = scmp.ne.s32.totalorder %s114, %s115
    %p124 = scmp.eq.s32.totalorder %s20, 0
    %p125 = por %p123, %p124
    %p126 = scmp.ne.s32.totalorder %s114, %s115
    %p127 = scmp.eq.s32.totalorder %s21, 1
    %p128 = por %p126, %p127
    %p130 = scmp.ne.s32.totalorder %s115, %s129
    %p131 = scmp.eq.s32.totalorder %s21, 0
    %p132 = por %p130, %p131
    %s134 = sadd.s32 %s133, 1
    %p137 = scmp.eq.s32.totalorder %s15, 1
    %p138 = scmp.ne.s32.totalorder %s133, %s135
    %p139 = scmp.eq.s32.totalorder %s15, 0
    %p140 = por %p138, %p139
    %p141 = scmp.ne.s32.totalorder %s133, %s135
    %p142 = scmp.eq.s32.totalorder %s20, 1
    %p143 = por %p141, %p142
    %p144 = scmp.ne.s32.totalorder %s135, %s136
    %p145 = scmp.eq.s32.totalorder %s20, 0
    %p146 = por %p144, %p145
    %p147 = scmp.ne.s32.totalorder %s135, %s136
    %p148 = scmp.eq.s32.totalorder %s21, 1
    %p149 = por %p147, %p148
    %p151 = scmp.ne.s32.totalorder %s136, %s150
    %p152 = scmp.eq.s32.totalorder %s21, 0
    %p153 = por %p151, %p152
    %s155 = sadd.s32 %s154, 1
    %p158 = scmp.eq.s32.totalorder %s15, 1
    %p159 = scmp.ne.s32.totalorder %s154, %s156
    %p160 = scmp.eq.s32.totalorder %s15, 0
    %p161 = por %p159, %p160
    %p162 = scmp.ne.s32.totalorder %s154, %s156
    %p163 = scmp.eq.s32.totalorder %s20, 1
    %p164 = por %p162, %p163
    %p165 = scmp.ne.s32.totalorder %s156, %s157
    %p166 = scmp.eq.s32.totalorder %s20, 0
    %p167 = por %p165, %p166
    %p168 = scmp.ne.s32.totalorder %s156, %s157
    %p169 = scmp.eq.s32.totalorder %s21, 1
    %p170 = por %p168, %p169
    %p172 = scmp.ne.s32.totalorder %s157, %s171
    %p173 = scmp.eq.s32.totalorder %s21, 0
    %p174 = por %p172, %p173
    %s176 = sadd.s32 %s175, 1
    %p179 = scmp.eq.s32.totalorder %s15, 1
    %p180 = scmp.ne.s32.totalorder %s175, %s177
    %p181 = scmp.eq.s32.totalorder %s15, 0
    %p182 = por %p180, %p181
    %p183 = scmp.ne.s32.totalorder %s175, %s177
    %p184 = scmp.eq.s32.totalorder %s20, 1
    %p185 = por %p183, %p184
    %p186 = scmp.ne.s32.totalorder %s177, %s178
    %p187 = scmp.eq.s32.totalorder %s20, 0
    %p188 = por %p186, %p187
    %p189 = scmp.ne.s32.totalorder %s177, %s178
    %p190 = scmp.eq.s32.totalorder %s21, 1
    %p191 = por %p189, %p190
    %p193 = scmp.ne.s32.totalorder %s178, %s192
    %p194 = scmp.eq.s32.totalorder %s21, 0
    %p195 = por %p193, %p194
    %s197 = sadd.s32 %s196, 1
    %p200 = scmp.eq.s32.totalorder %s15, 1
    %p201 = scmp.ne.s32.totalorder %s196, %s198
    %p202 = scmp.eq.s32.totalorder %s15, 0
    %p203 = por %p201, %p202
    %p204 = scmp.ne.s32.totalorder %s196, %s198
    %p205 = scmp.eq.s32.totalorder %s20, 1
    %p206 = por %p204, %p205
    %p207 = scmp.ne.s32.totalorder %s198, %s199
    %p208 = scmp.eq.s32.totalorder %s20, 0
    %p209 = por %p207, %p208
    %p210 = scmp.ne.s32.totalorder %s198, %s199
    %p211 = scmp.eq.s32.totalorder %s21, 1
    %p212 = por %p210, %p211
    %p214 = scmp.ne.s32.totalorder %s199, %s213
    %p215 = scmp.eq.s32.totalorder %s21, 0
    %p216 = por %p214, %p215
    %s217 = ssub.s32 %s15, %s22
    %p218 = scmp.eq.s32.totalorder %s217, 0
    %s220 = sadd.s32 %s219, 1
    %s221 = scalar_select %p218, %s219, %s220
    %p224 = pneg %p218
    %p225 = scmp.eq.s32.totalorder %s15, 1
    %p226 = por %p224, %p225
    %p227 = scmp.ne.s32.totalorder %s219, %s222
    %p228 = scmp.eq.s32.totalorder %s15, 0
    %p229 = por %p227, %p228
    %p230 = scmp.ne.s32.totalorder %s219, %s222
    %p231 = scmp.eq.s32.totalorder %s20, 1
    %p232 = por %p230, %p231
    %p233 = scmp.ne.s32.totalorder %s222, %s223
    %p234 = scmp.eq.s32.totalorder %s20, 0
    %p235 = por %p233, %p234
    %p236 = scmp.ne.s32.totalorder %s222, %s223
    %p237 = scmp.eq.s32.totalorder %s21, 1
    %p238 = por %p236, %p237
    %p240 = scmp.ne.s32.totalorder %s223, %s239
    %p241 = scmp.eq.s32.totalorder %s21, 0
    %p242 = por %p240, %p241
    %p243 = scmp.le.s32.totalorder 1, %s15
    %p244 = scmp.lt.s32.totalorder %s15, 3
    %p245 = pnand %p243, %p244
    %p246 = pneg %p245
    // Predicated region
    $region9: #{_ode_forward.1} parent=5 // pred_check
      _
    $region10: #{_ode_forward.1} parent=5 // pred_check_branch
      %248 = sbr.rel (%p245) target = $region12
    $region11: #{_ode_forward.1} parent=5 // pred_region
      %s249 = ssub.s32 %s15, 1
      // Predicated region
      $region13: #{_ode_forward.1} parent=11 // pred_check
        %p250 = pneg %p62
      $region14: #{_ode_forward.1} parent=11 // pred_check_branch
        %252 = sbr.rel (%p250) target = $region16
      $region15: #{_ode_forward.1} parent=11 // pred_region
        _
      $region16: #{_ode_forward.1} parent=11 // pred_fallthru
        _
      // Predicated region
      $region17: #{_ode_forward.1} parent=11 // pred_check
        %p253 = pneg %p83
      $region18: #{_ode_forward.1} parent=11 // pred_check_branch
        %255 = sbr.rel (%p253) target = $region20
      $region19: #{_ode_forward.1} parent=11 // pred_region
        _
      $region20: #{_ode_forward.1} parent=11 // pred_fallthru
        _
      // Predicated region
      $region21: #{_ode_forward.1} parent=11 // pred_check
        %p256 = pneg %p104
      $region22: #{_ode_forward.1} parent=11 // pred_check_branch
        %258 = sbr.rel (%p256) target = $region24
      $region23: #{_ode_forward.1} parent=11 // pred_region
        _
      $region24: #{_ode_forward.1} parent=11 // pred_fallthru
        _
      // Predicated region
      $region25: #{_ode_forward.1} parent=11 // pred_check
        %p259 = pneg %p125
      $region26: #{_ode_forward.1} parent=11 // pred_check_branch
        %261 = sbr.rel (%p259) target = $region28
      $region27: #{_ode_forward.1} parent=11 // pred_region
        _
      $region28: #{_ode_forward.1} parent=11 // pred_fallthru
        _
      // Predicated region
      $region29: #{_ode_forward.1} parent=11 // pred_check
        %p262 = pneg %p146
      $region30: #{_ode_forward.1} parent=11 // pred_check_branch
        %264 = sbr.rel (%p262) target = $region32
      $region31: #{_ode_forward.1} parent=11 // pred_region
        _
      $region32: #{_ode_forward.1} parent=11 // pred_fallthru
        _
      // Predicated region
      $region33: #{_ode_forward.1} parent=11 // pred_check
        %p265 = pneg %p167
      $region34: #{_ode_forward.1} parent=11 // pred_check_branch
        %267 = sbr.rel (%p265) target = $region36
      $region35: #{_ode_forward.1} parent=11 // pred_region
        _
      $region36: #{_ode_forward.1} parent=11 // pred_fallthru
        _
      // Predicated region
      $region37: #{_ode_forward.1} parent=11 // pred_check
        %p268 = pneg %p188
      $region38: #{_ode_forward.1} parent=11 // pred_check_branch
        %270 = sbr.rel (%p268) target = $region40
      $region39: #{_ode_forward.1} parent=11 // pred_region
        _
      $region40: #{_ode_forward.1} parent=11 // pred_fallthru
        _
      // Predicated region
      $region41: #{_ode_forward.1} parent=11 // pred_check
        %p271 = pneg %p209
      $region42: #{_ode_forward.1} parent=11 // pred_check_branch
        %273 = sbr.rel (%p271) target = $region44
      $region43: #{_ode_forward.1} parent=11 // pred_region
        _
      $region44: #{_ode_forward.1} parent=11 // pred_fallthru
        _
    $region12: #{_ode_forward.1} parent=5 // pred_fallthru
      _
    %p274 = scmp.lt.s32.totalorder %s15, 2
    // Predicated region
    $region45: #{_ode_forward.1} parent=5 // pred_check
      %p275 = pneg %p274
    $region46: #{_ode_forward.1} parent=5 // pred_check_branch
      %277 = sbr.rel (%p275) target = $region48
    $region47: #{_ode_forward.1} parent=5 // pred_region
      // Predicated region
      $region49: #{_ode_forward.1} parent=47 // pred_check
        %p278 = pneg %p35
      $region50: #{_ode_forward.1} parent=47 // pred_check_branch
        %280 = sbr.rel (%p278) target = $region52
      $region51: #{_ode_forward.1} parent=47 // pred_region
        %p281 = scmp.lt.s32.totalorder %s15, 1
        %s282 = scalar_select %p281, %s15, 1
        %s283 = smul.addr %s282, 2
        %s284 = smul.addr %s283, 4
        %s285 = scalar_lea.vmem %s0, %s284
      $region52: #{_ode_forward.1} parent=47 // pred_fallthru
        _
    $region48: #{_ode_forward.1} parent=5 // pred_fallthru
      _
    %p286 = scmp.le.s32.totalorder 1, %s15
    %p287 = scmp.lt.s32.totalorder %s15, 3
    %p288 = pnand %p286, %p287
    %p289 = pneg %p288
    // Predicated region
    $region53: #{_ode_forward.1} parent=5 // pred_check
      _
    $region54: #{_ode_forward.1} parent=5 // pred_check_branch
      %291 = sbr.rel (%p288) target = $region56
    $region55: #{_ode_forward.1} parent=5 // pred_region
      %s292 = ssub.s32 %s15, 1
      %p293 = scmp.lt.s32.totalorder %s20, 1
      %s294 = scalar_select %p293, %s20, 1
      %s295 = smul.addr %s294, 2
      %s296 = smul.addr %s295, 4
      %s297 = scalar_lea.vmem %s0, %s296
      %p298 = pneg %p41
      %p299 = pneg %p38
      %p300 = pneg %p62
      %p301 = pneg %p59
      %p302 = pneg %p83
      %p303 = pneg %p80
      %p304 = pneg %p104
      %p305 = pneg %p101
      %p306 = pneg %p125
      %p307 = pneg %p122
      %p308 = pneg %p146
      %p309 = pneg %p143
      %p310 = pneg %p167
      %p311 = pneg %p164
      %p312 = pneg %p188
      %p313 = pneg %p185
      %p314 = pneg %p209
      %p315 = pneg %p206
      %p316 = pneg %p235
      %p317 = pneg %p232
      %p318 = scmp.lt.s32.totalorder %s20, 1
      %s319 = scalar_select %p318, %s20, 1
      %s320 = smul.addr %s319, 2
      %s321 = smul.addr %s320, 4
      %s322 = scalar_lea.vmem %s9, %s321
      %p323 = scmp.lt.s32.totalorder %s20, 1
      %s324 = scalar_select %p323, %s20, 1
      %s325 = smul.addr %s324, 2
      %s326 = smul.addr %s325, 4
      %s327 = scalar_lea.vmem %s0, %s326
      %p328 = scmp.lt.s32.totalorder %s20, 1
      %s329 = scalar_select %p328, %s20, 1
      %s330 = smul.addr %s329, 2
      %s331 = smul.addr %s330, 4
      %s332 = scalar_lea.vmem %s9, %s331
      %v333 = vlaneseq
      %v334 = vshrl.u32 %v333, 7
      %v335 = vadd.s32 %v334, 8
      %v336 = vadd.s32 %v334, 16
      %v337 = vadd.s32 %v334, 24
      %v338 = vadd.s32 %v334, 32
      %v339 = vadd.s32 %v334, 40
      %v340 = vadd.s32 %v334, 48
      %v341 = vadd.s32 %v334, 56
      %v342 = vadd.s32 %v334, 64
      %v343 = vadd.s32 %v334, 72
      %v344 = vadd.s32 %v334, 80
      %v345 = vadd.s32 %v334, 88
      %v346 = vadd.s32 %v334, 96
      %v347 = vadd.s32 %v334, 104
      %v348 = vadd.s32 %v334, 112
      %v349 = vadd.s32 %v334, 120
      %v350 = vadd.s32 %v334, 128
      %v351 = vadd.s32 %v334, 136
      %v352 = vadd.s32 %v334, 144
      %v353 = vadd.s32 %v334, 152
      %v354 = vadd.s32 %v334, 160
      %v355 = vadd.s32 %v334, 168
      %v356 = vadd.s32 %v334, 176
      %v357 = vadd.s32 %v334, 184
      %v358 = vadd.s32 %v334, 192
      %v359 = vadd.s32 %v334, 200
      %v360 = vadd.s32 %v334, 208
      %v361 = vadd.s32 %v334, 216
      %v362 = vadd.s32 %v334, 224
      %v363 = vadd.s32 %v334, 232
      %v364 = vadd.s32 %v334, 240
      %v365 = vadd.s32 %v334, 248
      %v366 = vadd.s32 %v334, 256
      %v367 = vadd.s32 %v334, 264
      %v368 = vadd.s32 %v334, 272
      %v369 = vadd.s32 %v334, 280
      %vm370 = vcmp.lt.s32.totalorder %v334, 0
      %v371 = vsub.s32 0, %v334
      %v372 = vsel %vm370, %v371, %v334
      %v373 = vshrl.u32 %v372, 4
      %v374 = vand.u32 %v372, 15
      %v375 = vsub.s32 0, %v374
      %v376 = vsel %vm370, %v375, %v374
      %vm377 = vcmp.lt.s32.totalorder %v335, 0
      %v378 = vsub.s32 0, %v335
      %v379 = vsel %vm377, %v378, %v335
      %v380 = vshrl.u32 %v379, 4
      %v381 = vand.u32 %v379, 15
      %v382 = vsub.s32 0, %v381
      %v383 = vsel %vm377, %v382, %v381
      %vm384 = vcmp.lt.s32.totalorder %v336, 0
      %v385 = vsub.s32 0, %v336
      %v386 = vsel %vm384, %v385, %v336
      %v387 = vshrl.u32 %v386, 4
      %v388 = vand.u32 %v386, 15
      %v389 = vsub.s32 0, %v388
      %v390 = vsel %vm384, %v389, %v388
      %vm391 = vcmp.lt.s32.totalorder %v337, 0
      %v392 = vsub.s32 0, %v337
      %v393 = vsel %vm391, %v392, %v337
      %v394 = vshrl.u32 %v393, 4
      %v395 = vand.u32 %v393, 15
      %v396 = vsub.s32 0, %v395
      %v397 = vsel %vm391, %v396, %v395
      %vm398 = vcmp.lt.s32.totalorder %v338, 0
      %v399 = vsub.s32 0, %v338
      %v400 = vsel %vm398, %v399, %v338
      %v401 = vshrl.u32 %v400, 4
      %v402 = vand.u32 %v400, 15
      %v403 = vsub.s32 0, %v402
      %v404 = vsel %vm398, %v403, %v402
      %vm405 = vcmp.lt.s32.totalorder %v339, 0
      %v406 = vsub.s32 0, %v339
      %v407 = vsel %vm405, %v406, %v339
      %v408 = vshrl.u32 %v407, 4
      %v409 = vand.u32 %v407, 15
      %v410 = vsub.s32 0, %v409
      %v411 = vsel %vm405, %v410, %v409
      %vm412 = vcmp.lt.s32.totalorder %v340, 0
      %v413 = vsub.s32 0, %v340
      %v414 = vsel %vm412, %v413, %v340
      %v415 = vshrl.u32 %v414, 4
      %v416 = vand.u32 %v414, 15
      %v417 = vsub.s32 0, %v416
      %v418 = vsel %vm412, %v417, %v416
      %vm419 = vcmp.lt.s32.totalorder %v341, 0
      %v420 = vsub.s32 0, %v341
      %v421 = vsel %vm419, %v420, %v341
      %v422 = vshrl.u32 %v421, 4
      %v423 = vand.u32 %v421, 15
      %v424 = vsub.s32 0, %v423
      %v425 = vsel %vm419, %v424, %v423
      %vm426 = vcmp.lt.s32.totalorder %v342, 0
      %v427 = vsub.s32 0, %v342
      %v428 = vsel %vm426, %v427, %v342
      %v429 = vshrl.u32 %v428, 4
      %v430 = vand.u32 %v428, 15
      %v431 = vsub.s32 0, %v430
      %v432 = vsel %vm426, %v431, %v430
      %vm433 = vcmp.lt.s32.totalorder %v343, 0
      %v434 = vsub.s32 0, %v343
      %v435 = vsel %vm433, %v434, %v343
      %v436 = vshrl.u32 %v435, 4
      %v437 = vand.u32 %v435, 15
      %v438 = vsub.s32 0, %v437
      %v439 = vsel %vm433, %v438, %v437
      %vm440 = vcmp.lt.s32.totalorder %v344, 0
      %v441 = vsub.s32 0, %v344
      %v442 = vsel %vm440, %v441, %v344
      %v443 = vshrl.u32 %v442, 4
      %v444 = vand.u32 %v442, 15
      %v445 = vsub.s32 0, %v444
      %v446 = vsel %vm440, %v445, %v444
      %vm447 = vcmp.lt.s32.totalorder %v345, 0
      %v448 = vsub.s32 0, %v345
      %v449 = vsel %vm447, %v448, %v345
      %v450 = vshrl.u32 %v449, 4
      %v451 = vand.u32 %v449, 15
      %v452 = vsub.s32 0, %v451
      %v453 = vsel %vm447, %v452, %v451
      %vm454 = vcmp.lt.s32.totalorder %v346, 0
      %v455 = vsub.s32 0, %v346
      %v456 = vsel %vm454, %v455, %v346
      %v457 = vshrl.u32 %v456, 4
      %v458 = vand.u32 %v456, 15
      %v459 = vsub.s32 0, %v458
      %v460 = vsel %vm454, %v459, %v458
      %vm461 = vcmp.lt.s32.totalorder %v347, 0
      %v462 = vsub.s32 0, %v347
      %v463 = vsel %vm461, %v462, %v347
      %v464 = vshrl.u32 %v463, 4
      %v465 = vand.u32 %v463, 15
      %v466 = vsub.s32 0, %v465
      %v467 = vsel %vm461, %v466, %v465
      %vm468 = vcmp.lt.s32.totalorder %v348, 0
      %v469 = vsub.s32 0, %v348
      %v470 = vsel %vm468, %v469, %v348
      %v471 = vshrl.u32 %v470, 4
      %v472 = vand.u32 %v470, 15
      %v473 = vsub.s32 0, %v472
      %v474 = vsel %vm468, %v473, %v472
      %vm475 = vcmp.lt.s32.totalorder %v349, 0
      %v476 = vsub.s32 0, %v349
      %v477 = vsel %vm475, %v476, %v349
      %v478 = vshrl.u32 %v477, 4
      %v479 = vand.u32 %v477, 15
      %v480 = vsub.s32 0, %v479
      %v481 = vsel %vm475, %v480, %v479
      %vm482 = vcmp.lt.s32.totalorder %v350, 0
      %v483 = vsub.s32 0, %v350
      %v484 = vsel %vm482, %v483, %v350
      %v485 = vshrl.u32 %v484, 4
      %v486 = vand.u32 %v484, 15
      %v487 = vsub.s32 0, %v486
      %v488 = vsel %vm482, %v487, %v486
      %vm489 = vcmp.lt.s32.totalorder %v351, 0
      %v490 = vsub.s32 0, %v351
      %v491 = vsel %vm489, %v490, %v351
      %v492 = vshrl.u32 %v491, 4
      %v493 = vand.u32 %v491, 15
      %v494 = vsub.s32 0, %v493
      %v495 = vsel %vm489, %v494, %v493
      %vm496 = vcmp.lt.s32.totalorder %v352, 0
      %v497 = vsub.s32 0, %v352
      %v498 = vsel %vm496, %v497, %v352
      %v499 = vshrl.u32 %v498, 4
      %v500 = vand.u32 %v498, 15
      %v501 = vsub.s32 0, %v500
      %v502 = vsel %vm496, %v501, %v500
      %vm503 = vcmp.lt.s32.totalorder %v353, 0
      %v504 = vsub.s32 0, %v353
      %v505 = vsel %vm503, %v504, %v353
      %v506 = vshrl.u32 %v505, 4
      %v507 = vand.u32 %v505, 15
      %v508 = vsub.s32 0, %v507
      %v509 = vsel %vm503, %v508, %v507
      %vm510 = vcmp.lt.s32.totalorder %v354, 0
      %v511 = vsub.s32 0, %v354
      %v512 = vsel %vm510, %v511, %v354
      %v513 = vshrl.u32 %v512, 4
      %v514 = vand.u32 %v512, 15
      %v515 = vsub.s32 0, %v514
      %v516 = vsel %vm510, %v515, %v514
      %vm517 = vcmp.lt.s32.totalorder %v355, 0
      %v518 = vsub.s32 0, %v355
      %v519 = vsel %vm517, %v518, %v355
      %v520 = vshrl.u32 %v519, 4
      %v521 = vand.u32 %v519, 15
      %v522 = vsub.s32 0, %v521
      %v523 = vsel %vm517, %v522, %v521
      %vm524 = vcmp.lt.s32.totalorder %v356, 0
      %v525 = vsub.s32 0, %v356
      %v526 = vsel %vm524, %v525, %v356
      %v527 = vshrl.u32 %v526, 4
      %v528 = vand.u32 %v526, 15
      %v529 = vsub.s32 0, %v528
      %v530 = vsel %vm524, %v529, %v528
      %vm531 = vcmp.lt.s32.totalorder %v357, 0
      %v532 = vsub.s32 0, %v357
      %v533 = vsel %vm531, %v532, %v357
      %v534 = vshrl.u32 %v533, 4
      %v535 = vand.u32 %v533, 15
      %v536 = vsub.s32 0, %v535
      %v537 = vsel %vm531, %v536, %v535
      %vm538 = vcmp.lt.s32.totalorder %v358, 0
      %v539 = vsub.s32 0, %v358
      %v540 = vsel %vm538, %v539, %v358
      %v541 = vshrl.u32 %v540, 4
      %v542 = vand.u32 %v540, 15
      %v543 = vsub.s32 0, %v542
      %v544 = vsel %vm538, %v543, %v542
      %vm545 = vcmp.lt.s32.totalorder %v359, 0
      %v546 = vsub.s32 0, %v359
      %v547 = vsel %vm545, %v546, %v359
      %v548 = vshrl.u32 %v547, 4
      %v549 = vand.u32 %v547, 15
      %v550 = vsub.s32 0, %v549
      %v551 = vsel %vm545, %v550, %v549
      %vm552 = vcmp.lt.s32.totalorder %v360, 0
      %v553 = vsub.s32 0, %v360
      %v554 = vsel %vm552, %v553, %v360
      %v555 = vshrl.u32 %v554, 4
      %v556 = vand.u32 %v554, 15
      %v557 = vsub.s32 0, %v556
      %v558 = vsel %vm552, %v557, %v556
      %vm559 = vcmp.lt.s32.totalorder %v361, 0
      %v560 = vsub.s32 0, %v361
      %v561 = vsel %vm559, %v560, %v361
      %v562 = vshrl.u32 %v561, 4
      %v563 = vand.u32 %v561, 15
      %v564 = vsub.s32 0, %v563
      %v565 = vsel %vm559, %v564, %v563
      %vm566 = vcmp.lt.s32.totalorder %v362, 0
      %v567 = vsub.s32 0, %v362
      %v568 = vsel %vm566, %v567, %v362
      %v569 = vshrl.u32 %v568, 4
      %v570 = vand.u32 %v568, 15
      %v571 = vsub.s32 0, %v570
      %v572 = vsel %vm566, %v571, %v570
      %vm573 = vcmp.lt.s32.totalorder %v363, 0
      %v574 = vsub.s32 0, %v363
      %v575 = vsel %vm573, %v574, %v363
      %v576 = vshrl.u32 %v575, 4
      %v577 = vand.u32 %v575, 15
      %v578 = vsub.s32 0, %v577
      %v579 = vsel %vm573, %v578, %v577
      %vm580 = vcmp.lt.s32.totalorder %v364, 0
      %v581 = vsub.s32 0, %v364
      %v582 = vsel %vm580, %v581, %v364
      %v583 = vshrl.u32 %v582, 4
      %v584 = vand.u32 %v582, 15
      %v585 = vsub.s32 0, %v584
      %v586 = vsel %vm580, %v585, %v584
      %vm587 = vcmp.lt.s32.totalorder %v365, 0
      %v588 = vsub.s32 0, %v365
      %v589 = vsel %vm587, %v588, %v365
      %v590 = vshrl.u32 %v589, 4
      %v591 = vand.u32 %v589, 15
      %v592 = vsub.s32 0, %v591
      %v593 = vsel %vm587, %v592, %v591
      %vm594 = vcmp.lt.s32.totalorder %v366, 0
      %v595 = vsub.s32 0, %v366
      %v596 = vsel %vm594, %v595, %v366
      %v597 = vshrl.u32 %v596, 4
      %v598 = vand.u32 %v596, 15
      %v599 = vsub.s32 0, %v598
      %v600 = vsel %vm594, %v599, %v598
      %vm601 = vcmp.lt.s32.totalorder %v367, 0
      %v602 = vsub.s32 0, %v367
      %v603 = vsel %vm601, %v602, %v367
      %v604 = vshrl.u32 %v603, 4
      %v605 = vand.u32 %v603, 15
      %v606 = vsub.s32 0, %v605
      %v607 = vsel %vm601, %v606, %v605
      %vm608 = vcmp.lt.s32.totalorder %v368, 0
      %v609 = vsub.s32 0, %v368
      %v610 = vsel %vm608, %v609, %v368
      %v611 = vshrl.u32 %v610, 4
      %v612 = vand.u32 %v610, 15
      %v613 = vsub.s32 0, %v612
      %v614 = vsel %vm608, %v613, %v612
      %vm615 = vcmp.lt.s32.totalorder %v369, 0
      %v616 = vsub.s32 0, %v369
      %v617 = vsel %vm615, %v616, %v369
      %v618 = vshrl.u32 %v617, 4
      %v619 = vand.u32 %v617, 15
      %v620 = vsub.s32 0, %v619
      %v621 = vsel %vm615, %v620, %v619
      %vm622 = vcmp.ne.s32.totalorder %v376, 0
      %vm623 = vcmp.ne.s32.totalorder %v383, 0
      %vm624 = vcmp.ne.s32.totalorder %v390, 0
      %vm625 = vcmp.ne.s32.totalorder %v397, 0
      %vm626 = vcmp.ne.s32.totalorder %v404, 0
      %vm627 = vcmp.ne.s32.totalorder %v411, 0
      %vm628 = vcmp.ne.s32.totalorder %v418, 0
      %vm629 = vcmp.ne.s32.totalorder %v425, 0
      %vm630 = vcmp.ne.s32.totalorder %v432, 0
      %vm631 = vcmp.ne.s32.totalorder %v439, 0
      %vm632 = vcmp.ne.s32.totalorder %v446, 0
      %vm633 = vcmp.ne.s32.totalorder %v453, 0
      %vm634 = vcmp.ne.s32.totalorder %v460, 0
      %vm635 = vcmp.ne.s32.totalorder %v467, 0
      %vm636 = vcmp.ne.s32.totalorder %v474, 0
      %vm637 = vcmp.ne.s32.totalorder %v481, 0
      %vm638 = vcmp.ne.s32.totalorder %v488, 0
      %vm639 = vcmp.ne.s32.totalorder %v495, 0
      %vm640 = vcmp.ne.s32.totalorder %v502, 0
      %vm641 = vcmp.ne.s32.totalorder %v509, 0
      %vm642 = vcmp.ne.s32.totalorder %v516, 0
      %vm643 = vcmp.ne.s32.totalorder %v523, 0
      %vm644 = vcmp.ne.s32.totalorder %v530, 0
      %vm645 = vcmp.ne.s32.totalorder %v537, 0
      %vm646 = vcmp.ne.s32.totalorder %v544, 0
      %vm647 = vcmp.ne.s32.totalorder %v551, 0
      %vm648 = vcmp.ne.s32.totalorder %v558, 0
      %vm649 = vcmp.ne.s32.totalorder %v565, 0
      %vm650 = vcmp.ne.s32.totalorder %v572, 0
      %vm651 = vcmp.ne.s32.totalorder %v579, 0
      %vm652 = vcmp.ne.s32.totalorder %v586, 0
      %vm653 = vcmp.ne.s32.totalorder %v593, 0
      %vm654 = vcmp.ne.s32.totalorder %v600, 0
      %vm655 = vcmp.ne.s32.totalorder %v607, 0
      %vm656 = vcmp.ne.s32.totalorder %v614, 0
      %vm657 = vcmp.ne.s32.totalorder %v621, 0
      %vm658 = vcmp.lt.s32.totalorder %v376, 0
      %vm659 = vcmp.lt.s32.totalorder %v383, 0
      %vm660 = vcmp.lt.s32.totalorder %v390, 0
      %vm661 = vcmp.lt.s32.totalorder %v397, 0
      %vm662 = vcmp.lt.s32.totalorder %v404, 0
      %vm663 = vcmp.lt.s32.totalorder %v411, 0
      %vm664 = vcmp.lt.s32.totalorder %v418, 0
      %vm665 = vcmp.lt.s32.totalorder %v425, 0
      %vm666 = vcmp.lt.s32.totalorder %v432, 0
      %vm667 = vcmp.lt.s32.totalorder %v439, 0
      %vm668 = vcmp.lt.s32.totalorder %v446, 0
      %vm669 = vcmp.lt.s32.totalorder %v453, 0
      %vm670 = vcmp.lt.s32.totalorder %v460, 0
      %vm671 = vcmp.lt.s32.totalorder %v467, 0
      %vm672 = vcmp.lt.s32.totalorder %v474, 0
      %vm673 = vcmp.lt.s32.totalorder %v481, 0
      %vm674 = vcmp.lt.s32.totalorder %v488, 0
      %vm675 = vcmp.lt.s32.totalorder %v495, 0
      %vm676 = vcmp.lt.s32.totalorder %v502, 0
      %vm677 = vcmp.lt.s32.totalorder %v509, 0
      %vm678 = vcmp.lt.s32.totalorder %v516, 0
      %vm679 = vcmp.lt.s32.totalorder %v523, 0
      %vm680 = vcmp.lt.s32.totalorder %v530, 0
      %vm681 = vcmp.lt.s32.totalorder %v537, 0
      %vm682 = vcmp.lt.s32.totalorder %v544, 0
      %vm683 = vcmp.lt.s32.totalorder %v551, 0
      %vm684 = vcmp.lt.s32.totalorder %v558, 0
      %vm685 = vcmp.lt.s32.totalorder %v565, 0
      %vm686 = vcmp.lt.s32.totalorder %v572, 0
      %vm687 = vcmp.lt.s32.totalorder %v579, 0
      %vm688 = vcmp.lt.s32.totalorder %v586, 0
      %vm689 = vcmp.lt.s32.totalorder %v593, 0
      %vm690 = vcmp.lt.s32.totalorder %v600, 0
      %vm691 = vcmp.lt.s32.totalorder %v607, 0
      %vm692 = vcmp.lt.s32.totalorder %v614, 0
      %vm693 = vcmp.lt.s32.totalorder %v621, 0
      %vm694 = vmand %vm658, %vm622
      %vm695 = vmand %vm659, %vm623
      %vm696 = vmand %vm660, %vm624
      %vm697 = vmand %vm661, %vm625
      %vm698 = vmand %vm662, %vm626
      %vm699 = vmand %vm663, %vm627
      %vm700 = vmand %vm664, %vm628
      %vm701 = vmand %vm665, %vm629
      %vm702 = vmand %vm666, %vm630
      %vm703 = vmand %vm667, %vm631
      %vm704 = vmand %vm668, %vm632
      %vm705 = vmand %vm669, %vm633
      %vm706 = vmand %vm670, %vm634
      %vm707 = vmand %vm671, %vm635
      %vm708 = vmand %vm672, %vm636
      %vm709 = vmand %vm673, %vm637
      %vm710 = vmand %vm674, %vm638
      %vm711 = vmand %vm675, %vm639
      %vm712 = vmand %vm676, %vm640
      %vm713 = vmand %vm677, %vm641
      %vm714 = vmand %vm678, %vm642
      %vm715 = vmand %vm679, %vm643
      %vm716 = vmand %vm680, %vm644
      %vm717 = vmand %vm681, %vm645
      %vm718 = vmand %vm682, %vm646
      %vm719 = vmand %vm683, %vm647
      %vm720 = vmand %vm684, %vm648
      %vm721 = vmand %vm685, %vm649
      %vm722 = vmand %vm686, %vm650
      %vm723 = vmand %vm687, %vm651
      %vm724 = vmand %vm688, %vm652
      %vm725 = vmand %vm689, %vm653
      %vm726 = vmand %vm690, %vm654
      %vm727 = vmand %vm691, %vm655
      %vm728 = vmand %vm692, %vm656
      %vm729 = vmand %vm693, %vm657
      %v730 = vadd.s32 %v376, 16
      %v731 = vadd.s32 %v383, 16
      %v732 = vadd.s32 %v390, 16
      %v733 = vadd.s32 %v397, 16
      %v734 = vadd.s32 %v404, 16
      %v735 = vadd.s32 %v411, 16
      %v736 = vadd.s32 %v418, 16
      %v737 = vadd.s32 %v425, 16
      %v738 = vadd.s32 %v432, 16
      %v739 = vadd.s32 %v439, 16
      %v740 = vadd.s32 %v446, 16
      %v741 = vadd.s32 %v453, 16
      %v742 = vadd.s32 %v460, 16
      %v743 = vadd.s32 %v467, 16
      %v744 = vadd.s32 %v474, 16
      %v745 = vadd.s32 %v481, 16
      %v746 = vadd.s32 %v488, 16
      %v747 = vadd.s32 %v495, 16
      %v748 = vadd.s32 %v502, 16
      %v749 = vadd.s32 %v509, 16
      %v750 = vadd.s32 %v516, 16
      %v751 = vadd.s32 %v523, 16
      %v752 = vadd.s32 %v530, 16
      %v753 = vadd.s32 %v537, 16
      %v754 = vadd.s32 %v544, 16
      %v755 = vadd.s32 %v551, 16
      %v756 = vadd.s32 %v558, 16
      %v757 = vadd.s32 %v565, 16
      %v758 = vadd.s32 %v572, 16
      %v759 = vadd.s32 %v579, 16
      %v760 = vadd.s32 %v586, 16
      %v761 = vadd.s32 %v593, 16
      %v762 = vadd.s32 %v600, 16
      %v763 = vadd.s32 %v607, 16
      %v764 = vadd.s32 %v614, 16
      %v765 = vadd.s32 %v621, 16
      %v766 = vsel %vm694, %v730, %v376
      %v767 = vsel %vm695, %v731, %v383
      %v768 = vsel %vm696, %v732, %v390
      %v769 = vsel %vm697, %v733, %v397
      %v770 = vsel %vm698, %v734, %v404
      %v771 = vsel %vm699, %v735, %v411
      %v772 = vsel %vm700, %v736, %v418
      %v773 = vsel %vm701, %v737, %v425
      %v774 = vsel %vm702, %v738, %v432
      %v775 = vsel %vm703, %v739, %v439
      %v776 = vsel %vm704, %v740, %v446
      %v777 = vsel %vm705, %v741, %v453
      %v778 = vsel %vm706, %v742, %v460
      %v779 = vsel %vm707, %v743, %v467
      %v780 = vsel %vm708, %v744, %v474
      %v781 = vsel %vm709, %v745, %v481
      %v782 = vsel %vm710, %v746, %v488
      %v783 = vsel %vm711, %v747, %v495
      %v784 = vsel %vm712, %v748, %v502
      %v785 = vsel %vm713, %v749, %v509
      %v786 = vsel %vm714, %v750, %v516
      %v787 = vsel %vm715, %v751, %v523
      %v788 = vsel %vm716, %v752, %v530
      %v789 = vsel %vm717, %v753, %v537
      %v790 = vsel %vm718, %v754, %v544
      %v791 = vsel %vm719, %v755, %v551
      %v792 = vsel %vm720, %v756, %v558
      %v793 = vsel %vm721, %v757, %v565
      %v794 = vsel %vm722, %v758, %v572
      %v795 = vsel %vm723, %v759, %v579
      %v796 = vsel %vm724, %v760, %v586
      %v797 = vsel %vm725, %v761, %v593
      %v798 = vsel %vm726, %v762, %v600
      %v799 = vsel %vm727, %v763, %v607
      %v800 = vsel %vm728, %v764, %v614
      %v801 = vsel %vm729, %v765, %v621
      %vm802 = vcmp.ne.s32.totalorder %v766, 0
      %vm803 = vcmp.ne.s32.totalorder %v767, 0
      %vm804 = vcmp.ne.s32.totalorder %v768, 0
      %vm805 = vcmp.ne.s32.totalorder %v769, 0
      %vm806 = vcmp.ne.s32.totalorder %v770, 0
      %vm807 = vcmp.ne.s32.totalorder %v771, 0
      %vm808 = vcmp.ne.s32.totalorder %v772, 0
      %vm809 = vcmp.ne.s32.totalorder %v773, 0
      %vm810 = vcmp.ne.s32.totalorder %v774, 0
      %vm811 = vcmp.ne.s32.totalorder %v775, 0
      %vm812 = vcmp.ne.s32.totalorder %v776, 0
      %vm813 = vcmp.ne.s32.totalorder %v777, 0
      %vm814 = vcmp.ne.s32.totalorder %v778, 0
      %vm815 = vcmp.ne.s32.totalorder %v779, 0
      %vm816 = vcmp.ne.s32.totalorder %v780, 0
      %vm817 = vcmp.ne.s32.totalorder %v781, 0
      %vm818 = vcmp.ne.s32.totalorder %v782, 0
      %vm819 = vcmp.ne.s32.totalorder %v783, 0
      %vm820 = vcmp.ne.s32.totalorder %v784, 0
      %vm821 = vcmp.ne.s32.totalorder %v785, 0
      %vm822 = vcmp.ne.s32.totalorder %v786, 0
      %vm823 = vcmp.ne.s32.totalorder %v787, 0
      %vm824 = vcmp.ne.s32.totalorder %v788, 0
      %vm825 = vcmp.ne.s32.totalorder %v789, 0
      %vm826 = vcmp.ne.s32.totalorder %v790, 0
      %vm827 = vcmp.ne.s32.totalorder %v791, 0
      %vm828 = vcmp.ne.s32.totalorder %v792, 0
      %vm829 = vcmp.ne.s32.totalorder %v793, 0
      %vm830 = vcmp.ne.s32.totalorder %v794, 0
      %vm831 = vcmp.ne.s32.totalorder %v795, 0
      %vm832 = vcmp.ne.s32.totalorder %v796, 0
      %vm833 = vcmp.ne.s32.totalorder %v797, 0
      %vm834 = vcmp.ne.s32.totalorder %v798, 0
      %vm835 = vcmp.ne.s32.totalorder %v799, 0
      %vm836 = vcmp.ne.s32.totalorder %v800, 0
      %vm837 = vcmp.ne.s32.totalorder %v801, 0
      %vm838 = vcmp.ne.s32.totalorder %v766, 15
      %vm839 = vcmp.ne.s32.totalorder %v767, 15
      %vm840 = vcmp.ne.s32.totalorder %v768, 15
      %vm841 = vcmp.ne.s32.totalorder %v769, 15
      %vm842 = vcmp.ne.s32.totalorder %v770, 15
      %vm843 = vcmp.ne.s32.totalorder %v771, 15
      %vm844 = vcmp.ne.s32.totalorder %v772, 15
      %vm845 = vcmp.ne.s32.totalorder %v773, 15
      %vm846 = vcmp.ne.s32.totalorder %v774, 15
      %vm847 = vcmp.ne.s32.totalorder %v775, 15
      %vm848 = vcmp.ne.s32.totalorder %v776, 15
      %vm849 = vcmp.ne.s32.totalorder %v777, 15
      %vm850 = vcmp.ne.s32.totalorder %v778, 15
      %vm851 = vcmp.ne.s32.totalorder %v779, 15
      %vm852 = vcmp.ne.s32.totalorder %v780, 15
      %vm853 = vcmp.ne.s32.totalorder %v781, 15
      %vm854 = vcmp.ne.s32.totalorder %v782, 15
      %vm855 = vcmp.ne.s32.totalorder %v783, 15
      %vm856 = vcmp.ne.s32.totalorder %v784, 15
      %vm857 = vcmp.ne.s32.totalorder %v785, 15
      %vm858 = vcmp.ne.s32.totalorder %v786, 15
      %vm859 = vcmp.ne.s32.totalorder %v787, 15
      %vm860 = vcmp.ne.s32.totalorder %v788, 15
      %vm861 = vcmp.ne.s32.totalorder %v789, 15
      %vm862 = vcmp.ne.s32.totalorder %v790, 15
      %vm863 = vcmp.ne.s32.totalorder %v791, 15
      %vm864 = vcmp.ne.s32.totalorder %v792, 15
      %vm865 = vcmp.ne.s32.totalorder %v793, 15
      %vm866 = vcmp.ne.s32.totalorder %v794, 15
      %vm867 = vcmp.ne.s32.totalorder %v795, 15
      %vm868 = vcmp.ne.s32.totalorder %v796, 15
      %vm869 = vcmp.ne.s32.totalorder %v797, 15
      %vm870 = vcmp.ne.s32.totalorder %v798, 15
      %vm871 = vcmp.ne.s32.totalorder %v799, 15
      %vm872 = vcmp.ne.s32.totalorder %v800, 15
      %vm873 = vcmp.ne.s32.totalorder %v801, 15
      %vm874 = vcmask 48152
      %875 = vst.msk [vmem:[#allocation2] sm:$0xff] %vm874, 0.0
      %876 = vst.msk [vmem:[#allocation2 + $0x8] sm:$0xff] %vm874, 0.0
      %877 = vst.msk [vmem:[#allocation2 + $0x110] sm:$0xff] %vm874, 0.0
      %878 = vst.msk [vmem:[#allocation2 + $0x118] sm:$0xff] %vm874, 0.0
      %vm879 = vcmask 130112
      %880 = vst.msk [vmem:[#allocation2] sm:$0xff] %vm879, 0.0
      %881 = vst.msk [vmem:[#allocation2 + $0x8] sm:$0xff] %vm879, 0.0
      %882 = vst.msk [vmem:[#allocation2 + $0x110] sm:$0xff] %vm879, 0.0
      %883 = vst.msk [vmem:[#allocation2 + $0x118] sm:$0xff] %vm879, 0.0
      %v884 = vld [vmem:[%s327] sm:$0x77]
      %v886 = vcombine.high %v884, %v884
      %888 = vxpose.xlu0.b32.start [1/16] %v884, 128
      %889 = vxpose.xlu0.b32.cont [2/16] 0.0, 128
      %890 = vxpose.xlu0.b32.cont [3/16] 0.0, 128
      %891 = vxpose.xlu0.b32.cont [4/16] 0.0, 128
      %892 = vxpose.xlu0.b32.cont [5/16] 0.0, 128
      %893 = vxpose.xlu0.b32.cont [6/16] 0.0, 128
      %894 = vxpose.xlu0.b32.cont [7/16] 0.0, 128
      %895 = vxpose.xlu0.b32.cont [8/16] 0.0, 128
      %896 = vxpose.xlu0.b32.cont [9/16] 0.0, 128
      %897 = vxpose.xlu0.b32.cont [10/16] 0.0, 128
      %898 = vxpose.xlu0.b32.cont [11/16] 0.0, 128
      %899 = vxpose.xlu0.b32.cont [12/16] 0.0, 128
      %900 = vxpose.xlu0.b32.cont [13/16] 0.0, 128
      %901 = vxpose.xlu0.b32.cont [14/16] 0.0, 128
      %902 = vxpose.xlu0.b32.cont [15/16] 0.0, 128
      %903 = vxpose.xlu0.b32.end [16/16] 0.0, 128
      %v904 = vpop.trf.xlu0
      %v905 = vpop.trf.xlu0
      %v906 = vpop.trf.xlu0
      %v907 = vpop.trf.xlu0
      %v908 = vpop.trf.xlu0
      %v909 = vpop.trf.xlu0
      %v910 = vpop.trf.xlu0
      %v911 = vpop.trf.xlu0
      %v912 = vpop.trf.xlu0
      %v913 = vpop.trf.xlu0
      %v914 = vpop.trf.xlu0
      %v915 = vpop.trf.xlu0
      %v916 = vpop.trf.xlu0
      %v917 = vpop.trf.xlu0
      %v918 = vpop.trf.xlu0
      %v919 = vpop.trf.xlu0
      %920 = vxpose.xlu0.b32.start [1/16] %v886, 128
      %921 = vxpose.xlu0.b32.cont [2/16] 0.0, 128
      %922 = vxpose.xlu0.b32.cont [3/16] 0.0, 128
      %923 = vxpose.xlu0.b32.cont [4/16] 0.0, 128
      %924 = vxpose.xlu0.b32.cont [5/16] 0.0, 128
      %925 = vxpose.xlu0.b32.cont [6/16] 0.0, 128
      %926 = vxpose.xlu0.b32.cont [7/16] 0.0, 128
      %927 = vxpose.xlu0.b32.cont [8/16] 0.0, 128
      %928 = vxpose.xlu0.b32.cont [9/16] 0.0, 128
      %929 = vxpose.xlu0.b32.cont [10/16] 0.0, 128
      %930 = vxpose.xlu0.b32.cont [11/16] 0.0, 128
      %931 = vxpose.xlu0.b32.cont [12/16] 0.0, 128
      %932 = vxpose.xlu0.b32.cont [13/16] 0.0, 128
      %933 = vxpose.xlu0.b32.cont [14/16] 0.0, 128
      %934 = vxpose.xlu0.b32.cont [15/16] 0.0, 128
      %935 = vxpose.xlu0.b32.end [16/16] 0.0, 128
      %v936 = vpop.trf.xlu0
      %v937 = vpop.trf.xlu0
      %v938 = vpop.trf.xlu0
      %v939 = vpop.trf.xlu0
      %v940 = vpop.trf.xlu0
      %v941 = vpop.trf.xlu0
      %v942 = vpop.trf.xlu0
      %v943 = vpop.trf.xlu0
      %v944 = vpop.trf.xlu0
      %v945 = vpop.trf.xlu0
      %v946 = vpop.trf.xlu0
      %v947 = vpop.trf.xlu0
      %v948 = vpop.trf.xlu0
      %v949 = vpop.trf.xlu0
      %v950 = vpop.trf.xlu0
      %v951 = vpop.trf.xlu0
      %984 = vrot.lane.b32.xlu0 %v904, 3
      %v985 = vpop.permute.xlu0 %984
      %986 = vrot.lane.b32.xlu0 %v905, 3
      %v987 = vpop.permute.xlu0 %986
      %988 = vrot.lane.b32.xlu0 %v906, 3
      %v989 = vpop.permute.xlu0 %988
      %990 = vrot.lane.b32.xlu0 %v907, 3
      %v991 = vpop.permute.xlu0 %990
      %992 = vrot.lane.b32.xlu0 %v908, 3
      %v993 = vpop.permute.xlu0 %992
      %994 = vrot.lane.b32.xlu0 %v909, 3
      %v995 = vpop.permute.xlu0 %994
      %996 = vrot.lane.b32.xlu0 %v910, 3
      %v997 = vpop.permute.xlu0 %996
      %998 = vrot.lane.b32.xlu0 %v911, 3
      %v999 = vpop.permute.xlu0 %998
      %1000 = vrot.lane.b32.xlu0 %v912, 3
      %v1001 = vpop.permute.xlu0 %1000
      %1002 = vrot.lane.b32.xlu0 %v913, 3
      %v1003 = vpop.permute.xlu0 %1002
      %1004 = vrot.lane.b32.xlu0 %v914, 3
      %v1005 = vpop.permute.xlu0 %1004
      %1006 = vrot.lane.b32.xlu0 %v915, 3
      %v1007 = vpop.permute.xlu0 %1006
      %1008 = vrot.lane.b32.xlu0 %v916, 3
      %v1009 = vpop.permute.xlu0 %1008
      %1010 = vrot.lane.b32.xlu0 %v917, 3
      %v1011 = vpop.permute.xlu0 %1010
      %1012 = vrot.lane.b32.xlu0 %v918, 3
      %v1013 = vpop.permute.xlu0 %1012
      %1014 = vrot.lane.b32.xlu0 %v919, 3
      %v1015 = vpop.permute.xlu0 %1014
      %1016 = vrot.lane.b32.xlu0 %v936, 3
      %v1017 = vpop.permute.xlu0 %1016
      %1018 = vrot.lane.b32.xlu0 %v937, 3
      %v1019 = vpop.permute.xlu0 %1018
      %1020 = vrot.lane.b32.xlu0 %v938, 3
      %v1021 = vpop.permute.xlu0 %1020
      %1022 = vrot.lane.b32.xlu0 %v939, 3
      %v1023 = vpop.permute.xlu0 %1022
      %1024 = vrot.lane.b32.xlu0 %v940, 3
      %v1025 = vpop.permute.xlu0 %1024
      %1026 = vrot.lane.b32.xlu0 %v941, 3
      %v1027 = vpop.permute.xlu0 %1026
      %1028 = vrot.lane.b32.xlu0 %v942, 3
      %v1029 = vpop.permute.xlu0 %1028
      %1030 = vrot.lane.b32.xlu0 %v943, 3
      %v1031 = vpop.permute.xlu0 %1030
      %1032 = vrot.lane.b32.xlu0 %v944, 3
      %v1033 = vpop.permute.xlu0 %1032
      %1034 = vrot.lane.b32.xlu0 %v945, 3
      %v1035 = vpop.permute.xlu0 %1034
      %1036 = vrot.lane.b32.xlu0 %v946, 3
      %v1037 = vpop.permute.xlu0 %1036
      %1038 = vrot.lane.b32.xlu0 %v947, 3
      %v1039 = vpop.permute.xlu0 %1038
      %1040 = vrot.lane.b32.xlu0 %v948, 3
      %v1041 = vpop.permute.xlu0 %1040
      %1042 = vrot.lane.b32.xlu0 %v949, 3
      %v1043 = vpop.permute.xlu0 %1042
      %1044 = vrot.lane.b32.xlu0 %v950, 3
      %v1045 = vpop.permute.xlu0 %1044
      %1046 = vrot.lane.b32.xlu0 %v951, 3
      %v1047 = vpop.permute.xlu0 %1046
      %1080 = vst.msk [vmem:[#allocation2 + $0x10] sm:$0xff] %vm874, %v985
      %1081 = vst.msk [vmem:[#allocation2 + $0x18] sm:$0xff] %vm874, %v987
      %1082 = vst.msk [vmem:[#allocation2 + $0x20] sm:$0xff] %vm874, %v989
      %1083 = vst.msk [vmem:[#allocation2 + $0x28] sm:$0xff] %vm874, %v991
      %1084 = vst.msk [vmem:[#allocation2 + $0x30] sm:$0xff] %vm874, %v993
      %1085 = vst.msk [vmem:[#allocation2 + $0x38] sm:$0xff] %vm874, %v995
      %1086 = vst.msk [vmem:[#allocation2 + $0x40] sm:$0xff] %vm874, %v997
      %1087 = vst.msk [vmem:[#allocation2 + $0x48] sm:$0xff] %vm874, %v999
      %1088 = vst.msk [vmem:[#allocation2 + $0x50] sm:$0xff] %vm874, %v1001
      %1089 = vst.msk [vmem:[#allocation2 + $0x58] sm:$0xff] %vm874, %v1003
      %1090 = vst.msk [vmem:[#allocation2 + $0x60] sm:$0xff] %vm874, %v1005
      %1091 = vst.msk [vmem:[#allocation2 + $0x68] sm:$0xff] %vm874, %v1007
      %1092 = vst.msk [vmem:[#allocation2 + $0x70] sm:$0xff] %vm874, %v1009
      %1093 = vst.msk [vmem:[#allocation2 + $0x78] sm:$0xff] %vm874, %v1011
      %1094 = vst.msk [vmem:[#allocation2 + $0x80] sm:$0xff] %vm874, %v1013
      %1095 = vst.msk [vmem:[#allocation2 + $0x88] sm:$0xff] %vm874, %v1015
      %1096 = vst.msk [vmem:[#allocation2 + $0x90] sm:$0xff] %vm874, %v1017
      %1097 = vst.msk [vmem:[#allocation2 + $0x98] sm:$0xff] %vm874, %v1019
      %1098 = vst.msk [vmem:[#allocation2 + $0xa0] sm:$0xff] %vm874, %v1021
      %1099 = vst.msk [vmem:[#allocation2 + $0xa8] sm:$0xff] %vm874, %v1023
      %1100 = vst.msk [vmem:[#allocation2 + $0xb0] sm:$0xff] %vm874, %v1025
      %1101 = vst.msk [vmem:[#allocation2 + $0xb8] sm:$0xff] %vm874, %v1027
      %1102 = vst.msk [vmem:[#allocation2 + $0xc0] sm:$0xff] %vm874, %v1029
      %1103 = vst.msk [vmem:[#allocation2 + $0xc8] sm:$0xff] %vm874, %v1031
      %1104 = vst.msk [vmem:[#allocation2 + $0xd0] sm:$0xff] %vm874, %v1033
      %1105 = vst.msk [vmem:[#allocation2 + $0xd8] sm:$0xff] %vm874, %v1035
      %1106 = vst.msk [vmem:[#allocation2 + $0xe0] sm:$0xff] %vm874, %v1037
      %1107 = vst.msk [vmem:[#allocation2 + $0xe8] sm:$0xff] %vm874, %v1039
      %1108 = vst.msk [vmem:[#allocation2 + $0xf0] sm:$0xff] %vm874, %v1041
      %1109 = vst.msk [vmem:[#allocation2 + $0xf8] sm:$0xff] %vm874, %v1043
      %1110 = vst.msk [vmem:[#allocation2 + $0x100] sm:$0xff] %vm874, %v1045
      %1111 = vst.msk [vmem:[#allocation2 + $0x108] sm:$0xff] %vm874, %v1047
      %v1112 = vld [vmem:[#allocation2] sm:$0xff]
      %v1113 = vld [vmem:[#allocation2 + $0x8] sm:$0xff]
      %v1114 = vld [vmem:[#allocation2 + $0x10] sm:$0xff]
      %v1115 = vld [vmem:[#allocation2 + $0x18] sm:$0xff]
      %v1116 = vld [vmem:[#allocation2 + $0x20] sm:$0xff]
      %v1117 = vld [vmem:[#allocation2 + $0x28] sm:$0xff]
      %v1118 = vld [vmem:[#allocation2 + $0x30] sm:$0xff]
      %v1119 = vld [vmem:[#allocation2 + $0x38] sm:$0xff]
      %v1120 = vld [vmem:[#allocation2 + $0x40] sm:$0xff]
      %v1121 = vld [vmem:[#allocation2 + $0x48] sm:$0xff]
      %v1122 = vld [vmem:[#allocation2 + $0x50] sm:$0xff]
      %v1123 = vld [vmem:[#allocation2 + $0x58] sm:$0xff]
      %v1124 = vld [vmem:[#allocation2 + $0x60] sm:$0xff]
      %v1125 = vld [vmem:[#allocation2 + $0x68] sm:$0xff]
      %v1126 = vld [vmem:[#allocation2 + $0x70] sm:$0xff]
      %v1127 = vld [vmem:[#allocation2 + $0x78] sm:$0xff]
      %v1128 = vld [vmem:[#allocation2 + $0x80] sm:$0xff]
      %v1129 = vld [vmem:[#allocation2 + $0x88] sm:$0xff]
      %v1130 = vld [vmem:[#allocation2 + $0x90] sm:$0xff]
      %v1131 = vld [vmem:[#allocation2 + $0x98] sm:$0xff]
      %v1132 = vld [vmem:[#allocation2 + $0xa0] sm:$0xff]
      %v1133 = vld [vmem:[#allocation2 + $0xa8] sm:$0xff]
      %v1134 = vld [vmem:[#allocation2 + $0xb0] sm:$0xff]
      %v1135 = vld [vmem:[#allocation2 + $0xb8] sm:$0xff]
      %v1136 = vld [vmem:[#allocation2 + $0xc0] sm:$0xff]
      %v1137 = vld [vmem:[#allocation2 + $0xc8] sm:$0xff]
      %v1138 = vld [vmem:[#allocation2 + $0xd0] sm:$0xff]
      %v1139 = vld [vmem:[#allocation2 + $0xd8] sm:$0xff]
      %v1140 = vld [vmem:[#allocation2 + $0xe0] sm:$0xff]
      %v1141 = vld [vmem:[#allocation2 + $0xe8] sm:$0xff]
      %v1142 = vld [vmem:[#allocation2 + $0xf0] sm:$0xff]
      %v1143 = vld [vmem:[#allocation2 + $0xf8] sm:$0xff]
      %v1144 = vld [vmem:[#allocation2 + $0x100] sm:$0xff]
      %v1145 = vld [vmem:[#allocation2 + $0x108] sm:$0xff]
      %v1146 = vld [vmem:[#allocation2 + $0x110] sm:$0xff]
      %v1147 = vld [vmem:[#allocation2 + $0x118] sm:$0xff]
      %v1149 = vrot.slane %v1147, 7
      %vm1186 = vcmask 1040384
      %v1187 = vrot.slane %v1112, 7
      %v1188 = vrot.slane %v1113, 7
      %v1189 = vsel %vm1186, %v1187, %v1188
      %v1190 = vrot.slane %v1114, 7
      %v1191 = vsel %vm1186, %v1188, %v1190
      %v1192 = vrot.slane %v1115, 7
      %v1193 = vsel %vm1186, %v1190, %v1192
      %v1194 = vrot.slane %v1116, 7
      %v1195 = vsel %vm1186, %v1192, %v1194
      %v1196 = vrot.slane %v1117, 7
      %v1197 = vsel %vm1186, %v1194, %v1196
      %v1198 = vrot.slane %v1118, 7
      %v1199 = vsel %vm1186, %v1196, %v1198
      %v1200 = vrot.slane %v1119, 7
      %v1201 = vsel %vm1186, %v1198, %v1200
      %v1202 = vrot.slane %v1120, 7
      %v1203 = vsel %vm1186, %v1200, %v1202
      %v1204 = vrot.slane %v1121, 7
      %v1205 = vsel %vm1186, %v1202, %v1204
      %v1206 = vrot.slane %v1122, 7
      %v1207 = vsel %vm1186, %v1204, %v1206
      %v1208 = vrot.slane %v1123, 7
      %v1209 = vsel %vm1186, %v1206, %v1208
      %v1210 = vrot.slane %v1124, 7
      %v1211 = vsel %vm1186, %v1208, %v1210
      %v1212 = vrot.slane %v1125, 7
      %v1213 = vsel %vm1186, %v1210, %v1212
      %v1214 = vrot.slane %v1126, 7
      %v1215 = vsel %vm1186, %v1212, %v1214
      %v1216 = vrot.slane %v1127, 7
      %v1217 = vsel %vm1186, %v1214, %v1216
      %v1218 = vrot.slane %v1128, 7
      %v1219 = vsel %vm1186, %v1216, %v1218
      %v1220 = vrot.slane %v1129, 7
      %v1221 = vsel %vm1186, %v1218, %v1220
      %v1222 = vrot.slane %v1130, 7
      %v1223 = vsel %vm1186, %v1220, %v1222
      %v1224 = vrot.slane %v1131, 7
      %v1225 = vsel %vm1186, %v1222, %v1224
      %v1226 = vrot.slane %v1132, 7
      %v1227 = vsel %vm1186, %v1224, %v1226
      %v1228 = vrot.slane %v1133, 7
      %v1229 = vsel %vm1186, %v1226, %v1228
      %v1230 = vrot.slane %v1134, 7
      %v1231 = vsel %vm1186, %v1228, %v1230
      %v1232 = vrot.slane %v1135, 7
      %v1233 = vsel %vm1186, %v1230, %v1232
      %v1234 = vrot.slane %v1136, 7
      %v1235 = vsel %vm1186, %v1232, %v1234
      %v1236 = vrot.slane %v1137, 7
      %v1237 = vsel %vm1186, %v1234, %v1236
      %v1238 = vrot.slane %v1138, 7
      %v1239 = vsel %vm1186, %v1236, %v1238
      %v1240 = vrot.slane %v1139, 7
      %v1241 = vsel %vm1186, %v1238, %v1240
      %v1242 = vrot.slane %v1140, 7
      %v1243 = vsel %vm1186, %v1240, %v1242
      %v1244 = vrot.slane %v1141, 7
      %v1245 = vsel %vm1186, %v1242, %v1244
      %v1246 = vrot.slane %v1142, 7
      %v1247 = vsel %vm1186, %v1244, %v1246
      %v1248 = vrot.slane %v1143, 7
      %v1249 = vsel %vm1186, %v1246, %v1248
      %v1250 = vrot.slane %v1144, 7
      %v1251 = vsel %vm1186, %v1248, %v1250
      %v1252 = vrot.slane %v1145, 7
      %v1253 = vsel %vm1186, %v1250, %v1252
      %v1254 = vrot.slane %v1146, 7
      %v1255 = vsel %vm1186, %v1252, %v1254
      %v1256 = vsel %vm1186, %v1254, %v1149
      %v1293 = vsel %vm1186, %v1149, %v1187
      %v1294 = vsel %vm802, 1, 0
      %v1295 = vsel %vm803, 1, 0
      %v1296 = vsel %vm804, 1, 0
      %v1297 = vsel %vm805, 1, 0
      %v1298 = vsel %vm806, 1, 0
      %v1299 = vsel %vm807, 1, 0
      %v1300 = vsel %vm808, 1, 0
      %v1301 = vsel %vm809, 1, 0
      %v1302 = vsel %vm810, 1, 0
      %v1303 = vsel %vm811, 1, 0
      %v1304 = vsel %vm812, 1, 0
      %v1305 = vsel %vm813, 1, 0
      %v1306 = vsel %vm814, 1, 0
      %v1307 = vsel %vm815, 1, 0
      %v1308 = vsel %vm816, 1, 0
      %v1309 = vsel %vm817, 1, 0
      %v1310 = vsel %vm818, 1, 0
      %v1311 = vsel %vm819, 1, 0
      %v1312 = vsel %vm820, 1, 0
      %v1313 = vsel %vm821, 1, 0
      %v1314 = vsel %vm822, 1, 0
      %v1315 = vsel %vm823, 1, 0
      %v1316 = vsel %vm824, 1, 0
      %v1317 = vsel %vm825, 1, 0
      %v1318 = vsel %vm826, 1, 0
      %v1319 = vsel %vm827, 1, 0
      %v1320 = vsel %vm828, 1, 0
      %v1321 = vsel %vm829, 1, 0
      %v1322 = vsel %vm830, 1, 0
      %v1323 = vsel %vm831, 1, 0
      %v1324 = vsel %vm832, 1, 0
      %v1325 = vsel %vm833, 1, 0
      %v1326 = vsel %vm834, 1, 0
      %v1327 = vsel %vm835, 1, 0
      %v1328 = vsel %vm836, 1, 0
      %v1329 = vsel %vm837, 1, 0
      %vm1330 = vcmp.eq.s32.totalorder %v1294, 1
      %vm1331 = vcmp.eq.s32.totalorder %v1295, 1
      %vm1332 = vcmp.eq.s32.totalorder %v1296, 1
      %vm1333 = vcmp.eq.s32.totalorder %v1297, 1
      %vm1334 = vcmp.eq.s32.totalorder %v1298, 1
      %vm1335 = vcmp.eq.s32.totalorder %v1299, 1
      %vm1336 = vcmp.eq.s32.totalorder %v1300, 1
      %vm1337 = vcmp.eq.s32.totalorder %v1301, 1
      %vm1338 = vcmp.eq.s32.totalorder %v1302, 1
      %vm1339 = vcmp.eq.s32.totalorder %v1303, 1
      %vm1340 = vcmp.eq.s32.totalorder %v1304, 1
      %vm1341 = vcmp.eq.s32.totalorder %v1305, 1
      %vm1342 = vcmp.eq.s32.totalorder %v1306, 1
      %vm1343 = vcmp.eq.s32.totalorder %v1307, 1
      %vm1344 = vcmp.eq.s32.totalorder %v1308, 1
      %vm1345 = vcmp.eq.s32.totalorder %v1309, 1
      %vm1346 = vcmp.eq.s32.totalorder %v1310, 1
      %vm1347 = vcmp.eq.s32.totalorder %v1311, 1
      %vm1348 = vcmp.eq.s32.totalorder %v1312, 1
      %vm1349 = vcmp.eq.s32.totalorder %v1313, 1
      %vm1350 = vcmp.eq.s32.totalorder %v1314, 1
      %vm1351 = vcmp.eq.s32.totalorder %v1315, 1
      %vm1352 = vcmp.eq.s32.totalorder %v1316, 1
      %vm1353 = vcmp.eq.s32.totalorder %v1317, 1
      %vm1354 = vcmp.eq.s32.totalorder %v1318, 1
      %vm1355 = vcmp.eq.s32.totalorder %v1319, 1
      %vm1356 = vcmp.eq.s32.totalorder %v1320, 1
      %vm1357 = vcmp.eq.s32.totalorder %v1321, 1
      %vm1358 = vcmp.eq.s32.totalorder %v1322, 1
      %vm1359 = vcmp.eq.s32.totalorder %v1323, 1
      %vm1360 = vcmp.eq.s32.totalorder %v1324, 1
      %vm1361 = vcmp.eq.s32.totalorder %v1325, 1
      %vm1362 = vcmp.eq.s32.totalorder %v1326, 1
      %vm1363 = vcmp.eq.s32.totalorder %v1327, 1
      %vm1364 = vcmp.eq.s32.totalorder %v1328, 1
      %vm1365 = vcmp.eq.s32.totalorder %v1329, 1
      %v1366 = vsel %vm1330, %v1293, 0.0
      %v1367 = vsel %vm1331, %v1189, 0.0
      %v1368 = vsel %vm1332, %v1191, 0.0
      %v1369 = vsel %vm1333, %v1193, 0.0
      %v1370 = vsel %vm1334, %v1195, 0.0
      %v1371 = vsel %vm1335, %v1197, 0.0
      %v1372 = vsel %vm1336, %v1199, 0.0
      %v1373 = vsel %vm1337, %v1201, 0.0
      %v1374 = vsel %vm1338, %v1203, 0.0
      %v1375 = vsel %vm1339, %v1205, 0.0
      %v1376 = vsel %vm1340, %v1207, 0.0
      %v1377 = vsel %vm1341, %v1209, 0.0
      %v1378 = vsel %vm1342, %v1211, 0.0
      %v1379 = vsel %vm1343, %v1213, 0.0
      %v1380 = vsel %vm1344, %v1215, 0.0
      %v1381 = vsel %vm1345, %v1217, 0.0
      %v1382 = vsel %vm1346, %v1219, 0.0
      %v1383 = vsel %vm1347, %v1221, 0.0
      %v1384 = vsel %vm1348, %v1223, 0.0
      %v1385 = vsel %vm1349, %v1225, 0.0
      %v1386 = vsel %vm1350, %v1227, 0.0
      %v1387 = vsel %vm1351, %v1229, 0.0
      %v1388 = vsel %vm1352, %v1231, 0.0
      %v1389 = vsel %vm1353, %v1233, 0.0
      %v1390 = vsel %vm1354, %v1235, 0.0
      %v1391 = vsel %vm1355, %v1237, 0.0
      %v1392 = vsel %vm1356, %v1239, 0.0
      %v1393 = vsel %vm1357, %v1241, 0.0
      %v1394 = vsel %vm1358, %v1243, 0.0
      %v1395 = vsel %vm1359, %v1245, 0.0
      %v1396 = vsel %vm1360, %v1247, 0.0
      %v1397 = vsel %vm1361, %v1249, 0.0
      %v1398 = vsel %vm1362, %v1251, 0.0
      %v1399 = vsel %vm1363, %v1253, 0.0
      %v1400 = vsel %vm1364, %v1255, 0.0
      %v1401 = vsel %vm1365, %v1256, 0.0
      %1438 = vrot.lane.b32.xlu0 %v1366, 125
      %v1439 = vpop.permute.xlu0 %1438
      %1440 = vrot.lane.b32.xlu0 %v1367, 125
      %v1441 = vpop.permute.xlu0 %1440
      %1442 = vrot.lane.b32.xlu0 %v1368, 125
      %v1443 = vpop.permute.xlu0 %1442
      %1444 = vrot.lane.b32.xlu0 %v1369, 125
      %v1445 = vpop.permute.xlu0 %1444
      %1446 = vrot.lane.b32.xlu0 %v1370, 125
      %v1447 = vpop.permute.xlu0 %1446
      %1448 = vrot.lane.b32.xlu0 %v1371, 125
      %v1449 = vpop.permute.xlu0 %1448
      %1450 = vrot.lane.b32.xlu0 %v1372, 125
      %v1451 = vpop.permute.xlu0 %1450
      %1452 = vrot.lane.b32.xlu0 %v1373, 125
      %v1453 = vpop.permute.xlu0 %1452
      %1454 = vrot.lane.b32.xlu0 %v1374, 125
      %v1455 = vpop.permute.xlu0 %1454
      %1456 = vrot.lane.b32.xlu0 %v1375, 125
      %v1457 = vpop.permute.xlu0 %1456
      %1458 = vrot.lane.b32.xlu0 %v1376, 125
      %v1459 = vpop.permute.xlu0 %1458
      %1460 = vrot.lane.b32.xlu0 %v1377, 125
      %v1461 = vpop.permute.xlu0 %1460
      %1462 = vrot.lane.b32.xlu0 %v1378, 125
      %v1463 = vpop.permute.xlu0 %1462
      %1464 = vrot.lane.b32.xlu0 %v1379, 125
      %v1465 = vpop.permute.xlu0 %1464
      %1466 = vrot.lane.b32.xlu0 %v1380, 125
      %v1467 = vpop.permute.xlu0 %1466
      %1468 = vrot.lane.b32.xlu0 %v1381, 125
      %v1469 = vpop.permute.xlu0 %1468
      %1470 = vrot.lane.b32.xlu0 %v1382, 125
      %v1471 = vpop.permute.xlu0 %1470
      %1472 = vrot.lane.b32.xlu0 %v1383, 125
      %v1473 = vpop.permute.xlu0 %1472
      %1474 = vrot.lane.b32.xlu0 %v1384, 125
      %v1475 = vpop.permute.xlu0 %1474
      %1476 = vrot.lane.b32.xlu0 %v1385, 125
      %v1477 = vpop.permute.xlu0 %1476
      %1478 = vrot.lane.b32.xlu0 %v1386, 125
      %v1479 = vpop.permute.xlu0 %1478
      %1480 = vrot.lane.b32.xlu0 %v1387, 125
      %v1481 = vpop.permute.xlu0 %1480
      %1482 = vrot.lane.b32.xlu0 %v1388, 125
      %v1483 = vpop.permute.xlu0 %1482
      %1484 = vrot.lane.b32.xlu0 %v1389, 125
      %v1485 = vpop.permute.xlu0 %1484
      %1486 = vrot.lane.b32.xlu0 %v1390, 125
      %v1487 = vpop.permute.xlu0 %1486
      %1488 = vrot.lane.b32.xlu0 %v1391, 125
      %v1489 = vpop.permute.xlu0 %1488
      %1490 = vrot.lane.b32.xlu0 %v1392, 125
      %v1491 = vpop.permute.xlu0 %1490
      %1492 = vrot.lane.b32.xlu0 %v1393, 125
      %v1493 = vpop.permute.xlu0 %1492
      %1494 = vrot.lane.b32.xlu0 %v1394, 125
      %v1495 = vpop.permute.xlu0 %1494
      %1496 = vrot.lane.b32.xlu0 %v1395, 125
      %v1497 = vpop.permute.xlu0 %1496
      %1498 = vrot.lane.b32.xlu0 %v1396, 125
      %v1499 = vpop.permute.xlu0 %1498
      %1500 = vrot.lane.b32.xlu0 %v1397, 125
      %v1501 = vpop.permute.xlu0 %1500
      %1502 = vrot.lane.b32.xlu0 %v1398, 125
      %v1503 = vpop.permute.xlu0 %1502
      %1504 = vrot.lane.b32.xlu0 %v1399, 125
      %v1505 = vpop.permute.xlu0 %1504
      %1506 = vrot.lane.b32.xlu0 %v1400, 125
      %v1507 = vpop.permute.xlu0 %1506
      %1508 = vrot.lane.b32.xlu0 %v1401, 125
      %v1509 = vpop.permute.xlu0 %1508
      %vm1546 = vcmask 23552
      %1547 = vst.msk [vmem:[#allocation2] sm:$0xff] %vm1546, %v1439
      %1548 = vst.msk [vmem:[#allocation2 + $0x8] sm:$0xff] %vm1546, %v1441
      %1549 = vst.msk [vmem:[#allocation2 + $0x10] sm:$0xff] %vm1546, %v1443
      %1550 = vst.msk [vmem:[#allocation2 + $0x18] sm:$0xff] %vm1546, %v1445
      %1551 = vst.msk [vmem:[#allocation2 + $0x20] sm:$0xff] %vm1546, %v1447
      %1552 = vst.msk [vmem:[#allocation2 + $0x28] sm:$0xff] %vm1546, %v1449
      %1553 = vst.msk [vmem:[#allocation2 + $0x30] sm:$0xff] %vm1546, %v1451
      %1554 = vst.msk [vmem:[#allocation2 + $0x38] sm:$0xff] %vm1546, %v1453
      %1555 = vst.msk [vmem:[#allocation2 + $0x40] sm:$0xff] %vm1546, %v1455
      %1556 = vst.msk [vmem:[#allocation2 + $0x48] sm:$0xff] %vm1546, %v1457
      %1557 = vst.msk [vmem:[#allocation2 + $0x50] sm:$0xff] %vm1546, %v1459
      %1558 = vst.msk [vmem:[#allocation2 + $0x58] sm:$0xff] %vm1546, %v1461
      %1559 = vst.msk [vmem:[#allocation2 + $0x60] sm:$0xff] %vm1546, %v1463
      %1560 = vst.msk [vmem:[#allocation2 + $0x68] sm:$0xff] %vm1546, %v1465
      %1561 = vst.msk [vmem:[#allocation2 + $0x70] sm:$0xff] %vm1546, %v1467
      %1562 = vst.msk [vmem:[#allocation2 + $0x78] sm:$0xff] %vm1546, %v1469
      %1563 = vst.msk [vmem:[#allocation2 + $0x80] sm:$0xff] %vm1546, %v1471
      %1564 = vst.msk [vmem:[#allocation2 + $0x88] sm:$0xff] %vm1546, %v1473
      %1565 = vst.msk [vmem:[#allocation2 + $0x90] sm:$0xff] %vm1546, %v1475
      %1566 = vst.msk [vmem:[#allocation2 + $0x98] sm:$0xff] %vm1546, %v1477
      %1567 = vst.msk [vmem:[#allocation2 + $0xa0] sm:$0xff] %vm1546, %v1479
      %1568 = vst.msk [vmem:[#allocation2 + $0xa8] sm:$0xff] %vm1546, %v1481
      %1569 = vst.msk [vmem:[#allocation2 + $0xb0] sm:$0xff] %vm1546, %v1483
      %1570 = vst.msk [vmem:[#allocation2 + $0xb8] sm:$0xff] %vm1546, %v1485
      %1571 = vst.msk [vmem:[#allocation2 + $0xc0] sm:$0xff] %vm1546, %v1487
      %1572 = vst.msk [vmem:[#allocation2 + $0xc8] sm:$0xff] %vm1546, %v1489
      %1573 = vst.msk [vmem:[#allocation2 + $0xd0] sm:$0xff] %vm1546, %v1491
      %1574 = vst.msk [vmem:[#allocation2 + $0xd8] sm:$0xff] %vm1546, %v1493
      %1575 = vst.msk [vmem:[#allocation2 + $0xe0] sm:$0xff] %vm1546, %v1495
      %1576 = vst.msk [vmem:[#allocation2 + $0xe8] sm:$0xff] %vm1546, %v1497
      %1577 = vst.msk [vmem:[#allocation2 + $0xf0] sm:$0xff] %vm1546, %v1499
      %1578 = vst.msk [vmem:[#allocation2 + $0xf8] sm:$0xff] %vm1546, %v1501
      %1579 = vst.msk [vmem:[#allocation2 + $0x100] sm:$0xff] %vm1546, %v1503
      %1580 = vst.msk [vmem:[#allocation2 + $0x108] sm:$0xff] %vm1546, %v1505
      %1581 = vst.msk [vmem:[#allocation2 + $0x110] sm:$0xff] %vm1546, %v1507
      %1582 = vst.msk [vmem:[#allocation2 + $0x118] sm:$0xff] %vm1546, %v1509
      %vm1583 = vcmask 1046528
      %v1584 = vrot.slane %v1112, 1
      %v1585 = vrot.slane %v1113, 1
      %v1586 = vsel %vm1583, %v1584, %v1585
      %v1587 = vrot.slane %v1114, 1
      %v1588 = vsel %vm1583, %v1585, %v1587
      %v1589 = vrot.slane %v1115, 1
      %v1590 = vsel %vm1583, %v1587, %v1589
      %v1591 = vrot.slane %v1116, 1
      %v1592 = vsel %vm1583, %v1589, %v1591
      %v1593 = vrot.slane %v1117, 1
      %v1594 = vsel %vm1583, %v1591, %v1593
      %v1595 = vrot.slane %v1118, 1
      %v1596 = vsel %vm1583, %v1593, %v1595
      %v1597 = vrot.slane %v1119, 1
      %v1598 = vsel %vm1583, %v1595, %v1597
      %v1599 = vrot.slane %v1120, 1
      %v1600 = vsel %vm1583, %v1597, %v1599
      %v1601 = vrot.slane %v1121, 1
      %v1602 = vsel %vm1583, %v1599, %v1601
      %v1603 = vrot.slane %v1122, 1
      %v1604 = vsel %vm1583, %v1601, %v1603
      %v1605 = vrot.slane %v1123, 1
      %v1606 = vsel %vm1583, %v1603, %v1605
      %v1607 = vrot.slane %v1124, 1
      %v1608 = vsel %vm1583, %v1605, %v1607
      %v1609 = vrot.slane %v1125, 1
      %v1610 = vsel %vm1583, %v1607, %v1609
      %v1611 = vrot.slane %v1126, 1
      %v1612 = vsel %vm1583, %v1609, %v1611
      %v1613 = vrot.slane %v1127, 1
      %v1614 = vsel %vm1583, %v1611, %v1613
      %v1615 = vrot.slane %v1128, 1
      %v1616 = vsel %vm1583, %v1613, %v1615
      %v1617 = vrot.slane %v1129, 1
      %v1618 = vsel %vm1583, %v1615, %v1617
      %v1619 = vrot.slane %v1130, 1
      %v1620 = vsel %vm1583, %v1617, %v1619
      %v1621 = vrot.slane %v1131, 1
      %v1622 = vsel %vm1583, %v1619, %v1621
      %v1623 = vrot.slane %v1132, 1
      %v1624 = vsel %vm1583, %v1621, %v1623
      %v1625 = vrot.slane %v1133, 1
      %v1626 = vsel %vm1583, %v1623, %v1625
      %v1627 = vrot.slane %v1134, 1
      %v1628 = vsel %vm1583, %v1625, %v1627
      %v1629 = vrot.slane %v1135, 1
      %v1630 = vsel %vm1583, %v1627, %v1629
      %v1631 = vrot.slane %v1136, 1
      %v1632 = vsel %vm1583, %v1629, %v1631
      %v1633 = vrot.slane %v1137, 1
      %v1634 = vsel %vm1583, %v1631, %v1633
      %v1635 = vrot.slane %v1138, 1
      %v1636 = vsel %vm1583, %v1633, %v1635
      %v1637 = vrot.slane %v1139, 1
      %v1638 = vsel %vm1583, %v1635, %v1637
      %v1639 = vrot.slane %v1140, 1
      %v1640 = vsel %vm1583, %v1637, %v1639
      %v1641 = vrot.slane %v1141, 1
      %v1642 = vsel %vm1583, %v1639, %v1641
      %v1643 = vrot.slane %v1142, 1
      %v1644 = vsel %vm1583, %v1641, %v1643
      %v1645 = vrot.slane %v1143, 1
      %v1646 = vsel %vm1583, %v1643, %v1645
      %v1647 = vrot.slane %v1144, 1
      %v1648 = vsel %vm1583, %v1645, %v1647
      %v1649 = vrot.slane %v1145, 1
      %v1650 = vsel %vm1583, %v1647, %v1649
      %v1651 = vrot.slane %v1146, 1
      %v1652 = vsel %vm1583, %v1649, %v1651
      %v1653 = vrot.slane %v1147, 1
      %v1654 = vsel %vm1583, %v1651, %v1653
      %v1692 = vsel %vm1583, %v1653, %v1584
      %v1693 = vsel %vm838, 1, 0
      %v1694 = vsel %vm839, 1, 0
      %v1695 = vsel %vm840, 1, 0
      %v1696 = vsel %vm841, 1, 0
      %v1697 = vsel %vm842, 1, 0
      %v1698 = vsel %vm843, 1, 0
      %v1699 = vsel %vm844, 1, 0
      %v1700 = vsel %vm845, 1, 0
      %v1701 = vsel %vm846, 1, 0
      %v1702 = vsel %vm847, 1, 0
      %v1703 = vsel %vm848, 1, 0
      %v1704 = vsel %vm849, 1, 0
      %v1705 = vsel %vm850, 1, 0
      %v1706 = vsel %vm851, 1, 0
      %v1707 = vsel %vm852, 1, 0
      %v1708 = vsel %vm853, 1, 0
      %v1709 = vsel %vm854, 1, 0
      %v1710 = vsel %vm855, 1, 0
      %v1711 = vsel %vm856, 1, 0
      %v1712 = vsel %vm857, 1, 0
      %v1713 = vsel %vm858, 1, 0
      %v1714 = vsel %vm859, 1, 0
      %v1715 = vsel %vm860, 1, 0
      %v1716 = vsel %vm861, 1, 0
      %v1717 = vsel %vm862, 1, 0
      %v1718 = vsel %vm863, 1, 0
      %v1719 = vsel %vm864, 1, 0
      %v1720 = vsel %vm865, 1, 0
      %v1721 = vsel %vm866, 1, 0
      %v1722 = vsel %vm867, 1, 0
      %v1723 = vsel %vm868, 1, 0
      %v1724 = vsel %vm869, 1, 0
      %v1725 = vsel %vm870, 1, 0
      %v1726 = vsel %vm871, 1, 0
      %v1727 = vsel %vm872, 1, 0
      %v1728 = vsel %vm873, 1, 0
      %vm1729 = vcmp.eq.s32.totalorder %v1693, 1
      %vm1730 = vcmp.eq.s32.totalorder %v1694, 1
      %vm1731 = vcmp.eq.s32.totalorder %v1695, 1
      %vm1732 = vcmp.eq.s32.totalorder %v1696, 1
      %vm1733 = vcmp.eq.s32.totalorder %v1697, 1
      %vm1734 = vcmp.eq.s32.totalorder %v1698, 1
      %vm1735 = vcmp.eq.s32.totalorder %v1699, 1
      %vm1736 = vcmp.eq.s32.totalorder %v1700, 1
      %vm1737 = vcmp.eq.s32.totalorder %v1701, 1
      %vm1738 = vcmp.eq.s32.totalorder %v1702, 1
      %vm1739 = vcmp.eq.s32.totalorder %v1703, 1
      %vm1740 = vcmp.eq.s32.totalorder %v1704, 1
      %vm1741 = vcmp.eq.s32.totalorder %v1705, 1
      %vm1742 = vcmp.eq.s32.totalorder %v1706, 1
      %vm1743 = vcmp.eq.s32.totalorder %v1707, 1
      %vm1744 = vcmp.eq.s32.totalorder %v1708, 1
      %vm1745 = vcmp.eq.s32.totalorder %v1709, 1
      %vm1746 = vcmp.eq.s32.totalorder %v1710, 1
      %vm1747 = vcmp.eq.s32.totalorder %v1711, 1
      %vm1748 = vcmp.eq.s32.totalorder %v1712, 1
      %vm1749 = vcmp.eq.s32.totalorder %v1713, 1
      %vm1750 = vcmp.eq.s32.totalorder %v1714, 1
      %vm1751 = vcmp.eq.s32.totalorder %v1715, 1
      %vm1752 = vcmp.eq.s32.totalorder %v1716, 1
      %vm1753 = vcmp.eq.s32.totalorder %v1717, 1
      %vm1754 = vcmp.eq.s32.totalorder %v1718, 1
      %vm1755 = vcmp.eq.s32.totalorder %v1719, 1
      %vm1756 = vcmp.eq.s32.totalorder %v1720, 1
      %vm1757 = vcmp.eq.s32.totalorder %v1721, 1
      %vm1758 = vcmp.eq.s32.totalorder %v1722, 1
      %vm1759 = vcmp.eq.s32.totalorder %v1723, 1
      %vm1760 = vcmp.eq.s32.totalorder %v1724, 1
      %vm1761 = vcmp.eq.s32.totalorder %v1725, 1
      %vm1762 = vcmp.eq.s32.totalorder %v1726, 1
      %vm1763 = vcmp.eq.s32.totalorder %v1727, 1
      %vm1764 = vcmp.eq.s32.totalorder %v1728, 1
      %v1765 = vsel %vm1729, %v1586, 0.0
      %v1766 = vsel %vm1730, %v1588, 0.0
      %v1767 = vsel %vm1731, %v1590, 0.0
      %v1768 = vsel %vm1732, %v1592, 0.0
      %v1769 = vsel %vm1733, %v1594, 0.0
      %v1770 = vsel %vm1734, %v1596, 0.0
      %v1771 = vsel %vm1735, %v1598, 0.0
      %v1772 = vsel %vm1736, %v1600, 0.0
      %v1773 = vsel %vm1737, %v1602, 0.0
      %v1774 = vsel %vm1738, %v1604, 0.0
      %v1775 = vsel %vm1739, %v1606, 0.0
      %v1776 = vsel %vm1740, %v1608, 0.0
      %v1777 = vsel %vm1741, %v1610, 0.0
      %v1778 = vsel %vm1742, %v1612, 0.0
      %v1779 = vsel %vm1743, %v1614, 0.0
      %v1780 = vsel %vm1744, %v1616, 0.0
      %v1781 = vsel %vm1745, %v1618, 0.0
      %v1782 = vsel %vm1746, %v1620, 0.0
      %v1783 = vsel %vm1747, %v1622, 0.0
      %v1784 = vsel %vm1748, %v1624, 0.0
      %v1785 = vsel %vm1749, %v1626, 0.0
      %v1786 = vsel %vm1750, %v1628, 0.0
      %v1787 = vsel %vm1751, %v1630, 0.0
      %v1788 = vsel %vm1752, %v1632, 0.0
      %v1789 = vsel %vm1753, %v1634, 0.0
      %v1790 = vsel %vm1754, %v1636, 0.0
      %v1791 = vsel %vm1755, %v1638, 0.0
      %v1792 = vsel %vm1756, %v1640, 0.0
      %v1793 = vsel %vm1757, %v1642, 0.0
      %v1794 = vsel %vm1758, %v1644, 0.0
      %v1795 = vsel %vm1759, %v1646, 0.0
      %v1796 = vsel %vm1760, %v1648, 0.0
      %v1797 = vsel %vm1761, %v1650, 0.0
      %v1798 = vsel %vm1762, %v1652, 0.0
      %v1799 = vsel %vm1763, %v1654, 0.0
      %v1800 = vsel %vm1764, %v1692, 0.0
      %1837 = vrot.lane.b32.xlu0 %v1765, 3
      %v1838 = vpop.permute.xlu0 %1837
      %1839 = vrot.lane.b32.xlu0 %v1766, 3
      %v1840 = vpop.permute.xlu0 %1839
      %1841 = vrot.lane.b32.xlu0 %v1767, 3
      %v1842 = vpop.permute.xlu0 %1841
      %1843 = vrot.lane.b32.xlu0 %v1768, 3
      %v1844 = vpop.permute.xlu0 %1843
      %1845 = vrot.lane.b32.xlu0 %v1769, 3
      %v1846 = vpop.permute.xlu0 %1845
      %1847 = vrot.lane.b32.xlu0 %v1770, 3
      %v1848 = vpop.permute.xlu0 %1847
      %1849 = vrot.lane.b32.xlu0 %v1771, 3
      %v1850 = vpop.permute.xlu0 %1849
      %1851 = vrot.lane.b32.xlu0 %v1772, 3
      %v1852 = vpop.permute.xlu0 %1851
      %1853 = vrot.lane.b32.xlu0 %v1773, 3
      %v1854 = vpop.permute.xlu0 %1853
      %1855 = vrot.lane.b32.xlu0 %v1774, 3
      %v1856 = vpop.permute.xlu0 %1855
      %1857 = vrot.lane.b32.xlu0 %v1775, 3
      %v1858 = vpop.permute.xlu0 %1857
      %1859 = vrot.lane.b32.xlu0 %v1776, 3
      %v1860 = vpop.permute.xlu0 %1859
      %1861 = vrot.lane.b32.xlu0 %v1777, 3
      %v1862 = vpop.permute.xlu0 %1861
      %1863 = vrot.lane.b32.xlu0 %v1778, 3
      %v1864 = vpop.permute.xlu0 %1863
      %1865 = vrot.lane.b32.xlu0 %v1779, 3
      %v1866 = vpop.permute.xlu0 %1865
      %1867 = vrot.lane.b32.xlu0 %v1780, 3
      %v1868 = vpop.permute.xlu0 %1867
      %1869 = vrot.lane.b32.xlu0 %v1781, 3
      %v1870 = vpop.permute.xlu0 %1869
      %1871 = vrot.lane.b32.xlu0 %v1782, 3
      %v1872 = vpop.permute.xlu0 %1871
      %1873 = vrot.lane.b32.xlu0 %v1783, 3
      %v1874 = vpop.permute.xlu0 %1873
      %1875 = vrot.lane.b32.xlu0 %v1784, 3
      %v1876 = vpop.permute.xlu0 %1875
      %1877 = vrot.lane.b32.xlu0 %v1785, 3
      %v1878 = vpop.permute.xlu0 %1877
      %1879 = vrot.lane.b32.xlu0 %v1786, 3
      %v1880 = vpop.permute.xlu0 %1879
      %1881 = vrot.lane.b32.xlu0 %v1787, 3
      %v1882 = vpop.permute.xlu0 %1881
      %1883 = vrot.lane.b32.xlu0 %v1788, 3
      %v1884 = vpop.permute.xlu0 %1883
      %1885 = vrot.lane.b32.xlu0 %v1789, 3
      %v1886 = vpop.permute.xlu0 %1885
      %1887 = vrot.lane.b32.xlu0 %v1790, 3
      %v1888 = vpop.permute.xlu0 %1887
      %1889 = vrot.lane.b32.xlu0 %v1791, 3
      %v1890 = vpop.permute.xlu0 %1889
      %1891 = vrot.lane.b32.xlu0 %v1792, 3
      %v1892 = vpop.permute.xlu0 %1891
      %1893 = vrot.lane.b32.xlu0 %v1793, 3
      %v1894 = vpop.permute.xlu0 %1893
      %1895 = vrot.lane.b32.xlu0 %v1794, 3
      %v1896 = vpop.permute.xlu0 %1895
      %1897 = vrot.lane.b32.xlu0 %v1795, 3
      %v1898 = vpop.permute.xlu0 %1897
      %1899 = vrot.lane.b32.xlu0 %v1796, 3
      %v1900 = vpop.permute.xlu0 %1899
      %1901 = vrot.lane.b32.xlu0 %v1797, 3
      %v1902 = vpop.permute.xlu0 %1901
      %1903 = vrot.lane.b32.xlu0 %v1798, 3
      %v1904 = vpop.permute.xlu0 %1903
      %1905 = vrot.lane.b32.xlu0 %v1799, 3
      %v1906 = vpop.permute.xlu0 %1905
      %1907 = vrot.lane.b32.xlu0 %v1800, 3
      %v1908 = vpop.permute.xlu0 %1907
      %vm1945 = vcmask 72752
      %1946 = vst.msk [vmem:[#allocation2] sm:$0xff] %vm1945, %v1838
      %1947 = vst.msk [vmem:[#allocation2 + $0x8] sm:$0xff] %vm1945, %v1840
      %1948 = vst.msk [vmem:[#allocation2 + $0x10] sm:$0xff] %vm1945, %v1842
      %1949 = vst.msk [vmem:[#allocation2 + $0x18] sm:$0xff] %vm1945, %v1844
      %1950 = vst.msk [vmem:[#allocation2 + $0x20] sm:$0xff] %vm1945, %v1846
      %1951 = vst.msk [vmem:[#allocation2 + $0x28] sm:$0xff] %vm1945, %v1848
      %1952 = vst.msk [vmem:[#allocation2 + $0x30] sm:$0xff] %vm1945, %v1850
      %1953 = vst.msk [vmem:[#allocation2 + $0x38] sm:$0xff] %vm1945, %v1852
      %1954 = vst.msk [vmem:[#allocation2 + $0x40] sm:$0xff] %vm1945, %v1854
      %1955 = vst.msk [vmem:[#allocation2 + $0x48] sm:$0xff] %vm1945, %v1856
      %1956 = vst.msk [vmem:[#allocation2 + $0x50] sm:$0xff] %vm1945, %v1858
      %1957 = vst.msk [vmem:[#allocation2 + $0x58] sm:$0xff] %vm1945, %v1860
      %1958 = vst.msk [vmem:[#allocation2 + $0x60] sm:$0xff] %vm1945, %v1862
      %1959 = vst.msk [vmem:[#allocation2 + $0x68] sm:$0xff] %vm1945, %v1864
      %1960 = vst.msk [vmem:[#allocation2 + $0x70] sm:$0xff] %vm1945, %v1866
      %1961 = vst.msk [vmem:[#allocation2 + $0x78] sm:$0xff] %vm1945, %v1868
      %1962 = vst.msk [vmem:[#allocation2 + $0x80] sm:$0xff] %vm1945, %v1870
      %1963 = vst.msk [vmem:[#allocation2 + $0x88] sm:$0xff] %vm1945, %v1872
      %1964 = vst.msk [vmem:[#allocation2 + $0x90] sm:$0xff] %vm1945, %v1874
      %1965 = vst.msk [vmem:[#allocation2 + $0x98] sm:$0xff] %vm1945, %v1876
      %1966 = vst.msk [vmem:[#allocation2 + $0xa0] sm:$0xff] %vm1945, %v1878
      %1967 = vst.msk [vmem:[#allocation2 + $0xa8] sm:$0xff] %vm1945, %v1880
      %1968 = vst.msk [vmem:[#allocation2 + $0xb0] sm:$0xff] %vm1945, %v1882
      %1969 = vst.msk [vmem:[#allocation2 + $0xb8] sm:$0xff] %vm1945, %v1884
      %1970 = vst.msk [vmem:[#allocation2 + $0xc0] sm:$0xff] %vm1945, %v1886
      %1971 = vst.msk [vmem:[#allocation2 + $0xc8] sm:$0xff] %vm1945, %v1888
      %1972 = vst.msk [vmem:[#allocation2 + $0xd0] sm:$0xff] %vm1945, %v1890
      %1973 = vst.msk [vmem:[#allocation2 + $0xd8] sm:$0xff] %vm1945, %v1892
      %1974 = vst.msk [vmem:[#allocation2 + $0xe0] sm:$0xff] %vm1945, %v1894
      %1975 = vst.msk [vmem:[#allocation2 + $0xe8] sm:$0xff] %vm1945, %v1896
      %1976 = vst.msk [vmem:[#allocation2 + $0xf0] sm:$0xff] %vm1945, %v1898
      %1977 = vst.msk [vmem:[#allocation2 + $0xf8] sm:$0xff] %vm1945, %v1900
      %1978 = vst.msk [vmem:[#allocation2 + $0x100] sm:$0xff] %vm1945, %v1902
      %1979 = vst.msk [vmem:[#allocation2 + $0x108] sm:$0xff] %vm1945, %v1904
      %1980 = vst.msk [vmem:[#allocation2 + $0x110] sm:$0xff] %vm1945, %v1906
      %1981 = vst.msk [vmem:[#allocation2 + $0x118] sm:$0xff] %vm1945, %v1908
      %v1982 = vld [vmem:[#allocation2] sm:$0xff]
      %v1983 = vld [vmem:[#allocation2 + $0x8] sm:$0xff]
      %v1984 = vld [vmem:[#allocation2 + $0x10] sm:$0xff]
      %v1985 = vld [vmem:[#allocation2 + $0x18] sm:$0xff]
      %v1986 = vld [vmem:[#allocation2 + $0x20] sm:$0xff]
      %v1987 = vld [vmem:[#allocation2 + $0x28] sm:$0xff]
      %v1988 = vld [vmem:[#allocation2 + $0x30] sm:$0xff]
      %v1989 = vld [vmem:[#allocation2 + $0x38] sm:$0xff]
      %v1990 = vld [vmem:[#allocation2 + $0x40] sm:$0xff]
      %v1991 = vld [vmem:[#allocation2 + $0x48] sm:$0xff]
      %v1992 = vld [vmem:[#allocation2 + $0x50] sm:$0xff]
      %v1993 = vld [vmem:[#allocation2 + $0x58] sm:$0xff]
      %v1994 = vld [vmem:[#allocation2 + $0x60] sm:$0xff]
      %v1995 = vld [vmem:[#allocation2 + $0x68] sm:$0xff]
      %v1996 = vld [vmem:[#allocation2 + $0x70] sm:$0xff]
      %v1997 = vld [vmem:[#allocation2 + $0x78] sm:$0xff]
      %v1998 = vld [vmem:[#allocation2 + $0x80] sm:$0xff]
      %v1999 = vld [vmem:[#allocation2 + $0x88] sm:$0xff]
      %v2000 = vld [vmem:[#allocation2 + $0x90] sm:$0xff]
      %v2001 = vld [vmem:[#allocation2 + $0x98] sm:$0xff]
      %v2002 = vld [vmem:[#allocation2 + $0xa0] sm:$0xff]
      %v2003 = vld [vmem:[#allocation2 + $0xa8] sm:$0xff]
      %v2004 = vld [vmem:[#allocation2 + $0xb0] sm:$0xff]
      %v2005 = vld [vmem:[#allocation2 + $0xb8] sm:$0xff]
      %v2006 = vld [vmem:[#allocation2 + $0xc0] sm:$0xff]
      %v2007 = vld [vmem:[#allocation2 + $0xc8] sm:$0xff]
      %v2008 = vld [vmem:[#allocation2 + $0xd0] sm:$0xff]
      %v2009 = vld [vmem:[#allocation2 + $0xd8] sm:$0xff]
      %v2010 = vld [vmem:[#allocation2 + $0xe0] sm:$0xff]
      %v2011 = vld [vmem:[#allocation2 + $0xe8] sm:$0xff]
      %v2012 = vld [vmem:[#allocation2 + $0xf0] sm:$0xff]
      %v2013 = vld [vmem:[#allocation2 + $0xf8] sm:$0xff]
      %v2014 = vld [vmem:[%s1] sm:$0xff]
      %v2015 = vld [vmem:[%s1 + $0x8] sm:$0x1]
      %v2016 = vld [vmem:[#allocation2 + $0x100] sm:$0xff]
      %v2017 = vld [vmem:[#allocation2 + $0x108] sm:$0xff]
      %s2018 = scalar_lea.vmem %s1, 16
      %v2019 = vld [vmem:[%s2018] sm:$0xff]
      %v2020 = vld [vmem:[%s2018 + $0x8] sm:$0x1]
      %vm2021 = vcmask 72704
      %v2023 = vsel %vm2021, %v1984, 0
      %v2026 = vsel %vm2021, %v1985, 0
      %v2029 = vsel %vm2021, %v1986, 0
      %v2032 = vsel %vm2021, %v1987, 0
      %v2035 = vsel %vm2021, %v1988, 0
      %v2038 = vsel %vm2021, %v1989, 0
      %v2041 = vsel %vm2021, %v1990, 0
      %v2044 = vsel %vm2021, %v1991, 0
      %v2047 = vsel %vm2021, %v1992, 0
      %v2050 = vsel %vm2021, %v1993, 0
      %v2053 = vsel %vm2021, %v1994, 0
      %v2056 = vsel %vm2021, %v1995, 0
      %v2059 = vsel %vm2021, %v1996, 0
      %v2062 = vsel %vm2021, %v1997, 0
      %v2065 = vsel %vm2021, %v1998, 0
      %v2068 = vsel %vm2021, %v1999, 0
      %v2071 = vsel %vm2021, %v2000, 0
      %v2074 = vsel %vm2021, %v2001, 0
      %v2077 = vsel %vm2021, %v2002, 0
      %v2080 = vsel %vm2021, %v2003, 0
      %v2083 = vsel %vm2021, %v2004, 0
      %v2086 = vsel %vm2021, %v2005, 0
      %v2089 = vsel %vm2021, %v2006, 0
      %v2092 = vsel %vm2021, %v2007, 0
      %v2095 = vsel %vm2021, %v2008, 0
      %v2098 = vsel %vm2021, %v2009, 0
      %v2101 = vsel %vm2021, %v2010, 0
      %v2104 = vsel %vm2021, %v2011, 0
      %v2107 = vsel %vm2021, %v2012, 0
      %v2110 = vsel %vm2021, %v2013, 0
      %v2113 = vsel %vm2021, %v2016, 0
      %v2116 = vsel %vm2021, %v2017, 0
      %v2119 = vsel %vm1186, %v2020, 0
      %2121 = vmatprep.subr.mxu0 0.0
      %2122 = vmatpush1.msra.mxu0 %v2019
      %2123 = vmatprep.subr.mxu0 0.0
      %2124 = vmatpush1.msra.mxu0 %v2119
      %2125 = vmatprep.subr.mxu0 0.0
      %2126 = vmatpush1.msra.mxu0 0.0
      %2127 = vmatprep.subr.mxu0 0.0
      %2128 = vmatpush1.msra.mxu0 0.0
      %2129 = vmatprep.subr.mxu0 0.0
      %2130 = vmatpush1.msra.mxu0 0.0
      %2131 = vmatprep.subr.mxu0 0.0
      %2132 = vmatpush1.msra.mxu0 0.0
      %2133 = vmatprep.subr.mxu0 0.0
      %2134 = vmatpush1.msra.mxu0 0.0
      %2135 = vmatprep.subr.mxu0 0.0
      %2136 = vmatpush1.msra.mxu0 0.0
      %2137 = vmatprep.subr.mxu0 0.0
      %2138 = vmatpush1.msra.mxu0 0.0
      %2139 = vmatprep.subr.mxu0 0.0
      %2140 = vmatpush1.msra.mxu0 0.0
      %2141 = vmatprep.subr.mxu0 0.0
      %2142 = vmatpush1.msra.mxu0 0.0
      %2143 = vmatprep.subr.mxu0 0.0
      %2144 = vmatpush1.msra.mxu0 0.0
      %2145 = vmatprep.subr.mxu0 0.0
      %2146 = vmatpush1.msra.mxu0 0.0
      %2147 = vmatprep.subr.mxu0 0.0
      %2148 = vmatpush1.msra.mxu0 0.0
      %2149 = vmatprep.subr.mxu0 0.0
      %2150 = vmatpush1.msra.mxu0 0.0
      %2151 = vmatprep.subr.mxu0 0.0
      %2152 = vmatpush1.msra.mxu0 0.0
      %2153 = vmatprep.subr.mxu0 0.0
      %2154 = vmatpush1.msra.mxu0 0.0
      %2155 = vmatprep.subr.mxu0 0.0
      %2156 = vmatpush1.msra.mxu0 0.0
      %2157 = vmatprep.subr.mxu0 0.0
      %2158 = vmatpush1.msra.mxu0 0.0
      %2159 = vmatprep.subr.mxu0 0.0
      %2160 = vmatpush1.msra.mxu0 0.0
      %2161 = vmatprep.subr.mxu0 0.0
      %2162 = vmatpush1.msra.mxu0 0.0
      %2163 = vmatprep.subr.mxu0 0.0
      %2164 = vmatpush1.msra.mxu0 0.0
      %2165 = vmatprep.subr.mxu0 0.0
      %2166 = vmatpush1.msra.mxu0 0.0
      %2167 = vmatprep.subr.mxu0 0.0
      %2168 = vmatpush1.msra.mxu0 0.0
      %2169 = vmatprep.subr.mxu0 0.0
      %2170 = vmatpush1.msra.mxu0 0.0
      %2171 = vmatprep.subr.mxu0 0.0
      %2172 = vmatpush1.msra.mxu0 0.0
      %2173 = vmatprep.subr.mxu0 0.0
      %2174 = vmatpush1.msra.mxu0 0.0
      %2175 = vmatprep.subr.mxu0 0.0
      %2176 = vmatpush1.msra.mxu0 0.0
      %2177 = vmatprep.subr.mxu0 0.0
      %2178 = vmatpush1.msra.mxu0 0.0
      %2179 = vmatprep.subr.mxu0 0.0
      %2180 = vmatpush1.msra.mxu0 0.0
      %2181 = vmatprep.subr.mxu0 0.0
      %2182 = vmatpush1.msra.mxu0 0.0
      %2183 = vmatprep.subr.mxu0 0.0
      %2184 = vmatpush1.msra.mxu0 0.0
      %2185 = vmatprep.mubr.f32.mxu0 0.0
      %2186 = vmatmul.mubr.f32.gmra.mrb[0].mxu0 %v2023
      %v2187 = vpop.f32.mrb[0].mxu0
      %v2188 = vadd.f32 0.0, %v2187
      %v2189 = vpop.f32.mrb[0].mxu0
      %2190 = vmatprep.mubr.f32.mxu0 0.0
      %2191 = vmatmul.mubr.f32.gmra.mrb[0].mxu0 %v2026
      %v2192 = vpop.f32.mrb[0].mxu0
      %v2193 = vadd.f32 0.0, %v2192
      %v2194 = vpop.f32.mrb[0].mxu0
      %2195 = vmatprep.mubr.f32.mxu0 0.0
      %2196 = vmatmul.mubr.f32.gmra.mrb[0].mxu0 %v2029
      %v2197 = vpop.f32.mrb[0].mxu0
      %v2198 = vadd.f32 0.0, %v2197
      %v2199 = vpop.f32.mrb[0].mxu0
      %2200 = vmatprep.mubr.f32.mxu0 0.0
      %2201 = vmatmul.mubr.f32.gmra.mrb[0].mxu0 %v2032
      %v2202 = vpop.f32.mrb[0].mxu0
      %v2203 = vadd.f32 0.0, %v2202
      %v2204 = vpop.f32.mrb[0].mxu0
      %2205 = vmatprep.mubr.f32.mxu0 0.0
      %2206 = vmatmul.mubr.f32.gmra.mrb[0].mxu0 %v2035
      %v2207 = vpop.f32.mrb[0].mxu0
      %v2208 = vadd.f32 0.0, %v2207
      %v2209 = vpop.f32.mrb[0].mxu0
      %2210 = vmatprep.mubr.f32.mxu0 0.0
      %2211 = vmatmul.mubr.f32.gmra.mrb[0].mxu0 %v2038
      %v2212 = vpop.f32.mrb[0].mxu0
      %v2213 = vadd.f32 0.0, %v2212
      %v2214 = vpop.f32.mrb[0].mxu0
      %2215 = vmatprep.mubr.f32.mxu0 0.0
      %2216 = vmatmul.mubr.f32.gmra.mrb[0].mxu0 %v2041
      %v2217 = vpop.f32.mrb[0].mxu0
      %v2218 = vadd.f32 0.0, %v2217
      %v2219 = vpop.f32.mrb[0].mxu0
      %2220 = vmatprep.mubr.f32.mxu0 0.0
      %2221 = vmatmul.mubr.f32.gmra.mrb[0].mxu0 %v2044
      %v2222 = vpop.f32.mrb[0].mxu0
      %v2223 = vadd.f32 0.0, %v2222
      %v2224 = vpop.f32.mrb[0].mxu0
      %2225 = vmatprep.mubr.f32.mxu0 0.0
      %2226 = vmatmul.mubr.f32.gmra.mrb[0].mxu0 %v2047
      %v2227 = vpop.f32.mrb[0].mxu0
      %v2228 = vadd.f32 0.0, %v2227
      %v2229 = vpop.f32.mrb[0].mxu0
      %2230 = vmatprep.mubr.f32.mxu0 0.0
      %2231 = vmatmul.mubr.f32.gmra.mrb[0].mxu0 %v2050
      %v2232 = vpop.f32.mrb[0].mxu0
      %v2233 = vadd.f32 0.0, %v2232
      %v2234 = vpop.f32.mrb[0].mxu0
      %2235 = vmatprep.mubr.f32.mxu0 0.0
      %2236 = vmatmul.mubr.f32.gmra.mrb[0].mxu0 %v2053
      %v2237 = vpop.f32.mrb[0].mxu0
      %v2238 = vadd.f32 0.0, %v2237
      %v2239 = vpop.f32.mrb[0].mxu0
      %2240 = vmatprep.mubr.f32.mxu0 0.0
      %2241 = vmatmul.mubr.f32.gmra.mrb[0].mxu0 %v2056
      %v2242 = vpop.f32.mrb[0].mxu0
      %v2243 = vadd.f32 0.0, %v2242
      %v2244 = vpop.f32.mrb[0].mxu0
      %2245 = vmatprep.mubr.f32.mxu0 0.0
      %2246 = vmatmul.mubr.f32.gmra.mrb[0].mxu0 %v2059
      %v2247 = vpop.f32.mrb[0].mxu0
      %v2248 = vadd.f32 0.0, %v2247
      %v2249 = vpop.f32.mrb[0].mxu0
      %2250 = vmatprep.mubr.f32.mxu0 0.0
      %2251 = vmatmul.mubr.f32.gmra.mrb[0].mxu0 %v2062
      %v2252 = vpop.f32.mrb[0].mxu0
      %v2253 = vadd.f32 0.0, %v2252
      %v2254 = vpop.f32.mrb[0].mxu0
      %2255 = vmatprep.mubr.f32.mxu0 0.0
      %2256 = vmatmul.mubr.f32.gmra.mrb[0].mxu0 %v2065
      %v2257 = vpop.f32.mrb[0].mxu0
      %v2258 = vadd.f32 0.0, %v2257
      %v2259 = vpop.f32.mrb[0].mxu0
      %2260 = vmatprep.mubr.f32.mxu0 0.0
      %2261 = vmatmul.mubr.f32.gmra.mrb[0].mxu0 %v2068
      %v2262 = vpop.f32.mrb[0].mxu0
      %v2263 = vadd.f32 0.0, %v2262
      %v2264 = vpop.f32.mrb[0].mxu0
      %2265 = vmatprep.mubr.f32.mxu0 0.0
      %2266 = vmatmul.mubr.f32.gmra.mrb[0].mxu0 %v2071
      %v2267 = vpop.f32.mrb[0].mxu0
      %v2268 = vadd.f32 0.0, %v2267
      %v2269 = vpop.f32.mrb[0].mxu0
      %2270 = vmatprep.mubr.f32.mxu0 0.0
      %2271 = vmatmul.mubr.f32.gmra.mrb[0].mxu0 %v2074
      %v2272 = vpop.f32.mrb[0].mxu0
      %v2273 = vadd.f32 0.0, %v2272
      %v2274 = vpop.f32.mrb[0].mxu0
      %2275 = vmatprep.mubr.f32.mxu0 0.0
      %2276 = vmatmul.mubr.f32.gmra.mrb[0].mxu0 %v2077
      %v2277 = vpop.f32.mrb[0].mxu0
      %v2278 = vadd.f32 0.0, %v2277
      %v2279 = vpop.f32.mrb[0].mxu0
      %2280 = vmatprep.mubr.f32.mxu0 0.0
      %2281 = vmatmul.mubr.f32.gmra.mrb[0].mxu0 %v2080
      %v2282 = vpop.f32.mrb[0].mxu0
      %v2283 = vadd.f32 0.0, %v2282
      %v2284 = vpop.f32.mrb[0].mxu0
      %2285 = vmatprep.mubr.f32.mxu0 0.0
      %2286 = vmatmul.mubr.f32.gmra.mrb[0].mxu0 %v2083
      %v2287 = vpop.f32.mrb[0].mxu0
      %v2288 = vadd.f32 0.0, %v2287
      %v2289 = vpop.f32.mrb[0].mxu0
      %2290 = vmatprep.mubr.f32.mxu0 0.0
      %2291 = vmatmul.mubr.f32.gmra.mrb[0].mxu0 %v2086
      %v2292 = vpop.f32.mrb[0].mxu0
      %v2293 = vadd.f32 0.0, %v2292
      %v2294 = vpop.f32.mrb[0].mxu0
      %2295 = vmatprep.mubr.f32.mxu0 0.0
      %2296 = vmatmul.mubr.f32.gmra.mrb[0].mxu0 %v2089
      %v2297 = vpop.f32.mrb[0].mxu0
      %v2298 = vadd.f32 0.0, %v2297
      %v2299 = vpop.f32.mrb[0].mxu0
      %2300 = vmatprep.mubr.f32.mxu0 0.0
      %2301 = vmatmul.mubr.f32.gmra.mrb[0].mxu0 %v2092
      %v2302 = vpop.f32.mrb[0].mxu0
      %v2303 = vadd.f32 0.0, %v2302
      %v2304 = vpop.f32.mrb[0].mxu0
      %2305 = vmatprep.mubr.f32.mxu0 0.0
      %2306 = vmatmul.mubr.f32.gmra.mrb[0].mxu0 %v2095
      %v2307 = vpop.f32.mrb[0].mxu0
      %v2308 = vadd.f32 0.0, %v2307
      %v2309 = vpop.f32.mrb[0].mxu0
      %2310 = vmatprep.mubr.f32.mxu0 0.0
      %2311 = vmatmul.mubr.f32.gmra.mrb[0].mxu0 %v2098
      %v2312 = vpop.f32.mrb[0].mxu0
      %v2313 = vadd.f32 0.0, %v2312
      %v2314 = vpop.f32.mrb[0].mxu0
      %2315 = vmatprep.mubr.f32.mxu0 0.0
      %2316 = vmatmul.mubr.f32.gmra.mrb[0].mxu0 %v2101
      %v2317 = vpop.f32.mrb[0].mxu0
      %v2318 = vadd.f32 0.0, %v2317
      %v2319 = vpop.f32.mrb[0].mxu0
      %2320 = vmatprep.mubr.f32.mxu0 0.0
      %2321 = vmatmul.mubr.f32.gmra.mrb[0].mxu0 %v2104
      %v2322 = vpop.f32.mrb[0].mxu0
      %v2323 = vadd.f32 0.0, %v2322
      %v2324 = vpop.f32.mrb[0].mxu0
      %2325 = vmatprep.mubr.f32.mxu0 0.0
      %2326 = vmatmul.mubr.f32.gmra.mrb[0].mxu0 %v2107
      %v2327 = vpop.f32.mrb[0].mxu0
      %v2328 = vadd.f32 0.0, %v2327
      %v2329 = vpop.f32.mrb[0].mxu0
      %2330 = vmatprep.mubr.f32.mxu0 0.0
      %2331 = vmatmul.mubr.f32.gmra.mrb[0].mxu0 %v2110
      %v2332 = vpop.f32.mrb[0].mxu0
      %v2333 = vadd.f32 0.0, %v2332
      %v2334 = vpop.f32.mrb[0].mxu0
      %2335 = vmatprep.mubr.f32.mxu0 0.0
      %2336 = vmatmul.mubr.f32.gmra.mrb[0].mxu0 %v2113
      %v2337 = vpop.f32.mrb[0].mxu0
      %v2338 = vadd.f32 0.0, %v2337
      %v2339 = vpop.f32.mrb[0].mxu0
      %2340 = vmatprep.mubr.f32.mxu0 0.0
      %2341 = vmatmul.mubr.f32.gmra.mrb[0].mxu0 %v2116
      %v2342 = vpop.f32.mrb[0].mxu0
      %v2343 = vadd.f32 0.0, %v2342
      %v2344 = vpop.f32.mrb[0].mxu0
      %2345 = vdwg.mxu0
      %v2347 = vsel %vm2021, %v1982, 0
      %v2350 = vsel %vm2021, %v1983, 0
      %v2353 = vsel %vm1186, %v2015, 0
      %2355 = vmatprep.subr.mxu0 0.0
      %2356 = vmatpush1.msra.mxu0 %v2014
      %2357 = vmatprep.subr.mxu0 0.0
      %2358 = vmatpush1.msra.mxu0 %v2353
      %2359 = vmatprep.subr.mxu0 0.0
      %2360 = vmatpush1.msra.mxu0 0.0
      %2361 = vmatprep.subr.mxu0 0.0
      %2362 = vmatpush1.msra.mxu0 0.0
      %2363 = vmatprep.subr.mxu0 0.0
      %2364 = vmatpush1.msra.mxu0 0.0
      %2365 = vmatprep.subr.mxu0 0.0
      %2366 = vmatpush1.msra.mxu0 0.0
      %2367 = vmatprep.subr.mxu0 0.0
      %2368 = vmatpush1.msra.mxu0 0.0
      %2369 = vmatprep.subr.mxu0 0.0
      %2370 = vmatpush1.msra.mxu0 0.0
      %2371 = vmatprep.subr.mxu0 0.0
      %2372 = vmatpush1.msra.mxu0 0.0
      %2373 = vmatprep.subr.mxu0 0.0
      %2374 = vmatpush1.msra.mxu0 0.0
      %2375 = vmatprep.subr.mxu0 0.0
      %2376 = vmatpush1.msra.mxu0 0.0
      %2377 = vmatprep.subr.mxu0 0.0
      %2378 = vmatpush1.msra.mxu0 0.0
      %2379 = vmatprep.subr.mxu0 0.0
      %2380 = vmatpush1.msra.mxu0 0.0
      %2381 = vmatprep.subr.mxu0 0.0
      %2382 = vmatpush1.msra.mxu0 0.0
      %2383 = vmatprep.subr.mxu0 0.0
      %2384 = vmatpush1.msra.mxu0 0.0
      %2385 = vmatprep.subr.mxu0 0.0
      %2386 = vmatpush1.msra.mxu0 0.0
      %2387 = vmatprep.subr.mxu0 0.0
      %2388 = vmatpush1.msra.mxu0 0.0
      %2389 = vmatprep.subr.mxu0 0.0
      %2390 = vmatpush1.msra.mxu0 0.0
      %2391 = vmatprep.subr.mxu0 0.0
      %2392 = vmatpush1.msra.mxu0 0.0
      %2393 = vmatprep.subr.mxu0 0.0
      %2394 = vmatpush1.msra.mxu0 0.0
      %2395 = vmatprep.subr.mxu0 0.0
      %2396 = vmatpush1.msra.mxu0 0.0
      %2397 = vmatprep.subr.mxu0 0.0
      %2398 = vmatpush1.msra.mxu0 0.0
      %2399 = vmatprep.subr.mxu0 0.0
      %2400 = vmatpush1.msra.mxu0 0.0
      %2401 = vmatprep.subr.mxu0 0.0
      %2402 = vmatpush1.msra.mxu0 0.0
      %2403 = vmatprep.subr.mxu0 0.0
      %2404 = vmatpush1.msra.mxu0 0.0
      %2405 = vmatprep.subr.mxu0 0.0
      %2406 = vmatpush1.msra.mxu0 0.0
      %2407 = vmatprep.subr.mxu0 0.0
      %2408 = vmatpush1.msra.mxu0 0.0
      %2409 = vmatprep.subr.mxu0 0.0
      %2410 = vmatpush1.msra.mxu0 0.0
      %2411 = vmatprep.subr.mxu0 0.0
      %2412 = vmatpush1.msra.mxu0 0.0
      %2413 = vmatprep.subr.mxu0 0.0
      %2414 = vmatpush1.msra.mxu0 0.0
      %2415 = vmatprep.subr.mxu0 0.0
      %2416 = vmatpush1.msra.mxu0 0.0
      %2417 = vmatprep.subr.mxu0 0.0
      %2418 = vmatpush1.msra.mxu0 0.0
      %2419 = vmatprep.mubr.f32.mxu0 0.0
      %2420 = vmatmul.mubr.f32.gmra.mrb[0].mxu0 %v2347
      %v2421 = vpop.f32.mrb[0].mxu0
      %v2422 = vadd.f32 %v2188, %v2421
      %v2423 = vpop.f32.mrb[0].mxu0
      %2424 = vmatprep.mubr.f32.mxu0 0.0
      %2425 = vmatmul.mubr.f32.gmra.mrb[0].mxu0 %v2350
      %v2426 = vpop.f32.mrb[0].mxu0
      %v2427 = vadd.f32 %v2193, %v2426
      %v2428 = vpop.f32.mrb[0].mxu0
      %2429 = vmatprep.mubr.f32.mxu0 0.0
      %2430 = vmatmul.mubr.f32.gmra.mrb[0].mxu0 %v2023
      %v2431 = vpop.f32.mrb[0].mxu0
      %v2432 = vadd.f32 %v2198, %v2431
      %v2433 = vpop.f32.mrb[0].mxu0
      %2434 = vmatprep.mubr.f32.mxu0 0.0
      %2435 = vmatmul.mubr.f32.gmra.mrb[0].mxu0 %v2026
      %v2436 = vpop.f32.mrb[0].mxu0
      %v2437 = vadd.f32 %v2203, %v2436
      %v2438 = vpop.f32.mrb[0].mxu0
      %2439 = vmatprep.mubr.f32.mxu0 0.0
      %2440 = vmatmul.mubr.f32.gmra.mrb[0].mxu0 %v2029
      %v2441 = vpop.f32.mrb[0].mxu0
      %v2442 = vadd.f32 %v2208, %v2441
      %v2443 = vpop.f32.mrb[0].mxu0
      %2444 = vmatprep.mubr.f32.mxu0 0.0
      %2445 = vmatmul.mubr.f32.gmra.mrb[0].mxu0 %v2032
      %v2446 = vpop.f32.mrb[0].mxu0
      %v2447 = vadd.f32 %v2213, %v2446
      %v2448 = vpop.f32.mrb[0].mxu0
      %2449 = vmatprep.mubr.f32.mxu0 0.0
      %2450 = vmatmul.mubr.f32.gmra.mrb[0].mxu0 %v2035
      %v2451 = vpop.f32.mrb[0].mxu0
      %v2452 = vadd.f32 %v2218, %v2451
      %v2453 = vpop.f32.mrb[0].mxu0
      %2454 = vmatprep.mubr.f32.mxu0 0.0
      %2455 = vmatmul.mubr.f32.gmra.mrb[0].mxu0 %v2038
      %v2456 = vpop.f32.mrb[0].mxu0
      %v2457 = vadd.f32 %v2223, %v2456
      %v2458 = vpop.f32.mrb[0].mxu0
      %2459 = vmatprep.mubr.f32.mxu0 0.0
      %2460 = vmatmul.mubr.f32.gmra.mrb[0].mxu0 %v2041
      %v2461 = vpop.f32.mrb[0].mxu0
      %v2462 = vadd.f32 %v2228, %v2461
      %v2463 = vpop.f32.mrb[0].mxu0
      %2464 = vmatprep.mubr.f32.mxu0 0.0
      %2465 = vmatmul.mubr.f32.gmra.mrb[0].mxu0 %v2044
      %v2466 = vpop.f32.mrb[0].mxu0
      %v2467 = vadd.f32 %v2233, %v2466
      %v2468 = vpop.f32.mrb[0].mxu0
      %2469 = vmatprep.mubr.f32.mxu0 0.0
      %2470 = vmatmul.mubr.f32.gmra.mrb[0].mxu0 %v2047
      %v2471 = vpop.f32.mrb[0].mxu0
      %v2472 = vadd.f32 %v2238, %v2471
      %v2473 = vpop.f32.mrb[0].mxu0
      %2474 = vmatprep.mubr.f32.mxu0 0.0
      %2475 = vmatmul.mubr.f32.gmra.mrb[0].mxu0 %v2050
      %v2476 = vpop.f32.mrb[0].mxu0
      %v2477 = vadd.f32 %v2243, %v2476
      %v2478 = vpop.f32.mrb[0].mxu0
      %2479 = vmatprep.mubr.f32.mxu0 0.0
      %2480 = vmatmul.mubr.f32.gmra.mrb[0].mxu0 %v2053
      %v2481 = vpop.f32.mrb[0].mxu0
      %v2482 = vadd.f32 %v2248, %v2481
      %v2483 = vpop.f32.mrb[0].mxu0
      %2484 = vmatprep.mubr.f32.mxu0 0.0
      %2485 = vmatmul.mubr.f32.gmra.mrb[0].mxu0 %v2056
      %v2486 = vpop.f32.mrb[0].mxu0
      %v2487 = vadd.f32 %v2253, %v2486
      %v2488 = vpop.f32.mrb[0].mxu0
      %2489 = vmatprep.mubr.f32.mxu0 0.0
      %2490 = vmatmul.mubr.f32.gmra.mrb[0].mxu0 %v2059
      %v2491 = vpop.f32.mrb[0].mxu0
      %v2492 = vadd.f32 %v2258, %v2491
      %v2493 = vpop.f32.mrb[0].mxu0
      %2494 = vmatprep.mubr.f32.mxu0 0.0
      %2495 = vmatmul.mubr.f32.gmra.mrb[0].mxu0 %v2062
      %v2496 = vpop.f32.mrb[0].mxu0
      %v2497 = vadd.f32 %v2263, %v2496
      %v2498 = vpop.f32.mrb[0].mxu0
      %2499 = vmatprep.mubr.f32.mxu0 0.0
      %2500 = vmatmul.mubr.f32.gmra.mrb[0].mxu0 %v2065
      %v2501 = vpop.f32.mrb[0].mxu0
      %v2502 = vadd.f32 %v2268, %v2501
      %v2503 = vpop.f32.mrb[0].mxu0
      %2504 = vmatprep.mubr.f32.mxu0 0.0
      %2505 = vmatmul.mubr.f32.gmra.mrb[0].mxu0 %v2068
      %v2506 = vpop.f32.mrb[0].mxu0
      %v2507 = vadd.f32 %v2273, %v2506
      %v2508 = vpop.f32.mrb[0].mxu0
      %2509 = vmatprep.mubr.f32.mxu0 0.0
      %2510 = vmatmul.mubr.f32.gmra.mrb[0].mxu0 %v2071
      %v2511 = vpop.f32.mrb[0].mxu0
      %v2512 = vadd.f32 %v2278, %v2511
      %v2513 = vpop.f32.mrb[0].mxu0
      %2514 = vmatprep.mubr.f32.mxu0 0.0
      %2515 = vmatmul.mubr.f32.gmra.mrb[0].mxu0 %v2074
      %v2516 = vpop.f32.mrb[0].mxu0
      %v2517 = vadd.f32 %v2283, %v2516
      %v2518 = vpop.f32.mrb[0].mxu0
      %2519 = vmatprep.mubr.f32.mxu0 0.0
      %2520 = vmatmul.mubr.f32.gmra.mrb[0].mxu0 %v2077
      %v2521 = vpop.f32.mrb[0].mxu0
      %v2522 = vadd.f32 %v2288, %v2521
      %v2523 = vpop.f32.mrb[0].mxu0
      %2524 = vmatprep.mubr.f32.mxu0 0.0
      %2525 = vmatmul.mubr.f32.gmra.mrb[0].mxu0 %v2080
      %v2526 = vpop.f32.mrb[0].mxu0
      %v2527 = vadd.f32 %v2293, %v2526
      %v2528 = vpop.f32.mrb[0].mxu0
      %2529 = vmatprep.mubr.f32.mxu0 0.0
      %2530 = vmatmul.mubr.f32.gmra.mrb[0].mxu0 %v2083
      %v2531 = vpop.f32.mrb[0].mxu0
      %v2532 = vadd.f32 %v2298, %v2531
      %v2533 = vpop.f32.mrb[0].mxu0
      %2534 = vmatprep.mubr.f32.mxu0 0.0
      %2535 = vmatmul.mubr.f32.gmra.mrb[0].mxu0 %v2086
      %v2536 = vpop.f32.mrb[0].mxu0
      %v2537 = vadd.f32 %v2303, %v2536
      %v2538 = vpop.f32.mrb[0].mxu0
      %2539 = vmatprep.mubr.f32.mxu0 0.0
      %2540 = vmatmul.mubr.f32.gmra.mrb[0].mxu0 %v2089
      %v2541 = vpop.f32.mrb[0].mxu0
      %v2542 = vadd.f32 %v2308, %v2541
      %v2543 = vpop.f32.mrb[0].mxu0
      %2544 = vmatprep.mubr.f32.mxu0 0.0
      %2545 = vmatmul.mubr.f32.gmra.mrb[0].mxu0 %v2092
      %v2546 = vpop.f32.mrb[0].mxu0
      %v2547 = vadd.f32 %v2313, %v2546
      %v2548 = vpop.f32.mrb[0].mxu0
      %2549 = vmatprep.mubr.f32.mxu0 0.0
      %2550 = vmatmul.mubr.f32.gmra.mrb[0].mxu0 %v2095
      %v2551 = vpop.f32.mrb[0].mxu0
      %v2552 = vadd.f32 %v2318, %v2551
      %v2553 = vpop.f32.mrb[0].mxu0
      %2554 = vmatprep.mubr.f32.mxu0 0.0
      %2555 = vmatmul.mubr.f32.gmra.mrb[0].mxu0 %v2098
      %v2556 = vpop.f32.mrb[0].mxu0
      %v2557 = vadd.f32 %v2323, %v2556
      %v2558 = vpop.f32.mrb[0].mxu0
      %2559 = vmatprep.mubr.f32.mxu0 0.0
      %2560 = vmatmul.mubr.f32.gmra.mrb[0].mxu0 %v2101
      %v2561 = vpop.f32.mrb[0].mxu0
      %v2562 = vadd.f32 %v2328, %v2561
      %v2563 = vpop.f32.mrb[0].mxu0
      %2564 = vmatprep.mubr.f32.mxu0 0.0
      %2565 = vmatmul.mubr.f32.gmra.mrb[0].mxu0 %v2104
      %v2566 = vpop.f32.mrb[0].mxu0
      %v2567 = vadd.f32 %v2333, %v2566
      %v2568 = vpop.f32.mrb[0].mxu0
      %2569 = vmatprep.mubr.f32.mxu0 0.0
      %2570 = vmatmul.mubr.f32.gmra.mrb[0].mxu0 %v2107
      %v2571 = vpop.f32.mrb[0].mxu0
      %v2572 = vadd.f32 %v2338, %v2571
      %v2573 = vpop.f32.mrb[0].mxu0
      %2574 = vmatprep.mubr.f32.mxu0 0.0
      %2575 = vmatmul.mubr.f32.gmra.mrb[0].mxu0 %v2110
      %v2576 = vpop.f32.mrb[0].mxu0
      %v2577 = vadd.f32 %v2343, %v2576
      %v2578 = vpop.f32.mrb[0].mxu0
      %2579 = vdwg.mxu0
      %v2580 = vld [vmem:[#allocation2 + $0x20] sm:$0xff]
      %v2581 = vld [vmem:[#allocation2 + $0x28] sm:$0xff]
      %v2582 = vld [vmem:[#allocation2 + $0x30] sm:$0xff]
      %v2583 = vld [vmem:[#allocation2 + $0x38] sm:$0xff]
      %v2584 = vld [vmem:[#allocation2 + $0x40] sm:$0xff]
      %v2585 = vld [vmem:[#allocation2 + $0x48] sm:$0xff]
      %v2586 = vld [vmem:[#allocation2 + $0x50] sm:$0xff]
      %v2587 = vld [vmem:[#allocation2 + $0x58] sm:$0xff]
      %v2588 = vld [vmem:[#allocation2 + $0x60] sm:$0xff]
      %v2589 = vld [vmem:[#allocation2 + $0x68] sm:$0xff]
      %v2590 = vld [vmem:[#allocation2 + $0x70] sm:$0xff]
      %v2591 = vld [vmem:[#allocation2 + $0x78] sm:$0xff]
      %v2592 = vld [vmem:[#allocation2 + $0x80] sm:$0xff]
      %v2593 = vld [vmem:[#allocation2 + $0x88] sm:$0xff]
      %v2594 = vld [vmem:[#allocation2 + $0x90] sm:$0xff]
      %v2595 = vld [vmem:[#allocation2 + $0x98] sm:$0xff]
      %v2596 = vld [vmem:[#allocation2 + $0xa0] sm:$0xff]
      %v2597 = vld [vmem:[#allocation2 + $0xa8] sm:$0xff]
      %v2598 = vld [vmem:[#allocation2 + $0xb0] sm:$0xff]
      %v2599 = vld [vmem:[#allocation2 + $0xb8] sm:$0xff]
      %v2600 = vld [vmem:[#allocation2 + $0xc0] sm:$0xff]
      %v2601 = vld [vmem:[#allocation2 + $0xc8] sm:$0xff]
      %v2602 = vld [vmem:[#allocation2 + $0xd0] sm:$0xff]
      %v2603 = vld [vmem:[#allocation2 + $0xd8] sm:$0xff]
      %v2604 = vld [vmem:[#allocation2 + $0xe0] sm:$0xff]
      %v2605 = vld [vmem:[#allocation2 + $0xe8] sm:$0xff]
      %v2606 = vld [vmem:[#allocation2 + $0xf0] sm:$0xff]
      %v2607 = vld [vmem:[#allocation2 + $0xf8] sm:$0xff]
      %v2608 = vld [vmem:[#allocation2 + $0x100] sm:$0xff]
      %v2609 = vld [vmem:[#allocation2 + $0x108] sm:$0xff]
      %v2610 = vld [vmem:[#allocation2 + $0x110] sm:$0xff]
      %v2611 = vld [vmem:[#allocation2 + $0x118] sm:$0xff]
      %s2612 = scalar_lea.vmem %s1, 32
      %v2613 = vld [vmem:[%s2612] sm:$0xff]
      %v2614 = vld [vmem:[%s2612 + $0x8] sm:$0x1]
      %v2616 = vsel %vm2021, %v2580, 0
      %v2619 = vsel %vm2021, %v2581, 0
      %v2622 = vsel %vm2021, %v2582, 0
      %v2625 = vsel %vm2021, %v2583, 0
      %v2628 = vsel %vm2021, %v2584, 0
      %v2631 = vsel %vm2021, %v2585, 0
      %v2634 = vsel %vm2021, %v2586, 0
      %v2637 = vsel %vm2021, %v2587, 0
      %v2640 = vsel %vm2021, %v2588, 0
      %v2643 = vsel %vm2021, %v2589, 0
      %v2646 = vsel %vm2021, %v2590, 0
      %v2649 = vsel %vm2021, %v2591, 0
      %v2652 = vsel %vm2021, %v2592, 0
      %v2655 = vsel %vm2021, %v2593, 0
      %v2658 = vsel %vm2021, %v2594, 0
      %v2661 = vsel %vm2021, %v2595, 0
      %v2664 = vsel %vm2021, %v2596, 0
      %v2667 = vsel %vm2021, %v2597, 0
      %v2670 = vsel %vm2021, %v2598, 0
      %v2673 = vsel %vm2021, %v2599, 0
      %v2676 = vsel %vm2021, %v2600, 0
      %v2679 = vsel %vm2021, %v2601, 0
      %v2682 = vsel %vm2021, %v2602, 0
      %v2685 = vsel %vm2021, %v2603, 0
      %v2688 = vsel %vm2021, %v2604, 0
      %v2691 = vsel %vm2021, %v2605, 0
      %v2694 = vsel %vm2021, %v2606, 0
      %v2697 = vsel %vm2021, %v2607, 0
      %v2700 = vsel %vm2021, %v2608, 0
      %v2703 = vsel %vm2021, %v2609, 0
      %v2706 = vsel %vm2021, %v2610, 0
      %v2709 = vsel %vm2021, %v2611, 0
      %v2712 = vsel %vm1186, %v2614, 0
      %2714 = vmatprep.subr.mxu0 0.0
      %2715 = vmatpush1.msra.mxu0 %v2613
      %2716 = vmatprep.subr.mxu0 0.0
      %2717 = vmatpush1.msra.mxu0 %v2712
      %2718 = vmatprep.subr.mxu0 0.0
      %2719 = vmatpush1.msra.mxu0 0.0
      %2720 = vmatprep.subr.mxu0 0.0
      %2721 = vmatpush1.msra.mxu0 0.0
      %2722 = vmatprep.subr.mxu0 0.0
      %2723 = vmatpush1.msra.mxu0 0.0
      %2724 = vmatprep.subr.mxu0 0.0
      %2725 = vmatpush1.msra.mxu0 0.0
      %2726 = vmatprep.subr.mxu0 0.0
      %2727 = vmatpush1.msra.mxu0 0.0
      %2728 = vmatprep.subr.mxu0 0.0
      %2729 = vmatpush1.msra.mxu0 0.0
      %2730 = vmatprep.subr.mxu0 0.0
      %2731 = vmatpush1.msra.mxu0 0.0
      %2732 = vmatprep.subr.mxu0 0.0
      %2733 = vmatpush1.msra.mxu0 0.0
      %2734 = vmatprep.subr.mxu0 0.0
      %2735 = vmatpush1.msra.mxu0 0.0
      %2736 = vmatprep.subr.mxu0 0.0
      %2737 = vmatpush1.msra.mxu0 0.0
      %2738 = vmatprep.subr.mxu0 0.0
      %2739 = vmatpush1.msra.mxu0 0.0
      %2740 = vmatprep.subr.mxu0 0.0
      %2741 = vmatpush1.msra.mxu0 0.0
      %2742 = vmatprep.subr.mxu0 0.0
      %2743 = vmatpush1.msra.mxu0 0.0
      %2744 = vmatprep.subr.mxu0 0.0
      %2745 = vmatpush1.msra.mxu0 0.0
      %2746 = vmatprep.subr.mxu0 0.0
      %2747 = vmatpush1.msra.mxu0 0.0
      %2748 = vmatprep.subr.mxu0 0.0
      %2749 = vmatpush1.msra.mxu0 0.0
      %2750 = vmatprep.subr.mxu0 0.0
      %2751 = vmatpush1.msra.mxu0 0.0
      %2752 = vmatprep.subr.mxu0 0.0
      %2753 = vmatpush1.msra.mxu0 0.0
      %2754 = vmatprep.subr.mxu0 0.0
      %2755 = vmatpush1.msra.mxu0 0.0
      %2756 = vmatprep.subr.mxu0 0.0
      %2757 = vmatpush1.msra.mxu0 0.0
      %2758 = vmatprep.subr.mxu0 0.0
      %2759 = vmatpush1.msra.mxu0 0.0
      %2760 = vmatprep.subr.mxu0 0.0
      %2761 = vmatpush1.msra.mxu0 0.0
      %2762 = vmatprep.subr.mxu0 0.0
      %2763 = vmatpush1.msra.mxu0 0.0
      %2764 = vmatprep.subr.mxu0 0.0
      %2765 = vmatpush1.msra.mxu0 0.0
      %2766 = vmatprep.subr.mxu0 0.0
      %2767 = vmatpush1.msra.mxu0 0.0
      %2768 = vmatprep.subr.mxu0 0.0
      %2769 = vmatpush1.msra.mxu0 0.0
      %2770 = vmatprep.subr.mxu0 0.0
      %2771 = vmatpush1.msra.mxu0 0.0
      %2772 = vmatprep.subr.mxu0 0.0
      %2773 = vmatpush1.msra.mxu0 0.0
      %2774 = vmatprep.subr.mxu0 0.0
      %2775 = vmatpush1.msra.mxu0 0.0
      %2776 = vmatprep.subr.mxu0 0.0
      %2777 = vmatpush1.msra.mxu0 0.0
      %2778 = vmatprep.mubr.f32.mxu0 0.0
      %2779 = vmatmul.mubr.f32.gmra.mrb[0].mxu0 %v2616
      %v2780 = vpop.f32.mrb[0].mxu0
      %v2781 = vadd.f32 0.0, %v2780
      %v2782 = vpop.f32.mrb[0].mxu0
      %2783 = vmatprep.mubr.f32.mxu0 0.0
      %2784 = vmatmul.mubr.f32.gmra.mrb[0].mxu0 %v2619
      %v2785 = vpop.f32.mrb[0].mxu0
      %v2786 = vadd.f32 0.0, %v2785
      %v2787 = vpop.f32.mrb[0].mxu0
      %2788 = vmatprep.mubr.f32.mxu0 0.0
      %2789 = vmatmul.mubr.f32.gmra.mrb[0].mxu0 %v2622
      %v2790 = vpop.f32.mrb[0].mxu0
      %v2791 = vadd.f32 0.0, %v2790
      %v2792 = vpop.f32.mrb[0].mxu0
      %2793 = vmatprep.mubr.f32.mxu0 0.0
      %2794 = vmatmul.mubr.f32.gmra.mrb[0].mxu0 %v2625
      %v2795 = vpop.f32.mrb[0].mxu0
      %v2796 = vadd.f32 0.0, %v2795
      %v2797 = vpop.f32.mrb[0].mxu0
      %2798 = vmatprep.mubr.f32.mxu0 0.0
      %2799 = vmatmul.mubr.f32.gmra.mrb[0].mxu0 %v2628
      %v2800 = vpop.f32.mrb[0].mxu0
      %v2801 = vadd.f32 0.0, %v2800
      %v2802 = vpop.f32.mrb[0].mxu0
      %2803 = vmatprep.mubr.f32.mxu0 0.0
      %2804 = vmatmul.mubr.f32.gmra.mrb[0].mxu0 %v2631
      %v2805 = vpop.f32.mrb[0].mxu0
      %v2806 = vadd.f32 0.0, %v2805
      %v2807 = vpop.f32.mrb[0].mxu0
      %2808 = vmatprep.mubr.f32.mxu0 0.0
      %2809 = vmatmul.mubr.f32.gmra.mrb[0].mxu0 %v2634
      %v2810 = vpop.f32.mrb[0].mxu0
      %v2811 = vadd.f32 0.0, %v2810
      %v2812 = vpop.f32.mrb[0].mxu0
      %2813 = vmatprep.mubr.f32.mxu0 0.0
      %2814 = vmatmul.mubr.f32.gmra.mrb[0].mxu0 %v2637
      %v2815 = vpop.f32.mrb[0].mxu0
      %v2816 = vadd.f32 0.0, %v2815
      %v2817 = vpop.f32.mrb[0].mxu0
      %2818 = vmatprep.mubr.f32.mxu0 0.0
      %2819 = vmatmul.mubr.f32.gmra.mrb[0].mxu0 %v2640
      %v2820 = vpop.f32.mrb[0].mxu0
      %v2821 = vadd.f32 0.0, %v2820
      %v2822 = vpop.f32.mrb[0].mxu0
      %2823 = vmatprep.mubr.f32.mxu0 0.0
      %2824 = vmatmul.mubr.f32.gmra.mrb[0].mxu0 %v2643
      %v2825 = vpop.f32.mrb[0].mxu0
      %v2826 = vadd.f32 0.0, %v2825
      %v2827 = vpop.f32.mrb[0].mxu0
      %2828 = vmatprep.mubr.f32.mxu0 0.0
      %2829 = vmatmul.mubr.f32.gmra.mrb[0].mxu0 %v2646
      %v2830 = vpop.f32.mrb[0].mxu0
      %v2831 = vadd.f32 0.0, %v2830
      %v2832 = vpop.f32.mrb[0].mxu0
      %2833 = vmatprep.mubr.f32.mxu0 0.0
      %2834 = vmatmul.mubr.f32.gmra.mrb[0].mxu0 %v2649
      %v2835 = vpop.f32.mrb[0].mxu0
      %v2836 = vadd.f32 0.0, %v2835
      %v2837 = vpop.f32.mrb[0].mxu0
      %2838 = vmatprep.mubr.f32.mxu0 0.0
      %2839 = vmatmul.mubr.f32.gmra.mrb[0].mxu0 %v2652
      %v2840 = vpop.f32.mrb[0].mxu0
      %v2841 = vadd.f32 0.0, %v2840
      %v2842 = vpop.f32.mrb[0].mxu0
      %2843 = vmatprep.mubr.f32.mxu0 0.0
      %2844 = vmatmul.mubr.f32.gmra.mrb[0].mxu0 %v2655
      %v2845 = vpop.f32.mrb[0].mxu0
      %v2846 = vadd.f32 0.0, %v2845
      %v2847 = vpop.f32.mrb[0].mxu0
      %2848 = vmatprep.mubr.f32.mxu0 0.0
      %2849 = vmatmul.mubr.f32.gmra.mrb[0].mxu0 %v2658
      %v2850 = vpop.f32.mrb[0].mxu0
      %v2851 = vadd.f32 0.0, %v2850
      %v2852 = vpop.f32.mrb[0].mxu0
      %2853 = vmatprep.mubr.f32.mxu0 0.0
      %2854 = vmatmul.mubr.f32.gmra.mrb[0].mxu0 %v2661
      %v2855 = vpop.f32.mrb[0].mxu0
      %v2856 = vadd.f32 0.0, %v2855
      %v2857 = vpop.f32.mrb[0].mxu0
      %2858 = vmatprep.mubr.f32.mxu0 0.0
      %2859 = vmatmul.mubr.f32.gmra.mrb[0].mxu0 %v2664
      %v2860 = vpop.f32.mrb[0].mxu0
      %v2861 = vadd.f32 0.0, %v2860
      %v2862 = vpop.f32.mrb[0].mxu0
      %2863 = vmatprep.mubr.f32.mxu0 0.0
      %2864 = vmatmul.mubr.f32.gmra.mrb[0].mxu0 %v2667
      %v2865 = vpop.f32.mrb[0].mxu0
      %v2866 = vadd.f32 0.0, %v2865
      %v2867 = vpop.f32.mrb[0].mxu0
      %2868 = vmatprep.mubr.f32.mxu0 0.0
      %2869 = vmatmul.mubr.f32.gmra.mrb[0].mxu0 %v2670
      %v2870 = vpop.f32.mrb[0].mxu0
      %v2871 = vadd.f32 0.0, %v2870
      %v2872 = vpop.f32.mrb[0].mxu0
      %2873 = vmatprep.mubr.f32.mxu0 0.0
      %2874 = vmatmul.mubr.f32.gmra.mrb[0].mxu0 %v2673
      %v2875 = vpop.f32.mrb[0].mxu0
      %v2876 = vadd.f32 0.0, %v2875
      %v2877 = vpop.f32.mrb[0].mxu0
      %2878 = vmatprep.mubr.f32.mxu0 0.0
      %2879 = vmatmul.mubr.f32.gmra.mrb[0].mxu0 %v2676
      %v2880 = vpop.f32.mrb[0].mxu0
      %v2881 = vadd.f32 0.0, %v2880
      %v2882 = vpop.f32.mrb[0].mxu0
      %2883 = vmatprep.mubr.f32.mxu0 0.0
      %2884 = vmatmul.mubr.f32.gmra.mrb[0].mxu0 %v2679
      %v2885 = vpop.f32.mrb[0].mxu0
      %v2886 = vadd.f32 0.0, %v2885
      %v2887 = vpop.f32.mrb[0].mxu0
      %2888 = vmatprep.mubr.f32.mxu0 0.0
      %2889 = vmatmul.mubr.f32.gmra.mrb[0].mxu0 %v2682
      %v2890 = vpop.f32.mrb[0].mxu0
      %v2891 = vadd.f32 0.0, %v2890
      %v2892 = vpop.f32.mrb[0].mxu0
      %2893 = vmatprep.mubr.f32.mxu0 0.0
      %2894 = vmatmul.mubr.f32.gmra.mrb[0].mxu0 %v2685
      %v2895 = vpop.f32.mrb[0].mxu0
      %v2896 = vadd.f32 0.0, %v2895
      %v2897 = vpop.f32.mrb[0].mxu0
      %2898 = vmatprep.mubr.f32.mxu0 0.0
      %2899 = vmatmul.mubr.f32.gmra.mrb[0].mxu0 %v2688
      %v2900 = vpop.f32.mrb[0].mxu0
      %v2901 = vadd.f32 0.0, %v2900
      %v2902 = vpop.f32.mrb[0].mxu0
      %2903 = vmatprep.mubr.f32.mxu0 0.0
      %2904 = vmatmul.mubr.f32.gmra.mrb[0].mxu0 %v2691
      %v2905 = vpop.f32.mrb[0].mxu0
      %v2906 = vadd.f32 0.0, %v2905
      %v2907 = vpop.f32.mrb[0].mxu0
      %2908 = vmatprep.mubr.f32.mxu0 0.0
      %2909 = vmatmul.mubr.f32.gmra.mrb[0].mxu0 %v2694
      %v2910 = vpop.f32.mrb[0].mxu0
      %v2911 = vadd.f32 0.0, %v2910
      %v2912 = vpop.f32.mrb[0].mxu0
      %2913 = vmatprep.mubr.f32.mxu0 0.0
      %2914 = vmatmul.mubr.f32.gmra.mrb[0].mxu0 %v2697
      %v2915 = vpop.f32.mrb[0].mxu0
      %v2916 = vadd.f32 0.0, %v2915
      %v2917 = vpop.f32.mrb[0].mxu0
      %2918 = vmatprep.mubr.f32.mxu0 0.0
      %2919 = vmatmul.mubr.f32.gmra.mrb[0].mxu0 %v2700
      %v2920 = vpop.f32.mrb[0].mxu0
      %v2921 = vadd.f32 0.0, %v2920
      %v2922 = vpop.f32.mrb[0].mxu0
      %2923 = vmatprep.mubr.f32.mxu0 0.0
      %2924 = vmatmul.mubr.f32.gmra.mrb[0].mxu0 %v2703
      %v2925 = vpop.f32.mrb[0].mxu0
      %v2926 = vadd.f32 0.0, %v2925
      %v2927 = vpop.f32.mrb[0].mxu0
      %2928 = vmatprep.mubr.f32.mxu0 0.0
      %2929 = vmatmul.mubr.f32.gmra.mrb[0].mxu0 %v2706
      %v2930 = vpop.f32.mrb[0].mxu0
      %v2931 = vadd.f32 0.0, %v2930
      %v2932 = vpop.f32.mrb[0].mxu0
      %2933 = vmatprep.mubr.f32.mxu0 0.0
      %2934 = vmatmul.mubr.f32.gmra.mrb[0].mxu0 %v2709
      %v2935 = vpop.f32.mrb[0].mxu0
      %v2936 = vadd.f32 0.0, %v2935
      %v2937 = vpop.f32.mrb[0].mxu0
      %2938 = vdwg.mxu0
      %v2939 = vadd.f32 %v2422, %v2781
      %v2940 = vadd.f32 %v2427, %v2786
      %v2941 = vadd.f32 %v2432, %v2791
      %v2942 = vadd.f32 %v2437, %v2796
      %v2943 = vadd.f32 %v2442, %v2801
      %v2944 = vadd.f32 %v2447, %v2806
      %v2945 = vadd.f32 %v2452, %v2811
      %v2946 = vadd.f32 %v2457, %v2816
      %v2947 = vadd.f32 %v2462, %v2821
      %v2948 = vadd.f32 %v2467, %v2826
      %v2949 = vadd.f32 %v2472, %v2831
      %v2950 = vadd.f32 %v2477, %v2836
      %v2951 = vadd.f32 %v2482, %v2841
      %v2952 = vadd.f32 %v2487, %v2846
      %v2953 = vadd.f32 %v2492, %v2851
      %v2954 = vadd.f32 %v2497, %v2856
      %v2955 = vadd.f32 %v2502, %v2861
      %v2956 = vadd.f32 %v2507, %v2866
      %v2957 = vadd.f32 %v2512, %v2871
      %v2958 = vadd.f32 %v2517, %v2876
      %v2959 = vadd.f32 %v2522, %v2881
      %v2960 = vadd.f32 %v2527, %v2886
      %v2961 = vadd.f32 %v2532, %v2891
      %v2962 = vadd.f32 %v2537, %v2896
      %v2963 = vadd.f32 %v2542, %v2901
      %v2964 = vadd.f32 %v2547, %v2906
      %v2965 = vadd.f32 %v2552, %v2911
      %v2966 = vadd.f32 %v2557, %v2916
      %v2967 = vadd.f32 %v2562, %v2921
      %v2968 = vadd.f32 %v2567, %v2926
      %v2969 = vadd.f32 %v2572, %v2931
      %v2970 = vadd.f32 %v2577, %v2936
      %v2971 = vld [vmem:[%s2] sm:$0x1]
      %v2973 = vlaneseq
      %v2974 = vshrl.u32 %v2973, 7
      %v2975 = vsub.s32 0, %v2974
      %v2976 = vrot.slane %v2971, %v2975
      %v2978 = vadd.f32 %v2939, %v2976
      %v2979 = vadd.f32 %v2940, %v2976
      %v2980 = vadd.f32 %v2941, %v2976
      %v2981 = vadd.f32 %v2942, %v2976
      %v2982 = vadd.f32 %v2943, %v2976
      %v2983 = vadd.f32 %v2944, %v2976
      %v2984 = vadd.f32 %v2945, %v2976
      %v2985 = vadd.f32 %v2946, %v2976
      %v2986 = vadd.f32 %v2947, %v2976
      %v2987 = vadd.f32 %v2948, %v2976
      %v2988 = vadd.f32 %v2949, %v2976
      %v2989 = vadd.f32 %v2950, %v2976
      %v2990 = vadd.f32 %v2951, %v2976
      %v2991 = vadd.f32 %v2952, %v2976
      %v2992 = vadd.f32 %v2953, %v2976
      %v2993 = vadd.f32 %v2954, %v2976
      %v2994 = vadd.f32 %v2955, %v2976
      %v2995 = vadd.f32 %v2956, %v2976
      %v2996 = vadd.f32 %v2957, %v2976
      %v2997 = vadd.f32 %v2958, %v2976
      %v2998 = vadd.f32 %v2959, %v2976
      %v2999 = vadd.f32 %v2960, %v2976
      %v3000 = vadd.f32 %v2961, %v2976
      %v3001 = vadd.f32 %v2962, %v2976
      %v3002 = vadd.f32 %v2963, %v2976
      %v3003 = vadd.f32 %v2964, %v2976
      %v3004 = vadd.f32 %v2965, %v2976
      %v3005 = vadd.f32 %v2966, %v2976
      %v3006 = vadd.f32 %v2967, %v2976
      %v3007 = vadd.f32 %v2968, %v2976
      %v3008 = vadd.f32 %v2969, %v2976
      %v3009 = vadd.f32 %v2970, %v2976
      %v3010 = vmax.f32 %v2978, 0.0
      %v3011 = vmax.f32 %v2979, 0.0
      %v3012 = vmax.f32 %v2980, 0.0
      %v3013 = vmax.f32 %v2981, 0.0
      %v3014 = vmax.f32 %v2982, 0.0
      %v3015 = vmax.f32 %v2983, 0.0
      %v3016 = vmax.f32 %v2984, 0.0
      %v3017 = vmax.f32 %v2985, 0.0
      %v3018 = vmax.f32 %v2986, 0.0
      %v3019 = vmax.f32 %v2987, 0.0
      %v3020 = vmax.f32 %v2988, 0.0
      %v3021 = vmax.f32 %v2989, 0.0
      %v3022 = vmax.f32 %v2990, 0.0
      %v3023 = vmax.f32 %v2991, 0.0
      %v3024 = vmax.f32 %v2992, 0.0
      %v3025 = vmax.f32 %v2993, 0.0
      %v3026 = vmax.f32 %v2994, 0.0
      %v3027 = vmax.f32 %v2995, 0.0
      %v3028 = vmax.f32 %v2996, 0.0
      %v3029 = vmax.f32 %v2997, 0.0
      %v3030 = vmax.f32 %v2998, 0.0
      %v3031 = vmax.f32 %v2999, 0.0
      %v3032 = vmax.f32 %v3000, 0.0
      %v3033 = vmax.f32 %v3001, 0.0
      %v3034 = vmax.f32 %v3002, 0.0
      %v3035 = vmax.f32 %v3003, 0.0
      %v3036 = vmax.f32 %v3004, 0.0
      %v3037 = vmax.f32 %v3005, 0.0
      %v3038 = vmax.f32 %v3006, 0.0
      %v3039 = vmax.f32 %v3007, 0.0
      %v3040 = vmax.f32 %v3008, 0.0
      %v3041 = vmax.f32 %v3009, 0.0
      %3074 = vrot.lane.b32.xlu0 %v3010, 8
      %v3075 = vpop.permute.xlu0 %3074
      %3076 = vrot.lane.b32.xlu0 %v3011, 8
      %v3077 = vpop.permute.xlu0 %3076
      %3078 = vrot.lane.b32.xlu0 %v3012, 8
      %v3079 = vpop.permute.xlu0 %3078
      %3080 = vrot.lane.b32.xlu0 %v3013, 8
      %v3081 = vpop.permute.xlu0 %3080
      %3082 = vrot.lane.b32.xlu0 %v3014, 8
      %v3083 = vpop.permute.xlu0 %3082
      %3084 = vrot.lane.b32.xlu0 %v3015, 8
      %v3085 = vpop.permute.xlu0 %3084
      %3086 = vrot.lane.b32.xlu0 %v3016, 8
      %v3087 = vpop.permute.xlu0 %3086
      %3088 = vrot.lane.b32.xlu0 %v3017, 8
      %v3089 = vpop.permute.xlu0 %3088
      %3090 = vrot.lane.b32.xlu0 %v3018, 8
      %v3091 = vpop.permute.xlu0 %3090
      %3092 = vrot.lane.b32.xlu0 %v3019, 8
      %v3093 = vpop.permute.xlu0 %3092
      %3094 = vrot.lane.b32.xlu0 %v3020, 8
      %v3095 = vpop.permute.xlu0 %3094
      %3096 = vrot.lane.b32.xlu0 %v3021, 8
      %v3097 = vpop.permute.xlu0 %3096
      %3098 = vrot.lane.b32.xlu0 %v3022, 8
      %v3099 = vpop.permute.xlu0 %3098
      %3100 = vrot.lane.b32.xlu0 %v3023, 8
      %v3101 = vpop.permute.xlu0 %3100
      %3102 = vrot.lane.b32.xlu0 %v3024, 8
      %v3103 = vpop.permute.xlu0 %3102
      %3104 = vrot.lane.b32.xlu0 %v3025, 8
      %v3105 = vpop.permute.xlu0 %3104
      %3106 = vrot.lane.b32.xlu0 %v3026, 8
      %v3107 = vpop.permute.xlu0 %3106
      %3108 = vrot.lane.b32.xlu0 %v3027, 8
      %v3109 = vpop.permute.xlu0 %3108
      %3110 = vrot.lane.b32.xlu0 %v3028, 8
      %v3111 = vpop.permute.xlu0 %3110
      %3112 = vrot.lane.b32.xlu0 %v3029, 8
      %v3113 = vpop.permute.xlu0 %3112
      %3114 = vrot.lane.b32.xlu0 %v3030, 8
      %v3115 = vpop.permute.xlu0 %3114
      %3116 = vrot.lane.b32.xlu0 %v3031, 8
      %v3117 = vpop.permute.xlu0 %3116
      %3118 = vrot.lane.b32.xlu0 %v3032, 8
      %v3119 = vpop.permute.xlu0 %3118
      %3120 = vrot.lane.b32.xlu0 %v3033, 8
      %v3121 = vpop.permute.xlu0 %3120
      %3122 = vrot.lane.b32.xlu0 %v3034, 8
      %v3123 = vpop.permute.xlu0 %3122
      %3124 = vrot.lane.b32.xlu0 %v3035, 8
      %v3125 = vpop.permute.xlu0 %3124
      %3126 = vrot.lane.b32.xlu0 %v3036, 8
      %v3127 = vpop.permute.xlu0 %3126
      %3128 = vrot.lane.b32.xlu0 %v3037, 8
      %v3129 = vpop.permute.xlu0 %3128
      %3130 = vrot.lane.b32.xlu0 %v3038, 8
      %v3131 = vpop.permute.xlu0 %3130
      %3132 = vrot.lane.b32.xlu0 %v3039, 8
      %v3133 = vpop.permute.xlu0 %3132
      %3134 = vrot.lane.b32.xlu0 %v3040, 8
      %v3135 = vpop.permute.xlu0 %3134
      %3136 = vrot.lane.b32.xlu0 %v3041, 8
      %v3137 = vpop.permute.xlu0 %3136
      %3170 = vst.msk [vmem:[#allocation2 + $0x10] sm:$0xff] %vm879, %v3075
      %3171 = vst.msk [vmem:[#allocation2 + $0x18] sm:$0xff] %vm879, %v3077
      %3172 = vst.msk [vmem:[#allocation2 + $0x20] sm:$0xff] %vm879, %v3079
      %3173 = vst.msk [vmem:[#allocation2 + $0x28] sm:$0xff] %vm879, %v3081
      %3174 = vst.msk [vmem:[#allocation2 + $0x30] sm:$0xff] %vm879, %v3083
      %3175 = vst.msk [vmem:[#allocation2 + $0x38] sm:$0xff] %vm879, %v3085
      %3176 = vst.msk [vmem:[#allocation2 + $0x40] sm:$0xff] %vm879, %v3087
      %3177 = vst.msk [vmem:[#allocation2 + $0x48] sm:$0xff] %vm879, %v3089
      %3178 = vst.msk [vmem:[#allocation2 + $0x50] sm:$0xff] %vm879, %v3091
      %3179 = vst.msk [vmem:[#allocation2 + $0x58] sm:$0xff] %vm879, %v3093
      %3180 = vst.msk [vmem:[#allocation2 + $0x60] sm:$0xff] %vm879, %v3095
      %3181 = vst.msk [vmem:[#allocation2 + $0x68] sm:$0xff] %vm879, %v3097
      %3182 = vst.msk [vmem:[#allocation2 + $0x70] sm:$0xff] %vm879, %v3099
      %3183 = vst.msk [vmem:[#allocation2 + $0x78] sm:$0xff] %vm879, %v3101
      %3184 = vst.msk [vmem:[#allocation2 + $0x80] sm:$0xff] %vm879, %v3103
      %3185 = vst.msk [vmem:[#allocation2 + $0x88] sm:$0xff] %vm879, %v3105
      %3186 = vst.msk [vmem:[#allocation2 + $0x90] sm:$0xff] %vm879, %v3107
      %3187 = vst.msk [vmem:[#allocation2 + $0x98] sm:$0xff] %vm879, %v3109
      %3188 = vst.msk [vmem:[#allocation2 + $0xa0] sm:$0xff] %vm879, %v3111
      %3189 = vst.msk [vmem:[#allocation2 + $0xa8] sm:$0xff] %vm879, %v3113
      %3190 = vst.msk [vmem:[#allocation2 + $0xb0] sm:$0xff] %vm879, %v3115
      %3191 = vst.msk [vmem:[#allocation2 + $0xb8] sm:$0xff] %vm879, %v3117
      %3192 = vst.msk [vmem:[#allocation2 + $0xc0] sm:$0xff] %vm879, %v3119
      %3193 = vst.msk [vmem:[#allocation2 + $0xc8] sm:$0xff] %vm879, %v3121
      %3194 = vst.msk [vmem:[#allocation2 + $0xd0] sm:$0xff] %vm879, %v3123
      %3195 = vst.msk [vmem:[#allocation2 + $0xd8] sm:$0xff] %vm879, %v3125
      %3196 = vst.msk [vmem:[#allocation2 + $0xe0] sm:$0xff] %vm879, %v3127
      %3197 = vst.msk [vmem:[#allocation2 + $0xe8] sm:$0xff] %vm879, %v3129
      %3198 = vst.msk [vmem:[#allocation2 + $0xf0] sm:$0xff] %vm879, %v3131
      %3199 = vst.msk [vmem:[#allocation2 + $0xf8] sm:$0xff] %vm879, %v3133
      %3200 = vst.msk [vmem:[#allocation2 + $0x100] sm:$0xff] %vm879, %v3135
      %3201 = vst.msk [vmem:[#allocation2 + $0x108] sm:$0xff] %vm879, %v3137
      %v3202 = vld [vmem:[#allocation2] sm:$0xff]
      %v3203 = vld [vmem:[#allocation2 + $0x8] sm:$0xff]
      %v3204 = vld [vmem:[#allocation2 + $0x10] sm:$0xff]
      %v3205 = vld [vmem:[#allocation2 + $0x18] sm:$0xff]
      %v3206 = vld [vmem:[#allocation2 + $0x20] sm:$0xff]
      %v3207 = vld [vmem:[#allocation2 + $0x28] sm:$0xff]
      %v3208 = vld [vmem:[#allocation2 + $0x30] sm:$0xff]
      %v3209 = vld [vmem:[#allocation2 + $0x38] sm:$0xff]
      %v3210 = vld [vmem:[#allocation2 + $0x40] sm:$0xff]
      %v3211 = vld [vmem:[#allocation2 + $0x48] sm:$0xff]
      %v3212 = vld [vmem:[#allocation2 + $0x50] sm:$0xff]
      %v3213 = vld [vmem:[#allocation2 + $0x58] sm:$0xff]
      %v3214 = vld [vmem:[#allocation2 + $0x60] sm:$0xff]
      %v3215 = vld [vmem:[#allocation2 + $0x68] sm:$0xff]
      %v3216 = vld [vmem:[#allocation2 + $0x70] sm:$0xff]
      %v3217 = vld [vmem:[#allocation2 + $0x78] sm:$0xff]
      %v3218 = vld [vmem:[#allocation2 + $0x80] sm:$0xff]
      %v3219 = vld [vmem:[#allocation2 + $0x88] sm:$0xff]
      %v3220 = vld [vmem:[#allocation2 + $0x90] sm:$0xff]
      %v3221 = vld [vmem:[#allocation2 + $0x98] sm:$0xff]
      %v3222 = vld [vmem:[#allocation2 + $0xa0] sm:$0xff]
      %v3223 = vld [vmem:[#allocation2 + $0xa8] sm:$0xff]
      %v3224 = vld [vmem:[#allocation2 + $0xb0] sm:$0xff]
      %v3225 = vld [vmem:[#allocation2 + $0xb8] sm:$0xff]
      %v3226 = vld [vmem:[#allocation2 + $0xc0] sm:$0xff]
      %v3227 = vld [vmem:[#allocation2 + $0xc8] sm:$0xff]
      %v3228 = vld [vmem:[#allocation2 + $0xd0] sm:$0xff]
      %v3229 = vld [vmem:[#allocation2 + $0xd8] sm:$0xff]
      %v3230 = vld [vmem:[#allocation2 + $0xe0] sm:$0xff]
      %v3231 = vld [vmem:[#allocation2 + $0xe8] sm:$0xff]
      %v3232 = vld [vmem:[#allocation2 + $0xf0] sm:$0xff]
      %v3233 = vld [vmem:[#allocation2 + $0xf8] sm:$0xff]
      %v3234 = vld [vmem:[#allocation2 + $0x100] sm:$0xff]
      %v3235 = vld [vmem:[#allocation2 + $0x108] sm:$0xff]
      %v3236 = vld [vmem:[#allocation2 + $0x110] sm:$0xff]
      %v3237 = vld [vmem:[#allocation2 + $0x118] sm:$0xff]
      %v3239 = vrot.slane %v3237, 7
      %v3276 = vrot.slane %v3202, 7
      %v3277 = vrot.slane %v3203, 7
      %v3278 = vsel %vm1186, %v3276, %v3277
      %v3279 = vrot.slane %v3204, 7
      %v3280 = vsel %vm1186, %v3277, %v3279
      %v3281 = vrot.slane %v3205, 7
      %v3282 = vsel %vm1186, %v3279, %v3281
      %v3283 = vrot.slane %v3206, 7
      %v3284 = vsel %vm1186, %v3281, %v3283
      %v3285 = vrot.slane %v3207, 7
      %v3286 = vsel %vm1186, %v3283, %v3285
      %v3287 = vrot.slane %v3208, 7
      %v3288 = vsel %vm1186, %v3285, %v3287
      %v3289 = vrot.slane %v3209, 7
      %v3290 = vsel %vm1186, %v3287, %v3289
      %v3291 = vrot.slane %v3210, 7
      %v3292 = vsel %vm1186, %v3289, %v3291
      %v3293 = vrot.slane %v3211, 7
      %v3294 = vsel %vm1186, %v3291, %v3293
      %v3295 = vrot.slane %v3212, 7
      %v3296 = vsel %vm1186, %v3293, %v3295
      %v3297 = vrot.slane %v3213, 7
      %v3298 = vsel %vm1186, %v3295, %v3297
      %v3299 = vrot.slane %v3214, 7
      %v3300 = vsel %vm1186, %v3297, %v3299
      %v3301 = vrot.slane %v3215, 7
      %v3302 = vsel %vm1186, %v3299, %v3301
      %v3303 = vrot.slane %v3216, 7
      %v3304 = vsel %vm1186, %v3301, %v3303
      %v3305 = vrot.slane %v3217, 7
      %v3306 = vsel %vm1186, %v3303, %v3305
      %v3307 = vrot.slane %v3218, 7
      %v3308 = vsel %vm1186, %v3305, %v3307
      %v3309 = vrot.slane %v3219, 7
      %v3310 = vsel %vm1186, %v3307, %v3309
      %v3311 = vrot.slane %v3220, 7
      %v3312 = vsel %vm1186, %v3309, %v3311
      %v3313 = vrot.slane %v3221, 7
      %v3314 = vsel %vm1186, %v3311, %v3313
      %v3315 = vrot.slane %v3222, 7
      %v3316 = vsel %vm1186, %v3313, %v3315
      %v3317 = vrot.slane %v3223, 7
      %v3318 = vsel %vm1186, %v3315, %v3317
      %v3319 = vrot.slane %v3224, 7
      %v3320 = vsel %vm1186, %v3317, %v3319
      %v3321 = vrot.slane %v3225, 7
      %v3322 = vsel %vm1186, %v3319, %v3321
      %v3323 = vrot.slane %v3226, 7
      %v3324 = vsel %vm1186, %v3321, %v3323
      %v3325 = vrot.slane %v3227, 7
      %v3326 = vsel %vm1186, %v3323, %v3325
      %v3327 = vrot.slane %v3228, 7
      %v3328 = vsel %vm1186, %v3325, %v3327
      %v3329 = vrot.slane %v3229, 7
      %v3330 = vsel %vm1186, %v3327, %v3329
      %v3331 = vrot.slane %v3230, 7
      %v3332 = vsel %vm1186, %v3329, %v3331
      %v3333 = vrot.slane %v3231, 7
      %v3334 = vsel %vm1186, %v3331, %v3333
      %v3335 = vrot.slane %v3232, 7
      %v3336 = vsel %vm1186, %v3333, %v3335
      %v3337 = vrot.slane %v3233, 7
      %v3338 = vsel %vm1186, %v3335, %v3337
      %v3339 = vrot.slane %v3234, 7
      %v3340 = vsel %vm1186, %v3337, %v3339
      %v3341 = vrot.slane %v3235, 7
      %v3342 = vsel %vm1186, %v3339, %v3341
      %v3343 = vrot.slane %v3236, 7
      %v3344 = vsel %vm1186, %v3341, %v3343
      %v3345 = vsel %vm1186, %v3343, %v3239
      %v3382 = vsel %vm1186, %v3239, %v3276
      %v3383 = vsel %vm1330, %v3382, 0.0
      %v3384 = vsel %vm1331, %v3278, 0.0
      %v3385 = vsel %vm1332, %v3280, 0.0
      %v3386 = vsel %vm1333, %v3282, 0.0
      %v3387 = vsel %vm1334, %v3284, 0.0
      %v3388 = vsel %vm1335, %v3286, 0.0
      %v3389 = vsel %vm1336, %v3288, 0.0
      %v3390 = vsel %vm1337, %v3290, 0.0
      %v3391 = vsel %vm1338, %v3292, 0.0
      %v3392 = vsel %vm1339, %v3294, 0.0
      %v3393 = vsel %vm1340, %v3296, 0.0
      %v3394 = vsel %vm1341, %v3298, 0.0
      %v3395 = vsel %vm1342, %v3300, 0.0
      %v3396 = vsel %vm1343, %v3302, 0.0
      %v3397 = vsel %vm1344, %v3304, 0.0
      %v3398 = vsel %vm1345, %v3306, 0.0
      %v3399 = vsel %vm1346, %v3308, 0.0
      %v3400 = vsel %vm1347, %v3310, 0.0
      %v3401 = vsel %vm1348, %v3312, 0.0
      %v3402 = vsel %vm1349, %v3314, 0.0
      %v3403 = vsel %vm1350, %v3316, 0.0
      %v3404 = vsel %vm1351, %v3318, 0.0
      %v3405 = vsel %vm1352, %v3320, 0.0
      %v3406 = vsel %vm1353, %v3322, 0.0
      %v3407 = vsel %vm1354, %v3324, 0.0
      %v3408 = vsel %vm1355, %v3326, 0.0
      %v3409 = vsel %vm1356, %v3328, 0.0
      %v3410 = vsel %vm1357, %v3330, 0.0
      %v3411 = vsel %vm1358, %v3332, 0.0
      %v3412 = vsel %vm1359, %v3334, 0.0
      %v3413 = vsel %vm1360, %v3336, 0.0
      %v3414 = vsel %vm1361, %v3338, 0.0
      %v3415 = vsel %vm1362, %v3340, 0.0
      %v3416 = vsel %vm1363, %v3342, 0.0
      %v3417 = vsel %vm1364, %v3344, 0.0
      %v3418 = vsel %vm1365, %v3345, 0.0
      %3455 = vrot.lane.b32.xlu0 %v3383, 120
      %v3456 = vpop.permute.xlu0 %3455
      %3457 = vrot.lane.b32.xlu0 %v3384, 120
      %v3458 = vpop.permute.xlu0 %3457
      %3459 = vrot.lane.b32.xlu0 %v3385, 120
      %v3460 = vpop.permute.xlu0 %3459
      %3461 = vrot.lane.b32.xlu0 %v3386, 120
      %v3462 = vpop.permute.xlu0 %3461
      %3463 = vrot.lane.b32.xlu0 %v3387, 120
      %v3464 = vpop.permute.xlu0 %3463
      %3465 = vrot.lane.b32.xlu0 %v3388, 120
      %v3466 = vpop.permute.xlu0 %3465
      %3467 = vrot.lane.b32.xlu0 %v3389, 120
      %v3468 = vpop.permute.xlu0 %3467
      %3469 = vrot.lane.b32.xlu0 %v3390, 120
      %v3470 = vpop.permute.xlu0 %3469
      %3471 = vrot.lane.b32.xlu0 %v3391, 120
      %v3472 = vpop.permute.xlu0 %3471
      %3473 = vrot.lane.b32.xlu0 %v3392, 120
      %v3474 = vpop.permute.xlu0 %3473
      %3475 = vrot.lane.b32.xlu0 %v3393, 120
      %v3476 = vpop.permute.xlu0 %3475
      %3477 = vrot.lane.b32.xlu0 %v3394, 120
      %v3478 = vpop.permute.xlu0 %3477
      %3479 = vrot.lane.b32.xlu0 %v3395, 120
      %v3480 = vpop.permute.xlu0 %3479
      %3481 = vrot.lane.b32.xlu0 %v3396, 120
      %v3482 = vpop.permute.xlu0 %3481
      %3483 = vrot.lane.b32.xlu0 %v3397, 120
      %v3484 = vpop.permute.xlu0 %3483
      %3485 = vrot.lane.b32.xlu0 %v3398, 120
      %v3486 = vpop.permute.xlu0 %3485
      %3487 = vrot.lane.b32.xlu0 %v3399, 120
      %v3488 = vpop.permute.xlu0 %3487
      %3489 = vrot.lane.b32.xlu0 %v3400, 120
      %v3490 = vpop.permute.xlu0 %3489
      %3491 = vrot.lane.b32.xlu0 %v3401, 120
      %v3492 = vpop.permute.xlu0 %3491
      %3493 = vrot.lane.b32.xlu0 %v3402, 120
      %v3494 = vpop.permute.xlu0 %3493
      %3495 = vrot.lane.b32.xlu0 %v3403, 120
      %v3496 = vpop.permute.xlu0 %3495
      %3497 = vrot.lane.b32.xlu0 %v3404, 120
      %v3498 = vpop.permute.xlu0 %3497
      %3499 = vrot.lane.b32.xlu0 %v3405, 120
      %v3500 = vpop.permute.xlu0 %3499
      %3501 = vrot.lane.b32.xlu0 %v3406, 120
      %v3502 = vpop.permute.xlu0 %3501
      %3503 = vrot.lane.b32.xlu0 %v3407, 120
      %v3504 = vpop.permute.xlu0 %3503
      %3505 = vrot.lane.b32.xlu0 %v3408, 120
      %v3506 = vpop.permute.xlu0 %3505
      %3507 = vrot.lane.b32.xlu0 %v3409, 120
      %v3508 = vpop.permute.xlu0 %3507
      %3509 = vrot.lane.b32.xlu0 %v3410, 120
      %v3510 = vpop.permute.xlu0 %3509
      %3511 = vrot.lane.b32.xlu0 %v3411, 120
      %v3512 = vpop.permute.xlu0 %3511
      %3513 = vrot.lane.b32.xlu0 %v3412, 120
      %v3514 = vpop.permute.xlu0 %3513
      %3515 = vrot.lane.b32.xlu0 %v3413, 120
      %v3516 = vpop.permute.xlu0 %3515
      %3517 = vrot.lane.b32.xlu0 %v3414, 120
      %v3518 = vpop.permute.xlu0 %3517
      %3519 = vrot.lane.b32.xlu0 %v3415, 120
      %v3520 = vpop.permute.xlu0 %3519
      %3521 = vrot.lane.b32.xlu0 %v3416, 120
      %v3522 = vpop.permute.xlu0 %3521
      %3523 = vrot.lane.b32.xlu0 %v3417, 120
      %v3524 = vpop.permute.xlu0 %3523
      %3525 = vrot.lane.b32.xlu0 %v3418, 120
      %v3526 = vpop.permute.xlu0 %3525
      %vm3563 = vcmask 64512
      %3564 = vst.msk [vmem:[#allocation2] sm:$0xff] %vm3563, %v3456
      %3565 = vst.msk [vmem:[#allocation2 + $0x8] sm:$0xff] %vm3563, %v3458
      %3566 = vst.msk [vmem:[#allocation2 + $0x10] sm:$0xff] %vm3563, %v3460
      %3567 = vst.msk [vmem:[#allocation2 + $0x18] sm:$0xff] %vm3563, %v3462
      %3568 = vst.msk [vmem:[#allocation2 + $0x20] sm:$0xff] %vm3563, %v3464
      %3569 = vst.msk [vmem:[#allocation2 + $0x28] sm:$0xff] %vm3563, %v3466
      %3570 = vst.msk [vmem:[#allocation2 + $0x30] sm:$0xff] %vm3563, %v3468
      %3571 = vst.msk [vmem:[#allocation2 + $0x38] sm:$0xff] %vm3563, %v3470
      %3572 = vst.msk [vmem:[#allocation2 + $0x40] sm:$0xff] %vm3563, %v3472
      %3573 = vst.msk [vmem:[#allocation2 + $0x48] sm:$0xff] %vm3563, %v3474
      %3574 = vst.msk [vmem:[#allocation2 + $0x50] sm:$0xff] %vm3563, %v3476
      %3575 = vst.msk [vmem:[#allocation2 + $0x58] sm:$0xff] %vm3563, %v3478
      %3576 = vst.msk [vmem:[#allocation2 + $0x60] sm:$0xff] %vm3563, %v3480
      %3577 = vst.msk [vmem:[#allocation2 + $0x68] sm:$0xff] %vm3563, %v3482
      %3578 = vst.msk [vmem:[#allocation2 + $0x70] sm:$0xff] %vm3563, %v3484
      %3579 = vst.msk [vmem:[#allocation2 + $0x78] sm:$0xff] %vm3563, %v3486
      %3580 = vst.msk [vmem:[#allocation2 + $0x80] sm:$0xff] %vm3563, %v3488
      %3581 = vst.msk [vmem:[#allocation2 + $0x88] sm:$0xff] %vm3563, %v3490
      %3582 = vst.msk [vmem:[#allocation2 + $0x90] sm:$0xff] %vm3563, %v3492
      %3583 = vst.msk [vmem:[#allocation2 + $0x98] sm:$0xff] %vm3563, %v3494
      %3584 = vst.msk [vmem:[#allocation2 + $0xa0] sm:$0xff] %vm3563, %v3496
      %3585 = vst.msk [vmem:[#allocation2 + $0xa8] sm:$0xff] %vm3563, %v3498
      %3586 = vst.msk [vmem:[#allocation2 + $0xb0] sm:$0xff] %vm3563, %v3500
      %3587 = vst.msk [vmem:[#allocation2 + $0xb8] sm:$0xff] %vm3563, %v3502
      %3588 = vst.msk [vmem:[#allocation2 + $0xc0] sm:$0xff] %vm3563, %v3504
      %3589 = vst.msk [vmem:[#allocation2 + $0xc8] sm:$0xff] %vm3563, %v3506
      %3590 = vst.msk [vmem:[#allocation2 + $0xd0] sm:$0xff] %vm3563, %v3508
      %3591 = vst.msk [vmem:[#allocation2 + $0xd8] sm:$0xff] %vm3563, %v3510
      %3592 = vst.msk [vmem:[#allocation2 + $0xe0] sm:$0xff] %vm3563, %v3512
      %3593 = vst.msk [vmem:[#allocation2 + $0xe8] sm:$0xff] %vm3563, %v3514
      %3594 = vst.msk [vmem:[#allocation2 + $0xf0] sm:$0xff] %vm3563, %v3516
      %3595 = vst.msk [vmem:[#allocation2 + $0xf8] sm:$0xff] %vm3563, %v3518
      %3596 = vst.msk [vmem:[#allocation2 + $0x100] sm:$0xff] %vm3563, %v3520
      %3597 = vst.msk [vmem:[#allocation2 + $0x108] sm:$0xff] %vm3563, %v3522
      %3598 = vst.msk [vmem:[#allocation2 + $0x110] sm:$0xff] %vm3563, %v3524
      %3599 = vst.msk [vmem:[#allocation2 + $0x118] sm:$0xff] %vm3563, %v3526
      %v3600 = vrot.slane %v3202, 1
      %v3601 = vrot.slane %v3203, 1
      %v3602 = vsel %vm1583, %v3600, %v3601
      %v3603 = vrot.slane %v3204, 1
      %v3604 = vsel %vm1583, %v3601, %v3603
      %v3605 = vrot.slane %v3205, 1
      %v3606 = vsel %vm1583, %v3603, %v3605
      %v3607 = vrot.slane %v3206, 1
      %v3608 = vsel %vm1583, %v3605, %v3607
      %v3609 = vrot.slane %v3207, 1
      %v3610 = vsel %vm1583, %v3607, %v3609
      %v3611 = vrot.slane %v3208, 1
      %v3612 = vsel %vm1583, %v3609, %v3611
      %v3613 = vrot.slane %v3209, 1
      %v3614 = vsel %vm1583, %v3611, %v3613
      %v3615 = vrot.slane %v3210, 1
      %v3616 = vsel %vm1583, %v3613, %v3615
      %v3617 = vrot.slane %v3211, 1
      %v3618 = vsel %vm1583, %v3615, %v3617
      %v3619 = vrot.slane %v3212, 1
      %v3620 = vsel %vm1583, %v3617, %v3619
      %v3621 = vrot.slane %v3213, 1
      %v3622 = vsel %vm1583, %v3619, %v3621
      %v3623 = vrot.slane %v3214, 1
      %v3624 = vsel %vm1583, %v3621, %v3623
      %v3625 = vrot.slane %v3215, 1
      %v3626 = vsel %vm1583, %v3623, %v3625
      %v3627 = vrot.slane %v3216, 1
      %v3628 = vsel %vm1583, %v3625, %v3627
      %v3629 = vrot.slane %v3217, 1
      %v3630 = vsel %vm1583, %v3627, %v3629
      %v3631 = vrot.slane %v3218, 1
      %v3632 = vsel %vm1583, %v3629, %v3631
      %v3633 = vrot.slane %v3219, 1
      %v3634 = vsel %vm1583, %v3631, %v3633
      %v3635 = vrot.slane %v3220, 1
      %v3636 = vsel %vm1583, %v3633, %v3635
      %v3637 = vrot.slane %v3221, 1
      %v3638 = vsel %vm1583, %v3635, %v3637
      %v3639 = vrot.slane %v3222, 1
      %v3640 = vsel %vm1583, %v3637, %v3639
      %v3641 = vrot.slane %v3223, 1
      %v3642 = vsel %vm1583, %v3639, %v3641
      %v3643 = vrot.slane %v3224, 1
      %v3644 = vsel %vm1583, %v3641, %v3643
      %v3645 = vrot.slane %v3225, 1
      %v3646 = vsel %vm1583, %v3643, %v3645
      %v3647 = vrot.slane %v3226, 1
      %v3648 = vsel %vm1583, %v3645, %v3647
      %v3649 = vrot.slane %v3227, 1
      %v3650 = vsel %vm1583, %v3647, %v3649
      %v3651 = vrot.slane %v3228, 1
      %v3652 = vsel %vm1583, %v3649, %v3651
      %v3653 = vrot.slane %v3229, 1
      %v3654 = vsel %vm1583, %v3651, %v3653
      %v3655 = vrot.slane %v3230, 1
      %v3656 = vsel %vm1583, %v3653, %v3655
      %v3657 = vrot.slane %v3231, 1
      %v3658 = vsel %vm1583, %v3655, %v3657
      %v3659 = vrot.slane %v3232, 1
      %v3660 = vsel %vm1583, %v3657, %v3659
      %v3661 = vrot.slane %v3233, 1
      %v3662 = vsel %vm1583, %v3659, %v3661
      %v3663 = vrot.slane %v3234, 1
      %v3664 = vsel %vm1583, %v3661, %v3663
      %v3665 = vrot.slane %v3235, 1
      %v3666 = vsel %vm1583, %v3663, %v3665
      %v3667 = vrot.slane %v3236, 1
      %v3668 = vsel %vm1583, %v3665, %v3667
      %v3669 = vrot.slane %v3237, 1
      %v3670 = vsel %vm1583, %v3667, %v3669
      %v3708 = vsel %vm1583, %v3669, %v3600
      %v3709 = vsel %vm1729, %v3602, 0.0
      %v3710 = vsel %vm1730, %v3604, 0.0
      %v3711 = vsel %vm1731, %v3606, 0.0
      %v3712 = vsel %vm1732, %v3608, 0.0
      %v3713 = vsel %vm1733, %v3610, 0.0
      %v3714 = vsel %vm1734, %v3612, 0.0
      %v3715 = vsel %vm1735, %v3614, 0.0
      %v3716 = vsel %vm1736, %v3616, 0.0
      %v3717 = vsel %vm1737, %v3618, 0.0
      %v3718 = vsel %vm1738, %v3620, 0.0
      %v3719 = vsel %vm1739, %v3622, 0.0
      %v3720 = vsel %vm1740, %v3624, 0.0
      %v3721 = vsel %vm1741, %v3626, 0.0
      %v3722 = vsel %vm1742, %v3628, 0.0
      %v3723 = vsel %vm1743, %v3630, 0.0
      %v3724 = vsel %vm1744, %v3632, 0.0
      %v3725 = vsel %vm1745, %v3634, 0.0
      %v3726 = vsel %vm1746, %v3636, 0.0
      %v3727 = vsel %vm1747, %v3638, 0.0
      %v3728 = vsel %vm1748, %v3640, 0.0
      %v3729 = vsel %vm1749, %v3642, 0.0
      %v3730 = vsel %vm1750, %v3644, 0.0
      %v3731 = vsel %vm1751, %v3646, 0.0
      %v3732 = vsel %vm1752, %v3648, 0.0
      %v3733 = vsel %vm1753, %v3650, 0.0
      %v3734 = vsel %vm1754, %v3652, 0.0
      %v3735 = vsel %vm1755, %v3654, 0.0
      %v3736 = vsel %vm1756, %v3656, 0.0
      %v3737 = vsel %vm1757, %v3658, 0.0
      %v3738 = vsel %vm1758, %v3660, 0.0
      %v3739 = vsel %vm1759, %v3662, 0.0
      %v3740 = vsel %vm1760, %v3664, 0.0
      %v3741 = vsel %vm1761, %v3666, 0.0
      %v3742 = vsel %vm1762, %v3668, 0.0
      %v3743 = vsel %vm1763, %v3670, 0.0
      %v3744 = vsel %vm1764, %v3708, 0.0
      %3781 = vrot.lane.b32.xlu0 %v3709, 8
      %v3782 = vpop.permute.xlu0 %3781
      %3783 = vrot.lane.b32.xlu0 %v3710, 8
      %v3784 = vpop.permute.xlu0 %3783
      %3785 = vrot.lane.b32.xlu0 %v3711, 8
      %v3786 = vpop.permute.xlu0 %3785
      %3787 = vrot.lane.b32.xlu0 %v3712, 8
      %v3788 = vpop.permute.xlu0 %3787
      %3789 = vrot.lane.b32.xlu0 %v3713, 8
      %v3790 = vpop.permute.xlu0 %3789
      %3791 = vrot.lane.b32.xlu0 %v3714, 8
      %v3792 = vpop.permute.xlu0 %3791
      %3793 = vrot.lane.b32.xlu0 %v3715, 8
      %v3794 = vpop.permute.xlu0 %3793
      %3795 = vrot.lane.b32.xlu0 %v3716, 8
      %v3796 = vpop.permute.xlu0 %3795
      %3797 = vrot.lane.b32.xlu0 %v3717, 8
      %v3798 = vpop.permute.xlu0 %3797
      %3799 = vrot.lane.b32.xlu0 %v3718, 8
      %v3800 = vpop.permute.xlu0 %3799
      %3801 = vrot.lane.b32.xlu0 %v3719, 8
      %v3802 = vpop.permute.xlu0 %3801
      %3803 = vrot.lane.b32.xlu0 %v3720, 8
      %v3804 = vpop.permute.xlu0 %3803
      %3805 = vrot.lane.b32.xlu0 %v3721, 8
      %v3806 = vpop.permute.xlu0 %3805
      %3807 = vrot.lane.b32.xlu0 %v3722, 8
      %v3808 = vpop.permute.xlu0 %3807
      %3809 = vrot.lane.b32.xlu0 %v3723, 8
      %v3810 = vpop.permute.xlu0 %3809
      %3811 = vrot.lane.b32.xlu0 %v3724, 8
      %v3812 = vpop.permute.xlu0 %3811
      %3813 = vrot.lane.b32.xlu0 %v3725, 8
      %v3814 = vpop.permute.xlu0 %3813
      %3815 = vrot.lane.b32.xlu0 %v3726, 8
      %v3816 = vpop.permute.xlu0 %3815
      %3817 = vrot.lane.b32.xlu0 %v3727, 8
      %v3818 = vpop.permute.xlu0 %3817
      %3819 = vrot.lane.b32.xlu0 %v3728, 8
      %v3820 = vpop.permute.xlu0 %3819
      %3821 = vrot.lane.b32.xlu0 %v3729, 8
      %v3822 = vpop.permute.xlu0 %3821
      %3823 = vrot.lane.b32.xlu0 %v3730, 8
      %v3824 = vpop.permute.xlu0 %3823
      %3825 = vrot.lane.b32.xlu0 %v3731, 8
      %v3826 = vpop.permute.xlu0 %3825
      %3827 = vrot.lane.b32.xlu0 %v3732, 8
      %v3828 = vpop.permute.xlu0 %3827
      %3829 = vrot.lane.b32.xlu0 %v3733, 8
      %v3830 = vpop.permute.xlu0 %3829
      %3831 = vrot.lane.b32.xlu0 %v3734, 8
      %v3832 = vpop.permute.xlu0 %3831
      %3833 = vrot.lane.b32.xlu0 %v3735, 8
      %v3834 = vpop.permute.xlu0 %3833
      %3835 = vrot.lane.b32.xlu0 %v3736, 8
      %v3836 = vpop.permute.xlu0 %3835
      %3837 = vrot.lane.b32.xlu0 %v3737, 8
      %v3838 = vpop.permute.xlu0 %3837
      %3839 = vrot.lane.b32.xlu0 %v3738, 8
      %v3840 = vpop.permute.xlu0 %3839
      %3841 = vrot.lane.b32.xlu0 %v3739, 8
      %v3842 = vpop.permute.xlu0 %3841
      %3843 = vrot.lane.b32.xlu0 %v3740, 8
      %v3844 = vpop.permute.xlu0 %3843
      %3845 = vrot.lane.b32.xlu0 %v3741, 8
      %v3846 = vpop.permute.xlu0 %3845
      %3847 = vrot.lane.b32.xlu0 %v3742, 8
      %v3848 = vpop.permute.xlu0 %3847
      %3849 = vrot.lane.b32.xlu0 %v3743, 8
      %v3850 = vpop.permute.xlu0 %3849
      %3851 = vrot.lane.b32.xlu0 %v3744, 8
      %v3852 = vpop.permute.xlu0 %3851
      %vm3889 = vcmask 195712
      %3890 = vst.msk [vmem:[#allocation2] sm:$0xff] %vm3889, %v3782
      %3891 = vst.msk [vmem:[#allocation2 + $0x8] sm:$0xff] %vm3889, %v3784
      %3892 = vst.msk [vmem:[#allocation2 + $0x10] sm:$0xff] %vm3889, %v3786
      %3893 = vst.msk [vmem:[#allocation2 + $0x18] sm:$0xff] %vm3889, %v3788
      %3894 = vst.msk [vmem:[#allocation2 + $0x20] sm:$0xff] %vm3889, %v3790
      %3895 = vst.msk [vmem:[#allocation2 + $0x28] sm:$0xff] %vm3889, %v3792
      %3896 = vst.msk [vmem:[#allocation2 + $0x30] sm:$0xff] %vm3889, %v3794
      %3897 = vst.msk [vmem:[#allocation2 + $0x38] sm:$0xff] %vm3889, %v3796
      %3898 = vst.msk [vmem:[#allocation2 + $0x40] sm:$0xff] %vm3889, %v3798
      %3899 = vst.msk [vmem:[#allocation2 + $0x48] sm:$0xff] %vm3889, %v3800
      %3900 = vst.msk [vmem:[#allocation2 + $0x50] sm:$0xff] %vm3889, %v3802
      %3901 = vst.msk [vmem:[#allocation2 + $0x58] sm:$0xff] %vm3889, %v3804
      %3902 = vst.msk [vmem:[#allocation2 + $0x60] sm:$0xff] %vm3889, %v3806
      %3903 = vst.msk [vmem:[#allocation2 + $0x68] sm:$0xff] %vm3889, %v3808
      %3904 = vst.msk [vmem:[#allocation2 + $0x70] sm:$0xff] %vm3889, %v3810
      %3905 = vst.msk [vmem:[#allocation2 + $0x78] sm:$0xff] %vm3889, %v3812
      %3906 = vst.msk [vmem:[#allocation2 + $0x80] sm:$0xff] %vm3889, %v3814
      %3907 = vst.msk [vmem:[#allocation2 + $0x88] sm:$0xff] %vm3889, %v3816
      %3908 = vst.msk [vmem:[#allocation2 + $0x90] sm:$0xff] %vm3889, %v3818
      %3909 = vst.msk [vmem:[#allocation2 + $0x98] sm:$0xff] %vm3889, %v3820
      %3910 = vst.msk [vmem:[#allocation2 + $0xa0] sm:$0xff] %vm3889, %v3822
      %3911 = vst.msk [vmem:[#allocation2 + $0xa8] sm:$0xff] %vm3889, %v3824
      %3912 = vst.msk [vmem:[#allocation2 + $0xb0] sm:$0xff] %vm3889, %v3826
      %3913 = vst.msk [vmem:[#allocation2 + $0xb8] sm:$0xff] %vm3889, %v3828
      %3914 = vst.msk [vmem:[#allocation2 + $0xc0] sm:$0xff] %vm3889, %v3830
      %3915 = vst.msk [vmem:[#allocation2 + $0xc8] sm:$0xff] %vm3889, %v3832
      %3916 = vst.msk [vmem:[#allocation2 + $0xd0] sm:$0xff] %vm3889, %v3834
      %3917 = vst.msk [vmem:[#allocation2 + $0xd8] sm:$0xff] %vm3889, %v3836
      %3918 = vst.msk [vmem:[#allocation2 + $0xe0] sm:$0xff] %vm3889, %v3838
      %3919 = vst.msk [vmem:[#allocation2 + $0xe8] sm:$0xff] %vm3889, %v3840
      %3920 = vst.msk [vmem:[#allocation2 + $0xf0] sm:$0xff] %vm3889, %v3842
      %3921 = vst.msk [vmem:[#allocation2 + $0xf8] sm:$0xff] %vm3889, %v3844
      %3922 = vst.msk [vmem:[#allocation2 + $0x100] sm:$0xff] %vm3889, %v3846
      %3923 = vst.msk [vmem:[#allocation2 + $0x108] sm:$0xff] %vm3889, %v3848
      %3924 = vst.msk [vmem:[#allocation2 + $0x110] sm:$0xff] %vm3889, %v3850
      %3925 = vst.msk [vmem:[#allocation2 + $0x118] sm:$0xff] %vm3889, %v3852
      %v3926 = vld [vmem:[#allocation2] sm:$0xff]
      %v3927 = vld [vmem:[#allocation2 + $0x8] sm:$0xff]
      %v3928 = vld [vmem:[#allocation2 + $0x10] sm:$0xff]
      %v3929 = vld [vmem:[#allocation2 + $0x18] sm:$0xff]
      %v3930 = vld [vmem:[#allocation2 + $0x20] sm:$0xff]
      %v3931 = vld [vmem:[#allocation2 + $0x28] sm:$0xff]
      %v3932 = vld [vmem:[#allocation2 + $0x30] sm:$0xff]
      %v3933 = vld [vmem:[#allocation2 + $0x38] sm:$0xff]
      %v3934 = vld [vmem:[#allocation2 + $0x40] sm:$0xff]
      %v3935 = vld [vmem:[#allocation2 + $0x48] sm:$0xff]
      %v3936 = vld [vmem:[#allocation2 + $0x50] sm:$0xff]
      %v3937 = vld [vmem:[#allocation2 + $0x58] sm:$0xff]
      %v3938 = vld [vmem:[#allocation2 + $0x60] sm:$0xff]
      %v3939 = vld [vmem:[#allocation2 + $0x68] sm:$0xff]
      %v3940 = vld [vmem:[#allocation2 + $0x70] sm:$0xff]
      %v3941 = vld [vmem:[#allocation2 + $0x78] sm:$0xff]
      %v3942 = vld [vmem:[#allocation2 + $0x80] sm:$0xff]
      %v3943 = vld [vmem:[#allocation2 + $0x88] sm:$0xff]
      %v3944 = vld [vmem:[#allocation2 + $0x90] sm:$0xff]
      %v3945 = vld [vmem:[#allocation2 + $0x98] sm:$0xff]
      %v3946 = vld [vmem:[#allocation2 + $0xa0] sm:$0xff]
      %v3947 = vld [vmem:[#allocation2 + $0xa8] sm:$0xff]
      %v3948 = vld [vmem:[#allocation2 + $0xb0] sm:$0xff]
      %v3949 = vld [vmem:[#allocation2 + $0xb8] sm:$0xff]
      %v3950 = vld [vmem:[#allocation2 + $0xc0] sm:$0xff]
      %v3951 = vld [vmem:[#allocation2 + $0xc8] sm:$0xff]
      %v3952 = vld [vmem:[#allocation2 + $0xd0] sm:$0xff]
      %v3953 = vld [vmem:[#allocation2 + $0xd8] sm:$0xff]
      %v3954 = vld [vmem:[#allocation2 + $0xe0] sm:$0xff]
      %v3955 = vld [vmem:[#allocation2 + $0xe8] sm:$0xff]
      %v3956 = vld [vmem:[#allocation2 + $0xf0] sm:$0xff]
      %v3957 = vld [vmem:[#allocation2 + $0xf8] sm:$0xff]
      %v3958 = vld [vmem:[%s3] sm:$0xff]
      %v3959 = vld [vmem:[%s3 + $0x8] sm:$0xff]
      %v3960 = vld [vmem:[%s3 + $0x10] sm:$0xff]
      %v3961 = vld [vmem:[#allocation2 + $0x100] sm:$0xff]
      %v3962 = vld [vmem:[#allocation2 + $0x108] sm:$0xff]
      %s3963 = scalar_lea.vmem %s3, 24
      %v3964 = vld [vmem:[%s3963] sm:$0xff]
      %v3965 = vld [vmem:[%s3963 + $0x8] sm:$0xff]
      %v3966 = vld [vmem:[%s3963 + $0x10] sm:$0xff]
      %vm3967 = vcmask 195584
      %v3969 = vsel %vm3967, %v3928, 0
      %v3972 = vsel %vm3967, %v3929, 0
      %v3975 = vsel %vm3967, %v3930, 0
      %v3978 = vsel %vm3967, %v3931, 0
      %v3981 = vsel %vm3967, %v3932, 0
      %v3984 = vsel %vm3967, %v3933, 0
      %v3987 = vsel %vm3967, %v3934, 0
      %v3990 = vsel %vm3967, %v3935, 0
      %v3993 = vsel %vm3967, %v3936, 0
      %v3996 = vsel %vm3967, %v3937, 0
      %v3999 = vsel %vm3967, %v3938, 0
      %v4002 = vsel %vm3967, %v3939, 0
      %v4005 = vsel %vm3967, %v3940, 0
      %v4008 = vsel %vm3967, %v3941, 0
      %v4011 = vsel %vm3967, %v3942, 0
      %v4014 = vsel %vm3967, %v3943, 0
      %v4017 = vsel %vm3967, %v3944, 0
      %v4020 = vsel %vm3967, %v3945, 0
      %v4023 = vsel %vm3967, %v3946, 0
      %v4026 = vsel %vm3967, %v3947, 0
      %v4029 = vsel %vm3967, %v3948, 0
      %v4032 = vsel %vm3967, %v3949, 0
      %v4035 = vsel %vm3967, %v3950, 0
      %v4038 = vsel %vm3967, %v3951, 0
      %v4041 = vsel %vm3967, %v3952, 0
      %v4044 = vsel %vm3967, %v3953, 0
      %v4047 = vsel %vm3967, %v3954, 0
      %v4050 = vsel %vm3967, %v3955, 0
      %v4053 = vsel %vm3967, %v3956, 0
      %v4056 = vsel %vm3967, %v3957, 0
      %v4059 = vsel %vm3967, %v3961, 0
      %v4062 = vsel %vm3967, %v3962, 0
      %4064 = vmatprep.subr.mxu0 0.0
      %4065 = vmatpush1.msra.mxu0 %v3964
      %4066 = vmatprep.subr.mxu0 0.0
      %4067 = vmatpush1.msra.mxu0 %v3965
      %4068 = vmatprep.subr.mxu0 0.0
      %4069 = vmatpush1.msra.mxu0 %v3966
      %4070 = vmatprep.subr.mxu0 0.0
      %4071 = vmatpush1.msra.mxu0 0.0
      %4072 = vmatprep.subr.mxu0 0.0
      %4073 = vmatpush1.msra.mxu0 0.0
      %4074 = vmatprep.subr.mxu0 0.0
      %4075 = vmatpush1.msra.mxu0 0.0
      %4076 = vmatprep.subr.mxu0 0.0
      %4077 = vmatpush1.msra.mxu0 0.0
      %4078 = vmatprep.subr.mxu0 0.0
      %4079 = vmatpush1.msra.mxu0 0.0
      %4080 = vmatprep.subr.mxu0 0.0
      %4081 = vmatpush1.msra.mxu0 0.0
      %4082 = vmatprep.subr.mxu0 0.0
      %4083 = vmatpush1.msra.mxu0 0.0
      %4084 = vmatprep.subr.mxu0 0.0
      %4085 = vmatpush1.msra.mxu0 0.0
      %4086 = vmatprep.subr.mxu0 0.0
      %4087 = vmatpush1.msra.mxu0 0.0
      %4088 = vmatprep.subr.mxu0 0.0
      %4089 = vmatpush1.msra.mxu0 0.0
      %4090 = vmatprep.subr.mxu0 0.0
      %4091 = vmatpush1.msra.mxu0 0.0
      %4092 = vmatprep.subr.mxu0 0.0
      %4093 = vmatpush1.msra.mxu0 0.0
      %4094 = vmatprep.subr.mxu0 0.0
      %4095 = vmatpush1.msra.mxu0 0.0
      %4096 = vmatprep.subr.mxu0 0.0
      %4097 = vmatpush1.msra.mxu0 0.0
      %4098 = vmatprep.subr.mxu0 0.0
      %4099 = vmatpush1.msra.mxu0 0.0
      %4100 = vmatprep.subr.mxu0 0.0
      %4101 = vmatpush1.msra.mxu0 0.0
      %4102 = vmatprep.subr.mxu0 0.0
      %4103 = vmatpush1.msra.mxu0 0.0
      %4104 = vmatprep.subr.mxu0 0.0
      %4105 = vmatpush1.msra.mxu0 0.0
      %4106 = vmatprep.subr.mxu0 0.0
      %4107 = vmatpush1.msra.mxu0 0.0
      %4108 = vmatprep.subr.mxu0 0.0
      %4109 = vmatpush1.msra.mxu0 0.0
      %4110 = vmatprep.subr.mxu0 0.0
      %4111 = vmatpush1.msra.mxu0 0.0
      %4112 = vmatprep.subr.mxu0 0.0
      %4113 = vmatpush1.msra.mxu0 0.0
      %4114 = vmatprep.subr.mxu0 0.0
      %4115 = vmatpush1.msra.mxu0 0.0
      %4116 = vmatprep.subr.mxu0 0.0
      %4117 = vmatpush1.msra.mxu0 0.0
      %4118 = vmatprep.subr.mxu0 0.0
      %4119 = vmatpush1.msra.mxu0 0.0
      %4120 = vmatprep.subr.mxu0 0.0
      %4121 = vmatpush1.msra.mxu0 0.0
      %4122 = vmatprep.subr.mxu0 0.0
      %4123 = vmatpush1.msra.mxu0 0.0
      %4124 = vmatprep.subr.mxu0 0.0
      %4125 = vmatpush1.msra.mxu0 0.0
      %4126 = vmatprep.subr.mxu0 0.0
      %4127 = vmatpush1.msra.mxu0 0.0
      %4128 = vmatprep.mubr.f32.mxu0 0.0
      %4129 = vmatmul.mubr.f32.gmra.mrb[0].mxu0 %v3969
      %v4130 = vpop.f32.mrb[0].mxu0
      %v4131 = vadd.f32 0.0, %v4130
      %v4132 = vpop.f32.mrb[0].mxu0
      %4133 = vmatprep.mubr.f32.mxu0 0.0
      %4134 = vmatmul.mubr.f32.gmra.mrb[0].mxu0 %v3972
      %v4135 = vpop.f32.mrb[0].mxu0
      %v4136 = vadd.f32 0.0, %v4135
      %v4137 = vpop.f32.mrb[0].mxu0
      %4138 = vmatprep.mubr.f32.mxu0 0.0
      %4139 = vmatmul.mubr.f32.gmra.mrb[0].mxu0 %v3975
      %v4140 = vpop.f32.mrb[0].mxu0
      %v4141 = vadd.f32 0.0, %v4140
      %v4142 = vpop.f32.mrb[0].mxu0
      %4143 = vmatprep.mubr.f32.mxu0 0.0
      %4144 = vmatmul.mubr.f32.gmra.mrb[0].mxu0 %v3978
      %v4145 = vpop.f32.mrb[0].mxu0
      %v4146 = vadd.f32 0.0, %v4145
      %v4147 = vpop.f32.mrb[0].mxu0
      %4148 = vmatprep.mubr.f32.mxu0 0.0
      %4149 = vmatmul.mubr.f32.gmra.mrb[0].mxu0 %v3981
      %v4150 = vpop.f32.mrb[0].mxu0
      %v4151 = vadd.f32 0.0, %v4150
      %v4152 = vpop.f32.mrb[0].mxu0
      %4153 = vmatprep.mubr.f32.mxu0 0.0
      %4154 = vmatmul.mubr.f32.gmra.mrb[0].mxu0 %v3984
      %v4155 = vpop.f32.mrb[0].mxu0
      %v4156 = vadd.f32 0.0, %v4155
      %v4157 = vpop.f32.mrb[0].mxu0
      %4158 = vmatprep.mubr.f32.mxu0 0.0
      %4159 = vmatmul.mubr.f32.gmra.mrb[0].mxu0 %v3987
      %v4160 = vpop.f32.mrb[0].mxu0
      %v4161 = vadd.f32 0.0, %v4160
      %v4162 = vpop.f32.mrb[0].mxu0
      %4163 = vmatprep.mubr.f32.mxu0 0.0
      %4164 = vmatmul.mubr.f32.gmra.mrb[0].mxu0 %v3990
      %v4165 = vpop.f32.mrb[0].mxu0
      %v4166 = vadd.f32 0.0, %v4165
      %v4167 = vpop.f32.mrb[0].mxu0
      %4168 = vmatprep.mubr.f32.mxu0 0.0
      %4169 = vmatmul.mubr.f32.gmra.mrb[0].mxu0 %v3993
      %v4170 = vpop.f32.mrb[0].mxu0
      %v4171 = vadd.f32 0.0, %v4170
      %v4172 = vpop.f32.mrb[0].mxu0
      %4173 = vmatprep.mubr.f32.mxu0 0.0
      %4174 = vmatmul.mubr.f32.gmra.mrb[0].mxu0 %v3996
      %v4175 = vpop.f32.mrb[0].mxu0
      %v4176 = vadd.f32 0.0, %v4175
      %v4177 = vpop.f32.mrb[0].mxu0
      %4178 = vmatprep.mubr.f32.mxu0 0.0
      %4179 = vmatmul.mubr.f32.gmra.mrb[0].mxu0 %v3999
      %v4180 = vpop.f32.mrb[0].mxu0
      %v4181 = vadd.f32 0.0, %v4180
      %v4182 = vpop.f32.mrb[0].mxu0
      %4183 = vmatprep.mubr.f32.mxu0 0.0
      %4184 = vmatmul.mubr.f32.gmra.mrb[0].mxu0 %v4002
      %v4185 = vpop.f32.mrb[0].mxu0
      %v4186 = vadd.f32 0.0, %v4185
      %v4187 = vpop.f32.mrb[0].mxu0
      %4188 = vmatprep.mubr.f32.mxu0 0.0
      %4189 = vmatmul.mubr.f32.gmra.mrb[0].mxu0 %v4005
      %v4190 = vpop.f32.mrb[0].mxu0
      %v4191 = vadd.f32 0.0, %v4190
      %v4192 = vpop.f32.mrb[0].mxu0
      %4193 = vmatprep.mubr.f32.mxu0 0.0
      %4194 = vmatmul.mubr.f32.gmra.mrb[0].mxu0 %v4008
      %v4195 = vpop.f32.mrb[0].mxu0
      %v4196 = vadd.f32 0.0, %v4195
      %v4197 = vpop.f32.mrb[0].mxu0
      %4198 = vmatprep.mubr.f32.mxu0 0.0
      %4199 = vmatmul.mubr.f32.gmra.mrb[0].mxu0 %v4011
      %v4200 = vpop.f32.mrb[0].mxu0
      %v4201 = vadd.f32 0.0, %v4200
      %v4202 = vpop.f32.mrb[0].mxu0
      %4203 = vmatprep.mubr.f32.mxu0 0.0
      %4204 = vmatmul.mubr.f32.gmra.mrb[0].mxu0 %v4014
      %v4205 = vpop.f32.mrb[0].mxu0
      %v4206 = vadd.f32 0.0, %v4205
      %v4207 = vpop.f32.mrb[0].mxu0
      %4208 = vmatprep.mubr.f32.mxu0 0.0
      %4209 = vmatmul.mubr.f32.gmra.mrb[0].mxu0 %v4017
      %v4210 = vpop.f32.mrb[0].mxu0
      %v4211 = vadd.f32 0.0, %v4210
      %v4212 = vpop.f32.mrb[0].mxu0
      %4213 = vmatprep.mubr.f32.mxu0 0.0
      %4214 = vmatmul.mubr.f32.gmra.mrb[0].mxu0 %v4020
      %v4215 = vpop.f32.mrb[0].mxu0
      %v4216 = vadd.f32 0.0, %v4215
      %v4217 = vpop.f32.mrb[0].mxu0
      %4218 = vmatprep.mubr.f32.mxu0 0.0
      %4219 = vmatmul.mubr.f32.gmra.mrb[0].mxu0 %v4023
      %v4220 = vpop.f32.mrb[0].mxu0
      %v4221 = vadd.f32 0.0, %v4220
      %v4222 = vpop.f32.mrb[0].mxu0
      %4223 = vmatprep.mubr.f32.mxu0 0.0
      %4224 = vmatmul.mubr.f32.gmra.mrb[0].mxu0 %v4026
      %v4225 = vpop.f32.mrb[0].mxu0
      %v4226 = vadd.f32 0.0, %v4225
      %v4227 = vpop.f32.mrb[0].mxu0
      %4228 = vmatprep.mubr.f32.mxu0 0.0
      %4229 = vmatmul.mubr.f32.gmra.mrb[0].mxu0 %v4029
      %v4230 = vpop.f32.mrb[0].mxu0
      %v4231 = vadd.f32 0.0, %v4230
      %v4232 = vpop.f32.mrb[0].mxu0
      %4233 = vmatprep.mubr.f32.mxu0 0.0
      %4234 = vmatmul.mubr.f32.gmra.mrb[0].mxu0 %v4032
      %v4235 = vpop.f32.mrb[0].mxu0
      %v4236 = vadd.f32 0.0, %v4235
      %v4237 = vpop.f32.mrb[0].mxu0
      %4238 = vmatprep.mubr.f32.mxu0 0.0
      %4239 = vmatmul.mubr.f32.gmra.mrb[0].mxu0 %v4035
      %v4240 = vpop.f32.mrb[0].mxu0
      %v4241 = vadd.f32 0.0, %v4240
      %v4242 = vpop.f32.mrb[0].mxu0
      %4243 = vmatprep.mubr.f32.mxu0 0.0
      %4244 = vmatmul.mubr.f32.gmra.mrb[0].mxu0 %v4038
      %v4245 = vpop.f32.mrb[0].mxu0
      %v4246 = vadd.f32 0.0, %v4245
      %v4247 = vpop.f32.mrb[0].mxu0
      %4248 = vmatprep.mubr.f32.mxu0 0.0
      %4249 = vmatmul.mubr.f32.gmra.mrb[0].mxu0 %v4041
      %v4250 = vpop.f32.mrb[0].mxu0
      %v4251 = vadd.f32 0.0, %v4250
      %v4252 = vpop.f32.mrb[0].mxu0
      %4253 = vmatprep.mubr.f32.mxu0 0.0
      %4254 = vmatmul.mubr.f32.gmra.mrb[0].mxu0 %v4044
      %v4255 = vpop.f32.mrb[0].mxu0
      %v4256 = vadd.f32 0.0, %v4255
      %v4257 = vpop.f32.mrb[0].mxu0
      %4258 = vmatprep.mubr.f32.mxu0 0.0
      %4259 = vmatmul.mubr.f32.gmra.mrb[0].mxu0 %v4047
      %v4260 = vpop.f32.mrb[0].mxu0
      %v4261 = vadd.f32 0.0, %v4260
      %v4262 = vpop.f32.mrb[0].mxu0
      %4263 = vmatprep.mubr.f32.mxu0 0.0
      %4264 = vmatmul.mubr.f32.gmra.mrb[0].mxu0 %v4050
      %v4265 = vpop.f32.mrb[0].mxu0
      %v4266 = vadd.f32 0.0, %v4265
      %v4267 = vpop.f32.mrb[0].mxu0
      %4268 = vmatprep.mubr.f32.mxu0 0.0
      %4269 = vmatmul.mubr.f32.gmra.mrb[0].mxu0 %v4053
      %v4270 = vpop.f32.mrb[0].mxu0
      %v4271 = vadd.f32 0.0, %v4270
      %v4272 = vpop.f32.mrb[0].mxu0
      %4273 = vmatprep.mubr.f32.mxu0 0.0
      %4274 = vmatmul.mubr.f32.gmra.mrb[0].mxu0 %v4056
      %v4275 = vpop.f32.mrb[0].mxu0
      %v4276 = vadd.f32 0.0, %v4275
      %v4277 = vpop.f32.mrb[0].mxu0
      %4278 = vmatprep.mubr.f32.mxu0 0.0
      %4279 = vmatmul.mubr.f32.gmra.mrb[0].mxu0 %v4059
      %v4280 = vpop.f32.mrb[0].mxu0
      %v4281 = vadd.f32 0.0, %v4280
      %v4282 = vpop.f32.mrb[0].mxu0
      %4283 = vmatprep.mubr.f32.mxu0 0.0
      %4284 = vmatmul.mubr.f32.gmra.mrb[0].mxu0 %v4062
      %v4285 = vpop.f32.mrb[0].mxu0
      %v4286 = vadd.f32 0.0, %v4285
      %v4287 = vpop.f32.mrb[0].mxu0
      %4288 = vdwg.mxu0
      %v4290 = vsel %vm3967, %v3926, 0
      %v4293 = vsel %vm3967, %v3927, 0
      %4295 = vmatprep.subr.mxu0 0.0
      %4296 = vmatpush1.msra.mxu0 %v3958
      %4297 = vmatprep.subr.mxu0 0.0
      %4298 = vmatpush1.msra.mxu0 %v3959
      %4299 = vmatprep.subr.mxu0 0.0
      %4300 = vmatpush1.msra.mxu0 %v3960
      %4301 = vmatprep.subr.mxu0 0.0
      %4302 = vmatpush1.msra.mxu0 0.0
      %4303 = vmatprep.subr.mxu0 0.0
      %4304 = vmatpush1.msra.mxu0 0.0
      %4305 = vmatprep.subr.mxu0 0.0
      %4306 = vmatpush1.msra.mxu0 0.0
      %4307 = vmatprep.subr.mxu0 0.0
      %4308 = vmatpush1.msra.mxu0 0.0
      %4309 = vmatprep.subr.mxu0 0.0
      %4310 = vmatpush1.msra.mxu0 0.0
      %4311 = vmatprep.subr.mxu0 0.0
      %4312 = vmatpush1.msra.mxu0 0.0
      %4313 = vmatprep.subr.mxu0 0.0
      %4314 = vmatpush1.msra.mxu0 0.0
      %4315 = vmatprep.subr.mxu0 0.0
      %4316 = vmatpush1.msra.mxu0 0.0
      %4317 = vmatprep.subr.mxu0 0.0
      %4318 = vmatpush1.msra.mxu0 0.0
      %4319 = vmatprep.subr.mxu0 0.0
      %4320 = vmatpush1.msra.mxu0 0.0
      %4321 = vmatprep.subr.mxu0 0.0
      %4322 = vmatpush1.msra.mxu0 0.0
      %4323 = vmatprep.subr.mxu0 0.0
      %4324 = vmatpush1.msra.mxu0 0.0
      %4325 = vmatprep.subr.mxu0 0.0
      %4326 = vmatpush1.msra.mxu0 0.0
      %4327 = vmatprep.subr.mxu0 0.0
      %4328 = vmatpush1.msra.mxu0 0.0
      %4329 = vmatprep.subr.mxu0 0.0
      %4330 = vmatpush1.msra.mxu0 0.0
      %4331 = vmatprep.subr.mxu0 0.0
      %4332 = vmatpush1.msra.mxu0 0.0
      %4333 = vmatprep.subr.mxu0 0.0
      %4334 = vmatpush1.msra.mxu0 0.0
      %4335 = vmatprep.subr.mxu0 0.0
      %4336 = vmatpush1.msra.mxu0 0.0
      %4337 = vmatprep.subr.mxu0 0.0
      %4338 = vmatpush1.msra.mxu0 0.0
      %4339 = vmatprep.subr.mxu0 0.0
      %4340 = vmatpush1.msra.mxu0 0.0
      %4341 = vmatprep.subr.mxu0 0.0
      %4342 = vmatpush1.msra.mxu0 0.0
      %4343 = vmatprep.subr.mxu0 0.0
      %4344 = vmatpush1.msra.mxu0 0.0
      %4345 = vmatprep.subr.mxu0 0.0
      %4346 = vmatpush1.msra.mxu0 0.0
      %4347 = vmatprep.subr.mxu0 0.0
      %4348 = vmatpush1.msra.mxu0 0.0
      %4349 = vmatprep.subr.mxu0 0.0
      %4350 = vmatpush1.msra.mxu0 0.0
      %4351 = vmatprep.subr.mxu0 0.0
      %4352 = vmatpush1.msra.mxu0 0.0
      %4353 = vmatprep.subr.mxu0 0.0
      %4354 = vmatpush1.msra.mxu0 0.0
      %4355 = vmatprep.subr.mxu0 0.0
      %4356 = vmatpush1.msra.mxu0 0.0
      %4357 = vmatprep.subr.mxu0 0.0
      %4358 = vmatpush1.msra.mxu0 0.0
      %4359 = vmatprep.mubr.f32.mxu0 0.0
      %4360 = vmatmul.mubr.f32.gmra.mrb[0].mxu0 %v4290
      %v4361 = vpop.f32.mrb[0].mxu0
      %v4362 = vadd.f32 %v4131, %v4361
      %v4363 = vpop.f32.mrb[0].mxu0
      %4364 = vmatprep.mubr.f32.mxu0 0.0
      %4365 = vmatmul.mubr.f32.gmra.mrb[0].mxu0 %v4293
      %v4366 = vpop.f32.mrb[0].mxu0
      %v4367 = vadd.f32 %v4136, %v4366
      %v4368 = vpop.f32.mrb[0].mxu0
      %4369 = vmatprep.mubr.f32.mxu0 0.0
      %4370 = vmatmul.mubr.f32.gmra.mrb[0].mxu0 %v3969
      %v4371 = vpop.f32.mrb[0].mxu0
      %v4372 = vadd.f32 %v4141, %v4371
      %v4373 = vpop.f32.mrb[0].mxu0
      %4374 = vmatprep.mubr.f32.mxu0 0.0
      %4375 = vmatmul.mubr.f32.gmra.mrb[0].mxu0 %v3972
      %v4376 = vpop.f32.mrb[0].mxu0
      %v4377 = vadd.f32 %v4146, %v4376
      %v4378 = vpop.f32.mrb[0].mxu0
      %4379 = vmatprep.mubr.f32.mxu0 0.0
      %4380 = vmatmul.mubr.f32.gmra.mrb[0].mxu0 %v3975
      %v4381 = vpop.f32.mrb[0].mxu0
      %v4382 = vadd.f32 %v4151, %v4381
      %v4383 = vpop.f32.mrb[0].mxu0
      %4384 = vmatprep.mubr.f32.mxu0 0.0
      %4385 = vmatmul.mubr.f32.gmra.mrb[0].mxu0 %v3978
      %v4386 = vpop.f32.mrb[0].mxu0
      %v4387 = vadd.f32 %v4156, %v4386
      %v4388 = vpop.f32.mrb[0].mxu0
      %4389 = vmatprep.mubr.f32.mxu0 0.0
      %4390 = vmatmul.mubr.f32.gmra.mrb[0].mxu0 %v3981
      %v4391 = vpop.f32.mrb[0].mxu0
      %v4392 = vadd.f32 %v4161, %v4391
      %v4393 = vpop.f32.mrb[0].mxu0
      %4394 = vmatprep.mubr.f32.mxu0 0.0
      %4395 = vmatmul.mubr.f32.gmra.mrb[0].mxu0 %v3984
      %v4396 = vpop.f32.mrb[0].mxu0
      %v4397 = vadd.f32 %v4166, %v4396
      %v4398 = vpop.f32.mrb[0].mxu0
      %4399 = vmatprep.mubr.f32.mxu0 0.0
      %4400 = vmatmul.mubr.f32.gmra.mrb[0].mxu0 %v3987
      %v4401 = vpop.f32.mrb[0].mxu0
      %v4402 = vadd.f32 %v4171, %v4401
      %v4403 = vpop.f32.mrb[0].mxu0
      %4404 = vmatprep.mubr.f32.mxu0 0.0
      %4405 = vmatmul.mubr.f32.gmra.mrb[0].mxu0 %v3990
      %v4406 = vpop.f32.mrb[0].mxu0
      %v4407 = vadd.f32 %v4176, %v4406
      %v4408 = vpop.f32.mrb[0].mxu0
      %4409 = vmatprep.mubr.f32.mxu0 0.0
      %4410 = vmatmul.mubr.f32.gmra.mrb[0].mxu0 %v3993
      %v4411 = vpop.f32.mrb[0].mxu0
      %v4412 = vadd.f32 %v4181, %v4411
      %v4413 = vpop.f32.mrb[0].mxu0
      %4414 = vmatprep.mubr.f32.mxu0 0.0
      %4415 = vmatmul.mubr.f32.gmra.mrb[0].mxu0 %v3996
      %v4416 = vpop.f32.mrb[0].mxu0
      %v4417 = vadd.f32 %v4186, %v4416
      %v4418 = vpop.f32.mrb[0].mxu0
      %4419 = vmatprep.mubr.f32.mxu0 0.0
      %4420 = vmatmul.mubr.f32.gmra.mrb[0].mxu0 %v3999
      %v4421 = vpop.f32.mrb[0].mxu0
      %v4422 = vadd.f32 %v4191, %v4421
      %v4423 = vpop.f32.mrb[0].mxu0
      %4424 = vmatprep.mubr.f32.mxu0 0.0
      %4425 = vmatmul.mubr.f32.gmra.mrb[0].mxu0 %v4002
      %v4426 = vpop.f32.mrb[0].mxu0
      %v4427 = vadd.f32 %v4196, %v4426
      %v4428 = vpop.f32.mrb[0].mxu0
      %4429 = vmatprep.mubr.f32.mxu0 0.0
      %4430 = vmatmul.mubr.f32.gmra.mrb[0].mxu0 %v4005
      %v4431 = vpop.f32.mrb[0].mxu0
      %v4432 = vadd.f32 %v4201, %v4431
      %v4433 = vpop.f32.mrb[0].mxu0
      %4434 = vmatprep.mubr.f32.mxu0 0.0
      %4435 = vmatmul.mubr.f32.gmra.mrb[0].mxu0 %v4008
      %v4436 = vpop.f32.mrb[0].mxu0
      %v4437 = vadd.f32 %v4206, %v4436
      %v4438 = vpop.f32.mrb[0].mxu0
      %4439 = vmatprep.mubr.f32.mxu0 0.0
      %4440 = vmatmul.mubr.f32.gmra.mrb[0].mxu0 %v4011
      %v4441 = vpop.f32.mrb[0].mxu0
      %v4442 = vadd.f32 %v4211, %v4441
      %v4443 = vpop.f32.mrb[0].mxu0
      %4444 = vmatprep.mubr.f32.mxu0 0.0
      %4445 = vmatmul.mubr.f32.gmra.mrb[0].mxu0 %v4014
      %v4446 = vpop.f32.mrb[0].mxu0
      %v4447 = vadd.f32 %v4216, %v4446
      %v4448 = vpop.f32.mrb[0].mxu0
      %4449 = vmatprep.mubr.f32.mxu0 0.0
      %4450 = vmatmul.mubr.f32.gmra.mrb[0].mxu0 %v4017
      %v4451 = vpop.f32.mrb[0].mxu0
      %v4452 = vadd.f32 %v4221, %v4451
      %v4453 = vpop.f32.mrb[0].mxu0
      %4454 = vmatprep.mubr.f32.mxu0 0.0
      %4455 = vmatmul.mubr.f32.gmra.mrb[0].mxu0 %v4020
      %v4456 = vpop.f32.mrb[0].mxu0
      %v4457 = vadd.f32 %v4226, %v4456
      %v4458 = vpop.f32.mrb[0].mxu0
      %4459 = vmatprep.mubr.f32.mxu0 0.0
      %4460 = vmatmul.mubr.f32.gmra.mrb[0].mxu0 %v4023
      %v4461 = vpop.f32.mrb[0].mxu0
      %v4462 = vadd.f32 %v4231, %v4461
      %v4463 = vpop.f32.mrb[0].mxu0
      %4464 = vmatprep.mubr.f32.mxu0 0.0
      %4465 = vmatmul.mubr.f32.gmra.mrb[0].mxu0 %v4026
      %v4466 = vpop.f32.mrb[0].mxu0
      %v4467 = vadd.f32 %v4236, %v4466
      %v4468 = vpop.f32.mrb[0].mxu0
      %4469 = vmatprep.mubr.f32.mxu0 0.0
      %4470 = vmatmul.mubr.f32.gmra.mrb[0].mxu0 %v4029
      %v4471 = vpop.f32.mrb[0].mxu0
      %v4472 = vadd.f32 %v4241, %v4471
      %v4473 = vpop.f32.mrb[0].mxu0
      %4474 = vmatprep.mubr.f32.mxu0 0.0
      %4475 = vmatmul.mubr.f32.gmra.mrb[0].mxu0 %v4032
      %v4476 = vpop.f32.mrb[0].mxu0
      %v4477 = vadd.f32 %v4246, %v4476
      %v4478 = vpop.f32.mrb[0].mxu0
      %4479 = vmatprep.mubr.f32.mxu0 0.0
      %4480 = vmatmul.mubr.f32.gmra.mrb[0].mxu0 %v4035
      %v4481 = vpop.f32.mrb[0].mxu0
      %v4482 = vadd.f32 %v4251, %v4481
      %v4483 = vpop.f32.mrb[0].mxu0
      %4484 = vmatprep.mubr.f32.mxu0 0.0
      %4485 = vmatmul.mubr.f32.gmra.mrb[0].mxu0 %v4038
      %v4486 = vpop.f32.mrb[0].mxu0
      %v4487 = vadd.f32 %v4256, %v4486
      %v4488 = vpop.f32.mrb[0].mxu0
      %4489 = vmatprep.mubr.f32.mxu0 0.0
      %4490 = vmatmul.mubr.f32.gmra.mrb[0].mxu0 %v4041
      %v4491 = vpop.f32.mrb[0].mxu0
      %v4492 = vadd.f32 %v4261, %v4491
      %v4493 = vpop.f32.mrb[0].mxu0
      %4494 = vmatprep.mubr.f32.mxu0 0.0
      %4495 = vmatmul.mubr.f32.gmra.mrb[0].mxu0 %v4044
      %v4496 = vpop.f32.mrb[0].mxu0
      %v4497 = vadd.f32 %v4266, %v4496
      %v4498 = vpop.f32.mrb[0].mxu0
      %4499 = vmatprep.mubr.f32.mxu0 0.0
      %4500 = vmatmul.mubr.f32.gmra.mrb[0].mxu0 %v4047
      %v4501 = vpop.f32.mrb[0].mxu0
      %v4502 = vadd.f32 %v4271, %v4501
      %v4503 = vpop.f32.mrb[0].mxu0
      %4504 = vmatprep.mubr.f32.mxu0 0.0
      %4505 = vmatmul.mubr.f32.gmra.mrb[0].mxu0 %v4050
      %v4506 = vpop.f32.mrb[0].mxu0
      %v4507 = vadd.f32 %v4276, %v4506
      %v4508 = vpop.f32.mrb[0].mxu0
      %4509 = vmatprep.mubr.f32.mxu0 0.0
      %4510 = vmatmul.mubr.f32.gmra.mrb[0].mxu0 %v4053
      %v4511 = vpop.f32.mrb[0].mxu0
      %v4512 = vadd.f32 %v4281, %v4511
      %v4513 = vpop.f32.mrb[0].mxu0
      %4514 = vmatprep.mubr.f32.mxu0 0.0
      %4515 = vmatmul.mubr.f32.gmra.mrb[0].mxu0 %v4056
      %v4516 = vpop.f32.mrb[0].mxu0
      %v4517 = vadd.f32 %v4286, %v4516
      %v4518 = vpop.f32.mrb[0].mxu0
      %4519 = vdwg.mxu0
      %v4520 = vld [vmem:[#allocation2 + $0x20] sm:$0xff]
      %v4521 = vld [vmem:[#allocation2 + $0x28] sm:$0xff]
      %v4522 = vld [vmem:[#allocation2 + $0x30] sm:$0xff]
      %v4523 = vld [vmem:[#allocation2 + $0x38] sm:$0xff]
      %v4524 = vld [vmem:[#allocation2 + $0x40] sm:$0xff]
      %v4525 = vld [vmem:[#allocation2 + $0x48] sm:$0xff]
      %v4526 = vld [vmem:[#allocation2 + $0x50] sm:$0xff]
      %v4527 = vld [vmem:[#allocation2 + $0x58] sm:$0xff]
      %v4528 = vld [vmem:[#allocation2 + $0x60] sm:$0xff]
      %v4529 = vld [vmem:[#allocation2 + $0x68] sm:$0xff]
      %v4530 = vld [vmem:[#allocation2 + $0x70] sm:$0xff]
      %v4531 = vld [vmem:[#allocation2 + $0x78] sm:$0xff]
      %v4532 = vld [vmem:[#allocation2 + $0x80] sm:$0xff]
      %v4533 = vld [vmem:[#allocation2 + $0x88] sm:$0xff]
      %v4534 = vld [vmem:[#allocation2 + $0x90] sm:$0xff]
      %v4535 = vld [vmem:[#allocation2 + $0x98] sm:$0xff]
      %v4536 = vld [vmem:[#allocation2 + $0xa0] sm:$0xff]
      %v4537 = vld [vmem:[#allocation2 + $0xa8] sm:$0xff]
      %v4538 = vld [vmem:[#allocation2 + $0xb0] sm:$0xff]
      %v4539 = vld [vmem:[#allocation2 + $0xb8] sm:$0xff]
      %v4540 = vld [vmem:[#allocation2 + $0xc0] sm:$0xff]
      %v4541 = vld [vmem:[#allocation2 + $0xc8] sm:$0xff]
      %v4542 = vld [vmem:[#allocation2 + $0xd0] sm:$0xff]
      %v4543 = vld [vmem:[#allocation2 + $0xd8] sm:$0xff]
      %v4544 = vld [vmem:[#allocation2 + $0xe0] sm:$0xff]
      %v4545 = vld [vmem:[#allocation2 + $0xe8] sm:$0xff]
      %v4546 = vld [vmem:[#allocation2 + $0xf0] sm:$0xff]
      %v4547 = vld [vmem:[#allocation2 + $0xf8] sm:$0xff]
      %v4548 = vld [vmem:[#allocation2 + $0x100] sm:$0xff]
      %v4549 = vld [vmem:[#allocation2 + $0x108] sm:$0xff]
      %v4550 = vld [vmem:[#allocation2 + $0x110] sm:$0xff]
      %v4551 = vld [vmem:[#allocation2 + $0x118] sm:$0xff]
      %s4552 = scalar_lea.vmem %s3, 48
      %v4553 = vld [vmem:[%s4552] sm:$0xff]
      %v4554 = vld [vmem:[%s4552 + $0x8] sm:$0xff]
      %v4555 = vld [vmem:[%s4552 + $0x10] sm:$0xff]
      %v4557 = vsel %vm3967, %v4520, 0
      %v4560 = vsel %vm3967, %v4521, 0
      %v4563 = vsel %vm3967, %v4522, 0
      %v4566 = vsel %vm3967, %v4523, 0
      %v4569 = vsel %vm3967, %v4524, 0
      %v4572 = vsel %vm3967, %v4525, 0
      %v4575 = vsel %vm3967, %v4526, 0
      %v4578 = vsel %vm3967, %v4527, 0
      %v4581 = vsel %vm3967, %v4528, 0
      %v4584 = vsel %vm3967, %v4529, 0
      %v4587 = vsel %vm3967, %v4530, 0
      %v4590 = vsel %vm3967, %v4531, 0
      %v4593 = vsel %vm3967, %v4532, 0
      %v4596 = vsel %vm3967, %v4533, 0
      %v4599 = vsel %vm3967, %v4534, 0
      %v4602 = vsel %vm3967, %v4535, 0
      %v4605 = vsel %vm3967, %v4536, 0
      %v4608 = vsel %vm3967, %v4537, 0
      %v4611 = vsel %vm3967, %v4538, 0
      %v4614 = vsel %vm3967, %v4539, 0
      %v4617 = vsel %vm3967, %v4540, 0
      %v4620 = vsel %vm3967, %v4541, 0
      %v4623 = vsel %vm3967, %v4542, 0
      %v4626 = vsel %vm3967, %v4543, 0
      %v4629 = vsel %vm3967, %v4544, 0
      %v4632 = vsel %vm3967, %v4545, 0
      %v4635 = vsel %vm3967, %v4546, 0
      %v4638 = vsel %vm3967, %v4547, 0
      %v4641 = vsel %vm3967, %v4548, 0
      %v4644 = vsel %vm3967, %v4549, 0
      %v4647 = vsel %vm3967, %v4550, 0
      %v4650 = vsel %vm3967, %v4551, 0
      %4652 = vmatprep.subr.mxu0 0.0
      %4653 = vmatpush1.msra.mxu0 %v4553
      %4654 = vmatprep.subr.mxu0 0.0
      %4655 = vmatpush1.msra.mxu0 %v4554
      %4656 = vmatprep.subr.mxu0 0.0
      %4657 = vmatpush1.msra.mxu0 %v4555
      %4658 = vmatprep.subr.mxu0 0.0
      %4659 = vmatpush1.msra.mxu0 0.0
      %4660 = vmatprep.subr.mxu0 0.0
      %4661 = vmatpush1.msra.mxu0 0.0
      %4662 = vmatprep.subr.mxu0 0.0
      %4663 = vmatpush1.msra.mxu0 0.0
      %4664 = vmatprep.subr.mxu0 0.0
      %4665 = vmatpush1.msra.mxu0 0.0
      %4666 = vmatprep.subr.mxu0 0.0
      %4667 = vmatpush1.msra.mxu0 0.0
      %4668 = vmatprep.subr.mxu0 0.0
      %4669 = vmatpush1.msra.mxu0 0.0
      %4670 = vmatprep.subr.mxu0 0.0
      %4671 = vmatpush1.msra.mxu0 0.0
      %4672 = vmatprep.subr.mxu0 0.0
      %4673 = vmatpush1.msra.mxu0 0.0
      %4674 = vmatprep.subr.mxu0 0.0
      %4675 = vmatpush1.msra.mxu0 0.0
      %4676 = vmatprep.subr.mxu0 0.0
      %4677 = vmatpush1.msra.mxu0 0.0
      %4678 = vmatprep.subr.mxu0 0.0
      %4679 = vmatpush1.msra.mxu0 0.0
      %4680 = vmatprep.subr.mxu0 0.0
      %4681 = vmatpush1.msra.mxu0 0.0
      %4682 = vmatprep.subr.mxu0 0.0
      %4683 = vmatpush1.msra.mxu0 0.0
      %4684 = vmatprep.subr.mxu0 0.0
      %4685 = vmatpush1.msra.mxu0 0.0
      %4686 = vmatprep.subr.mxu0 0.0
      %4687 = vmatpush1.msra.mxu0 0.0
      %4688 = vmatprep.subr.mxu0 0.0
      %4689 = vmatpush1.msra.mxu0 0.0
      %4690 = vmatprep.subr.mxu0 0.0
      %4691 = vmatpush1.msra.mxu0 0.0
      %4692 = vmatprep.subr.mxu0 0.0
      %4693 = vmatpush1.msra.mxu0 0.0
      %4694 = vmatprep.subr.mxu0 0.0
      %4695 = vmatpush1.msra.mxu0 0.0
      %4696 = vmatprep.subr.mxu0 0.0
      %4697 = vmatpush1.msra.mxu0 0.0
      %4698 = vmatprep.subr.mxu0 0.0
      %4699 = vmatpush1.msra.mxu0 0.0
      %4700 = vmatprep.subr.mxu0 0.0
      %4701 = vmatpush1.msra.mxu0 0.0
      %4702 = vmatprep.subr.mxu0 0.0
      %4703 = vmatpush1.msra.mxu0 0.0
      %4704 = vmatprep.subr.mxu0 0.0
      %4705 = vmatpush1.msra.mxu0 0.0
      %4706 = vmatprep.subr.mxu0 0.0
      %4707 = vmatpush1.msra.mxu0 0.0
      %4708 = vmatprep.subr.mxu0 0.0
      %4709 = vmatpush1.msra.mxu0 0.0
      %4710 = vmatprep.subr.mxu0 0.0
      %4711 = vmatpush1.msra.mxu0 0.0
      %4712 = vmatprep.subr.mxu0 0.0
      %4713 = vmatpush1.msra.mxu0 0.0
      %4714 = vmatprep.subr.mxu0 0.0
      %4715 = vmatpush1.msra.mxu0 0.0
      %4716 = vmatprep.mubr.f32.mxu0 0.0
      %4717 = vmatmul.mubr.f32.gmra.mrb[0].mxu0 %v4557
      %v4718 = vpop.f32.mrb[0].mxu0
      %v4719 = vadd.f32 0.0, %v4718
      %v4720 = vpop.f32.mrb[0].mxu0
      %4721 = vmatprep.mubr.f32.mxu0 0.0
      %4722 = vmatmul.mubr.f32.gmra.mrb[0].mxu0 %v4560
      %v4723 = vpop.f32.mrb[0].mxu0
      %v4724 = vadd.f32 0.0, %v4723
      %v4725 = vpop.f32.mrb[0].mxu0
      %4726 = vmatprep.mubr.f32.mxu0 0.0
      %4727 = vmatmul.mubr.f32.gmra.mrb[0].mxu0 %v4563
      %v4728 = vpop.f32.mrb[0].mxu0
      %v4729 = vadd.f32 0.0, %v4728
      %v4730 = vpop.f32.mrb[0].mxu0
      %4731 = vmatprep.mubr.f32.mxu0 0.0
      %4732 = vmatmul.mubr.f32.gmra.mrb[0].mxu0 %v4566
      %v4733 = vpop.f32.mrb[0].mxu0
      %v4734 = vadd.f32 0.0, %v4733
      %v4735 = vpop.f32.mrb[0].mxu0
      %4736 = vmatprep.mubr.f32.mxu0 0.0
      %4737 = vmatmul.mubr.f32.gmra.mrb[0].mxu0 %v4569
      %v4738 = vpop.f32.mrb[0].mxu0
      %v4739 = vadd.f32 0.0, %v4738
      %v4740 = vpop.f32.mrb[0].mxu0
      %4741 = vmatprep.mubr.f32.mxu0 0.0
      %4742 = vmatmul.mubr.f32.gmra.mrb[0].mxu0 %v4572
      %v4743 = vpop.f32.mrb[0].mxu0
      %v4744 = vadd.f32 0.0, %v4743
      %v4745 = vpop.f32.mrb[0].mxu0
      %4746 = vmatprep.mubr.f32.mxu0 0.0
      %4747 = vmatmul.mubr.f32.gmra.mrb[0].mxu0 %v4575
      %v4748 = vpop.f32.mrb[0].mxu0
      %v4749 = vadd.f32 0.0, %v4748
      %v4750 = vpop.f32.mrb[0].mxu0
      %4751 = vmatprep.mubr.f32.mxu0 0.0
      %4752 = vmatmul.mubr.f32.gmra.mrb[0].mxu0 %v4578
      %v4753 = vpop.f32.mrb[0].mxu0
      %v4754 = vadd.f32 0.0, %v4753
      %v4755 = vpop.f32.mrb[0].mxu0
      %4756 = vmatprep.mubr.f32.mxu0 0.0
      %4757 = vmatmul.mubr.f32.gmra.mrb[0].mxu0 %v4581
      %v4758 = vpop.f32.mrb[0].mxu0
      %v4759 = vadd.f32 0.0, %v4758
      %v4760 = vpop.f32.mrb[0].mxu0
      %4761 = vmatprep.mubr.f32.mxu0 0.0
      %4762 = vmatmul.mubr.f32.gmra.mrb[0].mxu0 %v4584
      %v4763 = vpop.f32.mrb[0].mxu0
      %v4764 = vadd.f32 0.0, %v4763
      %v4765 = vpop.f32.mrb[0].mxu0
      %4766 = vmatprep.mubr.f32.mxu0 0.0
      %4767 = vmatmul.mubr.f32.gmra.mrb[0].mxu0 %v4587
      %v4768 = vpop.f32.mrb[0].mxu0
      %v4769 = vadd.f32 0.0, %v4768
      %v4770 = vpop.f32.mrb[0].mxu0
      %4771 = vmatprep.mubr.f32.mxu0 0.0
      %4772 = vmatmul.mubr.f32.gmra.mrb[0].mxu0 %v4590
      %v4773 = vpop.f32.mrb[0].mxu0
      %v4774 = vadd.f32 0.0, %v4773
      %v4775 = vpop.f32.mrb[0].mxu0
      %4776 = vmatprep.mubr.f32.mxu0 0.0
      %4777 = vmatmul.mubr.f32.gmra.mrb[0].mxu0 %v4593
      %v4778 = vpop.f32.mrb[0].mxu0
      %v4779 = vadd.f32 0.0, %v4778
      %v4780 = vpop.f32.mrb[0].mxu0
      %4781 = vmatprep.mubr.f32.mxu0 0.0
      %4782 = vmatmul.mubr.f32.gmra.mrb[0].mxu0 %v4596
      %v4783 = vpop.f32.mrb[0].mxu0
      %v4784 = vadd.f32 0.0, %v4783
      %v4785 = vpop.f32.mrb[0].mxu0
      %4786 = vmatprep.mubr.f32.mxu0 0.0
      %4787 = vmatmul.mubr.f32.gmra.mrb[0].mxu0 %v4599
      %v4788 = vpop.f32.mrb[0].mxu0
      %v4789 = vadd.f32 0.0, %v4788
      %v4790 = vpop.f32.mrb[0].mxu0
      %4791 = vmatprep.mubr.f32.mxu0 0.0
      %4792 = vmatmul.mubr.f32.gmra.mrb[0].mxu0 %v4602
      %v4793 = vpop.f32.mrb[0].mxu0
      %v4794 = vadd.f32 0.0, %v4793
      %v4795 = vpop.f32.mrb[0].mxu0
      %4796 = vmatprep.mubr.f32.mxu0 0.0
      %4797 = vmatmul.mubr.f32.gmra.mrb[0].mxu0 %v4605
      %v4798 = vpop.f32.mrb[0].mxu0
      %v4799 = vadd.f32 0.0, %v4798
      %v4800 = vpop.f32.mrb[0].mxu0
      %4801 = vmatprep.mubr.f32.mxu0 0.0
      %4802 = vmatmul.mubr.f32.gmra.mrb[0].mxu0 %v4608
      %v4803 = vpop.f32.mrb[0].mxu0
      %v4804 = vadd.f32 0.0, %v4803
      %v4805 = vpop.f32.mrb[0].mxu0
      %4806 = vmatprep.mubr.f32.mxu0 0.0
      %4807 = vmatmul.mubr.f32.gmra.mrb[0].mxu0 %v4611
      %v4808 = vpop.f32.mrb[0].mxu0
      %v4809 = vadd.f32 0.0, %v4808
      %v4810 = vpop.f32.mrb[0].mxu0
      %4811 = vmatprep.mubr.f32.mxu0 0.0
      %4812 = vmatmul.mubr.f32.gmra.mrb[0].mxu0 %v4614
      %v4813 = vpop.f32.mrb[0].mxu0
      %v4814 = vadd.f32 0.0, %v4813
      %v4815 = vpop.f32.mrb[0].mxu0
      %4816 = vmatprep.mubr.f32.mxu0 0.0
      %4817 = vmatmul.mubr.f32.gmra.mrb[0].mxu0 %v4617
      %v4818 = vpop.f32.mrb[0].mxu0
      %v4819 = vadd.f32 0.0, %v4818
      %v4820 = vpop.f32.mrb[0].mxu0
      %4821 = vmatprep.mubr.f32.mxu0 0.0
      %4822 = vmatmul.mubr.f32.gmra.mrb[0].mxu0 %v4620
      %v4823 = vpop.f32.mrb[0].mxu0
      %v4824 = vadd.f32 0.0, %v4823
      %v4825 = vpop.f32.mrb[0].mxu0
      %4826 = vmatprep.mubr.f32.mxu0 0.0
      %4827 = vmatmul.mubr.f32.gmra.mrb[0].mxu0 %v4623
      %v4828 = vpop.f32.mrb[0].mxu0
      %v4829 = vadd.f32 0.0, %v4828
      %v4830 = vpop.f32.mrb[0].mxu0
      %4831 = vmatprep.mubr.f32.mxu0 0.0
      %4832 = vmatmul.mubr.f32.gmra.mrb[0].mxu0 %v4626
      %v4833 = vpop.f32.mrb[0].mxu0
      %v4834 = vadd.f32 0.0, %v4833
      %v4835 = vpop.f32.mrb[0].mxu0
      %4836 = vmatprep.mubr.f32.mxu0 0.0
      %4837 = vmatmul.mubr.f32.gmra.mrb[0].mxu0 %v4629
      %v4838 = vpop.f32.mrb[0].mxu0
      %v4839 = vadd.f32 0.0, %v4838
      %v4840 = vpop.f32.mrb[0].mxu0
      %4841 = vmatprep.mubr.f32.mxu0 0.0
      %4842 = vmatmul.mubr.f32.gmra.mrb[0].mxu0 %v4632
      %v4843 = vpop.f32.mrb[0].mxu0
      %v4844 = vadd.f32 0.0, %v4843
      %v4845 = vpop.f32.mrb[0].mxu0
      %4846 = vmatprep.mubr.f32.mxu0 0.0
      %4847 = vmatmul.mubr.f32.gmra.mrb[0].mxu0 %v4635
      %v4848 = vpop.f32.mrb[0].mxu0
      %v4849 = vadd.f32 0.0, %v4848
      %v4850 = vpop.f32.mrb[0].mxu0
      %4851 = vmatprep.mubr.f32.mxu0 0.0
      %4852 = vmatmul.mubr.f32.gmra.mrb[0].mxu0 %v4638
      %v4853 = vpop.f32.mrb[0].mxu0
      %v4854 = vadd.f32 0.0, %v4853
      %v4855 = vpop.f32.mrb[0].mxu0
      %4856 = vmatprep.mubr.f32.mxu0 0.0
      %4857 = vmatmul.mubr.f32.gmra.mrb[0].mxu0 %v4641
      %v4858 = vpop.f32.mrb[0].mxu0
      %v4859 = vadd.f32 0.0, %v4858
      %v4860 = vpop.f32.mrb[0].mxu0
      %4861 = vmatprep.mubr.f32.mxu0 0.0
      %4862 = vmatmul.mubr.f32.gmra.mrb[0].mxu0 %v4644
      %v4863 = vpop.f32.mrb[0].mxu0
      %v4864 = vadd.f32 0.0, %v4863
      %v4865 = vpop.f32.mrb[0].mxu0
      %4866 = vmatprep.mubr.f32.mxu0 0.0
      %4867 = vmatmul.mubr.f32.gmra.mrb[0].mxu0 %v4647
      %v4868 = vpop.f32.mrb[0].mxu0
      %v4869 = vadd.f32 0.0, %v4868
      %v4870 = vpop.f32.mrb[0].mxu0
      %4871 = vmatprep.mubr.f32.mxu0 0.0
      %4872 = vmatmul.mubr.f32.gmra.mrb[0].mxu0 %v4650
      %v4873 = vpop.f32.mrb[0].mxu0
      %v4874 = vadd.f32 0.0, %v4873
      %v4875 = vpop.f32.mrb[0].mxu0
      %4876 = vdwg.mxu0
      %v4877 = vadd.f32 %v4362, %v4719
      %v4878 = vadd.f32 %v4367, %v4724
      %v4879 = vadd.f32 %v4372, %v4729
      %v4880 = vadd.f32 %v4377, %v4734
      %v4881 = vadd.f32 %v4382, %v4739
      %v4882 = vadd.f32 %v4387, %v4744
      %v4883 = vadd.f32 %v4392, %v4749
      %v4884 = vadd.f32 %v4397, %v4754
      %v4885 = vadd.f32 %v4402, %v4759
      %v4886 = vadd.f32 %v4407, %v4764
      %v4887 = vadd.f32 %v4412, %v4769
      %v4888 = vadd.f32 %v4417, %v4774
      %v4889 = vadd.f32 %v4422, %v4779
      %v4890 = vadd.f32 %v4427, %v4784
      %v4891 = vadd.f32 %v4432, %v4789
      %v4892 = vadd.f32 %v4437, %v4794
      %v4893 = vadd.f32 %v4442, %v4799
      %v4894 = vadd.f32 %v4447, %v4804
      %v4895 = vadd.f32 %v4452, %v4809
      %v4896 = vadd.f32 %v4457, %v4814
      %v4897 = vadd.f32 %v4462, %v4819
      %v4898 = vadd.f32 %v4467, %v4824
      %v4899 = vadd.f32 %v4472, %v4829
      %v4900 = vadd.f32 %v4477, %v4834
      %v4901 = vadd.f32 %v4482, %v4839
      %v4902 = vadd.f32 %v4487, %v4844
      %v4903 = vadd.f32 %v4492, %v4849
      %v4904 = vadd.f32 %v4497, %v4854
      %v4905 = vadd.f32 %v4502, %v4859
      %v4906 = vadd.f32 %v4507, %v4864
      %v4907 = vadd.f32 %v4512, %v4869
      %v4908 = vadd.f32 %v4517, %v4874
      %v4909 = vld [vmem:[%s4] sm:$0x1]
      %v4911 = vlaneseq
      %v4912 = vshrl.u32 %v4911, 7
      %v4913 = vsub.s32 0, %v4912
      %v4914 = vrot.slane %v4909, %v4913
      %v4916 = vadd.f32 %v4877, %v4914
      %v4917 = vadd.f32 %v4878, %v4914
      %v4918 = vadd.f32 %v4879, %v4914
      %v4919 = vadd.f32 %v4880, %v4914
      %v4920 = vadd.f32 %v4881, %v4914
      %v4921 = vadd.f32 %v4882, %v4914
      %v4922 = vadd.f32 %v4883, %v4914
      %v4923 = vadd.f32 %v4884, %v4914
      %v4924 = vadd.f32 %v4885, %v4914
      %v4925 = vadd.f32 %v4886, %v4914
      %v4926 = vadd.f32 %v4887, %v4914
      %v4927 = vadd.f32 %v4888, %v4914
      %v4928 = vadd.f32 %v4889, %v4914
      %v4929 = vadd.f32 %v4890, %v4914
      %v4930 = vadd.f32 %v4891, %v4914
      %v4931 = vadd.f32 %v4892, %v4914
      %v4932 = vadd.f32 %v4893, %v4914
      %v4933 = vadd.f32 %v4894, %v4914
      %v4934 = vadd.f32 %v4895, %v4914
      %v4935 = vadd.f32 %v4896, %v4914
      %v4936 = vadd.f32 %v4897, %v4914
      %v4937 = vadd.f32 %v4898, %v4914
      %v4938 = vadd.f32 %v4899, %v4914
      %v4939 = vadd.f32 %v4900, %v4914
      %v4940 = vadd.f32 %v4901, %v4914
      %v4941 = vadd.f32 %v4902, %v4914
      %v4942 = vadd.f32 %v4903, %v4914
      %v4943 = vadd.f32 %v4904, %v4914
      %v4944 = vadd.f32 %v4905, %v4914
      %v4945 = vadd.f32 %v4906, %v4914
      %v4946 = vadd.f32 %v4907, %v4914
      %v4947 = vadd.f32 %v4908, %v4914
      %v4948 = vmax.f32 %v4916, 0.0
      %v4949 = vmax.f32 %v4917, 0.0
      %v4950 = vmax.f32 %v4918, 0.0
      %v4951 = vmax.f32 %v4919, 0.0
      %v4952 = vmax.f32 %v4920, 0.0
      %v4953 = vmax.f32 %v4921, 0.0
      %v4954 = vmax.f32 %v4922, 0.0
      %v4955 = vmax.f32 %v4923, 0.0
      %v4956 = vmax.f32 %v4924, 0.0
      %v4957 = vmax.f32 %v4925, 0.0
      %v4958 = vmax.f32 %v4926, 0.0
      %v4959 = vmax.f32 %v4927, 0.0
      %v4960 = vmax.f32 %v4928, 0.0
      %v4961 = vmax.f32 %v4929, 0.0
      %v4962 = vmax.f32 %v4930, 0.0
      %v4963 = vmax.f32 %v4931, 0.0
      %v4964 = vmax.f32 %v4932, 0.0
      %v4965 = vmax.f32 %v4933, 0.0
      %v4966 = vmax.f32 %v4934, 0.0
      %v4967 = vmax.f32 %v4935, 0.0
      %v4968 = vmax.f32 %v4936, 0.0
      %v4969 = vmax.f32 %v4937, 0.0
      %v4970 = vmax.f32 %v4938, 0.0
      %v4971 = vmax.f32 %v4939, 0.0
      %v4972 = vmax.f32 %v4940, 0.0
      %v4973 = vmax.f32 %v4941, 0.0
      %v4974 = vmax.f32 %v4942, 0.0
      %v4975 = vmax.f32 %v4943, 0.0
      %v4976 = vmax.f32 %v4944, 0.0
      %v4977 = vmax.f32 %v4945, 0.0
      %v4978 = vmax.f32 %v4946, 0.0
      %v4979 = vmax.f32 %v4947, 0.0
      %5012 = vrot.lane.b32.xlu0 %v4948, 8
      %v5013 = vpop.permute.xlu0 %5012
      %5014 = vrot.lane.b32.xlu0 %v4949, 8
      %v5015 = vpop.permute.xlu0 %5014
      %5016 = vrot.lane.b32.xlu0 %v4950, 8
      %v5017 = vpop.permute.xlu0 %5016
      %5018 = vrot.lane.b32.xlu0 %v4951, 8
      %v5019 = vpop.permute.xlu0 %5018
      %5020 = vrot.lane.b32.xlu0 %v4952, 8
      %v5021 = vpop.permute.xlu0 %5020
      %5022 = vrot.lane.b32.xlu0 %v4953, 8
      %v5023 = vpop.permute.xlu0 %5022
      %5024 = vrot.lane.b32.xlu0 %v4954, 8
      %v5025 = vpop.permute.xlu0 %5024
      %5026 = vrot.lane.b32.xlu0 %v4955, 8
      %v5027 = vpop.permute.xlu0 %5026
      %5028 = vrot.lane.b32.xlu0 %v4956, 8
      %v5029 = vpop.permute.xlu0 %5028
      %5030 = vrot.lane.b32.xlu0 %v4957, 8
      %v5031 = vpop.permute.xlu0 %5030
      %5032 = vrot.lane.b32.xlu0 %v4958, 8
      %v5033 = vpop.permute.xlu0 %5032
      %5034 = vrot.lane.b32.xlu0 %v4959, 8
      %v5035 = vpop.permute.xlu0 %5034
      %5036 = vrot.lane.b32.xlu0 %v4960, 8
      %v5037 = vpop.permute.xlu0 %5036
      %5038 = vrot.lane.b32.xlu0 %v4961, 8
      %v5039 = vpop.permute.xlu0 %5038
      %5040 = vrot.lane.b32.xlu0 %v4962, 8
      %v5041 = vpop.permute.xlu0 %5040
      %5042 = vrot.lane.b32.xlu0 %v4963, 8
      %v5043 = vpop.permute.xlu0 %5042
      %5044 = vrot.lane.b32.xlu0 %v4964, 8
      %v5045 = vpop.permute.xlu0 %5044
      %5046 = vrot.lane.b32.xlu0 %v4965, 8
      %v5047 = vpop.permute.xlu0 %5046
      %5048 = vrot.lane.b32.xlu0 %v4966, 8
      %v5049 = vpop.permute.xlu0 %5048
      %5050 = vrot.lane.b32.xlu0 %v4967, 8
      %v5051 = vpop.permute.xlu0 %5050
      %5052 = vrot.lane.b32.xlu0 %v4968, 8
      %v5053 = vpop.permute.xlu0 %5052
      %5054 = vrot.lane.b32.xlu0 %v4969, 8
      %v5055 = vpop.permute.xlu0 %5054
      %5056 = vrot.lane.b32.xlu0 %v4970, 8
      %v5057 = vpop.permute.xlu0 %5056
      %5058 = vrot.lane.b32.xlu0 %v4971, 8
      %v5059 = vpop.permute.xlu0 %5058
      %5060 = vrot.lane.b32.xlu0 %v4972, 8
      %v5061 = vpop.permute.xlu0 %5060
      %5062 = vrot.lane.b32.xlu0 %v4973, 8
      %v5063 = vpop.permute.xlu0 %5062
      %5064 = vrot.lane.b32.xlu0 %v4974, 8
      %v5065 = vpop.permute.xlu0 %5064
      %5066 = vrot.lane.b32.xlu0 %v4975, 8
      %v5067 = vpop.permute.xlu0 %5066
      %5068 = vrot.lane.b32.xlu0 %v4976, 8
      %v5069 = vpop.permute.xlu0 %5068
      %5070 = vrot.lane.b32.xlu0 %v4977, 8
      %v5071 = vpop.permute.xlu0 %5070
      %5072 = vrot.lane.b32.xlu0 %v4978, 8
      %v5073 = vpop.permute.xlu0 %5072
      %5074 = vrot.lane.b32.xlu0 %v4979, 8
      %v5075 = vpop.permute.xlu0 %5074
      %5108 = vst.msk [vmem:[#allocation2 + $0x10] sm:$0xff] %vm879, %v5013
      %5109 = vst.msk [vmem:[#allocation2 + $0x18] sm:$0xff] %vm879, %v5015
      %5110 = vst.msk [vmem:[#allocation2 + $0x20] sm:$0xff] %vm879, %v5017
      %5111 = vst.msk [vmem:[#allocation2 + $0x28] sm:$0xff] %vm879, %v5019
      %5112 = vst.msk [vmem:[#allocation2 + $0x30] sm:$0xff] %vm879, %v5021
      %5113 = vst.msk [vmem:[#allocation2 + $0x38] sm:$0xff] %vm879, %v5023
      %5114 = vst.msk [vmem:[#allocation2 + $0x40] sm:$0xff] %vm879, %v5025
      %5115 = vst.msk [vmem:[#allocation2 + $0x48] sm:$0xff] %vm879, %v5027
      %5116 = vst.msk [vmem:[#allocation2 + $0x50] sm:$0xff] %vm879, %v5029
      %5117 = vst.msk [vmem:[#allocation2 + $0x58] sm:$0xff] %vm879, %v5031
      %5118 = vst.msk [vmem:[#allocation2 + $0x60] sm:$0xff] %vm879, %v5033
      %5119 = vst.msk [vmem:[#allocation2 + $0x68] sm:$0xff] %vm879, %v5035
      %5120 = vst.msk [vmem:[#allocation2 + $0x70] sm:$0xff] %vm879, %v5037
      %5121 = vst.msk [vmem:[#allocation2 + $0x78] sm:$0xff] %vm879, %v5039
      %5122 = vst.msk [vmem:[#allocation2 + $0x80] sm:$0xff] %vm879, %v5041
      %5123 = vst.msk [vmem:[#allocation2 + $0x88] sm:$0xff] %vm879, %v5043
      %5124 = vst.msk [vmem:[#allocation2 + $0x90] sm:$0xff] %vm879, %v5045
      %5125 = vst.msk [vmem:[#allocation2 + $0x98] sm:$0xff] %vm879, %v5047
      %5126 = vst.msk [vmem:[#allocation2 + $0xa0] sm:$0xff] %vm879, %v5049
      %5127 = vst.msk [vmem:[#allocation2 + $0xa8] sm:$0xff] %vm879, %v5051
      %5128 = vst.msk [vmem:[#allocation2 + $0xb0] sm:$0xff] %vm879, %v5053
      %5129 = vst.msk [vmem:[#allocation2 + $0xb8] sm:$0xff] %vm879, %v5055
      %5130 = vst.msk [vmem:[#allocation2 + $0xc0] sm:$0xff] %vm879, %v5057
      %5131 = vst.msk [vmem:[#allocation2 + $0xc8] sm:$0xff] %vm879, %v5059
      %5132 = vst.msk [vmem:[#allocation2 + $0xd0] sm:$0xff] %vm879, %v5061
      %5133 = vst.msk [vmem:[#allocation2 + $0xd8] sm:$0xff] %vm879, %v5063
      %5134 = vst.msk [vmem:[#allocation2 + $0xe0] sm:$0xff] %vm879, %v5065
      %5135 = vst.msk [vmem:[#allocation2 + $0xe8] sm:$0xff] %vm879, %v5067
      %5136 = vst.msk [vmem:[#allocation2 + $0xf0] sm:$0xff] %vm879, %v5069
      %5137 = vst.msk [vmem:[#allocation2 + $0xf8] sm:$0xff] %vm879, %v5071
      %5138 = vst.msk [vmem:[#allocation2 + $0x100] sm:$0xff] %vm879, %v5073
      %5139 = vst.msk [vmem:[#allocation2 + $0x108] sm:$0xff] %vm879, %v5075
      %v5140 = vld [vmem:[#allocation2] sm:$0xff]
      %v5141 = vld [vmem:[#allocation2 + $0x8] sm:$0xff]
      %v5142 = vld [vmem:[#allocation2 + $0x10] sm:$0xff]
      %v5143 = vld [vmem:[#allocation2 + $0x18] sm:$0xff]
      %v5144 = vld [vmem:[#allocation2 + $0x20] sm:$0xff]
      %v5145 = vld [vmem:[#allocation2 + $0x28] sm:$0xff]
      %v5146 = vld [vmem:[#allocation2 + $0x30] sm:$0xff]
      %v5147 = vld [vmem:[#allocation2 + $0x38] sm:$0xff]
      %v5148 = vld [vmem:[#allocation2 + $0x40] sm:$0xff]
      %v5149 = vld [vmem:[#allocation2 + $0x48] sm:$0xff]
      %v5150 = vld [vmem:[#allocation2 + $0x50] sm:$0xff]
      %v5151 = vld [vmem:[#allocation2 + $0x58] sm:$0xff]
      %v5152 = vld [vmem:[#allocation2 + $0x60] sm:$0xff]
      %v5153 = vld [vmem:[#allocation2 + $0x68] sm:$0xff]
      %v5154 = vld [vmem:[#allocation2 + $0x70] sm:$0xff]
      %v5155 = vld [vmem:[#allocation2 + $0x78] sm:$0xff]
      %v5156 = vld [vmem:[#allocation2 + $0x80] sm:$0xff]
      %v5157 = vld [vmem:[#allocation2 + $0x88] sm:$0xff]
      %v5158 = vld [vmem:[#allocation2 + $0x90] sm:$0xff]
      %v5159 = vld [vmem:[#allocation2 + $0x98] sm:$0xff]
      %v5160 = vld [vmem:[#allocation2 + $0xa0] sm:$0xff]
      %v5161 = vld [vmem:[#allocation2 + $0xa8] sm:$0xff]
      %v5162 = vld [vmem:[#allocation2 + $0xb0] sm:$0xff]
      %v5163 = vld [vmem:[#allocation2 + $0xb8] sm:$0xff]
      %v5164 = vld [vmem:[#allocation2 + $0xc0] sm:$0xff]
      %v5165 = vld [vmem:[#allocation2 + $0xc8] sm:$0xff]
      %v5166 = vld [vmem:[#allocation2 + $0xd0] sm:$0xff]
      %v5167 = vld [vmem:[#allocation2 + $0xd8] sm:$0xff]
      %v5168 = vld [vmem:[#allocation2 + $0xe0] sm:$0xff]
      %v5169 = vld [vmem:[#allocation2 + $0xe8] sm:$0xff]
      %v5170 = vld [vmem:[#allocation2 + $0xf0] sm:$0xff]
      %v5171 = vld [vmem:[#allocation2 + $0xf8] sm:$0xff]
      %v5172 = vld [vmem:[#allocation2 + $0x100] sm:$0xff]
      %v5173 = vld [vmem:[#allocation2 + $0x108] sm:$0xff]
      %v5174 = vld [vmem:[#allocation2 + $0x110] sm:$0xff]
      %v5175 = vld [vmem:[#allocation2 + $0x118] sm:$0xff]
      %v5177 = vrot.slane %v5175, 7
      %v5214 = vrot.slane %v5140, 7
      %v5215 = vrot.slane %v5141, 7
      %v5216 = vsel %vm1186, %v5214, %v5215
      %v5217 = vrot.slane %v5142, 7
      %v5218 = vsel %vm1186, %v5215, %v5217
      %v5219 = vrot.slane %v5143, 7
      %v5220 = vsel %vm1186, %v5217, %v5219
      %v5221 = vrot.slane %v5144, 7
      %v5222 = vsel %vm1186, %v5219, %v5221
      %v5223 = vrot.slane %v5145, 7
      %v5224 = vsel %vm1186, %v5221, %v5223
      %v5225 = vrot.slane %v5146, 7
      %v5226 = vsel %vm1186, %v5223, %v5225
      %v5227 = vrot.slane %v5147, 7
      %v5228 = vsel %vm1186, %v5225, %v5227
      %v5229 = vrot.slane %v5148, 7
      %v5230 = vsel %vm1186, %v5227, %v5229
      %v5231 = vrot.slane %v5149, 7
      %v5232 = vsel %vm1186, %v5229, %v5231
      %v5233 = vrot.slane %v5150, 7
      %v5234 = vsel %vm1186, %v5231, %v5233
      %v5235 = vrot.slane %v5151, 7
      %v5236 = vsel %vm1186, %v5233, %v5235
      %v5237 = vrot.slane %v5152, 7
      %v5238 = vsel %vm1186, %v5235, %v5237
      %v5239 = vrot.slane %v5153, 7
      %v5240 = vsel %vm1186, %v5237, %v5239
      %v5241 = vrot.slane %v5154, 7
      %v5242 = vsel %vm1186, %v5239, %v5241
      %v5243 = vrot.slane %v5155, 7
      %v5244 = vsel %vm1186, %v5241, %v5243
      %v5245 = vrot.slane %v5156, 7
      %v5246 = vsel %vm1186, %v5243, %v5245
      %v5247 = vrot.slane %v5157, 7
      %v5248 = vsel %vm1186, %v5245, %v5247
      %v5249 = vrot.slane %v5158, 7
      %v5250 = vsel %vm1186, %v5247, %v5249
      %v5251 = vrot.slane %v5159, 7
      %v5252 = vsel %vm1186, %v5249, %v5251
      %v5253 = vrot.slane %v5160, 7
      %v5254 = vsel %vm1186, %v5251, %v5253
      %v5255 = vrot.slane %v5161, 7
      %v5256 = vsel %vm1186, %v5253, %v5255
      %v5257 = vrot.slane %v5162, 7
      %v5258 = vsel %vm1186, %v5255, %v5257
      %v5259 = vrot.slane %v5163, 7
      %v5260 = vsel %vm1186, %v5257, %v5259
      %v5261 = vrot.slane %v5164, 7
      %v5262 = vsel %vm1186, %v5259, %v5261
      %v5263 = vrot.slane %v5165, 7
      %v5264 = vsel %vm1186, %v5261, %v5263
      %v5265 = vrot.slane %v5166, 7
      %v5266 = vsel %vm1186, %v5263, %v5265
      %v5267 = vrot.slane %v5167, 7
      %v5268 = vsel %vm1186, %v5265, %v5267
      %v5269 = vrot.slane %v5168, 7
      %v5270 = vsel %vm1186, %v5267, %v5269
      %v5271 = vrot.slane %v5169, 7
      %v5272 = vsel %vm1186, %v5269, %v5271
      %v5273 = vrot.slane %v5170, 7
      %v5274 = vsel %vm1186, %v5271, %v5273
      %v5275 = vrot.slane %v5171, 7
      %v5276 = vsel %vm1186, %v5273, %v5275
      %v5277 = vrot.slane %v5172, 7
      %v5278 = vsel %vm1186, %v5275, %v5277
      %v5279 = vrot.slane %v5173, 7
      %v5280 = vsel %vm1186, %v5277, %v5279
      %v5281 = vrot.slane %v5174, 7
      %v5282 = vsel %vm1186, %v5279, %v5281
      %v5283 = vsel %vm1186, %v5281, %v5177
      %v5320 = vsel %vm1186, %v5177, %v5214
      %v5321 = vsel %vm1330, %v5320, 0.0
      %v5322 = vsel %vm1331, %v5216, 0.0
      %v5323 = vsel %vm1332, %v5218, 0.0
      %v5324 = vsel %vm1333, %v5220, 0.0
      %v5325 = vsel %vm1334, %v5222, 0.0
      %v5326 = vsel %vm1335, %v5224, 0.0
      %v5327 = vsel %vm1336, %v5226, 0.0
      %v5328 = vsel %vm1337, %v5228, 0.0
      %v5329 = vsel %vm1338, %v5230, 0.0
      %v5330 = vsel %vm1339, %v5232, 0.0
      %v5331 = vsel %vm1340, %v5234, 0.0
      %v5332 = vsel %vm1341, %v5236, 0.0
      %v5333 = vsel %vm1342, %v5238, 0.0
      %v5334 = vsel %vm1343, %v5240, 0.0
      %v5335 = vsel %vm1344, %v5242, 0.0
      %v5336 = vsel %vm1345, %v5244, 0.0
      %v5337 = vsel %vm1346, %v5246, 0.0
      %v5338 = vsel %vm1347, %v5248, 0.0
      %v5339 = vsel %vm1348, %v5250, 0.0
      %v5340 = vsel %vm1349, %v5252, 0.0
      %v5341 = vsel %vm1350, %v5254, 0.0
      %v5342 = vsel %vm1351, %v5256, 0.0
      %v5343 = vsel %vm1352, %v5258, 0.0
      %v5344 = vsel %vm1353, %v5260, 0.0
      %v5345 = vsel %vm1354, %v5262, 0.0
      %v5346 = vsel %vm1355, %v5264, 0.0
      %v5347 = vsel %vm1356, %v5266, 0.0
      %v5348 = vsel %vm1357, %v5268, 0.0
      %v5349 = vsel %vm1358, %v5270, 0.0
      %v5350 = vsel %vm1359, %v5272, 0.0
      %v5351 = vsel %vm1360, %v5274, 0.0
      %v5352 = vsel %vm1361, %v5276, 0.0
      %v5353 = vsel %vm1362, %v5278, 0.0
      %v5354 = vsel %vm1363, %v5280, 0.0
      %v5355 = vsel %vm1364, %v5282, 0.0
      %v5356 = vsel %vm1365, %v5283, 0.0
      %5393 = vrot.lane.b32.xlu0 %v5321, 120
      %v5394 = vpop.permute.xlu0 %5393
      %5395 = vrot.lane.b32.xlu0 %v5322, 120
      %v5396 = vpop.permute.xlu0 %5395
      %5397 = vrot.lane.b32.xlu0 %v5323, 120
      %v5398 = vpop.permute.xlu0 %5397
      %5399 = vrot.lane.b32.xlu0 %v5324, 120
      %v5400 = vpop.permute.xlu0 %5399
      %5401 = vrot.lane.b32.xlu0 %v5325, 120
      %v5402 = vpop.permute.xlu0 %5401
      %5403 = vrot.lane.b32.xlu0 %v5326, 120
      %v5404 = vpop.permute.xlu0 %5403
      %5405 = vrot.lane.b32.xlu0 %v5327, 120
      %v5406 = vpop.permute.xlu0 %5405
      %5407 = vrot.lane.b32.xlu0 %v5328, 120
      %v5408 = vpop.permute.xlu0 %5407
      %5409 = vrot.lane.b32.xlu0 %v5329, 120
      %v5410 = vpop.permute.xlu0 %5409
      %5411 = vrot.lane.b32.xlu0 %v5330, 120
      %v5412 = vpop.permute.xlu0 %5411
      %5413 = vrot.lane.b32.xlu0 %v5331, 120
      %v5414 = vpop.permute.xlu0 %5413
      %5415 = vrot.lane.b32.xlu0 %v5332, 120
      %v5416 = vpop.permute.xlu0 %5415
      %5417 = vrot.lane.b32.xlu0 %v5333, 120
      %v5418 = vpop.permute.xlu0 %5417
      %5419 = vrot.lane.b32.xlu0 %v5334, 120
      %v5420 = vpop.permute.xlu0 %5419
      %5421 = vrot.lane.b32.xlu0 %v5335, 120
      %v5422 = vpop.permute.xlu0 %5421
      %5423 = vrot.lane.b32.xlu0 %v5336, 120
      %v5424 = vpop.permute.xlu0 %5423
      %5425 = vrot.lane.b32.xlu0 %v5337, 120
      %v5426 = vpop.permute.xlu0 %5425
      %5427 = vrot.lane.b32.xlu0 %v5338, 120
      %v5428 = vpop.permute.xlu0 %5427
      %5429 = vrot.lane.b32.xlu0 %v5339, 120
      %v5430 = vpop.permute.xlu0 %5429
      %5431 = vrot.lane.b32.xlu0 %v5340, 120
      %v5432 = vpop.permute.xlu0 %5431
      %5433 = vrot.lane.b32.xlu0 %v5341, 120
      %v5434 = vpop.permute.xlu0 %5433
      %5435 = vrot.lane.b32.xlu0 %v5342, 120
      %v5436 = vpop.permute.xlu0 %5435
      %5437 = vrot.lane.b32.xlu0 %v5343, 120
      %v5438 = vpop.permute.xlu0 %5437
      %5439 = vrot.lane.b32.xlu0 %v5344, 120
      %v5440 = vpop.permute.xlu0 %5439
      %5441 = vrot.lane.b32.xlu0 %v5345, 120
      %v5442 = vpop.permute.xlu0 %5441
      %5443 = vrot.lane.b32.xlu0 %v5346, 120
      %v5444 = vpop.permute.xlu0 %5443
      %5445 = vrot.lane.b32.xlu0 %v5347, 120
      %v5446 = vpop.permute.xlu0 %5445
      %5447 = vrot.lane.b32.xlu0 %v5348, 120
      %v5448 = vpop.permute.xlu0 %5447
      %5449 = vrot.lane.b32.xlu0 %v5349, 120
      %v5450 = vpop.permute.xlu0 %5449
      %5451 = vrot.lane.b32.xlu0 %v5350, 120
      %v5452 = vpop.permute.xlu0 %5451
      %5453 = vrot.lane.b32.xlu0 %v5351, 120
      %v5454 = vpop.permute.xlu0 %5453
      %5455 = vrot.lane.b32.xlu0 %v5352, 120
      %v5456 = vpop.permute.xlu0 %5455
      %5457 = vrot.lane.b32.xlu0 %v5353, 120
      %v5458 = vpop.permute.xlu0 %5457
      %5459 = vrot.lane.b32.xlu0 %v5354, 120
      %v5460 = vpop.permute.xlu0 %5459
      %5461 = vrot.lane.b32.xlu0 %v5355, 120
      %v5462 = vpop.permute.xlu0 %5461
      %5463 = vrot.lane.b32.xlu0 %v5356, 120
      %v5464 = vpop.permute.xlu0 %5463
      %5501 = vst.msk [vmem:[#allocation2] sm:$0xff] %vm3563, %v5394
      %5502 = vst.msk [vmem:[#allocation2 + $0x8] sm:$0xff] %vm3563, %v5396
      %5503 = vst.msk [vmem:[#allocation2 + $0x10] sm:$0xff] %vm3563, %v5398
      %5504 = vst.msk [vmem:[#allocation2 + $0x18] sm:$0xff] %vm3563, %v5400
      %5505 = vst.msk [vmem:[#allocation2 + $0x20] sm:$0xff] %vm3563, %v5402
      %5506 = vst.msk [vmem:[#allocation2 + $0x28] sm:$0xff] %vm3563, %v5404
      %5507 = vst.msk [vmem:[#allocation2 + $0x30] sm:$0xff] %vm3563, %v5406
      %5508 = vst.msk [vmem:[#allocation2 + $0x38] sm:$0xff] %vm3563, %v5408
      %5509 = vst.msk [vmem:[#allocation2 + $0x40] sm:$0xff] %vm3563, %v5410
      %5510 = vst.msk [vmem:[#allocation2 + $0x48] sm:$0xff] %vm3563, %v5412
      %5511 = vst.msk [vmem:[#allocation2 + $0x50] sm:$0xff] %vm3563, %v5414
      %5512 = vst.msk [vmem:[#allocation2 + $0x58] sm:$0xff] %vm3563, %v5416
      %5513 = vst.msk [vmem:[#allocation2 + $0x60] sm:$0xff] %vm3563, %v5418
      %5514 = vst.msk [vmem:[#allocation2 + $0x68] sm:$0xff] %vm3563, %v5420
      %5515 = vst.msk [vmem:[#allocation2 + $0x70] sm:$0xff] %vm3563, %v5422
      %5516 = vst.msk [vmem:[#allocation2 + $0x78] sm:$0xff] %vm3563, %v5424
      %5517 = vst.msk [vmem:[#allocation2 + $0x80] sm:$0xff] %vm3563, %v5426
      %5518 = vst.msk [vmem:[#allocation2 + $0x88] sm:$0xff] %vm3563, %v5428
      %5519 = vst.msk [vmem:[#allocation2 + $0x90] sm:$0xff] %vm3563, %v5430
      %5520 = vst.msk [vmem:[#allocation2 + $0x98] sm:$0xff] %vm3563, %v5432
      %5521 = vst.msk [vmem:[#allocation2 + $0xa0] sm:$0xff] %vm3563, %v5434
      %5522 = vst.msk [vmem:[#allocation2 + $0xa8] sm:$0xff] %vm3563, %v5436
      %5523 = vst.msk [vmem:[#allocation2 + $0xb0] sm:$0xff] %vm3563, %v5438
      %5524 = vst.msk [vmem:[#allocation2 + $0xb8] sm:$0xff] %vm3563, %v5440
      %5525 = vst.msk [vmem:[#allocation2 + $0xc0] sm:$0xff] %vm3563, %v5442
      %5526 = vst.msk [vmem:[#allocation2 + $0xc8] sm:$0xff] %vm3563, %v5444
      %5527 = vst.msk [vmem:[#allocation2 + $0xd0] sm:$0xff] %vm3563, %v5446
      %5528 = vst.msk [vmem:[#allocation2 + $0xd8] sm:$0xff] %vm3563, %v5448
      %5529 = vst.msk [vmem:[#allocation2 + $0xe0] sm:$0xff] %vm3563, %v5450
      %5530 = vst.msk [vmem:[#allocation2 + $0xe8] sm:$0xff] %vm3563, %v5452
      %5531 = vst.msk [vmem:[#allocation2 + $0xf0] sm:$0xff] %vm3563, %v5454
      %5532 = vst.msk [vmem:[#allocation2 + $0xf8] sm:$0xff] %vm3563, %v5456
      %5533 = vst.msk [vmem:[#allocation2 + $0x100] sm:$0xff] %vm3563, %v5458
      %5534 = vst.msk [vmem:[#allocation2 + $0x108] sm:$0xff] %vm3563, %v5460
      %5535 = vst.msk [vmem:[#allocation2 + $0x110] sm:$0xff] %vm3563, %v5462
      %5536 = vst.msk [vmem:[#allocation2 + $0x118] sm:$0xff] %vm3563, %v5464
      %v5537 = vrot.slane %v5140, 1
      %v5538 = vrot.slane %v5141, 1
      %v5539 = vsel %vm1583, %v5537, %v5538
      %v5540 = vrot.slane %v5142, 1
      %v5541 = vsel %vm1583, %v5538, %v5540
      %v5542 = vrot.slane %v5143, 1
      %v5543 = vsel %vm1583, %v5540, %v5542
      %v5544 = vrot.slane %v5144, 1
      %v5545 = vsel %vm1583, %v5542, %v5544
      %v5546 = vrot.slane %v5145, 1
      %v5547 = vsel %vm1583, %v5544, %v5546
      %v5548 = vrot.slane %v5146, 1
      %v5549 = vsel %vm1583, %v5546, %v5548
      %v5550 = vrot.slane %v5147, 1
      %v5551 = vsel %vm1583, %v5548, %v5550
      %v5552 = vrot.slane %v5148, 1
      %v5553 = vsel %vm1583, %v5550, %v5552
      %v5554 = vrot.slane %v5149, 1
      %v5555 = vsel %vm1583, %v5552, %v5554
      %v5556 = vrot.slane %v5150, 1
      %v5557 = vsel %vm1583, %v5554, %v5556
      %v5558 = vrot.slane %v5151, 1
      %v5559 = vsel %vm1583, %v5556, %v5558
      %v5560 = vrot.slane %v5152, 1
      %v5561 = vsel %vm1583, %v5558, %v5560
      %v5562 = vrot.slane %v5153, 1
      %v5563 = vsel %vm1583, %v5560, %v5562
      %v5564 = vrot.slane %v5154, 1
      %v5565 = vsel %vm1583, %v5562, %v5564
      %v5566 = vrot.slane %v5155, 1
      %v5567 = vsel %vm1583, %v5564, %v5566
      %v5568 = vrot.slane %v5156, 1
      %v5569 = vsel %vm1583, %v5566, %v5568
      %v5570 = vrot.slane %v5157, 1
      %v5571 = vsel %vm1583, %v5568, %v5570
      %v5572 = vrot.slane %v5158, 1
      %v5573 = vsel %vm1583, %v5570, %v5572
      %v5574 = vrot.slane %v5159, 1
      %v5575 = vsel %vm1583, %v5572, %v5574
      %v5576 = vrot.slane %v5160, 1
      %v5577 = vsel %vm1583, %v5574, %v5576
      %v5578 = vrot.slane %v5161, 1
      %v5579 = vsel %vm1583, %v5576, %v5578
      %v5580 = vrot.slane %v5162, 1
      %v5581 = vsel %vm1583, %v5578, %v5580
      %v5582 = vrot.slane %v5163, 1
      %v5583 = vsel %vm1583, %v5580, %v5582
      %v5584 = vrot.slane %v5164, 1
      %v5585 = vsel %vm1583, %v5582, %v5584
      %v5586 = vrot.slane %v5165, 1
      %v5587 = vsel %vm1583, %v5584, %v5586
      %v5588 = vrot.slane %v5166, 1
      %v5589 = vsel %vm1583, %v5586, %v5588
      %v5590 = vrot.slane %v5167, 1
      %v5591 = vsel %vm1583, %v5588, %v5590
      %v5592 = vrot.slane %v5168, 1
      %v5593 = vsel %vm1583, %v5590, %v5592
      %v5594 = vrot.slane %v5169, 1
      %v5595 = vsel %vm1583, %v5592, %v5594
      %v5596 = vrot.slane %v5170, 1
      %v5597 = vsel %vm1583, %v5594, %v5596
      %v5598 = vrot.slane %v5171, 1
      %v5599 = vsel %vm1583, %v5596, %v5598
      %v5600 = vrot.slane %v5172, 1
      %v5601 = vsel %vm1583, %v5598, %v5600
      %v5602 = vrot.slane %v5173, 1
      %v5603 = vsel %vm1583, %v5600, %v5602
      %v5604 = vrot.slane %v5174, 1
      %v5605 = vsel %vm1583, %v5602, %v5604
      %v5606 = vrot.slane %v5175, 1
      %v5607 = vsel %vm1583, %v5604, %v5606
      %v5645 = vsel %vm1583, %v5606, %v5537
      %v5646 = vsel %vm1729, %v5539, 0.0
      %v5647 = vsel %vm1730, %v5541, 0.0
      %v5648 = vsel %vm1731, %v5543, 0.0
      %v5649 = vsel %vm1732, %v5545, 0.0
      %v5650 = vsel %vm1733, %v5547, 0.0
      %v5651 = vsel %vm1734, %v5549, 0.0
      %v5652 = vsel %vm1735, %v5551, 0.0
      %v5653 = vsel %vm1736, %v5553, 0.0
      %v5654 = vsel %vm1737, %v5555, 0.0
      %v5655 = vsel %vm1738, %v5557, 0.0
      %v5656 = vsel %vm1739, %v5559, 0.0
      %v5657 = vsel %vm1740, %v5561, 0.0
      %v5658 = vsel %vm1741, %v5563, 0.0
      %v5659 = vsel %vm1742, %v5565, 0.0
      %v5660 = vsel %vm1743, %v5567, 0.0
      %v5661 = vsel %vm1744, %v5569, 0.0
      %v5662 = vsel %vm1745, %v5571, 0.0
      %v5663 = vsel %vm1746, %v5573, 0.0
      %v5664 = vsel %vm1747, %v5575, 0.0
      %v5665 = vsel %vm1748, %v5577, 0.0
      %v5666 = vsel %vm1749, %v5579, 0.0
      %v5667 = vsel %vm1750, %v5581, 0.0
      %v5668 = vsel %vm1751, %v5583, 0.0
      %v5669 = vsel %vm1752, %v5585, 0.0
      %v5670 = vsel %vm1753, %v5587, 0.0
      %v5671 = vsel %vm1754, %v5589, 0.0
      %v5672 = vsel %vm1755, %v5591, 0.0
      %v5673 = vsel %vm1756, %v5593, 0.0
      %v5674 = vsel %vm1757, %v5595, 0.0
      %v5675 = vsel %vm1758, %v5597, 0.0
      %v5676 = vsel %vm1759, %v5599, 0.0
      %v5677 = vsel %vm1760, %v5601, 0.0
      %v5678 = vsel %vm1761, %v5603, 0.0
      %v5679 = vsel %vm1762, %v5605, 0.0
      %v5680 = vsel %vm1763, %v5607, 0.0
      %v5681 = vsel %vm1764, %v5645, 0.0
      %5718 = vrot.lane.b32.xlu0 %v5646, 8
      %v5719 = vpop.permute.xlu0 %5718
      %5720 = vrot.lane.b32.xlu0 %v5647, 8
      %v5721 = vpop.permute.xlu0 %5720
      %5722 = vrot.lane.b32.xlu0 %v5648, 8
      %v5723 = vpop.permute.xlu0 %5722
      %5724 = vrot.lane.b32.xlu0 %v5649, 8
      %v5725 = vpop.permute.xlu0 %5724
      %5726 = vrot.lane.b32.xlu0 %v5650, 8
      %v5727 = vpop.permute.xlu0 %5726
      %5728 = vrot.lane.b32.xlu0 %v5651, 8
      %v5729 = vpop.permute.xlu0 %5728
      %5730 = vrot.lane.b32.xlu0 %v5652, 8
      %v5731 = vpop.permute.xlu0 %5730
      %5732 = vrot.lane.b32.xlu0 %v5653, 8
      %v5733 = vpop.permute.xlu0 %5732
      %5734 = vrot.lane.b32.xlu0 %v5654, 8
      %v5735 = vpop.permute.xlu0 %5734
      %5736 = vrot.lane.b32.xlu0 %v5655, 8
      %v5737 = vpop.permute.xlu0 %5736
      %5738 = vrot.lane.b32.xlu0 %v5656, 8
      %v5739 = vpop.permute.xlu0 %5738
      %5740 = vrot.lane.b32.xlu0 %v5657, 8
      %v5741 = vpop.permute.xlu0 %5740
      %5742 = vrot.lane.b32.xlu0 %v5658, 8
      %v5743 = vpop.permute.xlu0 %5742
      %5744 = vrot.lane.b32.xlu0 %v5659, 8
      %v5745 = vpop.permute.xlu0 %5744
      %5746 = vrot.lane.b32.xlu0 %v5660, 8
      %v5747 = vpop.permute.xlu0 %5746
      %5748 = vrot.lane.b32.xlu0 %v5661, 8
      %v5749 = vpop.permute.xlu0 %5748
      %5750 = vrot.lane.b32.xlu0 %v5662, 8
      %v5751 = vpop.permute.xlu0 %5750
      %5752 = vrot.lane.b32.xlu0 %v5663, 8
      %v5753 = vpop.permute.xlu0 %5752
      %5754 = vrot.lane.b32.xlu0 %v5664, 8
      %v5755 = vpop.permute.xlu0 %5754
      %5756 = vrot.lane.b32.xlu0 %v5665, 8
      %v5757 = vpop.permute.xlu0 %5756
      %5758 = vrot.lane.b32.xlu0 %v5666, 8
      %v5759 = vpop.permute.xlu0 %5758
      %5760 = vrot.lane.b32.xlu0 %v5667, 8
      %v5761 = vpop.permute.xlu0 %5760
      %5762 = vrot.lane.b32.xlu0 %v5668, 8
      %v5763 = vpop.permute.xlu0 %5762
      %5764 = vrot.lane.b32.xlu0 %v5669, 8
      %v5765 = vpop.permute.xlu0 %5764
      %5766 = vrot.lane.b32.xlu0 %v5670, 8
      %v5767 = vpop.permute.xlu0 %5766
      %5768 = vrot.lane.b32.xlu0 %v5671, 8
      %v5769 = vpop.permute.xlu0 %5768
      %5770 = vrot.lane.b32.xlu0 %v5672, 8
      %v5771 = vpop.permute.xlu0 %5770
      %5772 = vrot.lane.b32.xlu0 %v5673, 8
      %v5773 = vpop.permute.xlu0 %5772
      %5774 = vrot.lane.b32.xlu0 %v5674, 8
      %v5775 = vpop.permute.xlu0 %5774
      %5776 = vrot.lane.b32.xlu0 %v5675, 8
      %v5777 = vpop.permute.xlu0 %5776
      %5778 = vrot.lane.b32.xlu0 %v5676, 8
      %v5779 = vpop.permute.xlu0 %5778
      %5780 = vrot.lane.b32.xlu0 %v5677, 8
      %v5781 = vpop.permute.xlu0 %5780
      %5782 = vrot.lane.b32.xlu0 %v5678, 8
      %v5783 = vpop.permute.xlu0 %5782
      %5784 = vrot.lane.b32.xlu0 %v5679, 8
      %v5785 = vpop.permute.xlu0 %5784
      %5786 = vrot.lane.b32.xlu0 %v5680, 8
      %v5787 = vpop.permute.xlu0 %5786
      %5788 = vrot.lane.b32.xlu0 %v5681, 8
      %v5789 = vpop.permute.xlu0 %5788
      %5826 = vst.msk [vmem:[#allocation2] sm:$0xff] %vm3889, %v5719
      %5827 = vst.msk [vmem:[#allocation2 + $0x8] sm:$0xff] %vm3889, %v5721
      %5828 = vst.msk [vmem:[#allocation2 + $0x10] sm:$0xff] %vm3889, %v5723
      %5829 = vst.msk [vmem:[#allocation2 + $0x18] sm:$0xff] %vm3889, %v5725
      %5830 = vst.msk [vmem:[#allocation2 + $0x20] sm:$0xff] %vm3889, %v5727
      %5831 = vst.msk [vmem:[#allocation2 + $0x28] sm:$0xff] %vm3889, %v5729
      %5832 = vst.msk [vmem:[#allocation2 + $0x30] sm:$0xff] %vm3889, %v5731
      %5833 = vst.msk [vmem:[#allocation2 + $0x38] sm:$0xff] %vm3889, %v5733
      %5834 = vst.msk [vmem:[#allocation2 + $0x40] sm:$0xff] %vm3889, %v5735
      %5835 = vst.msk [vmem:[#allocation2 + $0x48] sm:$0xff] %vm3889, %v5737
      %5836 = vst.msk [vmem:[#allocation2 + $0x50] sm:$0xff] %vm3889, %v5739
      %5837 = vst.msk [vmem:[#allocation2 + $0x58] sm:$0xff] %vm3889, %v5741
      %5838 = vst.msk [vmem:[#allocation2 + $0x60] sm:$0xff] %vm3889, %v5743
      %5839 = vst.msk [vmem:[#allocation2 + $0x68] sm:$0xff] %vm3889, %v5745
      %5840 = vst.msk [vmem:[#allocation2 + $0x70] sm:$0xff] %vm3889, %v5747
      %5841 = vst.msk [vmem:[#allocation2 + $0x78] sm:$0xff] %vm3889, %v5749
      %5842 = vst.msk [vmem:[#allocation2 + $0x80] sm:$0xff] %vm3889, %v5751
      %5843 = vst.msk [vmem:[#allocation2 + $0x88] sm:$0xff] %vm3889, %v5753
      %5844 = vst.msk [vmem:[#allocation2 + $0x90] sm:$0xff] %vm3889, %v5755
      %5845 = vst.msk [vmem:[#allocation2 + $0x98] sm:$0xff] %vm3889, %v5757
      %5846 = vst.msk [vmem:[#allocation2 + $0xa0] sm:$0xff] %vm3889, %v5759
      %5847 = vst.msk [vmem:[#allocation2 + $0xa8] sm:$0xff] %vm3889, %v5761
      %5848 = vst.msk [vmem:[#allocation2 + $0xb0] sm:$0xff] %vm3889, %v5763
      %5849 = vst.msk [vmem:[#allocation2 + $0xb8] sm:$0xff] %vm3889, %v5765
      %5850 = vst.msk [vmem:[#allocation2 + $0xc0] sm:$0xff] %vm3889, %v5767
      %5851 = vst.msk [vmem:[#allocation2 + $0xc8] sm:$0xff] %vm3889, %v5769
      %5852 = vst.msk [vmem:[#allocation2 + $0xd0] sm:$0xff] %vm3889, %v5771
      %5853 = vst.msk [vmem:[#allocation2 + $0xd8] sm:$0xff] %vm3889, %v5773
      %5854 = vst.msk [vmem:[#allocation2 + $0xe0] sm:$0xff] %vm3889, %v5775
      %5855 = vst.msk [vmem:[#allocation2 + $0xe8] sm:$0xff] %vm3889, %v5777
      %5856 = vst.msk [vmem:[#allocation2 + $0xf0] sm:$0xff] %vm3889, %v5779
      %5857 = vst.msk [vmem:[#allocation2 + $0xf8] sm:$0xff] %vm3889, %v5781
      %5858 = vst.msk [vmem:[#allocation2 + $0x100] sm:$0xff] %vm3889, %v5783
      %5859 = vst.msk [vmem:[#allocation2 + $0x108] sm:$0xff] %vm3889, %v5785
      %5860 = vst.msk [vmem:[#allocation2 + $0x110] sm:$0xff] %vm3889, %v5787
      %5861 = vst.msk [vmem:[#allocation2 + $0x118] sm:$0xff] %vm3889, %v5789
      %v5862 = vld [vmem:[#allocation2] sm:$0xff]
      %v5863 = vld [vmem:[#allocation2 + $0x8] sm:$0xff]
      %v5864 = vld [vmem:[#allocation2 + $0x10] sm:$0xff]
      %v5865 = vld [vmem:[#allocation2 + $0x18] sm:$0xff]
      %v5866 = vld [vmem:[#allocation2 + $0x20] sm:$0xff]
      %v5867 = vld [vmem:[#allocation2 + $0x28] sm:$0xff]
      %v5868 = vld [vmem:[#allocation2 + $0x30] sm:$0xff]
      %v5869 = vld [vmem:[#allocation2 + $0x38] sm:$0xff]
      %v5870 = vld [vmem:[#allocation2 + $0x40] sm:$0xff]
      %v5871 = vld [vmem:[#allocation2 + $0x48] sm:$0xff]
      %v5872 = vld [vmem:[#allocation2 + $0x50] sm:$0xff]
      %v5873 = vld [vmem:[#allocation2 + $0x58] sm:$0xff]
      %v5874 = vld [vmem:[#allocation2 + $0x60] sm:$0xff]
      %v5875 = vld [vmem:[#allocation2 + $0x68] sm:$0xff]
      %v5876 = vld [vmem:[#allocation2 + $0x70] sm:$0xff]
      %v5877 = vld [vmem:[#allocation2 + $0x78] sm:$0xff]
      %v5878 = vld [vmem:[#allocation2 + $0x80] sm:$0xff]
      %v5879 = vld [vmem:[#allocation2 + $0x88] sm:$0xff]
      %v5880 = vld [vmem:[#allocation2 + $0x90] sm:$0xff]
      %v5881 = vld [vmem:[#allocation2 + $0x98] sm:$0xff]
      %v5882 = vld [vmem:[#allocation2 + $0xa0] sm:$0xff]
      %v5883 = vld [vmem:[#allocation2 + $0xa8] sm:$0xff]
      %v5884 = vld [vmem:[#allocation2 + $0xb0] sm:$0xff]
      %v5885 = vld [vmem:[#allocation2 + $0xb8] sm:$0xff]
      %v5886 = vld [vmem:[#allocation2 + $0xc0] sm:$0xff]
      %v5887 = vld [vmem:[#allocation2 + $0xc8] sm:$0xff]
      %v5888 = vld [vmem:[#allocation2 + $0xd0] sm:$0xff]
      %v5889 = vld [vmem:[#allocation2 + $0xd8] sm:$0xff]
      %v5890 = vld [vmem:[#allocation2 + $0xe0] sm:$0xff]
      %v5891 = vld [vmem:[#allocation2 + $0xe8] sm:$0xff]
      %v5892 = vld [vmem:[#allocation2 + $0xf0] sm:$0xff]
      %v5893 = vld [vmem:[#allocation2 + $0xf8] sm:$0xff]
      %v5894 = vld [vmem:[%s5] sm:$0xff]
      %v5895 = vld [vmem:[%s5 + $0x8] sm:$0xff]
      %v5896 = vld [vmem:[%s5 + $0x10] sm:$0xff]
      %v5897 = vld [vmem:[#allocation2 + $0x100] sm:$0xff]
      %v5898 = vld [vmem:[#allocation2 + $0x108] sm:$0xff]
      %s5899 = scalar_lea.vmem %s5, 24
      %v5900 = vld [vmem:[%s5899] sm:$0xff]
      %v5901 = vld [vmem:[%s5899 + $0x8] sm:$0xff]
      %v5902 = vld [vmem:[%s5899 + $0x10] sm:$0xff]
      %v5904 = vsel %vm3967, %v5864, 0
      %v5907 = vsel %vm3967, %v5865, 0
      %v5910 = vsel %vm3967, %v5866, 0
      %v5913 = vsel %vm3967, %v5867, 0
      %v5916 = vsel %vm3967, %v5868, 0
      %v5919 = vsel %vm3967, %v5869, 0
      %v5922 = vsel %vm3967, %v5870, 0
      %v5925 = vsel %vm3967, %v5871, 0
      %v5928 = vsel %vm3967, %v5872, 0
      %v5931 = vsel %vm3967, %v5873, 0
      %v5934 = vsel %vm3967, %v5874, 0
      %v5937 = vsel %vm3967, %v5875, 0
      %v5940 = vsel %vm3967, %v5876, 0
      %v5943 = vsel %vm3967, %v5877, 0
      %v5946 = vsel %vm3967, %v5878, 0
      %v5949 = vsel %vm3967, %v5879, 0
      %v5952 = vsel %vm3967, %v5880, 0
      %v5955 = vsel %vm3967, %v5881, 0
      %v5958 = vsel %vm3967, %v5882, 0
      %v5961 = vsel %vm3967, %v5883, 0
      %v5964 = vsel %vm3967, %v5884, 0
      %v5967 = vsel %vm3967, %v5885, 0
      %v5970 = vsel %vm3967, %v5886, 0
      %v5973 = vsel %vm3967, %v5887, 0
      %v5976 = vsel %vm3967, %v5888, 0
      %v5979 = vsel %vm3967, %v5889, 0
      %v5982 = vsel %vm3967, %v5890, 0
      %v5985 = vsel %vm3967, %v5891, 0
      %v5988 = vsel %vm3967, %v5892, 0
      %v5991 = vsel %vm3967, %v5893, 0
      %v5994 = vsel %vm3967, %v5897, 0
      %v5997 = vsel %vm3967, %v5898, 0
      %5999 = vmatprep.subr.mxu0 0.0
      %6000 = vmatpush1.msra.mxu0 %v5900
      %6001 = vmatprep.subr.mxu0 0.0
      %6002 = vmatpush1.msra.mxu0 %v5901
      %6003 = vmatprep.subr.mxu0 0.0
      %6004 = vmatpush1.msra.mxu0 %v5902
      %6005 = vmatprep.subr.mxu0 0.0
      %6006 = vmatpush1.msra.mxu0 0.0
      %6007 = vmatprep.subr.mxu0 0.0
      %6008 = vmatpush1.msra.mxu0 0.0
      %6009 = vmatprep.subr.mxu0 0.0
      %6010 = vmatpush1.msra.mxu0 0.0
      %6011 = vmatprep.subr.mxu0 0.0
      %6012 = vmatpush1.msra.mxu0 0.0
      %6013 = vmatprep.subr.mxu0 0.0
      %6014 = vmatpush1.msra.mxu0 0.0
      %6015 = vmatprep.subr.mxu0 0.0
      %6016 = vmatpush1.msra.mxu0 0.0
      %6017 = vmatprep.subr.mxu0 0.0
      %6018 = vmatpush1.msra.mxu0 0.0
      %6019 = vmatprep.subr.mxu0 0.0
      %6020 = vmatpush1.msra.mxu0 0.0
      %6021 = vmatprep.subr.mxu0 0.0
      %6022 = vmatpush1.msra.mxu0 0.0
      %6023 = vmatprep.subr.mxu0 0.0
      %6024 = vmatpush1.msra.mxu0 0.0
      %6025 = vmatprep.subr.mxu0 0.0
      %6026 = vmatpush1.msra.mxu0 0.0
      %6027 = vmatprep.subr.mxu0 0.0
      %6028 = vmatpush1.msra.mxu0 0.0
      %6029 = vmatprep.subr.mxu0 0.0
      %6030 = vmatpush1.msra.mxu0 0.0
      %6031 = vmatprep.subr.mxu0 0.0
      %6032 = vmatpush1.msra.mxu0 0.0
      %6033 = vmatprep.subr.mxu0 0.0
      %6034 = vmatpush1.msra.mxu0 0.0
      %6035 = vmatprep.subr.mxu0 0.0
      %6036 = vmatpush1.msra.mxu0 0.0
      %6037 = vmatprep.subr.mxu0 0.0
      %6038 = vmatpush1.msra.mxu0 0.0
      %6039 = vmatprep.subr.mxu0 0.0
      %6040 = vmatpush1.msra.mxu0 0.0
      %6041 = vmatprep.subr.mxu0 0.0
      %6042 = vmatpush1.msra.mxu0 0.0
      %6043 = vmatprep.subr.mxu0 0.0
      %6044 = vmatpush1.msra.mxu0 0.0
      %6045 = vmatprep.subr.mxu0 0.0
      %6046 = vmatpush1.msra.mxu0 0.0
      %6047 = vmatprep.subr.mxu0 0.0
      %6048 = vmatpush1.msra.mxu0 0.0
      %6049 = vmatprep.subr.mxu0 0.0
      %6050 = vmatpush1.msra.mxu0 0.0
      %6051 = vmatprep.subr.mxu0 0.0
      %6052 = vmatpush1.msra.mxu0 0.0
      %6053 = vmatprep.subr.mxu0 0.0
      %6054 = vmatpush1.msra.mxu0 0.0
      %6055 = vmatprep.subr.mxu0 0.0
      %6056 = vmatpush1.msra.mxu0 0.0
      %6057 = vmatprep.subr.mxu0 0.0
      %6058 = vmatpush1.msra.mxu0 0.0
      %6059 = vmatprep.subr.mxu0 0.0
      %6060 = vmatpush1.msra.mxu0 0.0
      %6061 = vmatprep.subr.mxu0 0.0
      %6062 = vmatpush1.msra.mxu0 0.0
      %6063 = vmatprep.mubr.f32.mxu0 0.0
      %6064 = vmatmul.mubr.f32.gmra.mrb[0].mxu0 %v5904
      %v6065 = vpop.f32.mrb[0].mxu0
      %v6066 = vadd.f32 0.0, %v6065
      %v6067 = vpop.f32.mrb[0].mxu0
      %6068 = vmatprep.mubr.f32.mxu0 0.0
      %6069 = vmatmul.mubr.f32.gmra.mrb[0].mxu0 %v5907
      %v6070 = vpop.f32.mrb[0].mxu0
      %v6071 = vadd.f32 0.0, %v6070
      %v6072 = vpop.f32.mrb[0].mxu0
      %6073 = vmatprep.mubr.f32.mxu0 0.0
      %6074 = vmatmul.mubr.f32.gmra.mrb[0].mxu0 %v5910
      %v6075 = vpop.f32.mrb[0].mxu0
      %v6076 = vadd.f32 0.0, %v6075
      %v6077 = vpop.f32.mrb[0].mxu0
      %6078 = vmatprep.mubr.f32.mxu0 0.0
      %6079 = vmatmul.mubr.f32.gmra.mrb[0].mxu0 %v5913
      %v6080 = vpop.f32.mrb[0].mxu0
      %v6081 = vadd.f32 0.0, %v6080
      %v6082 = vpop.f32.mrb[0].mxu0
      %6083 = vmatprep.mubr.f32.mxu0 0.0
      %6084 = vmatmul.mubr.f32.gmra.mrb[0].mxu0 %v5916
      %v6085 = vpop.f32.mrb[0].mxu0
      %v6086 = vadd.f32 0.0, %v6085
      %v6087 = vpop.f32.mrb[0].mxu0
      %6088 = vmatprep.mubr.f32.mxu0 0.0
      %6089 = vmatmul.mubr.f32.gmra.mrb[0].mxu0 %v5919
      %v6090 = vpop.f32.mrb[0].mxu0
      %v6091 = vadd.f32 0.0, %v6090
      %v6092 = vpop.f32.mrb[0].mxu0
      %6093 = vmatprep.mubr.f32.mxu0 0.0
      %6094 = vmatmul.mubr.f32.gmra.mrb[0].mxu0 %v5922
      %v6095 = vpop.f32.mrb[0].mxu0
      %v6096 = vadd.f32 0.0, %v6095
      %v6097 = vpop.f32.mrb[0].mxu0
      %6098 = vmatprep.mubr.f32.mxu0 0.0
      %6099 = vmatmul.mubr.f32.gmra.mrb[0].mxu0 %v5925
      %v6100 = vpop.f32.mrb[0].mxu0
      %v6101 = vadd.f32 0.0, %v6100
      %v6102 = vpop.f32.mrb[0].mxu0
      %6103 = vmatprep.mubr.f32.mxu0 0.0
      %6104 = vmatmul.mubr.f32.gmra.mrb[0].mxu0 %v5928
      %v6105 = vpop.f32.mrb[0].mxu0
      %v6106 = vadd.f32 0.0, %v6105
      %v6107 = vpop.f32.mrb[0].mxu0
      %6108 = vmatprep.mubr.f32.mxu0 0.0
      %6109 = vmatmul.mubr.f32.gmra.mrb[0].mxu0 %v5931
      %v6110 = vpop.f32.mrb[0].mxu0
      %v6111 = vadd.f32 0.0, %v6110
      %v6112 = vpop.f32.mrb[0].mxu0
      %6113 = vmatprep.mubr.f32.mxu0 0.0
      %6114 = vmatmul.mubr.f32.gmra.mrb[0].mxu0 %v5934
      %v6115 = vpop.f32.mrb[0].mxu0
      %v6116 = vadd.f32 0.0, %v6115
      %v6117 = vpop.f32.mrb[0].mxu0
      %6118 = vmatprep.mubr.f32.mxu0 0.0
      %6119 = vmatmul.mubr.f32.gmra.mrb[0].mxu0 %v5937
      %v6120 = vpop.f32.mrb[0].mxu0
      %v6121 = vadd.f32 0.0, %v6120
      %v6122 = vpop.f32.mrb[0].mxu0
      %6123 = vmatprep.mubr.f32.mxu0 0.0
      %6124 = vmatmul.mubr.f32.gmra.mrb[0].mxu0 %v5940
      %v6125 = vpop.f32.mrb[0].mxu0
      %v6126 = vadd.f32 0.0, %v6125
      %v6127 = vpop.f32.mrb[0].mxu0
      %6128 = vmatprep.mubr.f32.mxu0 0.0
      %6129 = vmatmul.mubr.f32.gmra.mrb[0].mxu0 %v5943
      %v6130 = vpop.f32.mrb[0].mxu0
      %v6131 = vadd.f32 0.0, %v6130
      %v6132 = vpop.f32.mrb[0].mxu0
      %6133 = vmatprep.mubr.f32.mxu0 0.0
      %6134 = vmatmul.mubr.f32.gmra.mrb[0].mxu0 %v5946
      %v6135 = vpop.f32.mrb[0].mxu0
      %v6136 = vadd.f32 0.0, %v6135
      %v6137 = vpop.f32.mrb[0].mxu0
      %6138 = vmatprep.mubr.f32.mxu0 0.0
      %6139 = vmatmul.mubr.f32.gmra.mrb[0].mxu0 %v5949
      %v6140 = vpop.f32.mrb[0].mxu0
      %v6141 = vadd.f32 0.0, %v6140
      %v6142 = vpop.f32.mrb[0].mxu0
      %6143 = vmatprep.mubr.f32.mxu0 0.0
      %6144 = vmatmul.mubr.f32.gmra.mrb[0].mxu0 %v5952
      %v6145 = vpop.f32.mrb[0].mxu0
      %v6146 = vadd.f32 0.0, %v6145
      %v6147 = vpop.f32.mrb[0].mxu0
      %6148 = vmatprep.mubr.f32.mxu0 0.0
      %6149 = vmatmul.mubr.f32.gmra.mrb[0].mxu0 %v5955
      %v6150 = vpop.f32.mrb[0].mxu0
      %v6151 = vadd.f32 0.0, %v6150
      %v6152 = vpop.f32.mrb[0].mxu0
      %6153 = vmatprep.mubr.f32.mxu0 0.0
      %6154 = vmatmul.mubr.f32.gmra.mrb[0].mxu0 %v5958
      %v6155 = vpop.f32.mrb[0].mxu0
      %v6156 = vadd.f32 0.0, %v6155
      %v6157 = vpop.f32.mrb[0].mxu0
      %6158 = vmatprep.mubr.f32.mxu0 0.0
      %6159 = vmatmul.mubr.f32.gmra.mrb[0].mxu0 %v5961
      %v6160 = vpop.f32.mrb[0].mxu0
      %v6161 = vadd.f32 0.0, %v6160
      %v6162 = vpop.f32.mrb[0].mxu0
      %6163 = vmatprep.mubr.f32.mxu0 0.0
      %6164 = vmatmul.mubr.f32.gmra.mrb[0].mxu0 %v5964
      %v6165 = vpop.f32.mrb[0].mxu0
      %v6166 = vadd.f32 0.0, %v6165
      %v6167 = vpop.f32.mrb[0].mxu0
      %6168 = vmatprep.mubr.f32.mxu0 0.0
      %6169 = vmatmul.mubr.f32.gmra.mrb[0].mxu0 %v5967
      %v6170 = vpop.f32.mrb[0].mxu0
      %v6171 = vadd.f32 0.0, %v6170
      %v6172 = vpop.f32.mrb[0].mxu0
      %6173 = vmatprep.mubr.f32.mxu0 0.0
      %6174 = vmatmul.mubr.f32.gmra.mrb[0].mxu0 %v5970
      %v6175 = vpop.f32.mrb[0].mxu0
      %v6176 = vadd.f32 0.0, %v6175
      %v6177 = vpop.f32.mrb[0].mxu0
      %6178 = vmatprep.mubr.f32.mxu0 0.0
      %6179 = vmatmul.mubr.f32.gmra.mrb[0].mxu0 %v5973
      %v6180 = vpop.f32.mrb[0].mxu0
      %v6181 = vadd.f32 0.0, %v6180
      %v6182 = vpop.f32.mrb[0].mxu0
      %6183 = vmatprep.mubr.f32.mxu0 0.0
      %6184 = vmatmul.mubr.f32.gmra.mrb[0].mxu0 %v5976
      %v6185 = vpop.f32.mrb[0].mxu0
      %v6186 = vadd.f32 0.0, %v6185
      %v6187 = vpop.f32.mrb[0].mxu0
      %6188 = vmatprep.mubr.f32.mxu0 0.0
      %6189 = vmatmul.mubr.f32.gmra.mrb[0].mxu0 %v5979
      %v6190 = vpop.f32.mrb[0].mxu0
      %v6191 = vadd.f32 0.0, %v6190
      %v6192 = vpop.f32.mrb[0].mxu0
      %6193 = vmatprep.mubr.f32.mxu0 0.0
      %6194 = vmatmul.mubr.f32.gmra.mrb[0].mxu0 %v5982
      %v6195 = vpop.f32.mrb[0].mxu0
      %v6196 = vadd.f32 0.0, %v6195
      %v6197 = vpop.f32.mrb[0].mxu0
      %6198 = vmatprep.mubr.f32.mxu0 0.0
      %6199 = vmatmul.mubr.f32.gmra.mrb[0].mxu0 %v5985
      %v6200 = vpop.f32.mrb[0].mxu0
      %v6201 = vadd.f32 0.0, %v6200
      %v6202 = vpop.f32.mrb[0].mxu0
      %6203 = vmatprep.mubr.f32.mxu0 0.0
      %6204 = vmatmul.mubr.f32.gmra.mrb[0].mxu0 %v5988
      %v6205 = vpop.f32.mrb[0].mxu0
      %v6206 = vadd.f32 0.0, %v6205
      %v6207 = vpop.f32.mrb[0].mxu0
      %6208 = vmatprep.mubr.f32.mxu0 0.0
      %6209 = vmatmul.mubr.f32.gmra.mrb[0].mxu0 %v5991
      %v6210 = vpop.f32.mrb[0].mxu0
      %v6211 = vadd.f32 0.0, %v6210
      %v6212 = vpop.f32.mrb[0].mxu0
      %6213 = vmatprep.mubr.f32.mxu0 0.0
      %6214 = vmatmul.mubr.f32.gmra.mrb[0].mxu0 %v5994
      %v6215 = vpop.f32.mrb[0].mxu0
      %v6216 = vadd.f32 0.0, %v6215
      %v6217 = vpop.f32.mrb[0].mxu0
      %6218 = vmatprep.mubr.f32.mxu0 0.0
      %6219 = vmatmul.mubr.f32.gmra.mrb[0].mxu0 %v5997
      %v6220 = vpop.f32.mrb[0].mxu0
      %v6221 = vadd.f32 0.0, %v6220
      %v6222 = vpop.f32.mrb[0].mxu0
      %6223 = vdwg.mxu0
      %v6225 = vsel %vm3967, %v5862, 0
      %v6228 = vsel %vm3967, %v5863, 0
      %6230 = vmatprep.subr.mxu0 0.0
      %6231 = vmatpush1.msra.mxu0 %v5894
      %6232 = vmatprep.subr.mxu0 0.0
      %6233 = vmatpush1.msra.mxu0 %v5895
      %6234 = vmatprep.subr.mxu0 0.0
      %6235 = vmatpush1.msra.mxu0 %v5896
      %6236 = vmatprep.subr.mxu0 0.0
      %6237 = vmatpush1.msra.mxu0 0.0
      %6238 = vmatprep.subr.mxu0 0.0
      %6239 = vmatpush1.msra.mxu0 0.0
      %6240 = vmatprep.subr.mxu0 0.0
      %6241 = vmatpush1.msra.mxu0 0.0
      %6242 = vmatprep.subr.mxu0 0.0
      %6243 = vmatpush1.msra.mxu0 0.0
      %6244 = vmatprep.subr.mxu0 0.0
      %6245 = vmatpush1.msra.mxu0 0.0
      %6246 = vmatprep.subr.mxu0 0.0
      %6247 = vmatpush1.msra.mxu0 0.0
      %6248 = vmatprep.subr.mxu0 0.0
      %6249 = vmatpush1.msra.mxu0 0.0
      %6250 = vmatprep.subr.mxu0 0.0
      %6251 = vmatpush1.msra.mxu0 0.0
      %6252 = vmatprep.subr.mxu0 0.0
      %6253 = vmatpush1.msra.mxu0 0.0
      %6254 = vmatprep.subr.mxu0 0.0
      %6255 = vmatpush1.msra.mxu0 0.0
      %6256 = vmatprep.subr.mxu0 0.0
      %6257 = vmatpush1.msra.mxu0 0.0
      %6258 = vmatprep.subr.mxu0 0.0
      %6259 = vmatpush1.msra.mxu0 0.0
      %6260 = vmatprep.subr.mxu0 0.0
      %6261 = vmatpush1.msra.mxu0 0.0
      %6262 = vmatprep.subr.mxu0 0.0
      %6263 = vmatpush1.msra.mxu0 0.0
      %6264 = vmatprep.subr.mxu0 0.0
      %6265 = vmatpush1.msra.mxu0 0.0
      %6266 = vmatprep.subr.mxu0 0.0
      %6267 = vmatpush1.msra.mxu0 0.0
      %6268 = vmatprep.subr.mxu0 0.0
      %6269 = vmatpush1.msra.mxu0 0.0
      %6270 = vmatprep.subr.mxu0 0.0
      %6271 = vmatpush1.msra.mxu0 0.0
      %6272 = vmatprep.subr.mxu0 0.0
      %6273 = vmatpush1.msra.mxu0 0.0
      %6274 = vmatprep.subr.mxu0 0.0
      %6275 = vmatpush1.msra.mxu0 0.0
      %6276 = vmatprep.subr.mxu0 0.0
      %6277 = vmatpush1.msra.mxu0 0.0
      %6278 = vmatprep.subr.mxu0 0.0
      %6279 = vmatpush1.msra.mxu0 0.0
      %6280 = vmatprep.subr.mxu0 0.0
      %6281 = vmatpush1.msra.mxu0 0.0
      %6282 = vmatprep.subr.mxu0 0.0
      %6283 = vmatpush1.msra.mxu0 0.0
      %6284 = vmatprep.subr.mxu0 0.0
      %6285 = vmatpush1.msra.mxu0 0.0
      %6286 = vmatprep.subr.mxu0 0.0
      %6287 = vmatpush1.msra.mxu0 0.0
      %6288 = vmatprep.subr.mxu0 0.0
      %6289 = vmatpush1.msra.mxu0 0.0
      %6290 = vmatprep.subr.mxu0 0.0
      %6291 = vmatpush1.msra.mxu0 0.0
      %6292 = vmatprep.subr.mxu0 0.0
      %6293 = vmatpush1.msra.mxu0 0.0
      %6294 = vmatprep.mubr.f32.mxu0 0.0
      %6295 = vmatmul.mubr.f32.gmra.mrb[0].mxu0 %v6225
      %v6296 = vpop.f32.mrb[0].mxu0
      %v6297 = vadd.f32 %v6066, %v6296
      %v6298 = vpop.f32.mrb[0].mxu0
      %6299 = vmatprep.mubr.f32.mxu0 0.0
      %6300 = vmatmul.mubr.f32.gmra.mrb[0].mxu0 %v6228
      %v6301 = vpop.f32.mrb[0].mxu0
      %v6302 = vadd.f32 %v6071, %v6301
      %v6303 = vpop.f32.mrb[0].mxu0
      %6304 = vmatprep.mubr.f32.mxu0 0.0
      %6305 = vmatmul.mubr.f32.gmra.mrb[0].mxu0 %v5904
      %v6306 = vpop.f32.mrb[0].mxu0
      %v6307 = vadd.f32 %v6076, %v6306
      %v6308 = vpop.f32.mrb[0].mxu0
      %6309 = vmatprep.mubr.f32.mxu0 0.0
      %6310 = vmatmul.mubr.f32.gmra.mrb[0].mxu0 %v5907
      %v6311 = vpop.f32.mrb[0].mxu0
      %v6312 = vadd.f32 %v6081, %v6311
      %v6313 = vpop.f32.mrb[0].mxu0
      %6314 = vmatprep.mubr.f32.mxu0 0.0
      %6315 = vmatmul.mubr.f32.gmra.mrb[0].mxu0 %v5910
      %v6316 = vpop.f32.mrb[0].mxu0
      %v6317 = vadd.f32 %v6086, %v6316
      %v6318 = vpop.f32.mrb[0].mxu0
      %6319 = vmatprep.mubr.f32.mxu0 0.0
      %6320 = vmatmul.mubr.f32.gmra.mrb[0].mxu0 %v5913
      %v6321 = vpop.f32.mrb[0].mxu0
      %v6322 = vadd.f32 %v6091, %v6321
      %v6323 = vpop.f32.mrb[0].mxu0
      %6324 = vmatprep.mubr.f32.mxu0 0.0
      %6325 = vmatmul.mubr.f32.gmra.mrb[0].mxu0 %v5916
      %v6326 = vpop.f32.mrb[0].mxu0
      %v6327 = vadd.f32 %v6096, %v6326
      %v6328 = vpop.f32.mrb[0].mxu0
      %6329 = vmatprep.mubr.f32.mxu0 0.0
      %6330 = vmatmul.mubr.f32.gmra.mrb[0].mxu0 %v5919
      %v6331 = vpop.f32.mrb[0].mxu0
      %v6332 = vadd.f32 %v6101, %v6331
      %v6333 = vpop.f32.mrb[0].mxu0
      %6334 = vmatprep.mubr.f32.mxu0 0.0
      %6335 = vmatmul.mubr.f32.gmra.mrb[0].mxu0 %v5922
      %v6336 = vpop.f32.mrb[0].mxu0
      %v6337 = vadd.f32 %v6106, %v6336
      %v6338 = vpop.f32.mrb[0].mxu0
      %6339 = vmatprep.mubr.f32.mxu0 0.0
      %6340 = vmatmul.mubr.f32.gmra.mrb[0].mxu0 %v5925
      %v6341 = vpop.f32.mrb[0].mxu0
      %v6342 = vadd.f32 %v6111, %v6341
      %v6343 = vpop.f32.mrb[0].mxu0
      %6344 = vmatprep.mubr.f32.mxu0 0.0
      %6345 = vmatmul.mubr.f32.gmra.mrb[0].mxu0 %v5928
      %v6346 = vpop.f32.mrb[0].mxu0
      %v6347 = vadd.f32 %v6116, %v6346
      %v6348 = vpop.f32.mrb[0].mxu0
      %6349 = vmatprep.mubr.f32.mxu0 0.0
      %6350 = vmatmul.mubr.f32.gmra.mrb[0].mxu0 %v5931
      %v6351 = vpop.f32.mrb[0].mxu0
      %v6352 = vadd.f32 %v6121, %v6351
      %v6353 = vpop.f32.mrb[0].mxu0
      %6354 = vmatprep.mubr.f32.mxu0 0.0
      %6355 = vmatmul.mubr.f32.gmra.mrb[0].mxu0 %v5934
      %v6356 = vpop.f32.mrb[0].mxu0
      %v6357 = vadd.f32 %v6126, %v6356
      %v6358 = vpop.f32.mrb[0].mxu0
      %6359 = vmatprep.mubr.f32.mxu0 0.0
      %6360 = vmatmul.mubr.f32.gmra.mrb[0].mxu0 %v5937
      %v6361 = vpop.f32.mrb[0].mxu0
      %v6362 = vadd.f32 %v6131, %v6361
      %v6363 = vpop.f32.mrb[0].mxu0
      %6364 = vmatprep.mubr.f32.mxu0 0.0
      %6365 = vmatmul.mubr.f32.gmra.mrb[0].mxu0 %v5940
      %v6366 = vpop.f32.mrb[0].mxu0
      %v6367 = vadd.f32 %v6136, %v6366
      %v6368 = vpop.f32.mrb[0].mxu0
      %6369 = vmatprep.mubr.f32.mxu0 0.0
      %6370 = vmatmul.mubr.f32.gmra.mrb[0].mxu0 %v5943
      %v6371 = vpop.f32.mrb[0].mxu0
      %v6372 = vadd.f32 %v6141, %v6371
      %v6373 = vpop.f32.mrb[0].mxu0
      %6374 = vmatprep.mubr.f32.mxu0 0.0
      %6375 = vmatmul.mubr.f32.gmra.mrb[0].mxu0 %v5946
      %v6376 = vpop.f32.mrb[0].mxu0
      %v6377 = vadd.f32 %v6146, %v6376
      %v6378 = vpop.f32.mrb[0].mxu0
      %6379 = vmatprep.mubr.f32.mxu0 0.0
      %6380 = vmatmul.mubr.f32.gmra.mrb[0].mxu0 %v5949
      %v6381 = vpop.f32.mrb[0].mxu0
      %v6382 = vadd.f32 %v6151, %v6381
      %v6383 = vpop.f32.mrb[0].mxu0
      %6384 = vmatprep.mubr.f32.mxu0 0.0
      %6385 = vmatmul.mubr.f32.gmra.mrb[0].mxu0 %v5952
      %v6386 = vpop.f32.mrb[0].mxu0
      %v6387 = vadd.f32 %v6156, %v6386
      %v6388 = vpop.f32.mrb[0].mxu0
      %6389 = vmatprep.mubr.f32.mxu0 0.0
      %6390 = vmatmul.mubr.f32.gmra.mrb[0].mxu0 %v5955
      %v6391 = vpop.f32.mrb[0].mxu0
      %v6392 = vadd.f32 %v6161, %v6391
      %v6393 = vpop.f32.mrb[0].mxu0
      %6394 = vmatprep.mubr.f32.mxu0 0.0
      %6395 = vmatmul.mubr.f32.gmra.mrb[0].mxu0 %v5958
      %v6396 = vpop.f32.mrb[0].mxu0
      %v6397 = vadd.f32 %v6166, %v6396
      %v6398 = vpop.f32.mrb[0].mxu0
      %6399 = vmatprep.mubr.f32.mxu0 0.0
      %6400 = vmatmul.mubr.f32.gmra.mrb[0].mxu0 %v5961
      %v6401 = vpop.f32.mrb[0].mxu0
      %v6402 = vadd.f32 %v6171, %v6401
      %v6403 = vpop.f32.mrb[0].mxu0
      %6404 = vmatprep.mubr.f32.mxu0 0.0
      %6405 = vmatmul.mubr.f32.gmra.mrb[0].mxu0 %v5964
      %v6406 = vpop.f32.mrb[0].mxu0
      %v6407 = vadd.f32 %v6176, %v6406
      %v6408 = vpop.f32.mrb[0].mxu0
      %6409 = vmatprep.mubr.f32.mxu0 0.0
      %6410 = vmatmul.mubr.f32.gmra.mrb[0].mxu0 %v5967
      %v6411 = vpop.f32.mrb[0].mxu0
      %v6412 = vadd.f32 %v6181, %v6411
      %v6413 = vpop.f32.mrb[0].mxu0
      %6414 = vmatprep.mubr.f32.mxu0 0.0
      %6415 = vmatmul.mubr.f32.gmra.mrb[0].mxu0 %v5970
      %v6416 = vpop.f32.mrb[0].mxu0
      %v6417 = vadd.f32 %v6186, %v6416
      %v6418 = vpop.f32.mrb[0].mxu0
      %6419 = vmatprep.mubr.f32.mxu0 0.0
      %6420 = vmatmul.mubr.f32.gmra.mrb[0].mxu0 %v5973
      %v6421 = vpop.f32.mrb[0].mxu0
      %v6422 = vadd.f32 %v6191, %v6421
      %v6423 = vpop.f32.mrb[0].mxu0
      %6424 = vmatprep.mubr.f32.mxu0 0.0
      %6425 = vmatmul.mubr.f32.gmra.mrb[0].mxu0 %v5976
      %v6426 = vpop.f32.mrb[0].mxu0
      %v6427 = vadd.f32 %v6196, %v6426
      %v6428 = vpop.f32.mrb[0].mxu0
      %6429 = vmatprep.mubr.f32.mxu0 0.0
      %6430 = vmatmul.mubr.f32.gmra.mrb[0].mxu0 %v5979
      %v6431 = vpop.f32.mrb[0].mxu0
      %v6432 = vadd.f32 %v6201, %v6431
      %v6433 = vpop.f32.mrb[0].mxu0
      %6434 = vmatprep.mubr.f32.mxu0 0.0
      %6435 = vmatmul.mubr.f32.gmra.mrb[0].mxu0 %v5982
      %v6436 = vpop.f32.mrb[0].mxu0
      %v6437 = vadd.f32 %v6206, %v6436
      %v6438 = vpop.f32.mrb[0].mxu0
      %6439 = vmatprep.mubr.f32.mxu0 0.0
      %6440 = vmatmul.mubr.f32.gmra.mrb[0].mxu0 %v5985
      %v6441 = vpop.f32.mrb[0].mxu0
      %v6442 = vadd.f32 %v6211, %v6441
      %v6443 = vpop.f32.mrb[0].mxu0
      %6444 = vmatprep.mubr.f32.mxu0 0.0
      %6445 = vmatmul.mubr.f32.gmra.mrb[0].mxu0 %v5988
      %v6446 = vpop.f32.mrb[0].mxu0
      %v6447 = vadd.f32 %v6216, %v6446
      %v6448 = vpop.f32.mrb[0].mxu0
      %6449 = vmatprep.mubr.f32.mxu0 0.0
      %6450 = vmatmul.mubr.f32.gmra.mrb[0].mxu0 %v5991
      %v6451 = vpop.f32.mrb[0].mxu0
      %v6452 = vadd.f32 %v6221, %v6451
      %v6453 = vpop.f32.mrb[0].mxu0
      %6454 = vdwg.mxu0
      %v6455 = vld [vmem:[#allocation2 + $0x20] sm:$0xff]
      %v6456 = vld [vmem:[#allocation2 + $0x28] sm:$0xff]
      %v6457 = vld [vmem:[#allocation2 + $0x30] sm:$0xff]
      %v6458 = vld [vmem:[#allocation2 + $0x38] sm:$0xff]
      %v6459 = vld [vmem:[#allocation2 + $0x40] sm:$0xff]
      %v6460 = vld [vmem:[#allocation2 + $0x48] sm:$0xff]
      %v6461 = vld [vmem:[#allocation2 + $0x50] sm:$0xff]
      %v6462 = vld [vmem:[#allocation2 + $0x58] sm:$0xff]
      %v6463 = vld [vmem:[#allocation2 + $0x60] sm:$0xff]
      %v6464 = vld [vmem:[#allocation2 + $0x68] sm:$0xff]
      %v6465 = vld [vmem:[#allocation2 + $0x70] sm:$0xff]
      %v6466 = vld [vmem:[#allocation2 + $0x78] sm:$0xff]
      %v6467 = vld [vmem:[#allocation2 + $0x80] sm:$0xff]
      %v6468 = vld [vmem:[#allocation2 + $0x88] sm:$0xff]
      %v6469 = vld [vmem:[#allocation2 + $0x90] sm:$0xff]
      %v6470 = vld [vmem:[#allocation2 + $0x98] sm:$0xff]
      %v6471 = vld [vmem:[#allocation2 + $0xa0] sm:$0xff]
      %v6472 = vld [vmem:[#allocation2 + $0xa8] sm:$0xff]
      %v6473 = vld [vmem:[#allocation2 + $0xb0] sm:$0xff]
      %v6474 = vld [vmem:[#allocation2 + $0xb8] sm:$0xff]
      %v6475 = vld [vmem:[#allocation2 + $0xc0] sm:$0xff]
      %v6476 = vld [vmem:[#allocation2 + $0xc8] sm:$0xff]
      %v6477 = vld [vmem:[#allocation2 + $0xd0] sm:$0xff]
      %v6478 = vld [vmem:[#allocation2 + $0xd8] sm:$0xff]
      %v6479 = vld [vmem:[#allocation2 + $0xe0] sm:$0xff]
      %v6480 = vld [vmem:[#allocation2 + $0xe8] sm:$0xff]
      %v6481 = vld [vmem:[#allocation2 + $0xf0] sm:$0xff]
      %v6482 = vld [vmem:[#allocation2 + $0xf8] sm:$0xff]
      %v6483 = vld [vmem:[#allocation2 + $0x100] sm:$0xff]
      %v6484 = vld [vmem:[#allocation2 + $0x108] sm:$0xff]
      %v6485 = vld [vmem:[#allocation2 + $0x110] sm:$0xff]
      %v6486 = vld [vmem:[#allocation2 + $0x118] sm:$0xff]
      %s6487 = scalar_lea.vmem %s5, 48
      %v6488 = vld [vmem:[%s6487] sm:$0xff]
      %v6489 = vld [vmem:[%s6487 + $0x8] sm:$0xff]
      %v6490 = vld [vmem:[%s6487 + $0x10] sm:$0xff]
      %v6492 = vsel %vm3967, %v6455, 0
      %v6495 = vsel %vm3967, %v6456, 0
      %v6498 = vsel %vm3967, %v6457, 0
      %v6501 = vsel %vm3967, %v6458, 0
      %v6504 = vsel %vm3967, %v6459, 0
      %v6507 = vsel %vm3967, %v6460, 0
      %v6510 = vsel %vm3967, %v6461, 0
      %v6513 = vsel %vm3967, %v6462, 0
      %v6516 = vsel %vm3967, %v6463, 0
      %v6519 = vsel %vm3967, %v6464, 0
      %v6522 = vsel %vm3967, %v6465, 0
      %v6525 = vsel %vm3967, %v6466, 0
      %v6528 = vsel %vm3967, %v6467, 0
      %v6531 = vsel %vm3967, %v6468, 0
      %v6534 = vsel %vm3967, %v6469, 0
      %v6537 = vsel %vm3967, %v6470, 0
      %v6540 = vsel %vm3967, %v6471, 0
      %v6543 = vsel %vm3967, %v6472, 0
      %v6546 = vsel %vm3967, %v6473, 0
      %v6549 = vsel %vm3967, %v6474, 0
      %v6552 = vsel %vm3967, %v6475, 0
      %v6555 = vsel %vm3967, %v6476, 0
      %v6558 = vsel %vm3967, %v6477, 0
      %v6561 = vsel %vm3967, %v6478, 0
      %v6564 = vsel %vm3967, %v6479, 0
      %v6567 = vsel %vm3967, %v6480, 0
      %v6570 = vsel %vm3967, %v6481, 0
      %v6573 = vsel %vm3967, %v6482, 0
      %v6576 = vsel %vm3967, %v6483, 0
      %v6579 = vsel %vm3967, %v6484, 0
      %v6582 = vsel %vm3967, %v6485, 0
      %v6585 = vsel %vm3967, %v6486, 0
      %6587 = vmatprep.subr.mxu0 0.0
      %6588 = vmatpush1.msra.mxu0 %v6488
      %6589 = vmatprep.subr.mxu0 0.0
      %6590 = vmatpush1.msra.mxu0 %v6489
      %6591 = vmatprep.subr.mxu0 0.0
      %6592 = vmatpush1.msra.mxu0 %v6490
      %6593 = vmatprep.subr.mxu0 0.0
      %6594 = vmatpush1.msra.mxu0 0.0
      %6595 = vmatprep.subr.mxu0 0.0
      %6596 = vmatpush1.msra.mxu0 0.0
      %6597 = vmatprep.subr.mxu0 0.0
      %6598 = vmatpush1.msra.mxu0 0.0
      %6599 = vmatprep.subr.mxu0 0.0
      %6600 = vmatpush1.msra.mxu0 0.0
      %6601 = vmatprep.subr.mxu0 0.0
      %6602 = vmatpush1.msra.mxu0 0.0
      %6603 = vmatprep.subr.mxu0 0.0
      %6604 = vmatpush1.msra.mxu0 0.0
      %6605 = vmatprep.subr.mxu0 0.0
      %6606 = vmatpush1.msra.mxu0 0.0
      %6607 = vmatprep.subr.mxu0 0.0
      %6608 = vmatpush1.msra.mxu0 0.0
      %6609 = vmatprep.subr.mxu0 0.0
      %6610 = vmatpush1.msra.mxu0 0.0
      %6611 = vmatprep.subr.mxu0 0.0
      %6612 = vmatpush1.msra.mxu0 0.0
      %6613 = vmatprep.subr.mxu0 0.0
      %6614 = vmatpush1.msra.mxu0 0.0
      %6615 = vmatprep.subr.mxu0 0.0
      %6616 = vmatpush1.msra.mxu0 0.0
      %6617 = vmatprep.subr.mxu0 0.0
      %6618 = vmatpush1.msra.mxu0 0.0
      %6619 = vmatprep.subr.mxu0 0.0
      %6620 = vmatpush1.msra.mxu0 0.0
      %6621 = vmatprep.subr.mxu0 0.0
      %6622 = vmatpush1.msra.mxu0 0.0
      %6623 = vmatprep.subr.mxu0 0.0
      %6624 = vmatpush1.msra.mxu0 0.0
      %6625 = vmatprep.subr.mxu0 0.0
      %6626 = vmatpush1.msra.mxu0 0.0
      %6627 = vmatprep.subr.mxu0 0.0
      %6628 = vmatpush1.msra.mxu0 0.0
      %6629 = vmatprep.subr.mxu0 0.0
      %6630 = vmatpush1.msra.mxu0 0.0
      %6631 = vmatprep.subr.mxu0 0.0
      %6632 = vmatpush1.msra.mxu0 0.0
      %6633 = vmatprep.subr.mxu0 0.0
      %6634 = vmatpush1.msra.mxu0 0.0
      %6635 = vmatprep.subr.mxu0 0.0
      %6636 = vmatpush1.msra.mxu0 0.0
      %6637 = vmatprep.subr.mxu0 0.0
      %6638 = vmatpush1.msra.mxu0 0.0
      %6639 = vmatprep.subr.mxu0 0.0
      %6640 = vmatpush1.msra.mxu0 0.0
      %6641 = vmatprep.subr.mxu0 0.0
      %6642 = vmatpush1.msra.mxu0 0.0
      %6643 = vmatprep.subr.mxu0 0.0
      %6644 = vmatpush1.msra.mxu0 0.0
      %6645 = vmatprep.subr.mxu0 0.0
      %6646 = vmatpush1.msra.mxu0 0.0
      %6647 = vmatprep.subr.mxu0 0.0
      %6648 = vmatpush1.msra.mxu0 0.0
      %6649 = vmatprep.subr.mxu0 0.0
      %6650 = vmatpush1.msra.mxu0 0.0
      %6651 = vmatprep.mubr.f32.mxu0 0.0
      %6652 = vmatmul.mubr.f32.gmra.mrb[0].mxu0 %v6492
      %v6653 = vpop.f32.mrb[0].mxu0
      %v6654 = vadd.f32 0.0, %v6653
      %v6655 = vpop.f32.mrb[0].mxu0
      %6656 = vmatprep.mubr.f32.mxu0 0.0
      %6657 = vmatmul.mubr.f32.gmra.mrb[0].mxu0 %v6495
      %v6658 = vpop.f32.mrb[0].mxu0
      %v6659 = vadd.f32 0.0, %v6658
      %v6660 = vpop.f32.mrb[0].mxu0
      %6661 = vmatprep.mubr.f32.mxu0 0.0
      %6662 = vmatmul.mubr.f32.gmra.mrb[0].mxu0 %v6498
      %v6663 = vpop.f32.mrb[0].mxu0
      %v6664 = vadd.f32 0.0, %v6663
      %v6665 = vpop.f32.mrb[0].mxu0
      %6666 = vmatprep.mubr.f32.mxu0 0.0
      %6667 = vmatmul.mubr.f32.gmra.mrb[0].mxu0 %v6501
      %v6668 = vpop.f32.mrb[0].mxu0
      %v6669 = vadd.f32 0.0, %v6668
      %v6670 = vpop.f32.mrb[0].mxu0
      %6671 = vmatprep.mubr.f32.mxu0 0.0
      %6672 = vmatmul.mubr.f32.gmra.mrb[0].mxu0 %v6504
      %v6673 = vpop.f32.mrb[0].mxu0
      %v6674 = vadd.f32 0.0, %v6673
      %v6675 = vpop.f32.mrb[0].mxu0
      %6676 = vmatprep.mubr.f32.mxu0 0.0
      %6677 = vmatmul.mubr.f32.gmra.mrb[0].mxu0 %v6507
      %v6678 = vpop.f32.mrb[0].mxu0
      %v6679 = vadd.f32 0.0, %v6678
      %v6680 = vpop.f32.mrb[0].mxu0
      %6681 = vmatprep.mubr.f32.mxu0 0.0
      %6682 = vmatmul.mubr.f32.gmra.mrb[0].mxu0 %v6510
      %v6683 = vpop.f32.mrb[0].mxu0
      %v6684 = vadd.f32 0.0, %v6683
      %v6685 = vpop.f32.mrb[0].mxu0
      %6686 = vmatprep.mubr.f32.mxu0 0.0
      %6687 = vmatmul.mubr.f32.gmra.mrb[0].mxu0 %v6513
      %v6688 = vpop.f32.mrb[0].mxu0
      %v6689 = vadd.f32 0.0, %v6688
      %v6690 = vpop.f32.mrb[0].mxu0
      %6691 = vmatprep.mubr.f32.mxu0 0.0
      %6692 = vmatmul.mubr.f32.gmra.mrb[0].mxu0 %v6516
      %v6693 = vpop.f32.mrb[0].mxu0
      %v6694 = vadd.f32 0.0, %v6693
      %v6695 = vpop.f32.mrb[0].mxu0
      %6696 = vmatprep.mubr.f32.mxu0 0.0
      %6697 = vmatmul.mubr.f32.gmra.mrb[0].mxu0 %v6519
      %v6698 = vpop.f32.mrb[0].mxu0
      %v6699 = vadd.f32 0.0, %v6698
      %v6700 = vpop.f32.mrb[0].mxu0
      %6701 = vmatprep.mubr.f32.mxu0 0.0
      %6702 = vmatmul.mubr.f32.gmra.mrb[0].mxu0 %v6522
      %v6703 = vpop.f32.mrb[0].mxu0
      %v6704 = vadd.f32 0.0, %v6703
      %v6705 = vpop.f32.mrb[0].mxu0
      %6706 = vmatprep.mubr.f32.mxu0 0.0
      %6707 = vmatmul.mubr.f32.gmra.mrb[0].mxu0 %v6525
      %v6708 = vpop.f32.mrb[0].mxu0
      %v6709 = vadd.f32 0.0, %v6708
      %v6710 = vpop.f32.mrb[0].mxu0
      %6711 = vmatprep.mubr.f32.mxu0 0.0
      %6712 = vmatmul.mubr.f32.gmra.mrb[0].mxu0 %v6528
      %v6713 = vpop.f32.mrb[0].mxu0
      %v6714 = vadd.f32 0.0, %v6713
      %v6715 = vpop.f32.mrb[0].mxu0
      %6716 = vmatprep.mubr.f32.mxu0 0.0
      %6717 = vmatmul.mubr.f32.gmra.mrb[0].mxu0 %v6531
      %v6718 = vpop.f32.mrb[0].mxu0
      %v6719 = vadd.f32 0.0, %v6718
      %v6720 = vpop.f32.mrb[0].mxu0
      %6721 = vmatprep.mubr.f32.mxu0 0.0
      %6722 = vmatmul.mubr.f32.gmra.mrb[0].mxu0 %v6534
      %v6723 = vpop.f32.mrb[0].mxu0
      %v6724 = vadd.f32 0.0, %v6723
      %v6725 = vpop.f32.mrb[0].mxu0
      %6726 = vmatprep.mubr.f32.mxu0 0.0
      %6727 = vmatmul.mubr.f32.gmra.mrb[0].mxu0 %v6537
      %v6728 = vpop.f32.mrb[0].mxu0
      %v6729 = vadd.f32 0.0, %v6728
      %v6730 = vpop.f32.mrb[0].mxu0
      %6731 = vmatprep.mubr.f32.mxu0 0.0
      %6732 = vmatmul.mubr.f32.gmra.mrb[0].mxu0 %v6540
      %v6733 = vpop.f32.mrb[0].mxu0
      %v6734 = vadd.f32 0.0, %v6733
      %v6735 = vpop.f32.mrb[0].mxu0
      %6736 = vmatprep.mubr.f32.mxu0 0.0
      %6737 = vmatmul.mubr.f32.gmra.mrb[0].mxu0 %v6543
      %v6738 = vpop.f32.mrb[0].mxu0
      %v6739 = vadd.f32 0.0, %v6738
      %v6740 = vpop.f32.mrb[0].mxu0
      %6741 = vmatprep.mubr.f32.mxu0 0.0
      %6742 = vmatmul.mubr.f32.gmra.mrb[0].mxu0 %v6546
      %v6743 = vpop.f32.mrb[0].mxu0
      %v6744 = vadd.f32 0.0, %v6743
      %v6745 = vpop.f32.mrb[0].mxu0
      %6746 = vmatprep.mubr.f32.mxu0 0.0
      %6747 = vmatmul.mubr.f32.gmra.mrb[0].mxu0 %v6549
      %v6748 = vpop.f32.mrb[0].mxu0
      %v6749 = vadd.f32 0.0, %v6748
      %v6750 = vpop.f32.mrb[0].mxu0
      %6751 = vmatprep.mubr.f32.mxu0 0.0
      %6752 = vmatmul.mubr.f32.gmra.mrb[0].mxu0 %v6552
      %v6753 = vpop.f32.mrb[0].mxu0
      %v6754 = vadd.f32 0.0, %v6753
      %v6755 = vpop.f32.mrb[0].mxu0
      %6756 = vmatprep.mubr.f32.mxu0 0.0
      %6757 = vmatmul.mubr.f32.gmra.mrb[0].mxu0 %v6555
      %v6758 = vpop.f32.mrb[0].mxu0
      %v6759 = vadd.f32 0.0, %v6758
      %v6760 = vpop.f32.mrb[0].mxu0
      %6761 = vmatprep.mubr.f32.mxu0 0.0
      %6762 = vmatmul.mubr.f32.gmra.mrb[0].mxu0 %v6558
      %v6763 = vpop.f32.mrb[0].mxu0
      %v6764 = vadd.f32 0.0, %v6763
      %v6765 = vpop.f32.mrb[0].mxu0
      %6766 = vmatprep.mubr.f32.mxu0 0.0
      %6767 = vmatmul.mubr.f32.gmra.mrb[0].mxu0 %v6561
      %v6768 = vpop.f32.mrb[0].mxu0
      %v6769 = vadd.f32 0.0, %v6768
      %v6770 = vpop.f32.mrb[0].mxu0
      %6771 = vmatprep.mubr.f32.mxu0 0.0
      %6772 = vmatmul.mubr.f32.gmra.mrb[0].mxu0 %v6564
      %v6773 = vpop.f32.mrb[0].mxu0
      %v6774 = vadd.f32 0.0, %v6773
      %v6775 = vpop.f32.mrb[0].mxu0
      %6776 = vmatprep.mubr.f32.mxu0 0.0
      %6777 = vmatmul.mubr.f32.gmra.mrb[0].mxu0 %v6567
      %v6778 = vpop.f32.mrb[0].mxu0
      %v6779 = vadd.f32 0.0, %v6778
      %v6780 = vpop.f32.mrb[0].mxu0
      %6781 = vmatprep.mubr.f32.mxu0 0.0
      %6782 = vmatmul.mubr.f32.gmra.mrb[0].mxu0 %v6570
      %v6783 = vpop.f32.mrb[0].mxu0
      %v6784 = vadd.f32 0.0, %v6783
      %v6785 = vpop.f32.mrb[0].mxu0
      %6786 = vmatprep.mubr.f32.mxu0 0.0
      %6787 = vmatmul.mubr.f32.gmra.mrb[0].mxu0 %v6573
      %v6788 = vpop.f32.mrb[0].mxu0
      %v6789 = vadd.f32 0.0, %v6788
      %v6790 = vpop.f32.mrb[0].mxu0
      %6791 = vmatprep.mubr.f32.mxu0 0.0
      %6792 = vmatmul.mubr.f32.gmra.mrb[0].mxu0 %v6576
      %v6793 = vpop.f32.mrb[0].mxu0
      %v6794 = vadd.f32 0.0, %v6793
      %v6795 = vpop.f32.mrb[0].mxu0
      %6796 = vmatprep.mubr.f32.mxu0 0.0
      %6797 = vmatmul.mubr.f32.gmra.mrb[0].mxu0 %v6579
      %v6798 = vpop.f32.mrb[0].mxu0
      %v6799 = vadd.f32 0.0, %v6798
      %v6800 = vpop.f32.mrb[0].mxu0
      %6801 = vmatprep.mubr.f32.mxu0 0.0
      %6802 = vmatmul.mubr.f32.gmra.mrb[0].mxu0 %v6582
      %v6803 = vpop.f32.mrb[0].mxu0
      %v6804 = vadd.f32 0.0, %v6803
      %v6805 = vpop.f32.mrb[0].mxu0
      %6806 = vmatprep.mubr.f32.mxu0 0.0
      %6807 = vmatmul.mubr.f32.gmra.mrb[0].mxu0 %v6585
      %v6808 = vpop.f32.mrb[0].mxu0
      %v6809 = vadd.f32 0.0, %v6808
      %v6810 = vpop.f32.mrb[0].mxu0
      %6811 = vdwg.mxu0
      %v6812 = vadd.f32 %v6297, %v6654
      %v6813 = vadd.f32 %v6302, %v6659
      %v6814 = vadd.f32 %v6307, %v6664
      %v6815 = vadd.f32 %v6312, %v6669
      %v6816 = vadd.f32 %v6317, %v6674
      %v6817 = vadd.f32 %v6322, %v6679
      %v6818 = vadd.f32 %v6327, %v6684
      %v6819 = vadd.f32 %v6332, %v6689
      %v6820 = vadd.f32 %v6337, %v6694
      %v6821 = vadd.f32 %v6342, %v6699
      %v6822 = vadd.f32 %v6347, %v6704
      %v6823 = vadd.f32 %v6352, %v6709
      %v6824 = vadd.f32 %v6357, %v6714
      %v6825 = vadd.f32 %v6362, %v6719
      %v6826 = vadd.f32 %v6367, %v6724
      %v6827 = vadd.f32 %v6372, %v6729
      %v6828 = vadd.f32 %v6377, %v6734
      %v6829 = vadd.f32 %v6382, %v6739
      %v6830 = vadd.f32 %v6387, %v6744
      %v6831 = vadd.f32 %v6392, %v6749
      %v6832 = vadd.f32 %v6397, %v6754
      %v6833 = vadd.f32 %v6402, %v6759
      %v6834 = vadd.f32 %v6407, %v6764
      %v6835 = vadd.f32 %v6412, %v6769
      %v6836 = vadd.f32 %v6417, %v6774
      %v6837 = vadd.f32 %v6422, %v6779
      %v6838 = vadd.f32 %v6427, %v6784
      %v6839 = vadd.f32 %v6432, %v6789
      %v6840 = vadd.f32 %v6437, %v6794
      %v6841 = vadd.f32 %v6442, %v6799
      %v6842 = vadd.f32 %v6447, %v6804
      %v6843 = vadd.f32 %v6452, %v6809
      %v6844 = vld [vmem:[%s6] sm:$0x1]
      %v6846 = vlaneseq
      %v6847 = vshrl.u32 %v6846, 7
      %v6848 = vsub.s32 0, %v6847
      %v6849 = vrot.slane %v6844, %v6848
      %v6851 = vadd.f32 %v6812, %v6849
      %v6852 = vadd.f32 %v6813, %v6849
      %v6853 = vadd.f32 %v6814, %v6849
      %v6854 = vadd.f32 %v6815, %v6849
      %v6855 = vadd.f32 %v6816, %v6849
      %v6856 = vadd.f32 %v6817, %v6849
      %v6857 = vadd.f32 %v6818, %v6849
      %v6858 = vadd.f32 %v6819, %v6849
      %v6859 = vadd.f32 %v6820, %v6849
      %v6860 = vadd.f32 %v6821, %v6849
      %v6861 = vadd.f32 %v6822, %v6849
      %v6862 = vadd.f32 %v6823, %v6849
      %v6863 = vadd.f32 %v6824, %v6849
      %v6864 = vadd.f32 %v6825, %v6849
      %v6865 = vadd.f32 %v6826, %v6849
      %v6866 = vadd.f32 %v6827, %v6849
      %v6867 = vadd.f32 %v6828, %v6849
      %v6868 = vadd.f32 %v6829, %v6849
      %v6869 = vadd.f32 %v6830, %v6849
      %v6870 = vadd.f32 %v6831, %v6849
      %v6871 = vadd.f32 %v6832, %v6849
      %v6872 = vadd.f32 %v6833, %v6849
      %v6873 = vadd.f32 %v6834, %v6849
      %v6874 = vadd.f32 %v6835, %v6849
      %v6875 = vadd.f32 %v6836, %v6849
      %v6876 = vadd.f32 %v6837, %v6849
      %v6877 = vadd.f32 %v6838, %v6849
      %v6878 = vadd.f32 %v6839, %v6849
      %v6879 = vadd.f32 %v6840, %v6849
      %v6880 = vadd.f32 %v6841, %v6849
      %v6881 = vadd.f32 %v6842, %v6849
      %v6882 = vadd.f32 %v6843, %v6849
      %v6883 = vmax.f32 %v6851, 0.0
      %v6884 = vmax.f32 %v6852, 0.0
      %v6885 = vmax.f32 %v6853, 0.0
      %v6886 = vmax.f32 %v6854, 0.0
      %v6887 = vmax.f32 %v6855, 0.0
      %v6888 = vmax.f32 %v6856, 0.0
      %v6889 = vmax.f32 %v6857, 0.0
      %v6890 = vmax.f32 %v6858, 0.0
      %v6891 = vmax.f32 %v6859, 0.0
      %v6892 = vmax.f32 %v6860, 0.0
      %v6893 = vmax.f32 %v6861, 0.0
      %v6894 = vmax.f32 %v6862, 0.0
      %v6895 = vmax.f32 %v6863, 0.0
      %v6896 = vmax.f32 %v6864, 0.0
      %v6897 = vmax.f32 %v6865, 0.0
      %v6898 = vmax.f32 %v6866, 0.0
      %v6899 = vmax.f32 %v6867, 0.0
      %v6900 = vmax.f32 %v6868, 0.0
      %v6901 = vmax.f32 %v6869, 0.0
      %v6902 = vmax.f32 %v6870, 0.0
      %v6903 = vmax.f32 %v6871, 0.0
      %v6904 = vmax.f32 %v6872, 0.0
      %v6905 = vmax.f32 %v6873, 0.0
      %v6906 = vmax.f32 %v6874, 0.0
      %v6907 = vmax.f32 %v6875, 0.0
      %v6908 = vmax.f32 %v6876, 0.0
      %v6909 = vmax.f32 %v6877, 0.0
      %v6910 = vmax.f32 %v6878, 0.0
      %v6911 = vmax.f32 %v6879, 0.0
      %v6912 = vmax.f32 %v6880, 0.0
      %v6913 = vmax.f32 %v6881, 0.0
      %v6914 = vmax.f32 %v6882, 0.0
      %6947 = vrot.lane.b32.xlu0 %v6883, 8
      %v6948 = vpop.permute.xlu0 %6947
      %6949 = vrot.lane.b32.xlu0 %v6884, 8
      %v6950 = vpop.permute.xlu0 %6949
      %6951 = vrot.lane.b32.xlu0 %v6885, 8
      %v6952 = vpop.permute.xlu0 %6951
      %6953 = vrot.lane.b32.xlu0 %v6886, 8
      %v6954 = vpop.permute.xlu0 %6953
      %6955 = vrot.lane.b32.xlu0 %v6887, 8
      %v6956 = vpop.permute.xlu0 %6955
      %6957 = vrot.lane.b32.xlu0 %v6888, 8
      %v6958 = vpop.permute.xlu0 %6957
      %6959 = vrot.lane.b32.xlu0 %v6889, 8
      %v6960 = vpop.permute.xlu0 %6959
      %6961 = vrot.lane.b32.xlu0 %v6890, 8
      %v6962 = vpop.permute.xlu0 %6961
      %6963 = vrot.lane.b32.xlu0 %v6891, 8
      %v6964 = vpop.permute.xlu0 %6963
      %6965 = vrot.lane.b32.xlu0 %v6892, 8
      %v6966 = vpop.permute.xlu0 %6965
      %6967 = vrot.lane.b32.xlu0 %v6893, 8
      %v6968 = vpop.permute.xlu0 %6967
      %6969 = vrot.lane.b32.xlu0 %v6894, 8
      %v6970 = vpop.permute.xlu0 %6969
      %6971 = vrot.lane.b32.xlu0 %v6895, 8
      %v6972 = vpop.permute.xlu0 %6971
      %6973 = vrot.lane.b32.xlu0 %v6896, 8
      %v6974 = vpop.permute.xlu0 %6973
      %6975 = vrot.lane.b32.xlu0 %v6897, 8
      %v6976 = vpop.permute.xlu0 %6975
      %6977 = vrot.lane.b32.xlu0 %v6898, 8
      %v6978 = vpop.permute.xlu0 %6977
      %6979 = vrot.lane.b32.xlu0 %v6899, 8
      %v6980 = vpop.permute.xlu0 %6979
      %6981 = vrot.lane.b32.xlu0 %v6900, 8
      %v6982 = vpop.permute.xlu0 %6981
      %6983 = vrot.lane.b32.xlu0 %v6901, 8
      %v6984 = vpop.permute.xlu0 %6983
      %6985 = vrot.lane.b32.xlu0 %v6902, 8
      %v6986 = vpop.permute.xlu0 %6985
      %6987 = vrot.lane.b32.xlu0 %v6903, 8
      %v6988 = vpop.permute.xlu0 %6987
      %6989 = vrot.lane.b32.xlu0 %v6904, 8
      %v6990 = vpop.permute.xlu0 %6989
      %6991 = vrot.lane.b32.xlu0 %v6905, 8
      %v6992 = vpop.permute.xlu0 %6991
      %6993 = vrot.lane.b32.xlu0 %v6906, 8
      %v6994 = vpop.permute.xlu0 %6993
      %6995 = vrot.lane.b32.xlu0 %v6907, 8
      %v6996 = vpop.permute.xlu0 %6995
      %6997 = vrot.lane.b32.xlu0 %v6908, 8
      %v6998 = vpop.permute.xlu0 %6997
      %6999 = vrot.lane.b32.xlu0 %v6909, 8
      %v7000 = vpop.permute.xlu0 %6999
      %7001 = vrot.lane.b32.xlu0 %v6910, 8
      %v7002 = vpop.permute.xlu0 %7001
      %7003 = vrot.lane.b32.xlu0 %v6911, 8
      %v7004 = vpop.permute.xlu0 %7003
      %7005 = vrot.lane.b32.xlu0 %v6912, 8
      %v7006 = vpop.permute.xlu0 %7005
      %7007 = vrot.lane.b32.xlu0 %v6913, 8
      %v7008 = vpop.permute.xlu0 %7007
      %7009 = vrot.lane.b32.xlu0 %v6914, 8
      %v7010 = vpop.permute.xlu0 %7009
      %7043 = vst.msk [vmem:[#allocation2 + $0x10] sm:$0xff] %vm879, %v6948
      %7044 = vst.msk [vmem:[#allocation2 + $0x18] sm:$0xff] %vm879, %v6950
      %7045 = vst.msk [vmem:[#allocation2 + $0x20] sm:$0xff] %vm879, %v6952
      %7046 = vst.msk [vmem:[#allocation2 + $0x28] sm:$0xff] %vm879, %v6954
      %7047 = vst.msk [vmem:[#allocation2 + $0x30] sm:$0xff] %vm879, %v6956
      %7048 = vst.msk [vmem:[#allocation2 + $0x38] sm:$0xff] %vm879, %v6958
      %7049 = vst.msk [vmem:[#allocation2 + $0x40] sm:$0xff] %vm879, %v6960
      %7050 = vst.msk [vmem:[#allocation2 + $0x48] sm:$0xff] %vm879, %v6962
      %7051 = vst.msk [vmem:[#allocation2 + $0x50] sm:$0xff] %vm879, %v6964
      %7052 = vst.msk [vmem:[#allocation2 + $0x58] sm:$0xff] %vm879, %v6966
      %7053 = vst.msk [vmem:[#allocation2 + $0x60] sm:$0xff] %vm879, %v6968
      %7054 = vst.msk [vmem:[#allocation2 + $0x68] sm:$0xff] %vm879, %v6970
      %7055 = vst.msk [vmem:[#allocation2 + $0x70] sm:$0xff] %vm879, %v6972
      %7056 = vst.msk [vmem:[#allocation2 + $0x78] sm:$0xff] %vm879, %v6974
      %7057 = vst.msk [vmem:[#allocation2 + $0x80] sm:$0xff] %vm879, %v6976
      %7058 = vst.msk [vmem:[#allocation2 + $0x88] sm:$0xff] %vm879, %v6978
      %7059 = vst.msk [vmem:[#allocation2 + $0x90] sm:$0xff] %vm879, %v6980
      %7060 = vst.msk [vmem:[#allocation2 + $0x98] sm:$0xff] %vm879, %v6982
      %7061 = vst.msk [vmem:[#allocation2 + $0xa0] sm:$0xff] %vm879, %v6984
      %7062 = vst.msk [vmem:[#allocation2 + $0xa8] sm:$0xff] %vm879, %v6986
      %7063 = vst.msk [vmem:[#allocation2 + $0xb0] sm:$0xff] %vm879, %v6988
      %7064 = vst.msk [vmem:[#allocation2 + $0xb8] sm:$0xff] %vm879, %v6990
      %7065 = vst.msk [vmem:[#allocation2 + $0xc0] sm:$0xff] %vm879, %v6992
      %7066 = vst.msk [vmem:[#allocation2 + $0xc8] sm:$0xff] %vm879, %v6994
      %7067 = vst.msk [vmem:[#allocation2 + $0xd0] sm:$0xff] %vm879, %v6996
      %7068 = vst.msk [vmem:[#allocation2 + $0xd8] sm:$0xff] %vm879, %v6998
      %7069 = vst.msk [vmem:[#allocation2 + $0xe0] sm:$0xff] %vm879, %v7000
      %7070 = vst.msk [vmem:[#allocation2 + $0xe8] sm:$0xff] %vm879, %v7002
      %7071 = vst.msk [vmem:[#allocation2 + $0xf0] sm:$0xff] %vm879, %v7004
      %7072 = vst.msk [vmem:[#allocation2 + $0xf8] sm:$0xff] %vm879, %v7006
      %7073 = vst.msk [vmem:[#allocation2 + $0x100] sm:$0xff] %vm879, %v7008
      %7074 = vst.msk [vmem:[#allocation2 + $0x108] sm:$0xff] %vm879, %v7010
      %v7075 = vld [vmem:[#allocation2] sm:$0xff]
      %v7076 = vld [vmem:[#allocation2 + $0x8] sm:$0xff]
      %v7077 = vld [vmem:[#allocation2 + $0x10] sm:$0xff]
      %v7078 = vld [vmem:[#allocation2 + $0x18] sm:$0xff]
      %v7079 = vld [vmem:[#allocation2 + $0x20] sm:$0xff]
      %v7080 = vld [vmem:[#allocation2 + $0x28] sm:$0xff]
      %v7081 = vld [vmem:[#allocation2 + $0x30] sm:$0xff]
      %v7082 = vld [vmem:[#allocation2 + $0x38] sm:$0xff]
      %v7083 = vld [vmem:[#allocation2 + $0x40] sm:$0xff]
      %v7084 = vld [vmem:[#allocation2 + $0x48] sm:$0xff]
      %v7085 = vld [vmem:[#allocation2 + $0x50] sm:$0xff]
      %v7086 = vld [vmem:[#allocation2 + $0x58] sm:$0xff]
      %v7087 = vld [vmem:[#allocation2 + $0x60] sm:$0xff]
      %v7088 = vld [vmem:[#allocation2 + $0x68] sm:$0xff]
      %v7089 = vld [vmem:[#allocation2 + $0x70] sm:$0xff]
      %v7090 = vld [vmem:[#allocation2 + $0x78] sm:$0xff]
      %v7091 = vld [vmem:[#allocation2 + $0x80] sm:$0xff]
      %v7092 = vld [vmem:[#allocation2 + $0x88] sm:$0xff]
      %v7093 = vld [vmem:[#allocation2 + $0x90] sm:$0xff]
      %v7094 = vld [vmem:[#allocation2 + $0x98] sm:$0xff]
      %v7095 = vld [vmem:[#allocation2 + $0xa0] sm:$0xff]
      %v7096 = vld [vmem:[#allocation2 + $0xa8] sm:$0xff]
      %v7097 = vld [vmem:[#allocation2 + $0xb0] sm:$0xff]
      %v7098 = vld [vmem:[#allocation2 + $0xb8] sm:$0xff]
      %v7099 = vld [vmem:[#allocation2 + $0xc0] sm:$0xff]
      %v7100 = vld [vmem:[#allocation2 + $0xc8] sm:$0xff]
      %v7101 = vld [vmem:[#allocation2 + $0xd0] sm:$0xff]
      %v7102 = vld [vmem:[#allocation2 + $0xd8] sm:$0xff]
      %v7103 = vld [vmem:[#allocation2 + $0xe0] sm:$0xff]
      %v7104 = vld [vmem:[#allocation2 + $0xe8] sm:$0xff]
      %v7105 = vld [vmem:[#allocation2 + $0xf0] sm:$0xff]
      %v7106 = vld [vmem:[#allocation2 + $0xf8] sm:$0xff]
      %v7107 = vld [vmem:[#allocation2 + $0x100] sm:$0xff]
      %v7108 = vld [vmem:[#allocation2 + $0x108] sm:$0xff]
      %v7109 = vld [vmem:[#allocation2 + $0x110] sm:$0xff]
      %v7110 = vld [vmem:[#allocation2 + $0x118] sm:$0xff]
      %v7112 = vrot.slane %v7110, 7
      %v7149 = vrot.slane %v7075, 7
      %v7150 = vrot.slane %v7076, 7
      %v7151 = vsel %vm1186, %v7149, %v7150
      %v7152 = vrot.slane %v7077, 7
      %v7153 = vsel %vm1186, %v7150, %v7152
      %v7154 = vrot.slane %v7078, 7
      %v7155 = vsel %vm1186, %v7152, %v7154
      %v7156 = vrot.slane %v7079, 7
      %v7157 = vsel %vm1186, %v7154, %v7156
      %v7158 = vrot.slane %v7080, 7
      %v7159 = vsel %vm1186, %v7156, %v7158
      %v7160 = vrot.slane %v7081, 7
      %v7161 = vsel %vm1186, %v7158, %v7160
      %v7162 = vrot.slane %v7082, 7
      %v7163 = vsel %vm1186, %v7160, %v7162
      %v7164 = vrot.slane %v7083, 7
      %v7165 = vsel %vm1186, %v7162, %v7164
      %v7166 = vrot.slane %v7084, 7
      %v7167 = vsel %vm1186, %v7164, %v7166
      %v7168 = vrot.slane %v7085, 7
      %v7169 = vsel %vm1186, %v7166, %v7168
      %v7170 = vrot.slane %v7086, 7
      %v7171 = vsel %vm1186, %v7168, %v7170
      %v7172 = vrot.slane %v7087, 7
      %v7173 = vsel %vm1186, %v7170, %v7172
      %v7174 = vrot.slane %v7088, 7
      %v7175 = vsel %vm1186, %v7172, %v7174
      %v7176 = vrot.slane %v7089, 7
      %v7177 = vsel %vm1186, %v7174, %v7176
      %v7178 = vrot.slane %v7090, 7
      %v7179 = vsel %vm1186, %v7176, %v7178
      %v7180 = vrot.slane %v7091, 7
      %v7181 = vsel %vm1186, %v7178, %v7180
      %v7182 = vrot.slane %v7092, 7
      %v7183 = vsel %vm1186, %v7180, %v7182
      %v7184 = vrot.slane %v7093, 7
      %v7185 = vsel %vm1186, %v7182, %v7184
      %v7186 = vrot.slane %v7094, 7
      %v7187 = vsel %vm1186, %v7184, %v7186
      %v7188 = vrot.slane %v7095, 7
      %v7189 = vsel %vm1186, %v7186, %v7188
      %v7190 = vrot.slane %v7096, 7
      %v7191 = vsel %vm1186, %v7188, %v7190
      %v7192 = vrot.slane %v7097, 7
      %v7193 = vsel %vm1186, %v7190, %v7192
      %v7194 = vrot.slane %v7098, 7
      %v7195 = vsel %vm1186, %v7192, %v7194
      %v7196 = vrot.slane %v7099, 7
      %v7197 = vsel %vm1186, %v7194, %v7196
      %v7198 = vrot.slane %v7100, 7
      %v7199 = vsel %vm1186, %v7196, %v7198
      %v7200 = vrot.slane %v7101, 7
      %v7201 = vsel %vm1186, %v7198, %v7200
      %v7202 = vrot.slane %v7102, 7
      %v7203 = vsel %vm1186, %v7200, %v7202
      %v7204 = vrot.slane %v7103, 7
      %v7205 = vsel %vm1186, %v7202, %v7204
      %v7206 = vrot.slane %v7104, 7
      %v7207 = vsel %vm1186, %v7204, %v7206
      %v7208 = vrot.slane %v7105, 7
      %v7209 = vsel %vm1186, %v7206, %v7208
      %v7210 = vrot.slane %v7106, 7
      %v7211 = vsel %vm1186, %v7208, %v7210
      %v7212 = vrot.slane %v7107, 7
      %v7213 = vsel %vm1186, %v7210, %v7212
      %v7214 = vrot.slane %v7108, 7
      %v7215 = vsel %vm1186, %v7212, %v7214
      %v7216 = vrot.slane %v7109, 7
      %v7217 = vsel %vm1186, %v7214, %v7216
      %v7218 = vsel %vm1186, %v7216, %v7112
      %v7255 = vsel %vm1186, %v7112, %v7149
      %v7256 = vsel %vm1330, %v7255, 0.0
      %v7257 = vsel %vm1331, %v7151, 0.0
      %v7258 = vsel %vm1332, %v7153, 0.0
      %v7259 = vsel %vm1333, %v7155, 0.0
      %v7260 = vsel %vm1334, %v7157, 0.0
      %v7261 = vsel %vm1335, %v7159, 0.0
      %v7262 = vsel %vm1336, %v7161, 0.0
      %v7263 = vsel %vm1337, %v7163, 0.0
      %v7264 = vsel %vm1338, %v7165, 0.0
      %v7265 = vsel %vm1339, %v7167, 0.0
      %v7266 = vsel %vm1340, %v7169, 0.0
      %v7267 = vsel %vm1341, %v7171, 0.0
      %v7268 = vsel %vm1342, %v7173, 0.0
      %v7269 = vsel %vm1343, %v7175, 0.0
      %v7270 = vsel %vm1344, %v7177, 0.0
      %v7271 = vsel %vm1345, %v7179, 0.0
      %v7272 = vsel %vm1346, %v7181, 0.0
      %v7273 = vsel %vm1347, %v7183, 0.0
      %v7274 = vsel %vm1348, %v7185, 0.0
      %v7275 = vsel %vm1349, %v7187, 0.0
      %v7276 = vsel %vm1350, %v7189, 0.0
      %v7277 = vsel %vm1351, %v7191, 0.0
      %v7278 = vsel %vm1352, %v7193, 0.0
      %v7279 = vsel %vm1353, %v7195, 0.0
      %v7280 = vsel %vm1354, %v7197, 0.0
      %v7281 = vsel %vm1355, %v7199, 0.0
      %v7282 = vsel %vm1356, %v7201, 0.0
      %v7283 = vsel %vm1357, %v7203, 0.0
      %v7284 = vsel %vm1358, %v7205, 0.0
      %v7285 = vsel %vm1359, %v7207, 0.0
      %v7286 = vsel %vm1360, %v7209, 0.0
      %v7287 = vsel %vm1361, %v7211, 0.0
      %v7288 = vsel %vm1362, %v7213, 0.0
      %v7289 = vsel %vm1363, %v7215, 0.0
      %v7290 = vsel %vm1364, %v7217, 0.0
      %v7291 = vsel %vm1365, %v7218, 0.0
      %7328 = vrot.lane.b32.xlu0 %v7256, 120
      %v7329 = vpop.permute.xlu0 %7328
      %7330 = vrot.lane.b32.xlu0 %v7257, 120
      %v7331 = vpop.permute.xlu0 %7330
      %7332 = vrot.lane.b32.xlu0 %v7258, 120
      %v7333 = vpop.permute.xlu0 %7332
      %7334 = vrot.lane.b32.xlu0 %v7259, 120
      %v7335 = vpop.permute.xlu0 %7334
      %7336 = vrot.lane.b32.xlu0 %v7260, 120
      %v7337 = vpop.permute.xlu0 %7336
      %7338 = vrot.lane.b32.xlu0 %v7261, 120
      %v7339 = vpop.permute.xlu0 %7338
      %7340 = vrot.lane.b32.xlu0 %v7262, 120
      %v7341 = vpop.permute.xlu0 %7340
      %7342 = vrot.lane.b32.xlu0 %v7263, 120
      %v7343 = vpop.permute.xlu0 %7342
      %7344 = vrot.lane.b32.xlu0 %v7264, 120
      %v7345 = vpop.permute.xlu0 %7344
      %7346 = vrot.lane.b32.xlu0 %v7265, 120
      %v7347 = vpop.permute.xlu0 %7346
      %7348 = vrot.lane.b32.xlu0 %v7266, 120
      %v7349 = vpop.permute.xlu0 %7348
      %7350 = vrot.lane.b32.xlu0 %v7267, 120
      %v7351 = vpop.permute.xlu0 %7350
      %7352 = vrot.lane.b32.xlu0 %v7268, 120
      %v7353 = vpop.permute.xlu0 %7352
      %7354 = vrot.lane.b32.xlu0 %v7269, 120
      %v7355 = vpop.permute.xlu0 %7354
      %7356 = vrot.lane.b32.xlu0 %v7270, 120
      %v7357 = vpop.permute.xlu0 %7356
      %7358 = vrot.lane.b32.xlu0 %v7271, 120
      %v7359 = vpop.permute.xlu0 %7358
      %7360 = vrot.lane.b32.xlu0 %v7272, 120
      %v7361 = vpop.permute.xlu0 %7360
      %7362 = vrot.lane.b32.xlu0 %v7273, 120
      %v7363 = vpop.permute.xlu0 %7362
      %7364 = vrot.lane.b32.xlu0 %v7274, 120
      %v7365 = vpop.permute.xlu0 %7364
      %7366 = vrot.lane.b32.xlu0 %v7275, 120
      %v7367 = vpop.permute.xlu0 %7366
      %7368 = vrot.lane.b32.xlu0 %v7276, 120
      %v7369 = vpop.permute.xlu0 %7368
      %7370 = vrot.lane.b32.xlu0 %v7277, 120
      %v7371 = vpop.permute.xlu0 %7370
      %7372 = vrot.lane.b32.xlu0 %v7278, 120
      %v7373 = vpop.permute.xlu0 %7372
      %7374 = vrot.lane.b32.xlu0 %v7279, 120
      %v7375 = vpop.permute.xlu0 %7374
      %7376 = vrot.lane.b32.xlu0 %v7280, 120
      %v7377 = vpop.permute.xlu0 %7376
      %7378 = vrot.lane.b32.xlu0 %v7281, 120
      %v7379 = vpop.permute.xlu0 %7378
      %7380 = vrot.lane.b32.xlu0 %v7282, 120
      %v7381 = vpop.permute.xlu0 %7380
      %7382 = vrot.lane.b32.xlu0 %v7283, 120
      %v7383 = vpop.permute.xlu0 %7382
      %7384 = vrot.lane.b32.xlu0 %v7284, 120
      %v7385 = vpop.permute.xlu0 %7384
      %7386 = vrot.lane.b32.xlu0 %v7285, 120
      %v7387 = vpop.permute.xlu0 %7386
      %7388 = vrot.lane.b32.xlu0 %v7286, 120
      %v7389 = vpop.permute.xlu0 %7388
      %7390 = vrot.lane.b32.xlu0 %v7287, 120
      %v7391 = vpop.permute.xlu0 %7390
      %7392 = vrot.lane.b32.xlu0 %v7288, 120
      %v7393 = vpop.permute.xlu0 %7392
      %7394 = vrot.lane.b32.xlu0 %v7289, 120
      %v7395 = vpop.permute.xlu0 %7394
      %7396 = vrot.lane.b32.xlu0 %v7290, 120
      %v7397 = vpop.permute.xlu0 %7396
      %7398 = vrot.lane.b32.xlu0 %v7291, 120
      %v7399 = vpop.permute.xlu0 %7398
      %7436 = vst.msk [vmem:[#allocation2] sm:$0xff] %vm3563, %v7329
      %7437 = vst.msk [vmem:[#allocation2 + $0x8] sm:$0xff] %vm3563, %v7331
      %7438 = vst.msk [vmem:[#allocation2 + $0x10] sm:$0xff] %vm3563, %v7333
      %7439 = vst.msk [vmem:[#allocation2 + $0x18] sm:$0xff] %vm3563, %v7335
      %7440 = vst.msk [vmem:[#allocation2 + $0x20] sm:$0xff] %vm3563, %v7337
      %7441 = vst.msk [vmem:[#allocation2 + $0x28] sm:$0xff] %vm3563, %v7339
      %7442 = vst.msk [vmem:[#allocation2 + $0x30] sm:$0xff] %vm3563, %v7341
      %7443 = vst.msk [vmem:[#allocation2 + $0x38] sm:$0xff] %vm3563, %v7343
      %7444 = vst.msk [vmem:[#allocation2 + $0x40] sm:$0xff] %vm3563, %v7345
      %7445 = vst.msk [vmem:[#allocation2 + $0x48] sm:$0xff] %vm3563, %v7347
      %7446 = vst.msk [vmem:[#allocation2 + $0x50] sm:$0xff] %vm3563, %v7349
      %7447 = vst.msk [vmem:[#allocation2 + $0x58] sm:$0xff] %vm3563, %v7351
      %7448 = vst.msk [vmem:[#allocation2 + $0x60] sm:$0xff] %vm3563, %v7353
      %7449 = vst.msk [vmem:[#allocation2 + $0x68] sm:$0xff] %vm3563, %v7355
      %7450 = vst.msk [vmem:[#allocation2 + $0x70] sm:$0xff] %vm3563, %v7357
      %7451 = vst.msk [vmem:[#allocation2 + $0x78] sm:$0xff] %vm3563, %v7359
      %7452 = vst.msk [vmem:[#allocation2 + $0x80] sm:$0xff] %vm3563, %v7361
      %7453 = vst.msk [vmem:[#allocation2 + $0x88] sm:$0xff] %vm3563, %v7363
      %7454 = vst.msk [vmem:[#allocation2 + $0x90] sm:$0xff] %vm3563, %v7365
      %7455 = vst.msk [vmem:[#allocation2 + $0x98] sm:$0xff] %vm3563, %v7367
      %7456 = vst.msk [vmem:[#allocation2 + $0xa0] sm:$0xff] %vm3563, %v7369
      %7457 = vst.msk [vmem:[#allocation2 + $0xa8] sm:$0xff] %vm3563, %v7371
      %7458 = vst.msk [vmem:[#allocation2 + $0xb0] sm:$0xff] %vm3563, %v7373
      %7459 = vst.msk [vmem:[#allocation2 + $0xb8] sm:$0xff] %vm3563, %v7375
      %7460 = vst.msk [vmem:[#allocation2 + $0xc0] sm:$0xff] %vm3563, %v7377
      %7461 = vst.msk [vmem:[#allocation2 + $0xc8] sm:$0xff] %vm3563, %v7379
      %7462 = vst.msk [vmem:[#allocation2 + $0xd0] sm:$0xff] %vm3563, %v7381
      %7463 = vst.msk [vmem:[#allocation2 + $0xd8] sm:$0xff] %vm3563, %v7383
      %7464 = vst.msk [vmem:[#allocation2 + $0xe0] sm:$0xff] %vm3563, %v7385
      %7465 = vst.msk [vmem:[#allocation2 + $0xe8] sm:$0xff] %vm3563, %v7387
      %7466 = vst.msk [vmem:[#allocation2 + $0xf0] sm:$0xff] %vm3563, %v7389
      %7467 = vst.msk [vmem:[#allocation2 + $0xf8] sm:$0xff] %vm3563, %v7391
      %7468 = vst.msk [vmem:[#allocation2 + $0x100] sm:$0xff] %vm3563, %v7393
      %7469 = vst.msk [vmem:[#allocation2 + $0x108] sm:$0xff] %vm3563, %v7395
      %7470 = vst.msk [vmem:[#allocation2 + $0x110] sm:$0xff] %vm3563, %v7397
      %7471 = vst.msk [vmem:[#allocation2 + $0x118] sm:$0xff] %vm3563, %v7399
      %v7472 = vrot.slane %v7075, 1
      %v7473 = vrot.slane %v7076, 1
      %v7474 = vsel %vm1583, %v7472, %v7473
      %v7475 = vrot.slane %v7077, 1
      %v7476 = vsel %vm1583, %v7473, %v7475
      %v7477 = vrot.slane %v7078, 1
      %v7478 = vsel %vm1583, %v7475, %v7477
      %v7479 = vrot.slane %v7079, 1
      %v7480 = vsel %vm1583, %v7477, %v7479
      %v7481 = vrot.slane %v7080, 1
      %v7482 = vsel %vm1583, %v7479, %v7481
      %v7483 = vrot.slane %v7081, 1
      %v7484 = vsel %vm1583, %v7481, %v7483
      %v7485 = vrot.slane %v7082, 1
      %v7486 = vsel %vm1583, %v7483, %v7485
      %v7487 = vrot.slane %v7083, 1
      %v7488 = vsel %vm1583, %v7485, %v7487
      %v7489 = vrot.slane %v7084, 1
      %v7490 = vsel %vm1583, %v7487, %v7489
      %v7491 = vrot.slane %v7085, 1
      %v7492 = vsel %vm1583, %v7489, %v7491
      %v7493 = vrot.slane %v7086, 1
      %v7494 = vsel %vm1583, %v7491, %v7493
      %v7495 = vrot.slane %v7087, 1
      %v7496 = vsel %vm1583, %v7493, %v7495
      %v7497 = vrot.slane %v7088, 1
      %v7498 = vsel %vm1583, %v7495, %v7497
      %v7499 = vrot.slane %v7089, 1
      %v7500 = vsel %vm1583, %v7497, %v7499
      %v7501 = vrot.slane %v7090, 1
      %v7502 = vsel %vm1583, %v7499, %v7501
      %v7503 = vrot.slane %v7091, 1
      %v7504 = vsel %vm1583, %v7501, %v7503
      %v7505 = vrot.slane %v7092, 1
      %v7506 = vsel %vm1583, %v7503, %v7505
      %v7507 = vrot.slane %v7093, 1
      %v7508 = vsel %vm1583, %v7505, %v7507
      %v7509 = vrot.slane %v7094, 1
      %v7510 = vsel %vm1583, %v7507, %v7509
      %v7511 = vrot.slane %v7095, 1
      %v7512 = vsel %vm1583, %v7509, %v7511
      %v7513 = vrot.slane %v7096, 1
      %v7514 = vsel %vm1583, %v7511, %v7513
      %v7515 = vrot.slane %v7097, 1
      %v7516 = vsel %vm1583, %v7513, %v7515
      %v7517 = vrot.slane %v7098, 1
      %v7518 = vsel %vm1583, %v7515, %v7517
      %v7519 = vrot.slane %v7099, 1
      %v7520 = vsel %vm1583, %v7517, %v7519
      %v7521 = vrot.slane %v7100, 1
      %v7522 = vsel %vm1583, %v7519, %v7521
      %v7523 = vrot.slane %v7101, 1
      %v7524 = vsel %vm1583, %v7521, %v7523
      %v7525 = vrot.slane %v7102, 1
      %v7526 = vsel %vm1583, %v7523, %v7525
      %v7527 = vrot.slane %v7103, 1
      %v7528 = vsel %vm1583, %v7525, %v7527
      %v7529 = vrot.slane %v7104, 1
      %v7530 = vsel %vm1583, %v7527, %v7529
      %v7531 = vrot.slane %v7105, 1
      %v7532 = vsel %vm1583, %v7529, %v7531
      %v7533 = vrot.slane %v7106, 1
      %v7534 = vsel %vm1583, %v7531, %v7533
      %v7535 = vrot.slane %v7107, 1
      %v7536 = vsel %vm1583, %v7533, %v7535
      %v7537 = vrot.slane %v7108, 1
      %v7538 = vsel %vm1583, %v7535, %v7537
      %v7539 = vrot.slane %v7109, 1
      %v7540 = vsel %vm1583, %v7537, %v7539
      %v7541 = vrot.slane %v7110, 1
      %v7542 = vsel %vm1583, %v7539, %v7541
      %v7580 = vsel %vm1583, %v7541, %v7472
      %v7581 = vsel %vm1729, %v7474, 0.0
      %v7582 = vsel %vm1730, %v7476, 0.0
      %v7583 = vsel %vm1731, %v7478, 0.0
      %v7584 = vsel %vm1732, %v7480, 0.0
      %v7585 = vsel %vm1733, %v7482, 0.0
      %v7586 = vsel %vm1734, %v7484, 0.0
      %v7587 = vsel %vm1735, %v7486, 0.0
      %v7588 = vsel %vm1736, %v7488, 0.0
      %v7589 = vsel %vm1737, %v7490, 0.0
      %v7590 = vsel %vm1738, %v7492, 0.0
      %v7591 = vsel %vm1739, %v7494, 0.0
      %v7592 = vsel %vm1740, %v7496, 0.0
      %v7593 = vsel %vm1741, %v7498, 0.0
      %v7594 = vsel %vm1742, %v7500, 0.0
      %v7595 = vsel %vm1743, %v7502, 0.0
      %v7596 = vsel %vm1744, %v7504, 0.0
      %v7597 = vsel %vm1745, %v7506, 0.0
      %v7598 = vsel %vm1746, %v7508, 0.0
      %v7599 = vsel %vm1747, %v7510, 0.0
      %v7600 = vsel %vm1748, %v7512, 0.0
      %v7601 = vsel %vm1749, %v7514, 0.0
      %v7602 = vsel %vm1750, %v7516, 0.0
      %v7603 = vsel %vm1751, %v7518, 0.0
      %v7604 = vsel %vm1752, %v7520, 0.0
      %v7605 = vsel %vm1753, %v7522, 0.0
      %v7606 = vsel %vm1754, %v7524, 0.0
      %v7607 = vsel %vm1755, %v7526, 0.0
      %v7608 = vsel %vm1756, %v7528, 0.0
      %v7609 = vsel %vm1757, %v7530, 0.0
      %v7610 = vsel %vm1758, %v7532, 0.0
      %v7611 = vsel %vm1759, %v7534, 0.0
      %v7612 = vsel %vm1760, %v7536, 0.0
      %v7613 = vsel %vm1761, %v7538, 0.0
      %v7614 = vsel %vm1762, %v7540, 0.0
      %v7615 = vsel %vm1763, %v7542, 0.0
      %v7616 = vsel %vm1764, %v7580, 0.0
      %7653 = vrot.lane.b32.xlu0 %v7581, 8
      %v7654 = vpop.permute.xlu0 %7653
      %7655 = vrot.lane.b32.xlu0 %v7582, 8
      %v7656 = vpop.permute.xlu0 %7655
      %7657 = vrot.lane.b32.xlu0 %v7583, 8
      %v7658 = vpop.permute.xlu0 %7657
      %7659 = vrot.lane.b32.xlu0 %v7584, 8
      %v7660 = vpop.permute.xlu0 %7659
      %7661 = vrot.lane.b32.xlu0 %v7585, 8
      %v7662 = vpop.permute.xlu0 %7661
      %7663 = vrot.lane.b32.xlu0 %v7586, 8
      %v7664 = vpop.permute.xlu0 %7663
      %7665 = vrot.lane.b32.xlu0 %v7587, 8
      %v7666 = vpop.permute.xlu0 %7665
      %7667 = vrot.lane.b32.xlu0 %v7588, 8
      %v7668 = vpop.permute.xlu0 %7667
      %7669 = vrot.lane.b32.xlu0 %v7589, 8
      %v7670 = vpop.permute.xlu0 %7669
      %7671 = vrot.lane.b32.xlu0 %v7590, 8
      %v7672 = vpop.permute.xlu0 %7671
      %7673 = vrot.lane.b32.xlu0 %v7591, 8
      %v7674 = vpop.permute.xlu0 %7673
      %7675 = vrot.lane.b32.xlu0 %v7592, 8
      %v7676 = vpop.permute.xlu0 %7675
      %7677 = vrot.lane.b32.xlu0 %v7593, 8
      %v7678 = vpop.permute.xlu0 %7677
      %7679 = vrot.lane.b32.xlu0 %v7594, 8
      %v7680 = vpop.permute.xlu0 %7679
      %7681 = vrot.lane.b32.xlu0 %v7595, 8
      %v7682 = vpop.permute.xlu0 %7681
      %7683 = vrot.lane.b32.xlu0 %v7596, 8
      %v7684 = vpop.permute.xlu0 %7683
      %7685 = vrot.lane.b32.xlu0 %v7597, 8
      %v7686 = vpop.permute.xlu0 %7685
      %7687 = vrot.lane.b32.xlu0 %v7598, 8
      %v7688 = vpop.permute.xlu0 %7687
      %7689 = vrot.lane.b32.xlu0 %v7599, 8
      %v7690 = vpop.permute.xlu0 %7689
      %7691 = vrot.lane.b32.xlu0 %v7600, 8
      %v7692 = vpop.permute.xlu0 %7691
      %7693 = vrot.lane.b32.xlu0 %v7601, 8
      %v7694 = vpop.permute.xlu0 %7693
      %7695 = vrot.lane.b32.xlu0 %v7602, 8
      %v7696 = vpop.permute.xlu0 %7695
      %7697 = vrot.lane.b32.xlu0 %v7603, 8
      %v7698 = vpop.permute.xlu0 %7697
      %7699 = vrot.lane.b32.xlu0 %v7604, 8
      %v7700 = vpop.permute.xlu0 %7699
      %7701 = vrot.lane.b32.xlu0 %v7605, 8
      %v7702 = vpop.permute.xlu0 %7701
      %7703 = vrot.lane.b32.xlu0 %v7606, 8
      %v7704 = vpop.permute.xlu0 %7703
      %7705 = vrot.lane.b32.xlu0 %v7607, 8
      %v7706 = vpop.permute.xlu0 %7705
      %7707 = vrot.lane.b32.xlu0 %v7608, 8
      %v7708 = vpop.permute.xlu0 %7707
      %7709 = vrot.lane.b32.xlu0 %v7609, 8
      %v7710 = vpop.permute.xlu0 %7709
      %7711 = vrot.lane.b32.xlu0 %v7610, 8
      %v7712 = vpop.permute.xlu0 %7711
      %7713 = vrot.lane.b32.xlu0 %v7611, 8
      %v7714 = vpop.permute.xlu0 %7713
      %7715 = vrot.lane.b32.xlu0 %v7612, 8
      %v7716 = vpop.permute.xlu0 %7715
      %7717 = vrot.lane.b32.xlu0 %v7613, 8
      %v7718 = vpop.permute.xlu0 %7717
      %7719 = vrot.lane.b32.xlu0 %v7614, 8
      %v7720 = vpop.permute.xlu0 %7719
      %7721 = vrot.lane.b32.xlu0 %v7615, 8
      %v7722 = vpop.permute.xlu0 %7721
      %7723 = vrot.lane.b32.xlu0 %v7616, 8
      %v7724 = vpop.permute.xlu0 %7723
      %7761 = vst.msk [vmem:[#allocation2] sm:$0xff] %vm3889, %v7654
      %7762 = vst.msk [vmem:[#allocation2 + $0x8] sm:$0xff] %vm3889, %v7656
      %7763 = vst.msk [vmem:[#allocation2 + $0x10] sm:$0xff] %vm3889, %v7658
      %7764 = vst.msk [vmem:[#allocation2 + $0x18] sm:$0xff] %vm3889, %v7660
      %7765 = vst.msk [vmem:[#allocation2 + $0x20] sm:$0xff] %vm3889, %v7662
      %7766 = vst.msk [vmem:[#allocation2 + $0x28] sm:$0xff] %vm3889, %v7664
      %7767 = vst.msk [vmem:[#allocation2 + $0x30] sm:$0xff] %vm3889, %v7666
      %7768 = vst.msk [vmem:[#allocation2 + $0x38] sm:$0xff] %vm3889, %v7668
      %7769 = vst.msk [vmem:[#allocation2 + $0x40] sm:$0xff] %vm3889, %v7670
      %7770 = vst.msk [vmem:[#allocation2 + $0x48] sm:$0xff] %vm3889, %v7672
      %7771 = vst.msk [vmem:[#allocation2 + $0x50] sm:$0xff] %vm3889, %v7674
      %7772 = vst.msk [vmem:[#allocation2 + $0x58] sm:$0xff] %vm3889, %v7676
      %7773 = vst.msk [vmem:[#allocation2 + $0x60] sm:$0xff] %vm3889, %v7678
      %7774 = vst.msk [vmem:[#allocation2 + $0x68] sm:$0xff] %vm3889, %v7680
      %7775 = vst.msk [vmem:[#allocation2 + $0x70] sm:$0xff] %vm3889, %v7682
      %7776 = vst.msk [vmem:[#allocation2 + $0x78] sm:$0xff] %vm3889, %v7684
      %7777 = vst.msk [vmem:[#allocation2 + $0x80] sm:$0xff] %vm3889, %v7686
      %7778 = vst.msk [vmem:[#allocation2 + $0x88] sm:$0xff] %vm3889, %v7688
      %7779 = vst.msk [vmem:[#allocation2 + $0x90] sm:$0xff] %vm3889, %v7690
      %7780 = vst.msk [vmem:[#allocation2 + $0x98] sm:$0xff] %vm3889, %v7692
      %7781 = vst.msk [vmem:[#allocation2 + $0xa0] sm:$0xff] %vm3889, %v7694
      %7782 = vst.msk [vmem:[#allocation2 + $0xa8] sm:$0xff] %vm3889, %v7696
      %7783 = vst.msk [vmem:[#allocation2 + $0xb0] sm:$0xff] %vm3889, %v7698
      %7784 = vst.msk [vmem:[#allocation2 + $0xb8] sm:$0xff] %vm3889, %v7700
      %7785 = vst.msk [vmem:[#allocation2 + $0xc0] sm:$0xff] %vm3889, %v7702
      %7786 = vst.msk [vmem:[#allocation2 + $0xc8] sm:$0xff] %vm3889, %v7704
      %7787 = vst.msk [vmem:[#allocation2 + $0xd0] sm:$0xff] %vm3889, %v7706
      %7788 = vst.msk [vmem:[#allocation2 + $0xd8] sm:$0xff] %vm3889, %v7708
      %7789 = vst.msk [vmem:[#allocation2 + $0xe0] sm:$0xff] %vm3889, %v7710
      %7790 = vst.msk [vmem:[#allocation2 + $0xe8] sm:$0xff] %vm3889, %v7712
      %7791 = vst.msk [vmem:[#allocation2 + $0xf0] sm:$0xff] %vm3889, %v7714
      %7792 = vst.msk [vmem:[#allocation2 + $0xf8] sm:$0xff] %vm3889, %v7716
      %7793 = vst.msk [vmem:[#allocation2 + $0x100] sm:$0xff] %vm3889, %v7718
      %7794 = vst.msk [vmem:[#allocation2 + $0x108] sm:$0xff] %vm3889, %v7720
      %7795 = vst.msk [vmem:[#allocation2 + $0x110] sm:$0xff] %vm3889, %v7722
      %7796 = vst.msk [vmem:[#allocation2 + $0x118] sm:$0xff] %vm3889, %v7724
      %v7797 = vld [vmem:[#allocation2] sm:$0xff]
      %v7798 = vld [vmem:[#allocation2 + $0x8] sm:$0xff]
      %v7799 = vld [vmem:[#allocation2 + $0x10] sm:$0xff]
      %v7800 = vld [vmem:[#allocation2 + $0x18] sm:$0xff]
      %v7801 = vld [vmem:[#allocation2 + $0x20] sm:$0xff]
      %v7802 = vld [vmem:[#allocation2 + $0x28] sm:$0xff]
      %v7803 = vld [vmem:[#allocation2 + $0x30] sm:$0xff]
      %v7804 = vld [vmem:[#allocation2 + $0x38] sm:$0xff]
      %v7805 = vld [vmem:[#allocation2 + $0x40] sm:$0xff]
      %v7806 = vld [vmem:[#allocation2 + $0x48] sm:$0xff]
      %v7807 = vld [vmem:[#allocation2 + $0x50] sm:$0xff]
      %v7808 = vld [vmem:[#allocation2 + $0x58] sm:$0xff]
      %v7809 = vld [vmem:[#allocation2 + $0x60] sm:$0xff]
      %v7810 = vld [vmem:[#allocation2 + $0x68] sm:$0xff]
      %v7811 = vld [vmem:[#allocation2 + $0x70] sm:$0xff]
      %v7812 = vld [vmem:[#allocation2 + $0x78] sm:$0xff]
      %v7813 = vld [vmem:[#allocation2 + $0x80] sm:$0xff]
      %v7814 = vld [vmem:[#allocation2 + $0x88] sm:$0xff]
      %v7815 = vld [vmem:[#allocation2 + $0x90] sm:$0xff]
      %v7816 = vld [vmem:[#allocation2 + $0x98] sm:$0xff]
      %v7817 = vld [vmem:[#allocation2 + $0xa0] sm:$0xff]
      %v7818 = vld [vmem:[#allocation2 + $0xa8] sm:$0xff]
      %v7819 = vld [vmem:[#allocation2 + $0xb0] sm:$0xff]
      %v7820 = vld [vmem:[#allocation2 + $0xb8] sm:$0xff]
      %v7821 = vld [vmem:[#allocation2 + $0xc0] sm:$0xff]
      %v7822 = vld [vmem:[#allocation2 + $0xc8] sm:$0xff]
      %v7823 = vld [vmem:[#allocation2 + $0xd0] sm:$0xff]
      %v7824 = vld [vmem:[#allocation2 + $0xd8] sm:$0xff]
      %v7825 = vld [vmem:[#allocation2 + $0xe0] sm:$0xff]
      %v7826 = vld [vmem:[#allocation2 + $0xe8] sm:$0xff]
      %v7827 = vld [vmem:[#allocation2 + $0xf0] sm:$0xff]
      %v7828 = vld [vmem:[#allocation2 + $0xf8] sm:$0xff]
      %v7829 = vld [vmem:[%s7] sm:$0xff]
      %v7830 = vld [vmem:[%s7 + $0x8] sm:$0xff]
      %v7831 = vld [vmem:[%s7 + $0x10] sm:$0xff]
      %v7832 = vld [vmem:[#allocation2 + $0x100] sm:$0xff]
      %v7833 = vld [vmem:[#allocation2 + $0x108] sm:$0xff]
      %s7834 = scalar_lea.vmem %s7, 24
      %v7835 = vld [vmem:[%s7834] sm:$0xff]
      %v7836 = vld [vmem:[%s7834 + $0x8] sm:$0xff]
      %v7837 = vld [vmem:[%s7834 + $0x10] sm:$0xff]
      %v7839 = vsel %vm3967, %v7799, 0
      %v7842 = vsel %vm3967, %v7800, 0
      %v7845 = vsel %vm3967, %v7801, 0
      %v7848 = vsel %vm3967, %v7802, 0
      %v7851 = vsel %vm3967, %v7803, 0
      %v7854 = vsel %vm3967, %v7804, 0
      %v7857 = vsel %vm3967, %v7805, 0
      %v7860 = vsel %vm3967, %v7806, 0
      %v7863 = vsel %vm3967, %v7807, 0
      %v7866 = vsel %vm3967, %v7808, 0
      %v7869 = vsel %vm3967, %v7809, 0
      %v7872 = vsel %vm3967, %v7810, 0
      %v7875 = vsel %vm3967, %v7811, 0
      %v7878 = vsel %vm3967, %v7812, 0
      %v7881 = vsel %vm3967, %v7813, 0
      %v7884 = vsel %vm3967, %v7814, 0
      %v7887 = vsel %vm3967, %v7815, 0
      %v7890 = vsel %vm3967, %v7816, 0
      %v7893 = vsel %vm3967, %v7817, 0
      %v7896 = vsel %vm3967, %v7818, 0
      %v7899 = vsel %vm3967, %v7819, 0
      %v7902 = vsel %vm3967, %v7820, 0
      %v7905 = vsel %vm3967, %v7821, 0
      %v7908 = vsel %vm3967, %v7822, 0
      %v7911 = vsel %vm3967, %v7823, 0
      %v7914 = vsel %vm3967, %v7824, 0
      %v7917 = vsel %vm3967, %v7825, 0
      %v7920 = vsel %vm3967, %v7826, 0
      %v7923 = vsel %vm3967, %v7827, 0
      %v7926 = vsel %vm3967, %v7828, 0
      %v7929 = vsel %vm3967, %v7832, 0
      %v7932 = vsel %vm3967, %v7833, 0
      %7934 = vmatprep.subr.mxu0 0.0
      %7935 = vmatpush1.msra.mxu0 %v7835
      %7936 = vmatprep.subr.mxu0 0.0
      %7937 = vmatpush1.msra.mxu0 %v7836
      %7938 = vmatprep.subr.mxu0 0.0
      %7939 = vmatpush1.msra.mxu0 %v7837
      %7940 = vmatprep.subr.mxu0 0.0
      %7941 = vmatpush1.msra.mxu0 0.0
      %7942 = vmatprep.subr.mxu0 0.0
      %7943 = vmatpush1.msra.mxu0 0.0
      %7944 = vmatprep.subr.mxu0 0.0
      %7945 = vmatpush1.msra.mxu0 0.0
      %7946 = vmatprep.subr.mxu0 0.0
      %7947 = vmatpush1.msra.mxu0 0.0
      %7948 = vmatprep.subr.mxu0 0.0
      %7949 = vmatpush1.msra.mxu0 0.0
      %7950 = vmatprep.subr.mxu0 0.0
      %7951 = vmatpush1.msra.mxu0 0.0
      %7952 = vmatprep.subr.mxu0 0.0
      %7953 = vmatpush1.msra.mxu0 0.0
      %7954 = vmatprep.subr.mxu0 0.0
      %7955 = vmatpush1.msra.mxu0 0.0
      %7956 = vmatprep.subr.mxu0 0.0
      %7957 = vmatpush1.msra.mxu0 0.0
      %7958 = vmatprep.subr.mxu0 0.0
      %7959 = vmatpush1.msra.mxu0 0.0
      %7960 = vmatprep.subr.mxu0 0.0
      %7961 = vmatpush1.msra.mxu0 0.0
      %7962 = vmatprep.subr.mxu0 0.0
      %7963 = vmatpush1.msra.mxu0 0.0
      %7964 = vmatprep.subr.mxu0 0.0
      %7965 = vmatpush1.msra.mxu0 0.0
      %7966 = vmatprep.subr.mxu0 0.0
      %7967 = vmatpush1.msra.mxu0 0.0
      %7968 = vmatprep.subr.mxu0 0.0
      %7969 = vmatpush1.msra.mxu0 0.0
      %7970 = vmatprep.subr.mxu0 0.0
      %7971 = vmatpush1.msra.mxu0 0.0
      %7972 = vmatprep.subr.mxu0 0.0
      %7973 = vmatpush1.msra.mxu0 0.0
      %7974 = vmatprep.subr.mxu0 0.0
      %7975 = vmatpush1.msra.mxu0 0.0
      %7976 = vmatprep.subr.mxu0 0.0
      %7977 = vmatpush1.msra.mxu0 0.0
      %7978 = vmatprep.subr.mxu0 0.0
      %7979 = vmatpush1.msra.mxu0 0.0
      %7980 = vmatprep.subr.mxu0 0.0
      %7981 = vmatpush1.msra.mxu0 0.0
      %7982 = vmatprep.subr.mxu0 0.0
      %7983 = vmatpush1.msra.mxu0 0.0
      %7984 = vmatprep.subr.mxu0 0.0
      %7985 = vmatpush1.msra.mxu0 0.0
      %7986 = vmatprep.subr.mxu0 0.0
      %7987 = vmatpush1.msra.mxu0 0.0
      %7988 = vmatprep.subr.mxu0 0.0
      %7989 = vmatpush1.msra.mxu0 0.0
      %7990 = vmatprep.subr.mxu0 0.0
      %7991 = vmatpush1.msra.mxu0 0.0
      %7992 = vmatprep.subr.mxu0 0.0
      %7993 = vmatpush1.msra.mxu0 0.0
      %7994 = vmatprep.subr.mxu0 0.0
      %7995 = vmatpush1.msra.mxu0 0.0
      %7996 = vmatprep.subr.mxu0 0.0
      %7997 = vmatpush1.msra.mxu0 0.0
      %7998 = vmatprep.mubr.f32.mxu0 0.0
      %7999 = vmatmul.mubr.f32.gmra.mrb[0].mxu0 %v7839
      %v8000 = vpop.f32.mrb[0].mxu0
      %v8001 = vadd.f32 0.0, %v8000
      %v8002 = vpop.f32.mrb[0].mxu0
      %8003 = vmatprep.mubr.f32.mxu0 0.0
      %8004 = vmatmul.mubr.f32.gmra.mrb[0].mxu0 %v7842
      %v8005 = vpop.f32.mrb[0].mxu0
      %v8006 = vadd.f32 0.0, %v8005
      %v8007 = vpop.f32.mrb[0].mxu0
      %8008 = vmatprep.mubr.f32.mxu0 0.0
      %8009 = vmatmul.mubr.f32.gmra.mrb[0].mxu0 %v7845
      %v8010 = vpop.f32.mrb[0].mxu0
      %v8011 = vadd.f32 0.0, %v8010
      %v8012 = vpop.f32.mrb[0].mxu0
      %8013 = vmatprep.mubr.f32.mxu0 0.0
      %8014 = vmatmul.mubr.f32.gmra.mrb[0].mxu0 %v7848
      %v8015 = vpop.f32.mrb[0].mxu0
      %v8016 = vadd.f32 0.0, %v8015
      %v8017 = vpop.f32.mrb[0].mxu0
      %8018 = vmatprep.mubr.f32.mxu0 0.0
      %8019 = vmatmul.mubr.f32.gmra.mrb[0].mxu0 %v7851
      %v8020 = vpop.f32.mrb[0].mxu0
      %v8021 = vadd.f32 0.0, %v8020
      %v8022 = vpop.f32.mrb[0].mxu0
      %8023 = vmatprep.mubr.f32.mxu0 0.0
      %8024 = vmatmul.mubr.f32.gmra.mrb[0].mxu0 %v7854
      %v8025 = vpop.f32.mrb[0].mxu0
      %v8026 = vadd.f32 0.0, %v8025
      %v8027 = vpop.f32.mrb[0].mxu0
      %8028 = vmatprep.mubr.f32.mxu0 0.0
      %8029 = vmatmul.mubr.f32.gmra.mrb[0].mxu0 %v7857
      %v8030 = vpop.f32.mrb[0].mxu0
      %v8031 = vadd.f32 0.0, %v8030
      %v8032 = vpop.f32.mrb[0].mxu0
      %8033 = vmatprep.mubr.f32.mxu0 0.0
      %8034 = vmatmul.mubr.f32.gmra.mrb[0].mxu0 %v7860
      %v8035 = vpop.f32.mrb[0].mxu0
      %v8036 = vadd.f32 0.0, %v8035
      %v8037 = vpop.f32.mrb[0].mxu0
      %8038 = vmatprep.mubr.f32.mxu0 0.0
      %8039 = vmatmul.mubr.f32.gmra.mrb[0].mxu0 %v7863
      %v8040 = vpop.f32.mrb[0].mxu0
      %v8041 = vadd.f32 0.0, %v8040
      %v8042 = vpop.f32.mrb[0].mxu0
      %8043 = vmatprep.mubr.f32.mxu0 0.0
      %8044 = vmatmul.mubr.f32.gmra.mrb[0].mxu0 %v7866
      %v8045 = vpop.f32.mrb[0].mxu0
      %v8046 = vadd.f32 0.0, %v8045
      %v8047 = vpop.f32.mrb[0].mxu0
      %8048 = vmatprep.mubr.f32.mxu0 0.0
      %8049 = vmatmul.mubr.f32.gmra.mrb[0].mxu0 %v7869
      %v8050 = vpop.f32.mrb[0].mxu0
      %v8051 = vadd.f32 0.0, %v8050
      %v8052 = vpop.f32.mrb[0].mxu0
      %8053 = vmatprep.mubr.f32.mxu0 0.0
      %8054 = vmatmul.mubr.f32.gmra.mrb[0].mxu0 %v7872
      %v8055 = vpop.f32.mrb[0].mxu0
      %v8056 = vadd.f32 0.0, %v8055
      %v8057 = vpop.f32.mrb[0].mxu0
      %8058 = vmatprep.mubr.f32.mxu0 0.0
      %8059 = vmatmul.mubr.f32.gmra.mrb[0].mxu0 %v7875
      %v8060 = vpop.f32.mrb[0].mxu0
      %v8061 = vadd.f32 0.0, %v8060
      %v8062 = vpop.f32.mrb[0].mxu0
      %8063 = vmatprep.mubr.f32.mxu0 0.0
      %8064 = vmatmul.mubr.f32.gmra.mrb[0].mxu0 %v7878
      %v8065 = vpop.f32.mrb[0].mxu0
      %v8066 = vadd.f32 0.0, %v8065
      %v8067 = vpop.f32.mrb[0].mxu0
      %8068 = vmatprep.mubr.f32.mxu0 0.0
      %8069 = vmatmul.mubr.f32.gmra.mrb[0].mxu0 %v7881
      %v8070 = vpop.f32.mrb[0].mxu0
      %v8071 = vadd.f32 0.0, %v8070
      %v8072 = vpop.f32.mrb[0].mxu0
      %8073 = vmatprep.mubr.f32.mxu0 0.0
      %8074 = vmatmul.mubr.f32.gmra.mrb[0].mxu0 %v7884
      %v8075 = vpop.f32.mrb[0].mxu0
      %v8076 = vadd.f32 0.0, %v8075
      %v8077 = vpop.f32.mrb[0].mxu0
      %8078 = vmatprep.mubr.f32.mxu0 0.0
      %8079 = vmatmul.mubr.f32.gmra.mrb[0].mxu0 %v7887
      %v8080 = vpop.f32.mrb[0].mxu0
      %v8081 = vadd.f32 0.0, %v8080
      %v8082 = vpop.f32.mrb[0].mxu0
      %8083 = vmatprep.mubr.f32.mxu0 0.0
      %8084 = vmatmul.mubr.f32.gmra.mrb[0].mxu0 %v7890
      %v8085 = vpop.f32.mrb[0].mxu0
      %v8086 = vadd.f32 0.0, %v8085
      %v8087 = vpop.f32.mrb[0].mxu0
      %8088 = vmatprep.mubr.f32.mxu0 0.0
      %8089 = vmatmul.mubr.f32.gmra.mrb[0].mxu0 %v7893
      %v8090 = vpop.f32.mrb[0].mxu0
      %v8091 = vadd.f32 0.0, %v8090
      %v8092 = vpop.f32.mrb[0].mxu0
      %8093 = vmatprep.mubr.f32.mxu0 0.0
      %8094 = vmatmul.mubr.f32.gmra.mrb[0].mxu0 %v7896
      %v8095 = vpop.f32.mrb[0].mxu0
      %v8096 = vadd.f32 0.0, %v8095
      %v8097 = vpop.f32.mrb[0].mxu0
      %8098 = vmatprep.mubr.f32.mxu0 0.0
      %8099 = vmatmul.mubr.f32.gmra.mrb[0].mxu0 %v7899
      %v8100 = vpop.f32.mrb[0].mxu0
      %v8101 = vadd.f32 0.0, %v8100
      %v8102 = vpop.f32.mrb[0].mxu0
      %8103 = vmatprep.mubr.f32.mxu0 0.0
      %8104 = vmatmul.mubr.f32.gmra.mrb[0].mxu0 %v7902
      %v8105 = vpop.f32.mrb[0].mxu0
      %v8106 = vadd.f32 0.0, %v8105
      %v8107 = vpop.f32.mrb[0].mxu0
      %8108 = vmatprep.mubr.f32.mxu0 0.0
      %8109 = vmatmul.mubr.f32.gmra.mrb[0].mxu0 %v7905
      %v8110 = vpop.f32.mrb[0].mxu0
      %v8111 = vadd.f32 0.0, %v8110
      %v8112 = vpop.f32.mrb[0].mxu0
      %8113 = vmatprep.mubr.f32.mxu0 0.0
      %8114 = vmatmul.mubr.f32.gmra.mrb[0].mxu0 %v7908
      %v8115 = vpop.f32.mrb[0].mxu0
      %v8116 = vadd.f32 0.0, %v8115
      %v8117 = vpop.f32.mrb[0].mxu0
      %8118 = vmatprep.mubr.f32.mxu0 0.0
      %8119 = vmatmul.mubr.f32.gmra.mrb[0].mxu0 %v7911
      %v8120 = vpop.f32.mrb[0].mxu0
      %v8121 = vadd.f32 0.0, %v8120
      %v8122 = vpop.f32.mrb[0].mxu0
      %8123 = vmatprep.mubr.f32.mxu0 0.0
      %8124 = vmatmul.mubr.f32.gmra.mrb[0].mxu0 %v7914
      %v8125 = vpop.f32.mrb[0].mxu0
      %v8126 = vadd.f32 0.0, %v8125
      %v8127 = vpop.f32.mrb[0].mxu0
      %8128 = vmatprep.mubr.f32.mxu0 0.0
      %8129 = vmatmul.mubr.f32.gmra.mrb[0].mxu0 %v7917
      %v8130 = vpop.f32.mrb[0].mxu0
      %v8131 = vadd.f32 0.0, %v8130
      %v8132 = vpop.f32.mrb[0].mxu0
      %8133 = vmatprep.mubr.f32.mxu0 0.0
      %8134 = vmatmul.mubr.f32.gmra.mrb[0].mxu0 %v7920
      %v8135 = vpop.f32.mrb[0].mxu0
      %v8136 = vadd.f32 0.0, %v8135
      %v8137 = vpop.f32.mrb[0].mxu0
      %8138 = vmatprep.mubr.f32.mxu0 0.0
      %8139 = vmatmul.mubr.f32.gmra.mrb[0].mxu0 %v7923
      %v8140 = vpop.f32.mrb[0].mxu0
      %v8141 = vadd.f32 0.0, %v8140
      %v8142 = vpop.f32.mrb[0].mxu0
      %8143 = vmatprep.mubr.f32.mxu0 0.0
      %8144 = vmatmul.mubr.f32.gmra.mrb[0].mxu0 %v7926
      %v8145 = vpop.f32.mrb[0].mxu0
      %v8146 = vadd.f32 0.0, %v8145
      %v8147 = vpop.f32.mrb[0].mxu0
      %8148 = vmatprep.mubr.f32.mxu0 0.0
      %8149 = vmatmul.mubr.f32.gmra.mrb[0].mxu0 %v7929
      %v8150 = vpop.f32.mrb[0].mxu0
      %v8151 = vadd.f32 0.0, %v8150
      %v8152 = vpop.f32.mrb[0].mxu0
      %8153 = vmatprep.mubr.f32.mxu0 0.0
      %8154 = vmatmul.mubr.f32.gmra.mrb[0].mxu0 %v7932
      %v8155 = vpop.f32.mrb[0].mxu0
      %v8156 = vadd.f32 0.0, %v8155
      %v8157 = vpop.f32.mrb[0].mxu0
      %8158 = vdwg.mxu0
      %v8160 = vsel %vm3967, %v7797, 0
      %v8163 = vsel %vm3967, %v7798, 0
      %8165 = vmatprep.subr.mxu0 0.0
      %8166 = vmatpush1.msra.mxu0 %v7829
      %8167 = vmatprep.subr.mxu0 0.0
      %8168 = vmatpush1.msra.mxu0 %v7830
      %8169 = vmatprep.subr.mxu0 0.0
      %8170 = vmatpush1.msra.mxu0 %v7831
      %8171 = vmatprep.subr.mxu0 0.0
      %8172 = vmatpush1.msra.mxu0 0.0
      %8173 = vmatprep.subr.mxu0 0.0
      %8174 = vmatpush1.msra.mxu0 0.0
      %8175 = vmatprep.subr.mxu0 0.0
      %8176 = vmatpush1.msra.mxu0 0.0
      %8177 = vmatprep.subr.mxu0 0.0
      %8178 = vmatpush1.msra.mxu0 0.0
      %8179 = vmatprep.subr.mxu0 0.0
      %8180 = vmatpush1.msra.mxu0 0.0
      %8181 = vmatprep.subr.mxu0 0.0
      %8182 = vmatpush1.msra.mxu0 0.0
      %8183 = vmatprep.subr.mxu0 0.0
      %8184 = vmatpush1.msra.mxu0 0.0
      %8185 = vmatprep.subr.mxu0 0.0
      %8186 = vmatpush1.msra.mxu0 0.0
      %8187 = vmatprep.subr.mxu0 0.0
      %8188 = vmatpush1.msra.mxu0 0.0
      %8189 = vmatprep.subr.mxu0 0.0
      %8190 = vmatpush1.msra.mxu0 0.0
      %8191 = vmatprep.subr.mxu0 0.0
      %8192 = vmatpush1.msra.mxu0 0.0
      %8193 = vmatprep.subr.mxu0 0.0
      %8194 = vmatpush1.msra.mxu0 0.0
      %8195 = vmatprep.subr.mxu0 0.0
      %8196 = vmatpush1.msra.mxu0 0.0
      %8197 = vmatprep.subr.mxu0 0.0
      %8198 = vmatpush1.msra.mxu0 0.0
      %8199 = vmatprep.subr.mxu0 0.0
      %8200 = vmatpush1.msra.mxu0 0.0
      %8201 = vmatprep.subr.mxu0 0.0
      %8202 = vmatpush1.msra.mxu0 0.0
      %8203 = vmatprep.subr.mxu0 0.0
      %8204 = vmatpush1.msra.mxu0 0.0
      %8205 = vmatprep.subr.mxu0 0.0
      %8206 = vmatpush1.msra.mxu0 0.0
      %8207 = vmatprep.subr.mxu0 0.0
      %8208 = vmatpush1.msra.mxu0 0.0
      %8209 = vmatprep.subr.mxu0 0.0
      %8210 = vmatpush1.msra.mxu0 0.0
      %8211 = vmatprep.subr.mxu0 0.0
      %8212 = vmatpush1.msra.mxu0 0.0
      %8213 = vmatprep.subr.mxu0 0.0
      %8214 = vmatpush1.msra.mxu0 0.0
      %8215 = vmatprep.subr.mxu0 0.0
      %8216 = vmatpush1.msra.mxu0 0.0
      %8217 = vmatprep.subr.mxu0 0.0
      %8218 = vmatpush1.msra.mxu0 0.0
      %8219 = vmatprep.subr.mxu0 0.0
      %8220 = vmatpush1.msra.mxu0 0.0
      %8221 = vmatprep.subr.mxu0 0.0
      %8222 = vmatpush1.msra.mxu0 0.0
      %8223 = vmatprep.subr.mxu0 0.0
      %8224 = vmatpush1.msra.mxu0 0.0
      %8225 = vmatprep.subr.mxu0 0.0
      %8226 = vmatpush1.msra.mxu0 0.0
      %8227 = vmatprep.subr.mxu0 0.0
      %8228 = vmatpush1.msra.mxu0 0.0
      %8229 = vmatprep.mubr.f32.mxu0 0.0
      %8230 = vmatmul.mubr.f32.gmra.mrb[0].mxu0 %v8160
      %v8231 = vpop.f32.mrb[0].mxu0
      %v8232 = vadd.f32 %v8001, %v8231
      %v8233 = vpop.f32.mrb[0].mxu0
      %8234 = vmatprep.mubr.f32.mxu0 0.0
      %8235 = vmatmul.mubr.f32.gmra.mrb[0].mxu0 %v8163
      %v8236 = vpop.f32.mrb[0].mxu0
      %v8237 = vadd.f32 %v8006, %v8236
      %v8238 = vpop.f32.mrb[0].mxu0
      %8239 = vmatprep.mubr.f32.mxu0 0.0
      %8240 = vmatmul.mubr.f32.gmra.mrb[0].mxu0 %v7839
      %v8241 = vpop.f32.mrb[0].mxu0
      %v8242 = vadd.f32 %v8011, %v8241
      %v8243 = vpop.f32.mrb[0].mxu0
      %8244 = vmatprep.mubr.f32.mxu0 0.0
      %8245 = vmatmul.mubr.f32.gmra.mrb[0].mxu0 %v7842
      %v8246 = vpop.f32.mrb[0].mxu0
      %v8247 = vadd.f32 %v8016, %v8246
      %v8248 = vpop.f32.mrb[0].mxu0
      %8249 = vmatprep.mubr.f32.mxu0 0.0
      %8250 = vmatmul.mubr.f32.gmra.mrb[0].mxu0 %v7845
      %v8251 = vpop.f32.mrb[0].mxu0
      %v8252 = vadd.f32 %v8021, %v8251
      %v8253 = vpop.f32.mrb[0].mxu0
      %8254 = vmatprep.mubr.f32.mxu0 0.0
      %8255 = vmatmul.mubr.f32.gmra.mrb[0].mxu0 %v7848
      %v8256 = vpop.f32.mrb[0].mxu0
      %v8257 = vadd.f32 %v8026, %v8256
      %v8258 = vpop.f32.mrb[0].mxu0
      %8259 = vmatprep.mubr.f32.mxu0 0.0
      %8260 = vmatmul.mubr.f32.gmra.mrb[0].mxu0 %v7851
      %v8261 = vpop.f32.mrb[0].mxu0
      %v8262 = vadd.f32 %v8031, %v8261
      %v8263 = vpop.f32.mrb[0].mxu0
      %8264 = vmatprep.mubr.f32.mxu0 0.0
      %8265 = vmatmul.mubr.f32.gmra.mrb[0].mxu0 %v7854
      %v8266 = vpop.f32.mrb[0].mxu0
      %v8267 = vadd.f32 %v8036, %v8266
      %v8268 = vpop.f32.mrb[0].mxu0
      %8269 = vmatprep.mubr.f32.mxu0 0.0
      %8270 = vmatmul.mubr.f32.gmra.mrb[0].mxu0 %v7857
      %v8271 = vpop.f32.mrb[0].mxu0
      %v8272 = vadd.f32 %v8041, %v8271
      %v8273 = vpop.f32.mrb[0].mxu0
      %8274 = vmatprep.mubr.f32.mxu0 0.0
      %8275 = vmatmul.mubr.f32.gmra.mrb[0].mxu0 %v7860
      %v8276 = vpop.f32.mrb[0].mxu0
      %v8277 = vadd.f32 %v8046, %v8276
      %v8278 = vpop.f32.mrb[0].mxu0
      %8279 = vmatprep.mubr.f32.mxu0 0.0
      %8280 = vmatmul.mubr.f32.gmra.mrb[0].mxu0 %v7863
      %v8281 = vpop.f32.mrb[0].mxu0
      %v8282 = vadd.f32 %v8051, %v8281
      %v8283 = vpop.f32.mrb[0].mxu0
      %8284 = vmatprep.mubr.f32.mxu0 0.0
      %8285 = vmatmul.mubr.f32.gmra.mrb[0].mxu0 %v7866
      %v8286 = vpop.f32.mrb[0].mxu0
      %v8287 = vadd.f32 %v8056, %v8286
      %v8288 = vpop.f32.mrb[0].mxu0
      %8289 = vmatprep.mubr.f32.mxu0 0.0
      %8290 = vmatmul.mubr.f32.gmra.mrb[0].mxu0 %v7869
      %v8291 = vpop.f32.mrb[0].mxu0
      %v8292 = vadd.f32 %v8061, %v8291
      %v8293 = vpop.f32.mrb[0].mxu0
      %8294 = vmatprep.mubr.f32.mxu0 0.0
      %8295 = vmatmul.mubr.f32.gmra.mrb[0].mxu0 %v7872
      %v8296 = vpop.f32.mrb[0].mxu0
      %v8297 = vadd.f32 %v8066, %v8296
      %v8298 = vpop.f32.mrb[0].mxu0
      %8299 = vmatprep.mubr.f32.mxu0 0.0
      %8300 = vmatmul.mubr.f32.gmra.mrb[0].mxu0 %v7875
      %v8301 = vpop.f32.mrb[0].mxu0
      %v8302 = vadd.f32 %v8071, %v8301
      %v8303 = vpop.f32.mrb[0].mxu0
      %8304 = vmatprep.mubr.f32.mxu0 0.0
      %8305 = vmatmul.mubr.f32.gmra.mrb[0].mxu0 %v7878
      %v8306 = vpop.f32.mrb[0].mxu0
      %v8307 = vadd.f32 %v8076, %v8306
      %v8308 = vpop.f32.mrb[0].mxu0
      %8309 = vmatprep.mubr.f32.mxu0 0.0
      %8310 = vmatmul.mubr.f32.gmra.mrb[0].mxu0 %v7881
      %v8311 = vpop.f32.mrb[0].mxu0
      %v8312 = vadd.f32 %v8081, %v8311
      %v8313 = vpop.f32.mrb[0].mxu0
      %8314 = vmatprep.mubr.f32.mxu0 0.0
      %8315 = vmatmul.mubr.f32.gmra.mrb[0].mxu0 %v7884
      %v8316 = vpop.f32.mrb[0].mxu0
      %v8317 = vadd.f32 %v8086, %v8316
      %v8318 = vpop.f32.mrb[0].mxu0
      %8319 = vmatprep.mubr.f32.mxu0 0.0
      %8320 = vmatmul.mubr.f32.gmra.mrb[0].mxu0 %v7887
      %v8321 = vpop.f32.mrb[0].mxu0
      %v8322 = vadd.f32 %v8091, %v8321
      %v8323 = vpop.f32.mrb[0].mxu0
      %8324 = vmatprep.mubr.f32.mxu0 0.0
      %8325 = vmatmul.mubr.f32.gmra.mrb[0].mxu0 %v7890
      %v8326 = vpop.f32.mrb[0].mxu0
      %v8327 = vadd.f32 %v8096, %v8326
      %v8328 = vpop.f32.mrb[0].mxu0
      %8329 = vmatprep.mubr.f32.mxu0 0.0
      %8330 = vmatmul.mubr.f32.gmra.mrb[0].mxu0 %v7893
      %v8331 = vpop.f32.mrb[0].mxu0
      %v8332 = vadd.f32 %v8101, %v8331
      %v8333 = vpop.f32.mrb[0].mxu0
      %8334 = vmatprep.mubr.f32.mxu0 0.0
      %8335 = vmatmul.mubr.f32.gmra.mrb[0].mxu0 %v7896
      %v8336 = vpop.f32.mrb[0].mxu0
      %v8337 = vadd.f32 %v8106, %v8336
      %v8338 = vpop.f32.mrb[0].mxu0
      %8339 = vmatprep.mubr.f32.mxu0 0.0
      %8340 = vmatmul.mubr.f32.gmra.mrb[0].mxu0 %v7899
      %v8341 = vpop.f32.mrb[0].mxu0
      %v8342 = vadd.f32 %v8111, %v8341
      %v8343 = vpop.f32.mrb[0].mxu0
      %8344 = vmatprep.mubr.f32.mxu0 0.0
      %8345 = vmatmul.mubr.f32.gmra.mrb[0].mxu0 %v7902
      %v8346 = vpop.f32.mrb[0].mxu0
      %v8347 = vadd.f32 %v8116, %v8346
      %v8348 = vpop.f32.mrb[0].mxu0
      %8349 = vmatprep.mubr.f32.mxu0 0.0
      %8350 = vmatmul.mubr.f32.gmra.mrb[0].mxu0 %v7905
      %v8351 = vpop.f32.mrb[0].mxu0
      %v8352 = vadd.f32 %v8121, %v8351
      %v8353 = vpop.f32.mrb[0].mxu0
      %8354 = vmatprep.mubr.f32.mxu0 0.0
      %8355 = vmatmul.mubr.f32.gmra.mrb[0].mxu0 %v7908
      %v8356 = vpop.f32.mrb[0].mxu0
      %v8357 = vadd.f32 %v8126, %v8356
      %v8358 = vpop.f32.mrb[0].mxu0
      %8359 = vmatprep.mubr.f32.mxu0 0.0
      %8360 = vmatmul.mubr.f32.gmra.mrb[0].mxu0 %v7911
      %v8361 = vpop.f32.mrb[0].mxu0
      %v8362 = vadd.f32 %v8131, %v8361
      %v8363 = vpop.f32.mrb[0].mxu0
      %8364 = vmatprep.mubr.f32.mxu0 0.0
      %8365 = vmatmul.mubr.f32.gmra.mrb[0].mxu0 %v7914
      %v8366 = vpop.f32.mrb[0].mxu0
      %v8367 = vadd.f32 %v8136, %v8366
      %v8368 = vpop.f32.mrb[0].mxu0
      %8369 = vmatprep.mubr.f32.mxu0 0.0
      %8370 = vmatmul.mubr.f32.gmra.mrb[0].mxu0 %v7917
      %v8371 = vpop.f32.mrb[0].mxu0
      %v8372 = vadd.f32 %v8141, %v8371
      %v8373 = vpop.f32.mrb[0].mxu0
      %8374 = vmatprep.mubr.f32.mxu0 0.0
      %8375 = vmatmul.mubr.f32.gmra.mrb[0].mxu0 %v7920
      %v8376 = vpop.f32.mrb[0].mxu0
      %v8377 = vadd.f32 %v8146, %v8376
      %v8378 = vpop.f32.mrb[0].mxu0
      %8379 = vmatprep.mubr.f32.mxu0 0.0
      %8380 = vmatmul.mubr.f32.gmra.mrb[0].mxu0 %v7923
      %v8381 = vpop.f32.mrb[0].mxu0
      %v8382 = vadd.f32 %v8151, %v8381
      %v8383 = vpop.f32.mrb[0].mxu0
      %8384 = vmatprep.mubr.f32.mxu0 0.0
      %8385 = vmatmul.mubr.f32.gmra.mrb[0].mxu0 %v7926
      %v8386 = vpop.f32.mrb[0].mxu0
      %v8387 = vadd.f32 %v8156, %v8386
      %v8388 = vpop.f32.mrb[0].mxu0
      %8389 = vdwg.mxu0
      %v8390 = vld [vmem:[#allocation2 + $0x20] sm:$0xff]
      %v8391 = vld [vmem:[#allocation2 + $0x28] sm:$0xff]
      %v8392 = vld [vmem:[#allocation2 + $0x30] sm:$0xff]
      %v8393 = vld [vmem:[#allocation2 + $0x38] sm:$0xff]
      %v8394 = vld [vmem:[#allocation2 + $0x40] sm:$0xff]
      %v8395 = vld [vmem:[#allocation2 + $0x48] sm:$0xff]
      %v8396 = vld [vmem:[#allocation2 + $0x50] sm:$0xff]
      %v8397 = vld [vmem:[#allocation2 + $0x58] sm:$0xff]
      %v8398 = vld [vmem:[#allocation2 + $0x60] sm:$0xff]
      %v8399 = vld [vmem:[#allocation2 + $0x68] sm:$0xff]
      %v8400 = vld [vmem:[#allocation2 + $0x70] sm:$0xff]
      %v8401 = vld [vmem:[#allocation2 + $0x78] sm:$0xff]
      %v8402 = vld [vmem:[#allocation2 + $0x80] sm:$0xff]
      %v8403 = vld [vmem:[#allocation2 + $0x88] sm:$0xff]
      %v8404 = vld [vmem:[#allocation2 + $0x90] sm:$0xff]
      %v8405 = vld [vmem:[#allocation2 + $0x98] sm:$0xff]
      %v8406 = vld [vmem:[#allocation2 + $0xa0] sm:$0xff]
      %v8407 = vld [vmem:[#allocation2 + $0xa8] sm:$0xff]
      %v8408 = vld [vmem:[#allocation2 + $0xb0] sm:$0xff]
      %v8409 = vld [vmem:[#allocation2 + $0xb8] sm:$0xff]
      %v8410 = vld [vmem:[#allocation2 + $0xc0] sm:$0xff]
      %v8411 = vld [vmem:[#allocation2 + $0xc8] sm:$0xff]
      %v8412 = vld [vmem:[#allocation2 + $0xd0] sm:$0xff]
      %v8413 = vld [vmem:[#allocation2 + $0xd8] sm:$0xff]
      %v8414 = vld [vmem:[#allocation2 + $0xe0] sm:$0xff]
      %v8415 = vld [vmem:[#allocation2 + $0xe8] sm:$0xff]
      %v8416 = vld [vmem:[#allocation2 + $0xf0] sm:$0xff]
      %v8417 = vld [vmem:[#allocation2 + $0xf8] sm:$0xff]
      %v8418 = vld [vmem:[#allocation2 + $0x100] sm:$0xff]
      %v8419 = vld [vmem:[#allocation2 + $0x108] sm:$0xff]
      %v8420 = vld [vmem:[#allocation2 + $0x110] sm:$0xff]
      %v8421 = vld [vmem:[#allocation2 + $0x118] sm:$0xff]
      %s8422 = scalar_lea.vmem %s7, 48
      %v8423 = vld [vmem:[%s8422] sm:$0xff]
      %v8424 = vld [vmem:[%s8422 + $0x8] sm:$0xff]
      %v8425 = vld [vmem:[%s8422 + $0x10] sm:$0xff]
      %v8427 = vsel %vm3967, %v8390, 0
      %v8430 = vsel %vm3967, %v8391, 0
      %v8433 = vsel %vm3967, %v8392, 0
      %v8436 = vsel %vm3967, %v8393, 0
      %v8439 = vsel %vm3967, %v8394, 0
      %v8442 = vsel %vm3967, %v8395, 0
      %v8445 = vsel %vm3967, %v8396, 0
      %v8448 = vsel %vm3967, %v8397, 0
      %v8451 = vsel %vm3967, %v8398, 0
      %v8454 = vsel %vm3967, %v8399, 0
      %v8457 = vsel %vm3967, %v8400, 0
      %v8460 = vsel %vm3967, %v8401, 0
      %v8463 = vsel %vm3967, %v8402, 0
      %v8466 = vsel %vm3967, %v8403, 0
      %v8469 = vsel %vm3967, %v8404, 0
      %v8472 = vsel %vm3967, %v8405, 0
      %v8475 = vsel %vm3967, %v8406, 0
      %v8478 = vsel %vm3967, %v8407, 0
      %v8481 = vsel %vm3967, %v8408, 0
      %v8484 = vsel %vm3967, %v8409, 0
      %v8487 = vsel %vm3967, %v8410, 0
      %v8490 = vsel %vm3967, %v8411, 0
      %v8493 = vsel %vm3967, %v8412, 0
      %v8496 = vsel %vm3967, %v8413, 0
      %v8499 = vsel %vm3967, %v8414, 0
      %v8502 = vsel %vm3967, %v8415, 0
      %v8505 = vsel %vm3967, %v8416, 0
      %v8508 = vsel %vm3967, %v8417, 0
      %v8511 = vsel %vm3967, %v8418, 0
      %v8514 = vsel %vm3967, %v8419, 0
      %v8517 = vsel %vm3967, %v8420, 0
      %v8520 = vsel %vm3967, %v8421, 0
      %8522 = vmatprep.subr.mxu0 0.0
      %8523 = vmatpush1.msra.mxu0 %v8423
      %8524 = vmatprep.subr.mxu0 0.0
      %8525 = vmatpush1.msra.mxu0 %v8424
      %8526 = vmatprep.subr.mxu0 0.0
      %8527 = vmatpush1.msra.mxu0 %v8425
      %8528 = vmatprep.subr.mxu0 0.0
      %8529 = vmatpush1.msra.mxu0 0.0
      %8530 = vmatprep.subr.mxu0 0.0
      %8531 = vmatpush1.msra.mxu0 0.0
      %8532 = vmatprep.subr.mxu0 0.0
      %8533 = vmatpush1.msra.mxu0 0.0
      %8534 = vmatprep.subr.mxu0 0.0
      %8535 = vmatpush1.msra.mxu0 0.0
      %8536 = vmatprep.subr.mxu0 0.0
      %8537 = vmatpush1.msra.mxu0 0.0
      %8538 = vmatprep.subr.mxu0 0.0
      %8539 = vmatpush1.msra.mxu0 0.0
      %8540 = vmatprep.subr.mxu0 0.0
      %8541 = vmatpush1.msra.mxu0 0.0
      %8542 = vmatprep.subr.mxu0 0.0
      %8543 = vmatpush1.msra.mxu0 0.0
      %8544 = vmatprep.subr.mxu0 0.0
      %8545 = vmatpush1.msra.mxu0 0.0
      %8546 = vmatprep.subr.mxu0 0.0
      %8547 = vmatpush1.msra.mxu0 0.0
      %8548 = vmatprep.subr.mxu0 0.0
      %8549 = vmatpush1.msra.mxu0 0.0
      %8550 = vmatprep.subr.mxu0 0.0
      %8551 = vmatpush1.msra.mxu0 0.0
      %8552 = vmatprep.subr.mxu0 0.0
      %8553 = vmatpush1.msra.mxu0 0.0
      %8554 = vmatprep.subr.mxu0 0.0
      %8555 = vmatpush1.msra.mxu0 0.0
      %8556 = vmatprep.subr.mxu0 0.0
      %8557 = vmatpush1.msra.mxu0 0.0
      %8558 = vmatprep.subr.mxu0 0.0
      %8559 = vmatpush1.msra.mxu0 0.0
      %8560 = vmatprep.subr.mxu0 0.0
      %8561 = vmatpush1.msra.mxu0 0.0
      %8562 = vmatprep.subr.mxu0 0.0
      %8563 = vmatpush1.msra.mxu0 0.0
      %8564 = vmatprep.subr.mxu0 0.0
      %8565 = vmatpush1.msra.mxu0 0.0
      %8566 = vmatprep.subr.mxu0 0.0
      %8567 = vmatpush1.msra.mxu0 0.0
      %8568 = vmatprep.subr.mxu0 0.0
      %8569 = vmatpush1.msra.mxu0 0.0
      %8570 = vmatprep.subr.mxu0 0.0
      %8571 = vmatpush1.msra.mxu0 0.0
      %8572 = vmatprep.subr.mxu0 0.0
      %8573 = vmatpush1.msra.mxu0 0.0
      %8574 = vmatprep.subr.mxu0 0.0
      %8575 = vmatpush1.msra.mxu0 0.0
      %8576 = vmatprep.subr.mxu0 0.0
      %8577 = vmatpush1.msra.mxu0 0.0
      %8578 = vmatprep.subr.mxu0 0.0
      %8579 = vmatpush1.msra.mxu0 0.0
      %8580 = vmatprep.subr.mxu0 0.0
      %8581 = vmatpush1.msra.mxu0 0.0
      %8582 = vmatprep.subr.mxu0 0.0
      %8583 = vmatpush1.msra.mxu0 0.0
      %8584 = vmatprep.subr.mxu0 0.0
      %8585 = vmatpush1.msra.mxu0 0.0
      %8586 = vmatprep.mubr.f32.mxu0 0.0
      %8587 = vmatmul.mubr.f32.gmra.mrb[0].mxu0 %v8427
      %v8588 = vpop.f32.mrb[0].mxu0
      %v8589 = vadd.f32 0.0, %v8588
      %v8590 = vpop.f32.mrb[0].mxu0
      %8591 = vmatprep.mubr.f32.mxu0 0.0
      %8592 = vmatmul.mubr.f32.gmra.mrb[0].mxu0 %v8430
      %v8593 = vpop.f32.mrb[0].mxu0
      %v8594 = vadd.f32 0.0, %v8593
      %v8595 = vpop.f32.mrb[0].mxu0
      %8596 = vmatprep.mubr.f32.mxu0 0.0
      %8597 = vmatmul.mubr.f32.gmra.mrb[0].mxu0 %v8433
      %v8598 = vpop.f32.mrb[0].mxu0
      %v8599 = vadd.f32 0.0, %v8598
      %v8600 = vpop.f32.mrb[0].mxu0
      %8601 = vmatprep.mubr.f32.mxu0 0.0
      %8602 = vmatmul.mubr.f32.gmra.mrb[0].mxu0 %v8436
      %v8603 = vpop.f32.mrb[0].mxu0
      %v8604 = vadd.f32 0.0, %v8603
      %v8605 = vpop.f32.mrb[0].mxu0
      %8606 = vmatprep.mubr.f32.mxu0 0.0
      %8607 = vmatmul.mubr.f32.gmra.mrb[0].mxu0 %v8439
      %v8608 = vpop.f32.mrb[0].mxu0
      %v8609 = vadd.f32 0.0, %v8608
      %v8610 = vpop.f32.mrb[0].mxu0
      %8611 = vmatprep.mubr.f32.mxu0 0.0
      %8612 = vmatmul.mubr.f32.gmra.mrb[0].mxu0 %v8442
      %v8613 = vpop.f32.mrb[0].mxu0
      %v8614 = vadd.f32 0.0, %v8613
      %v8615 = vpop.f32.mrb[0].mxu0
      %8616 = vmatprep.mubr.f32.mxu0 0.0
      %8617 = vmatmul.mubr.f32.gmra.mrb[0].mxu0 %v8445
      %v8618 = vpop.f32.mrb[0].mxu0
      %v8619 = vadd.f32 0.0, %v8618
      %v8620 = vpop.f32.mrb[0].mxu0
      %8621 = vmatprep.mubr.f32.mxu0 0.0
      %8622 = vmatmul.mubr.f32.gmra.mrb[0].mxu0 %v8448
      %v8623 = vpop.f32.mrb[0].mxu0
      %v8624 = vadd.f32 0.0, %v8623
      %v8625 = vpop.f32.mrb[0].mxu0
      %8626 = vmatprep.mubr.f32.mxu0 0.0
      %8627 = vmatmul.mubr.f32.gmra.mrb[0].mxu0 %v8451
      %v8628 = vpop.f32.mrb[0].mxu0
      %v8629 = vadd.f32 0.0, %v8628
      %v8630 = vpop.f32.mrb[0].mxu0
      %8631 = vmatprep.mubr.f32.mxu0 0.0
      %8632 = vmatmul.mubr.f32.gmra.mrb[0].mxu0 %v8454
      %v8633 = vpop.f32.mrb[0].mxu0
      %v8634 = vadd.f32 0.0, %v8633
      %v8635 = vpop.f32.mrb[0].mxu0
      %8636 = vmatprep.mubr.f32.mxu0 0.0
      %8637 = vmatmul.mubr.f32.gmra.mrb[0].mxu0 %v8457
      %v8638 = vpop.f32.mrb[0].mxu0
      %v8639 = vadd.f32 0.0, %v8638
      %v8640 = vpop.f32.mrb[0].mxu0
      %8641 = vmatprep.mubr.f32.mxu0 0.0
      %8642 = vmatmul.mubr.f32.gmra.mrb[0].mxu0 %v8460
      %v8643 = vpop.f32.mrb[0].mxu0
      %v8644 = vadd.f32 0.0, %v8643
      %v8645 = vpop.f32.mrb[0].mxu0
      %8646 = vmatprep.mubr.f32.mxu0 0.0
      %8647 = vmatmul.mubr.f32.gmra.mrb[0].mxu0 %v8463
      %v8648 = vpop.f32.mrb[0].mxu0
      %v8649 = vadd.f32 0.0, %v8648
      %v8650 = vpop.f32.mrb[0].mxu0
      %8651 = vmatprep.mubr.f32.mxu0 0.0
      %8652 = vmatmul.mubr.f32.gmra.mrb[0].mxu0 %v8466
      %v8653 = vpop.f32.mrb[0].mxu0
      %v8654 = vadd.f32 0.0, %v8653
      %v8655 = vpop.f32.mrb[0].mxu0
      %8656 = vmatprep.mubr.f32.mxu0 0.0
      %8657 = vmatmul.mubr.f32.gmra.mrb[0].mxu0 %v8469
      %v8658 = vpop.f32.mrb[0].mxu0
      %v8659 = vadd.f32 0.0, %v8658
      %v8660 = vpop.f32.mrb[0].mxu0
      %8661 = vmatprep.mubr.f32.mxu0 0.0
      %8662 = vmatmul.mubr.f32.gmra.mrb[0].mxu0 %v8472
      %v8663 = vpop.f32.mrb[0].mxu0
      %v8664 = vadd.f32 0.0, %v8663
      %v8665 = vpop.f32.mrb[0].mxu0
      %8666 = vmatprep.mubr.f32.mxu0 0.0
      %8667 = vmatmul.mubr.f32.gmra.mrb[0].mxu0 %v8475
      %v8668 = vpop.f32.mrb[0].mxu0
      %v8669 = vadd.f32 0.0, %v8668
      %v8670 = vpop.f32.mrb[0].mxu0
      %8671 = vmatprep.mubr.f32.mxu0 0.0
      %8672 = vmatmul.mubr.f32.gmra.mrb[0].mxu0 %v8478
      %v8673 = vpop.f32.mrb[0].mxu0
      %v8674 = vadd.f32 0.0, %v8673
      %v8675 = vpop.f32.mrb[0].mxu0
      %8676 = vmatprep.mubr.f32.mxu0 0.0
      %8677 = vmatmul.mubr.f32.gmra.mrb[0].mxu0 %v8481
      %v8678 = vpop.f32.mrb[0].mxu0
      %v8679 = vadd.f32 0.0, %v8678
      %v8680 = vpop.f32.mrb[0].mxu0
      %8681 = vmatprep.mubr.f32.mxu0 0.0
      %8682 = vmatmul.mubr.f32.gmra.mrb[0].mxu0 %v8484
      %v8683 = vpop.f32.mrb[0].mxu0
      %v8684 = vadd.f32 0.0, %v8683
      %v8685 = vpop.f32.mrb[0].mxu0
      %8686 = vmatprep.mubr.f32.mxu0 0.0
      %8687 = vmatmul.mubr.f32.gmra.mrb[0].mxu0 %v8487
      %v8688 = vpop.f32.mrb[0].mxu0
      %v8689 = vadd.f32 0.0, %v8688
      %v8690 = vpop.f32.mrb[0].mxu0
      %8691 = vmatprep.mubr.f32.mxu0 0.0
      %8692 = vmatmul.mubr.f32.gmra.mrb[0].mxu0 %v8490
      %v8693 = vpop.f32.mrb[0].mxu0
      %v8694 = vadd.f32 0.0, %v8693
      %v8695 = vpop.f32.mrb[0].mxu0
      %8696 = vmatprep.mubr.f32.mxu0 0.0
      %8697 = vmatmul.mubr.f32.gmra.mrb[0].mxu0 %v8493
      %v8698 = vpop.f32.mrb[0].mxu0
      %v8699 = vadd.f32 0.0, %v8698
      %v8700 = vpop.f32.mrb[0].mxu0
      %8701 = vmatprep.mubr.f32.mxu0 0.0
      %8702 = vmatmul.mubr.f32.gmra.mrb[0].mxu0 %v8496
      %v8703 = vpop.f32.mrb[0].mxu0
      %v8704 = vadd.f32 0.0, %v8703
      %v8705 = vpop.f32.mrb[0].mxu0
      %8706 = vmatprep.mubr.f32.mxu0 0.0
      %8707 = vmatmul.mubr.f32.gmra.mrb[0].mxu0 %v8499
      %v8708 = vpop.f32.mrb[0].mxu0
      %v8709 = vadd.f32 0.0, %v8708
      %v8710 = vpop.f32.mrb[0].mxu0
      %8711 = vmatprep.mubr.f32.mxu0 0.0
      %8712 = vmatmul.mubr.f32.gmra.mrb[0].mxu0 %v8502
      %v8713 = vpop.f32.mrb[0].mxu0
      %v8714 = vadd.f32 0.0, %v8713
      %v8715 = vpop.f32.mrb[0].mxu0
      %8716 = vmatprep.mubr.f32.mxu0 0.0
      %8717 = vmatmul.mubr.f32.gmra.mrb[0].mxu0 %v8505
      %v8718 = vpop.f32.mrb[0].mxu0
      %v8719 = vadd.f32 0.0, %v8718
      %v8720 = vpop.f32.mrb[0].mxu0
      %8721 = vmatprep.mubr.f32.mxu0 0.0
      %8722 = vmatmul.mubr.f32.gmra.mrb[0].mxu0 %v8508
      %v8723 = vpop.f32.mrb[0].mxu0
      %v8724 = vadd.f32 0.0, %v8723
      %v8725 = vpop.f32.mrb[0].mxu0
      %8726 = vmatprep.mubr.f32.mxu0 0.0
      %8727 = vmatmul.mubr.f32.gmra.mrb[0].mxu0 %v8511
      %v8728 = vpop.f32.mrb[0].mxu0
      %v8729 = vadd.f32 0.0, %v8728
      %v8730 = vpop.f32.mrb[0].mxu0
      %8731 = vmatprep.mubr.f32.mxu0 0.0
      %8732 = vmatmul.mubr.f32.gmra.mrb[0].mxu0 %v8514
      %v8733 = vpop.f32.mrb[0].mxu0
      %v8734 = vadd.f32 0.0, %v8733
      %v8735 = vpop.f32.mrb[0].mxu0
      %8736 = vmatprep.mubr.f32.mxu0 0.0
      %8737 = vmatmul.mubr.f32.gmra.mrb[0].mxu0 %v8517
      %v8738 = vpop.f32.mrb[0].mxu0
      %v8739 = vadd.f32 0.0, %v8738
      %v8740 = vpop.f32.mrb[0].mxu0
      %8741 = vmatprep.mubr.f32.mxu0 0.0
      %8742 = vmatmul.mubr.f32.gmra.mrb[0].mxu0 %v8520
      %v8743 = vpop.f32.mrb[0].mxu0
      %v8744 = vadd.f32 0.0, %v8743
      %v8745 = vpop.f32.mrb[0].mxu0
      %8746 = vdwg.mxu0
      %v8747 = vadd.f32 %v8232, %v8589
      %v8748 = vadd.f32 %v8237, %v8594
      %v8749 = vadd.f32 %v8242, %v8599
      %v8750 = vadd.f32 %v8247, %v8604
      %v8751 = vadd.f32 %v8252, %v8609
      %v8752 = vadd.f32 %v8257, %v8614
      %v8753 = vadd.f32 %v8262, %v8619
      %v8754 = vadd.f32 %v8267, %v8624
      %v8755 = vadd.f32 %v8272, %v8629
      %v8756 = vadd.f32 %v8277, %v8634
      %v8757 = vadd.f32 %v8282, %v8639
      %v8758 = vadd.f32 %v8287, %v8644
      %v8759 = vadd.f32 %v8292, %v8649
      %v8760 = vadd.f32 %v8297, %v8654
      %v8761 = vadd.f32 %v8302, %v8659
      %v8762 = vadd.f32 %v8307, %v8664
      %v8763 = vadd.f32 %v8312, %v8669
      %v8764 = vadd.f32 %v8317, %v8674
      %v8765 = vadd.f32 %v8322, %v8679
      %v8766 = vadd.f32 %v8327, %v8684
      %v8767 = vadd.f32 %v8332, %v8689
      %v8768 = vadd.f32 %v8337, %v8694
      %v8769 = vadd.f32 %v8342, %v8699
      %v8770 = vadd.f32 %v8347, %v8704
      %v8771 = vadd.f32 %v8352, %v8709
      %v8772 = vadd.f32 %v8357, %v8714
      %v8773 = vadd.f32 %v8362, %v8719
      %v8774 = vadd.f32 %v8367, %v8724
      %v8775 = vadd.f32 %v8372, %v8729
      %v8776 = vadd.f32 %v8377, %v8734
      %v8777 = vadd.f32 %v8382, %v8739
      %v8778 = vadd.f32 %v8387, %v8744
      %v8779 = vld [vmem:[%s8] sm:$0x1]
      %v8781 = vlaneseq
      %v8782 = vshrl.u32 %v8781, 7
      %v8783 = vsub.s32 0, %v8782
      %v8784 = vrot.slane %v8779, %v8783
      %v8786 = vadd.f32 %v8747, %v8784
      %v8787 = vadd.f32 %v8748, %v8784
      %v8788 = vadd.f32 %v8749, %v8784
      %v8789 = vadd.f32 %v8750, %v8784
      %v8790 = vadd.f32 %v8751, %v8784
      %v8791 = vadd.f32 %v8752, %v8784
      %v8792 = vadd.f32 %v8753, %v8784
      %v8793 = vadd.f32 %v8754, %v8784
      %v8794 = vadd.f32 %v8755, %v8784
      %v8795 = vadd.f32 %v8756, %v8784
      %v8796 = vadd.f32 %v8757, %v8784
      %v8797 = vadd.f32 %v8758, %v8784
      %v8798 = vadd.f32 %v8759, %v8784
      %v8799 = vadd.f32 %v8760, %v8784
      %v8800 = vadd.f32 %v8761, %v8784
      %v8801 = vadd.f32 %v8762, %v8784
      %v8802 = vadd.f32 %v8763, %v8784
      %v8803 = vadd.f32 %v8764, %v8784
      %v8804 = vadd.f32 %v8765, %v8784
      %v8805 = vadd.f32 %v8766, %v8784
      %v8806 = vadd.f32 %v8767, %v8784
      %v8807 = vadd.f32 %v8768, %v8784
      %v8808 = vadd.f32 %v8769, %v8784
      %v8809 = vadd.f32 %v8770, %v8784
      %v8810 = vadd.f32 %v8771, %v8784
      %v8811 = vadd.f32 %v8772, %v8784
      %v8812 = vadd.f32 %v8773, %v8784
      %v8813 = vadd.f32 %v8774, %v8784
      %v8814 = vadd.f32 %v8775, %v8784
      %v8815 = vadd.f32 %v8776, %v8784
      %v8816 = vadd.f32 %v8777, %v8784
      %v8817 = vadd.f32 %v8778, %v8784
      %v8818 = vtanh.pop %v8786
      %v8819 = vtanh.pop %v8787
      %v8820 = vtanh.pop %v8788
      %v8821 = vtanh.pop %v8789
      %v8822 = vtanh.pop %v8790
      %v8823 = vtanh.pop %v8791
      %v8824 = vtanh.pop %v8792
      %v8825 = vtanh.pop %v8793
      %v8826 = vtanh.pop %v8794
      %v8827 = vtanh.pop %v8795
      %v8828 = vtanh.pop %v8796
      %v8829 = vtanh.pop %v8797
      %v8830 = vtanh.pop %v8798
      %v8831 = vtanh.pop %v8799
      %v8832 = vtanh.pop %v8800
      %v8833 = vtanh.pop %v8801
      %v8834 = vtanh.pop %v8802
      %v8835 = vtanh.pop %v8803
      %v8836 = vtanh.pop %v8804
      %v8837 = vtanh.pop %v8805
      %v8838 = vtanh.pop %v8806
      %v8839 = vtanh.pop %v8807
      %v8840 = vtanh.pop %v8808
      %v8841 = vtanh.pop %v8809
      %v8842 = vtanh.pop %v8810
      %v8843 = vtanh.pop %v8811
      %v8844 = vtanh.pop %v8812
      %v8845 = vtanh.pop %v8813
      %v8846 = vtanh.pop %v8814
      %v8847 = vtanh.pop %v8815
      %v8848 = vtanh.pop %v8816
      %v8849 = vtanh.pop %v8817
      %8850 = vxpose.xlu0.b32.start [1/16] %v8818, 128
      %8851 = vxpose.xlu0.b32.cont [2/16] %v8819, 128
      %8852 = vxpose.xlu0.b32.cont [3/16] %v8820, 128
      %8853 = vxpose.xlu0.b32.cont [4/16] %v8821, 128
      %8854 = vxpose.xlu0.b32.cont [5/16] %v8822, 128
      %8855 = vxpose.xlu0.b32.cont [6/16] %v8823, 128
      %8856 = vxpose.xlu0.b32.cont [7/16] %v8824, 128
      %8857 = vxpose.xlu0.b32.cont [8/16] %v8825, 128
      %8858 = vxpose.xlu0.b32.cont [9/16] %v8826, 128
      %8859 = vxpose.xlu0.b32.cont [10/16] %v8827, 128
      %8860 = vxpose.xlu0.b32.cont [11/16] %v8828, 128
      %8861 = vxpose.xlu0.b32.cont [12/16] %v8829, 128
      %8862 = vxpose.xlu0.b32.cont [13/16] %v8830, 128
      %8863 = vxpose.xlu0.b32.cont [14/16] %v8831, 128
      %8864 = vxpose.xlu0.b32.cont [15/16] %v8832, 128
      %8865 = vxpose.xlu0.b32.end [16/16] %v8833, 128
      %v8866 = vpop.trf.xlu0
      %v8867 = vpop.trf.xlu0
      %v8868 = vpop.trf.xlu0
      %v8869 = vpop.trf.xlu0
      %v8870 = vpop.trf.xlu0
      %v8871 = vpop.trf.xlu0
      %v8872 = vpop.trf.xlu0
      %v8873 = vpop.trf.xlu0
      %v8874 = vpop.trf.xlu0
      %v8875 = vpop.trf.xlu0
      %v8876 = vpop.trf.xlu0
      %v8877 = vpop.trf.xlu0
      %v8878 = vpop.trf.xlu0
      %v8879 = vpop.trf.xlu0
      %v8880 = vpop.trf.xlu0
      %v8881 = vpop.trf.xlu0
      %8882 = vxpose.xlu0.b32.start [1/16] %v8834, 128
      %8883 = vxpose.xlu0.b32.cont [2/16] %v8835, 128
      %8884 = vxpose.xlu0.b32.cont [3/16] %v8836, 128
      %8885 = vxpose.xlu0.b32.cont [4/16] %v8837, 128
      %8886 = vxpose.xlu0.b32.cont [5/16] %v8838, 128
      %8887 = vxpose.xlu0.b32.cont [6/16] %v8839, 128
      %8888 = vxpose.xlu0.b32.cont [7/16] %v8840, 128
      %8889 = vxpose.xlu0.b32.cont [8/16] %v8841, 128
      %8890 = vxpose.xlu0.b32.cont [9/16] %v8842, 128
      %8891 = vxpose.xlu0.b32.cont [10/16] %v8843, 128
      %8892 = vxpose.xlu0.b32.cont [11/16] %v8844, 128
      %8893 = vxpose.xlu0.b32.cont [12/16] %v8845, 128
      %8894 = vxpose.xlu0.b32.cont [13/16] %v8846, 128
      %8895 = vxpose.xlu0.b32.cont [14/16] %v8847, 128
      %8896 = vxpose.xlu0.b32.cont [15/16] %v8848, 128
      %8897 = vxpose.xlu0.b32.end [16/16] %v8849, 128
      %v8898 = vpop.trf.xlu0
      %v8899 = vpop.trf.xlu0
      %v8900 = vpop.trf.xlu0
      %v8901 = vpop.trf.xlu0
      %v8902 = vpop.trf.xlu0
      %v8903 = vpop.trf.xlu0
      %v8904 = vpop.trf.xlu0
      %v8905 = vpop.trf.xlu0
      %v8906 = vpop.trf.xlu0
      %v8907 = vpop.trf.xlu0
      %v8908 = vpop.trf.xlu0
      %v8909 = vpop.trf.xlu0
      %v8910 = vpop.trf.xlu0
      %v8911 = vpop.trf.xlu0
      %v8912 = vpop.trf.xlu0
      %v8913 = vpop.trf.xlu0
      %v8916 = vcombine.low %v8866, %v8898
      %8918 = vst [vmem:[%s332] sm:$0x77] %v8916
      %p8919 = scmp.lt.s32.totalorder %s20, 1
      %s8920 = scalar_select %p8919, %s20, 1
      %s8921 = smul.addr %s8920, 2
      %s8922 = smul.addr %s8921, 4
      %s8923 = scalar_lea.vmem %s9, %s8922
      // Predicated region
      $region57: #{_ode_forward.1} parent=55 // pred_check
        %p8924 = pneg %p232
      $region58: #{_ode_forward.1} parent=55 // pred_check_branch
        %8926 = sbr.rel (%p8924) target = $region60
      $region59: #{_ode_forward.1} parent=55 // pred_region
        _
      $region60: #{_ode_forward.1} parent=55 // pred_fallthru
        _
    $region56: #{_ode_forward.1} parent=5 // pred_fallthru
      _
    %p8927 = scmp.le.s32.totalorder 2, %s15
    // Predicated region
    $region61: #{_ode_forward.1} parent=5 // pred_check
      %p8928 = pneg %p8927
    $region62: #{_ode_forward.1} parent=5 // pred_check_branch
      %8930 = sbr.rel (%p8928) target = $region64
    $region63: #{_ode_forward.1} parent=5 // pred_region
      %s8931 = ssub.s32 %s15, 2
      // Predicated region
      $region65: #{_ode_forward.1} parent=63 // pred_check
        %p8932 = pneg %p238
      $region66: #{_ode_forward.1} parent=63 // pred_check_branch
        %8934 = sbr.rel (%p8932) target = $region68
      $region67: #{_ode_forward.1} parent=63 // pred_region
        %p8935 = scmp.lt.s32.totalorder %s21, 1
        %s8936 = scalar_select %p8935, %s21, 1
        %s8937 = smul.addr %s8936, 2
        %s8938 = smul.addr %s8937, 4
        %s8939 = scalar_lea.vmem %s9, %s8938
      $region68: #{_ode_forward.1} parent=63 // pred_fallthru
        _
    $region64: #{_ode_forward.1} parent=5 // pred_fallthru
      _
  $region6: #{_ode_forward.1} parent=0 // loop_footer
    %s19 = sadd.s32 1, %s15
  $region7: #{_ode_forward.1} parent=0 // loop_footer_branch
    %14 = sbr.rel target = $region3
  $region8: #{_ode_forward.1} parent=0 // loop_exit
    _

</llo_original>
